<compile_context>
chip_gen: v6e
topology: v6e:2x2x1
jax: 0.10.0
libtpu: 0.0.40
codegen_flags: <defaults>
</compile_context>

<pallas_src>
import jax
import jax.numpy as jnp
from jax.experimental import pallas as pl
from jax.experimental.pallas import tpu as pltpu


def _round_up(x, m):
    return (x + m - 1) // m * m


_VMEM_LIMIT = 48 * 1024 * 1024  # fits v7x's 64 MiB physical VMEM with headroom


# ----------------------------------------------------------------------------
# Pallas kernels
# ----------------------------------------------------------------------------
def _gemm_stats_kernel(a_ref, b_ref, o_ref, sum_ref, sq_ref):
    """Single-K-tile GEMM with fused per-(phase, channel) sum / sum-of-squares.

    grid = (Nt, P, Mt) with M innermost.  The stats blocks map to (p, 0, j), so
    they are revisited only across the M axis (marked "arbitrary") and stay
    resident in VMEM as accumulators; the N and phase axes remain safely
    "parallel" (megacore-friendly on v7x).
    """
    @pl.when(pl.program_id(2) == 0)
    def _():
        sum_ref[...] = jnp.zeros_like(sum_ref)
        sq_ref[...] = jnp.zeros_like(sq_ref)

    y = jnp.dot(a_ref[0], b_ref[0], preferred_element_type=jnp.float32)
    o_ref[0] = y.astype(o_ref.dtype)          # bf16 store: halves HBM writeback
    sum_ref[0] += jnp.sum(y, axis=0, keepdims=True)
    sq_ref[0] += jnp.sum(y * y, axis=0, keepdims=True)


def _gemm_tanh_kernel(a_ref, b_ref, o_ref):
    """Single-K-tile GEMM with Tanh fused into the epilogue (final layer)."""
    y = jnp.dot(a_ref[0], b_ref[0], preferred_element_type=jnp.float32)
    o_ref[0] = jnp.tanh(y).astype(o_ref.dtype)


def _bn_relu_kernel(x_ref, scale_ref, shift_ref, o_ref):
    """y = max(x * scale + shift, 0); scale/shift precomputed per channel.

    x block is (P, tm, Np) bf16 (all phases folded into one block); math in f32.
    """
    y = x_ref[...].astype(jnp.float32) * scale_ref[...] + shift_ref[...]
    o_ref[...] = jnp.maximum(y, 0.0).astype(o_ref.dtype)


# ----------------------------------------------------------------------------
# Pallas wrappers
# ----------------------------------------------------------------------------
def _phase_gemm(a, b, *, with_stats):
    """Batched-over-phase GEMM: (P, M, K) @ (P, K, N) -> (P, Mp, Np) bf16.

    a, b are bf16 with K already a multiple of 128 (single K tile).  If
    with_stats, also returns per-phase partial sum / sum-of-squares of the f32
    output, each of shape (P, 1, Np).  Otherwise applies tanh in the epilogue.
    """
    P, M, K = a.shape
    N = b.shape[2]
    assert K % 128 == 0, K
    tm = min(1024, _round_up(M, 16))
    Mp = _round_up(M, tm)
    Np = _round_up(N, 128)
    # Keep the whole (K, Np) weight slab resident per phase when small enough:
    # the N grid axis then has extent 1, so the `a` patch matrix is streamed
    # from HBM exactly once, and the MXU gets a wide N dimension.
    if Np <= 512:
        tn = Np
    elif Np % 256 == 0:
        tn = 256
    else:
        tn = 128
    if Mp != M:
        a = jnp.pad(a, ((0, 0), (0, Mp - M), (0, 0)))
    if Np != N:
        b = jnp.pad(b, ((0, 0), (0, 0), (0, Np - N)))

    grid = (Np // tn, P, Mp // tm)
    in_specs = [pl.BlockSpec((1, tm, K), lambda j, p, i: (p, i, 0)),
                pl.BlockSpec((1, K, tn), lambda j, p, i: (p, 0, j))]
    rows_spec = pl.BlockSpec((1, tm, tn), lambda j, p, i: (p, i, j))
    rows_shape = jax.ShapeDtypeStruct((P, Mp, Np), jnp.bfloat16)
    gemm_bytes = 2 * (a.size + b.size + P * Mp * Np)   # bf16 operands + output
    flops = 2 * P * Mp * K * Np

    if with_stats:
        stat_spec = pl.BlockSpec((1, 1, tn), lambda j, p, i: (p, 0, j))
        stat_shape = jax.ShapeDtypeStruct((P, 1, Np), jnp.float32)
        return pl.pallas_call(
            _gemm_stats_kernel,
            out_shape=(rows_shape, stat_shape, stat_shape),
            grid_spec=pltpu.PrefetchScalarGridSpec(
                num_scalar_prefetch=0, grid=grid,
                in_specs=in_specs,
                out_specs=(rows_spec, stat_spec, stat_spec)),
            compiler_params=pltpu.CompilerParams(
                dimension_semantics=("parallel", "parallel", "arbitrary"),
                vmem_limit_bytes=_VMEM_LIMIT),
            cost_estimate=pl.CostEstimate(
                flops=flops, transcendentals=0,
                bytes_accessed=gemm_bytes + 2 * 4 * P * Np),
        )(a, b)

    return pl.pallas_call(
        _gemm_tanh_kernel,
        out_shape=rows_shape,
        grid_spec=pltpu.PrefetchScalarGridSpec(
            num_scalar_prefetch=0, grid=grid,
            in_specs=in_specs, out_specs=rows_spec),
        compiler_params=pltpu.CompilerParams(
            dimension_semantics=("parallel", "parallel", "parallel"),
            vmem_limit_bytes=_VMEM_LIMIT),
        cost_estimate=pl.CostEstimate(
            flops=flops, transcendentals=P * Mp * Np,
            bytes_accessed=gemm_bytes),
    )(a, b)


def _bn_relu(rows, s_part, sq_part, count, gamma, beta):
    """Training-mode BatchNorm + ReLU over GEMM rows using the fused stats.

    s_part / sq_part are per-phase partials (P, 1, Np); count is the true
    (unpadded) number of elements per channel.  Zero-padded rows contributed 0
    to both sums, so dividing by count gives exact batch stats (biased
    variance, matching PyTorch BatchNorm normalization in train()).  Output is
    bf16 so it directly feeds the next layer's bf16 MXU operands.
    """
    P, Mp, Np = rows.shape
    C = gamma.shape[0]
    s = jnp.sum(s_part, axis=0)              # (1, Np)
    sq = jnp.sum(sq_part, axis=0)
    mean = s / count
    var = jnp.maximum(sq / count - mean * mean, 0.0)
    gp = jnp.pad(gamma, (0, Np - C)).reshape(1, Np)
    bp = jnp.pad(beta, (0, Np - C)).reshape(1, Np)
    scale = gp * jax.lax.rsqrt(var + 1e-5)
    shift = bp - mean * scale
    scale = scale.reshape(1, 1, Np)
    shift = shift.reshape(1, 1, Np)

    tm = 512 if Mp % 512 == 0 else Mp        # always divides Mp by construction
    # TODO(synk): write directly into the interleaved (B, 2H, 2W, C) layout to
    # remove the separate _interleave_phases HBM pass between layers.
    return pl.pallas_call(
        _bn_relu_kernel,
        out_shape=jax.ShapeDtypeStruct((P, Mp, Np), jnp.bfloat16),
        grid_spec=pltpu.PrefetchScalarGridSpec(
            num_scalar_prefetch=0, grid=(Mp // tm,),
            in_specs=[pl.BlockSpec((P, tm, Np), lambda i: (0, i, 0)),
                      pl.BlockSpec((1, 1, Np), lambda i: (0, 0, 0)),
                      pl.BlockSpec((1, 1, Np), lambda i: (0, 0, 0))],
            out_specs=pl.BlockSpec((P, tm, Np), lambda i: (0, i, 0))),
        compiler_params=pltpu.CompilerParams(
            dimension_semantics=("parallel",),
            vmem_limit_bytes=_VMEM_LIMIT),
    )(rows, scale, shift)


# ----------------------------------------------------------------------------
# ConvTranspose2d -> GEMM operand construction (plain-JAX glue, NHWC)
# ----------------------------------------------------------------------------
# Polyphase taps for k=4, stride=2, padding=1 (derived from the transposed-conv
# index relation oh = 2*ih - 1 + kh, with xp = x padded by 1):
#   even output index: out[2m]   = xp[m]*w[3]   + xp[m+1]*w[1]
#   odd  output index: out[2m+1] = xp[m+1]*w[2] + xp[m+2]*w[0]
_TAPS = {0: ((0, 3), (1, 1)),
         1: ((1, 2), (2, 0))}


def _convt_s2_polyphase(x, w):
    """ConvTranspose2d(k=4, s=2, p=1) as 4 polyphase GEMM operand stacks.

    x: (B, H, W, Cin) NHWC bf16.  w: (Cin, Cout, 4, 4) PyTorch layout, f32.
    Returns a (4, B*H*W, 4*Cin_p) bf16, b (4, 4*Cin_p, Cout) bf16.
    Phase (ph, pw) (index 2*ph+pw) produces out[:, 2m+ph, 2n+pw, :].
    """
    # TODO(synk): read the four shifted NHWC windows inside the GEMM kernel
    # (manual DMA / element-offset index_map) instead of materializing this
    # 4x-per-phase patch stack through XLA; cuts GEMM input HBM traffic ~4x.
    B, H, W, Cin = x.shape
    Cout = w.shape[1]
    cin_p = _round_up(4 * Cin, 128) // 4              # lane-align K = 4*Cin
    if cin_p != Cin:
        x = jnp.pad(x, ((0, 0), (0, 0), (0, 0), (0, cin_p - Cin)))
        w = jnp.pad(w, ((0, cin_p - Cin), (0, 0), (0, 0), (0, 0)))
    xp = jnp.pad(x, ((0, 0), (1, 1), (1, 1), (0, 0)))

    patches, wmats = [], []
    for ph in (0, 1):
        for pw in (0, 1):
            th, tw = _TAPS[ph], _TAPS[pw]
            cols = [xp[:, oh:oh + H, ow:ow + W, :]
                    for (oh, _) in th for (ow, _) in tw]
            patches.append(
                jnp.stack(cols, axis=3).reshape(B * H * W, 4 * cin_p))
            wsel = jnp.stack(
                [jnp.stack([w[:, :, kh, kw] for (_, kw) in tw], axis=0)
                 for (_, kh) in th], axis=0)          # (2, 2, Cin_p, Cout)
            wmats.append(wsel.reshape(4 * cin_p, Cout))
    a = jnp.stack(patches, axis=0)                    # (4, B*H*W, 4*Cin_p)
    b = jnp.stack(wmats, axis=0).astype(jnp.bfloat16)
    return a, b, H, W, Cout


def _convt_s1_im2col(x, w, padding):
    """ConvTranspose2d(stride=1) as pad + im2col GEMM operands (P=1)."""
    B, H, W, Cin = x.shape
    Cout, k = w.shape[1], w.shape[2]
    cin_p = _round_up(k * k * Cin, 128) // (k * k)
    if cin_p != Cin:
        x = jnp.pad(x, ((0, 0), (0, 0), (0, 0), (0, cin_p - Cin)))
        w = jnp.pad(w, ((0, cin_p - Cin), (0, 0), (0, 0), (0, 0)))
    pad = k - 1 - padding
    xp = jnp.pad(x, ((0, 0), (pad, pad), (pad, pad), (0, 0)))
    OH = H + 2 * pad - k + 1
    OW = W + 2 * pad - k + 1
    cols = [xp[:, dh:dh + OH, dw:dw + OW, :]
            for dh in range(k) for dw in range(k)]
    a = jnp.stack(cols, axis=3).reshape(B * OH * OW, k * k * cin_p)[None]
    wflip = w[:, :, ::-1, ::-1].transpose(2, 3, 0, 1)  # (k, k, Cin_p, Cout)
    b = wflip.reshape(k * k * cin_p, Cout)[None].astype(jnp.bfloat16)
    return a, b, OH, OW, Cout


def _interleave_phases(rows, B, H, W, C):
    """rows: (4, B*H*W, C) phase-major (ph, pw) -> (B, 2H, 2W, C) NHWC."""
    r = rows.reshape(2, 2, B, H, W, C)
    r = r.transpose(2, 3, 0, 4, 1, 5)                 # (B, H, ph, W, pw, C)
    return r.reshape(B, 2 * H, 2 * W, C)


# ----------------------------------------------------------------------------
# Generator: params + forward
# ----------------------------------------------------------------------------
def init_generator_params(key, z_dim, ngf, gen_img_ch):
    chans = [z_dim, ngf * 8, ngf * 4, ngf * 2, ngf, gen_img_ch]
    params = {}
    keys = jax.random.split(key, 5)
    for i in range(5):
        cin, cout = chans[i], chans[i + 1]
        params[f"w{i}"] = 0.02 * jax.random.normal(
            keys[i], (cin, cout, 4, 4), dtype=jnp.float32)
        if i < 4:  # BatchNorm affine params (PyTorch default init: ones/zeros)
            params[f"gamma{i}"] = jnp.ones((cout,), jnp.float32)
            params[f"beta{i}"] = jnp.zeros((cout,), jnp.float32)
    return params


@jax.jit
def generator_forward(params, x):
    """x: (B, z_dim, 1, 1) NCHW -> (B, gen_img_ch, 64, 64) NCHW float32."""
    B = x.shape[0]
    h = jnp.transpose(x, (0, 2, 3, 1)).astype(jnp.bfloat16)   # NHWC

    # Projection: ConvT(k4, s1, p0) + BN + ReLU, 1x1 -> 4x4.
    a, b, OH, OW, Cout = _convt_s1_im2col(h, params["w0"], padding=0)
    rows, s, sq = _phase_gemm(a, b, with_stats=True)
    M = a.shape[1]
    act = _bn_relu(rows, s, sq, count=float(M),
                   gamma=params["gamma0"], beta=params["beta0"])
    h = act[0, :M, :Cout].reshape(B, OH, OW, Cout)

    # convT1..convT3: ConvT(k4, s2, p1) + BN + ReLU (polyphase).
    for i in (1, 2, 3):
        a, b, H, W, Cout = _convt_s2_polyphase(h, params[f"w{i}"])
        rows, s, sq = _phase_gemm(a, b, with_stats=True)
        M = a.shape[1]
        act = _bn_relu(rows, s, sq, count=float(4 * M),
                       gamma=params[f"gamma{i}"], beta=params[f"beta{i}"])
        h = _interleave_phases(act[:, :M, :Cout], B, H, W, Cout)

    # convT4: ConvT(k4, s2, p1) + Tanh fused into the GEMM epilogue (bf16 out).
    a, b, H, W, Cout = _convt_s2_polyphase(h, params["w4"])
    rows = _phase_gemm(a, b, with_stats=False)
    M = a.shape[1]
    out = _interleave_phases(rows[:, :M, :Cout], B, H, W, Cout)
    return jnp.transpose(out, (0, 3, 1, 2)).astype(jnp.float32)   # NCHW f32


if __name__ == "__main__":
    # Small, deterministic example consistent with the module's forward:
    # latent input of shape (B, z_dim, 1, 1).
    B, z_dim, ngf, gen_img_ch = 2, 16, 8, 3

    key = jax.random.PRNGKey(0)
    pkey, xkey = jax.random.split(key)
    params = init_generator_params(pkey, z_dim, ngf, gen_img_ch)
    x = jax.random.normal(xkey, (B, z_dim, 1, 1), dtype=jnp.float32)

    out = generator_forward(params, x)
    out = jax.block_until_ready(out)

    assert out.shape == (B, gen_img_ch, 64, 64), out.shape
    assert out.dtype == jnp.float32, out.dtype
    assert bool(jnp.all(jnp.isfinite(out)))
    assert bool(jnp.all(jnp.abs(out) <= 1.0))  # tanh range
    print("KERNEL_OK")
</pallas_src>

<mosaic_0001>
module attributes {stable_mosaic.version = 11 : i64} {
  func.func @_gemm_stats_kernel(%arg0: i32, %arg1: i32, %arg2: i32, %arg3: memref<1x32x256xbf16, #tpu.memory_space<vmem>>, %arg4: memref<1x256x128xbf16, #tpu.memory_space<vmem>>, %arg5: memref<1x32x128xbf16, #tpu.memory_space<vmem>>, %arg6: memref<1x1x128xf32, #tpu.memory_space<vmem>>, %arg7: memref<1x1x128xf32, #tpu.memory_space<vmem>>) attributes {dimension_semantics = [#tpu.dimension_semantics<parallel>, #tpu.dimension_semantics<parallel>, #tpu.dimension_semantics<arbitrary>], iteration_bounds = array<i64: 1, 1, 1>, scalar_prefetch = 0 : i64, scratch_operands = 0 : i64, tpu.core_type = #tpu.core_type<tc>, window_params = [{transform_indices = @transform_0, window_bounds = array<i64: 1, 32, 256>}, {transform_indices = @transform_1, window_bounds = array<i64: 1, 256, 128>}, {transform_indices = @transform_2, window_bounds = array<i64: 1, 32, 128>}, {transform_indices = @transform_3, window_bounds = array<i64: 1, 1, 128>}, {transform_indices = @transform_4, window_bounds = array<i64: 1, 1, 128>}]} {
    %c0_i32 = arith.constant 0 : i32
    %0 = arith.cmpi eq, %arg2, %c0_i32 : i32
    %1 = arith.extui %0 : i1 to i32
    %c0_i32_0 = arith.constant 0 : i32
    %2 = arith.cmpi ne, %1, %c0_i32_0 : i32
    scf.if %2 {
      %cst_23 = arith.constant 0.000000e+00 : f32
      %29 = vector.broadcast %cst_23 : f32 to vector<1x1x128xf32>
      %c0_24 = arith.constant 0 : index
      %c0_25 = arith.constant 0 : index
      %c0_26 = arith.constant 0 : index
      %30 = vector.load %arg6[%c0_24, %c0_25, %c0_26] : memref<1x1x128xf32, #tpu.memory_space<vmem>>, vector<1x1x128xf32>
      tpu.vector_store %arg6[%c0_24, %c0_25, %c0_26], %29 {strides = array<i32>} : memref<1x1x128xf32, #tpu.memory_space<vmem>>, vector<1x1x128xf32>,
      %cst_27 = arith.constant 0.000000e+00 : f32
      %31 = vector.broadcast %cst_27 : f32 to vector<1x1x128xf32>
      %c0_28 = arith.constant 0 : index
      %c0_29 = arith.constant 0 : index
      %c0_30 = arith.constant 0 : index
      %32 = vector.load %arg7[%c0_28, %c0_29, %c0_30] : memref<1x1x128xf32, #tpu.memory_space<vmem>>, vector<1x1x128xf32>
      tpu.vector_store %arg7[%c0_28, %c0_29, %c0_30], %31 {strides = array<i32>} : memref<1x1x128xf32, #tpu.memory_space<vmem>>, vector<1x1x128xf32>,
    } else {
    }
    %c0 = arith.constant 0 : index
    %c0_1 = arith.constant 0 : index
    %c0_2 = arith.constant 0 : index
    %3 = vector.load %arg3[%c0, %c0_1, %c0_2] : memref<1x32x256xbf16, #tpu.memory_space<vmem>>, vector<1x32x256xbf16>
    %4 = vector.shape_cast %3 : vector<1x32x256xbf16> to vector<32x256xbf16>
    %c0_3 = arith.constant 0 : index
    %c0_4 = arith.constant 0 : index
    %c0_5 = arith.constant 0 : index
    %5 = vector.load %arg4[%c0_3, %c0_4, %c0_5] : memref<1x256x128xbf16, #tpu.memory_space<vmem>>, vector<1x256x128xbf16>
    %6 = vector.shape_cast %5 : vector<1x256x128xbf16> to vector<256x128xbf16>
    %cst = arith.constant dense<0.000000e+00> : vector<32x128xf32>
    %7 = tpu.matmul %4, %6, %cst {dimension_numbers = #tpu.dot_dimension_numbers<[1], [0], [0], [1], [0, 0, 1, 1], [], []>} : vector<32x256xbf16>, vector<256x128xbf16>, vector<32x128xf32> -> vector<32x128xf32>
    %8 = arith.truncf %7 : vector<32x128xf32> to vector<32x128xbf16>
    %c0_6 = arith.constant 0 : index
    %c0_7 = arith.constant 0 : index
    %c0_8 = arith.constant 0 : index
    %9 = vector.load %arg5[%c0_6, %c0_7, %c0_8] : memref<1x32x128xbf16, #tpu.memory_space<vmem>>, vector<1x32x128xbf16>
    %10 = vector.shape_cast %9 : vector<1x32x128xbf16> to vector<32x128xbf16>
    %11 = vector.shape_cast %8 : vector<32x128xbf16> to vector<1x32x128xbf16>
    tpu.vector_store %arg5[%c0_6, %c0_7, %c0_8], %11 {strides = array<i32>} : memref<1x32x128xbf16, #tpu.memory_space<vmem>>, vector<1x32x128xbf16>,
    %c0_9 = arith.constant 0 : index
    %c0_10 = arith.constant 0 : index
    %c0_11 = arith.constant 0 : index
    %12 = vector.load %arg6[%c0_9, %c0_10, %c0_11] : memref<1x1x128xf32, #tpu.memory_space<vmem>>, vector<1x1x128xf32>
    %13 = vector.shape_cast %12 : vector<1x1x128xf32> to vector<1x128xf32>
    %cst_12 = arith.constant dense<0.000000e+00> : vector<128xf32>
    %14 = vector.multi_reduction <add>, %7, %cst_12 [0] : vector<32x128xf32> to vector<128xf32>
    %15 = vector.shape_cast %14 : vector<128xf32> to vector<1x128xf32>
    %16 = arith.addf %13, %15 : vector<1x128xf32>
    %c0_13 = arith.constant 0 : index
    %c0_14 = arith.constant 0 : index
    %c0_15 = arith.constant 0 : index
    %17 = vector.load %arg6[%c0_13, %c0_14, %c0_15] : memref<1x1x128xf32, #tpu.memory_space<vmem>>, vector<1x1x128xf32>
    %18 = vector.shape_cast %17 : vector<1x1x128xf32> to vector<1x128xf32>
    %19 = vector.shape_cast %16 : vector<1x128xf32> to vector<1x1x128xf32>
    tpu.vector_store %arg6[%c0_13, %c0_14, %c0_15], %19 {strides = array<i32>} : memref<1x1x128xf32, #tpu.memory_space<vmem>>, vector<1x1x128xf32>,
    %c0_16 = arith.constant 0 : index
    %c0_17 = arith.constant 0 : index
    %c0_18 = arith.constant 0 : index
    %20 = vector.load %arg7[%c0_16, %c0_17, %c0_18] : memref<1x1x128xf32, #tpu.memory_space<vmem>>, vector<1x1x128xf32>
    %21 = vector.shape_cast %20 : vector<1x1x128xf32> to vector<1x128xf32>
    %22 = arith.mulf %7, %7 : vector<32x128xf32>
    %cst_19 = arith.constant dense<0.000000e+00> : vector<128xf32>
    %23 = vector.multi_reduction <add>, %22, %cst_19 [0] : vector<32x128xf32> to vector<128xf32>
    %24 = vector.shape_cast %23 : vector<128xf32> to vector<1x128xf32>
    %25 = arith.addf %21, %24 : vector<1x128xf32>
    %c0_20 = arith.constant 0 : index
    %c0_21 = arith.constant 0 : index
    %c0_22 = arith.constant 0 : index
    %26 = vector.load %arg7[%c0_20, %c0_21, %c0_22] : memref<1x1x128xf32, #tpu.memory_space<vmem>>, vector<1x1x128xf32>
    %27 = vector.shape_cast %26 : vector<1x1x128xf32> to vector<1x128xf32>
    %28 = vector.shape_cast %25 : vector<1x128xf32> to vector<1x1x128xf32>
    tpu.vector_store %arg7[%c0_20, %c0_21, %c0_22], %28 {strides = array<i32>} : memref<1x1x128xf32, #tpu.memory_space<vmem>>, vector<1x1x128xf32>,
    return
  }
  func.func @transform_0(%arg0: i32, %arg1: i32, %arg2: i32) -> (i32, i32, i32) {
    %c0_i32 = arith.constant 0 : i32
    %c0_i32_0 = arith.constant 0 : i32
    return %arg1, %arg2, %c0_i32 : i32, i32, i32
  }
  func.func @transform_1(%arg0: i32, %arg1: i32, %arg2: i32) -> (i32, i32, i32) {
    %c0_i32 = arith.constant 0 : i32
    %c0_i32_0 = arith.constant 0 : i32
    return %arg1, %c0_i32, %arg0 : i32, i32, i32
  }
  func.func @transform_2(%arg0: i32, %arg1: i32, %arg2: i32) -> (i32, i32, i32) {
    %c0_i32 = arith.constant 0 : i32
    return %arg1, %arg2, %arg0 : i32, i32, i32
  }
  func.func @transform_3(%arg0: i32, %arg1: i32, %arg2: i32) -> (i32, i32, i32) {
    %c0_i32 = arith.constant 0 : i32
    %c0_i32_0 = arith.constant 0 : i32
    return %arg1, %c0_i32, %arg0 : i32, i32, i32
  }
  func.func @transform_4(%arg0: i32, %arg1: i32, %arg2: i32) -> (i32, i32, i32) {
    %c0_i32 = arith.constant 0 : i32
    %c0_i32_0 = arith.constant 0 : i32
    return %arg1, %c0_i32, %arg0 : i32, i32, i32
  }
}

module attributes {stable_mosaic.version = 11 : i64} {
  func.func @_bn_relu_kernel(%arg0: i32, %arg1: memref<1x32x128xbf16, #tpu.memory_space<vmem>>, %arg2: memref<1x1x128xf32, #tpu.memory_space<vmem>>, %arg3: memref<1x1x128xf32, #tpu.memory_space<vmem>>, %arg4: memref<1x32x128xbf16, #tpu.memory_space<vmem>>) attributes {dimension_semantics = [#tpu.dimension_semantics<parallel>], iteration_bounds = array<i64: 1>, scalar_prefetch = 0 : i64, scratch_operands = 0 : i64, tpu.core_type = #tpu.core_type<tc>, window_params = [{transform_indices = @transform_0, window_bounds = array<i64: 1, 32, 128>}, {pipeline_mode = #tpu.pipeline_mode<synchronous>, transform_indices = @transform_1, window_bounds = array<i64: 1, 1, 128>}, {pipeline_mode = #tpu.pipeline_mode<synchronous>, transform_indices = @transform_2, window_bounds = array<i64: 1, 1, 128>}, {transform_indices = @transform_3, window_bounds = array<i64: 1, 32, 128>}]} {
    %c0 = arith.constant 0 : index
    %c0_0 = arith.constant 0 : index
    %c0_1 = arith.constant 0 : index
    %0 = vector.load %arg1[%c0, %c0_0, %c0_1] : memref<1x32x128xbf16, #tpu.memory_space<vmem>>, vector<1x32x128xbf16>
    %1 = arith.extf %0 : vector<1x32x128xbf16> to vector<1x32x128xf32>
    %c0_2 = arith.constant 0 : index
    %c0_3 = arith.constant 0 : index
    %c0_4 = arith.constant 0 : index
    %2 = vector.load %arg2[%c0_2, %c0_3, %c0_4] : memref<1x1x128xf32, #tpu.memory_space<vmem>>, vector<1x1x128xf32>
    %3 = vector.broadcast %2 : vector<1x1x128xf32> to vector<1x32x128xf32>
    %4 = arith.mulf %1, %3 : vector<1x32x128xf32>
    %c0_5 = arith.constant 0 : index
    %c0_6 = arith.constant 0 : index
    %c0_7 = arith.constant 0 : index
    %5 = vector.load %arg3[%c0_5, %c0_6, %c0_7] : memref<1x1x128xf32, #tpu.memory_space<vmem>>, vector<1x1x128xf32>
    %6 = vector.broadcast %5 : vector<1x1x128xf32> to vector<1x32x128xf32>
    %7 = arith.addf %4, %6 : vector<1x32x128xf32>
    %cst = arith.constant 0.000000e+00 : f32
    %8 = vector.broadcast %cst : f32 to vector<1x32x128xf32>
    %9 = arith.maximumf %7, %8 : vector<1x32x128xf32>
    %10 = arith.truncf %9 : vector<1x32x128xf32> to vector<1x32x128xbf16>
    %c0_8 = arith.constant 0 : index
    %c0_9 = arith.constant 0 : index
    %c0_10 = arith.constant 0 : index
    %11 = vector.load %arg4[%c0_8, %c0_9, %c0_10] : memref<1x32x128xbf16, #tpu.memory_space<vmem>>, vector<1x32x128xbf16>
    tpu.vector_store %arg4[%c0_8, %c0_9, %c0_10], %10 {strides = array<i32>} : memref<1x32x128xbf16, #tpu.memory_space<vmem>>, vector<1x32x128xbf16>,
    return
  }
  func.func @transform_0(%arg0: i32) -> (i32, i32, i32) {
    %c0_i32 = arith.constant 0 : i32
    %c0_i32_0 = arith.constant 0 : i32
    %c0_i32_1 = arith.constant 0 : i32
    return %c0_i32, %arg0, %c0_i32_0 : i32, i32, i32
  }
  func.func @transform_1(%arg0: i32) -> (i32, i32, i32) {
    %c0_i32 = arith.constant 0 : i32
    %c0_i32_0 = arith.constant 0 : i32
    %c0_i32_1 = arith.constant 0 : i32
    %c0_i32_2 = arith.constant 0 : i32
    return %c0_i32, %c0_i32_0, %c0_i32_1 : i32, i32, i32
  }
  func.func @transform_2(%arg0: i32) -> (i32, i32, i32) {
    %c0_i32 = arith.constant 0 : i32
    %c0_i32_0 = arith.constant 0 : i32
    %c0_i32_1 = arith.constant 0 : i32
    %c0_i32_2 = arith.constant 0 : i32
    return %c0_i32, %c0_i32_0, %c0_i32_1 : i32, i32, i32
  }
  func.func @transform_3(%arg0: i32) -> (i32, i32, i32) {
    %c0_i32 = arith.constant 0 : i32
    %c0_i32_0 = arith.constant 0 : i32
    %c0_i32_1 = arith.constant 0 : i32
    return %c0_i32, %arg0, %c0_i32_0 : i32, i32, i32
  }
}

module attributes {stable_mosaic.version = 11 : i64} {
  func.func @_gemm_stats_kernel(%arg0: i32, %arg1: i32, %arg2: i32, %arg3: memref<1x32x256xbf16, #tpu.memory_space<vmem>>, %arg4: memref<1x256x128xbf16, #tpu.memory_space<vmem>>, %arg5: memref<1x32x128xbf16, #tpu.memory_space<vmem>>, %arg6: memref<1x1x128xf32, #tpu.memory_space<vmem>>, %arg7: memref<1x1x128xf32, #tpu.memory_space<vmem>>) attributes {dimension_semantics = [#tpu.dimension_semantics<parallel>, #tpu.dimension_semantics<parallel>, #tpu.dimension_semantics<arbitrary>], iteration_bounds = array<i64: 1, 4, 1>, scalar_prefetch = 0 : i64, scratch_operands = 0 : i64, tpu.core_type = #tpu.core_type<tc>, window_params = [{transform_indices = @transform_0, window_bounds = array<i64: 1, 32, 256>}, {transform_indices = @transform_1, window_bounds = array<i64: 1, 256, 128>}, {transform_indices = @transform_2, window_bounds = array<i64: 1, 32, 128>}, {transform_indices = @transform_3, window_bounds = array<i64: 1, 1, 128>}, {transform_indices = @transform_4, window_bounds = array<i64: 1, 1, 128>}]} {
    %c0_i32 = arith.constant 0 : i32
    %0 = arith.cmpi eq, %arg2, %c0_i32 : i32
    %1 = arith.extui %0 : i1 to i32
    %c0_i32_0 = arith.constant 0 : i32
    %2 = arith.cmpi ne, %1, %c0_i32_0 : i32
    scf.if %2 {
      %cst_23 = arith.constant 0.000000e+00 : f32
      %29 = vector.broadcast %cst_23 : f32 to vector<1x1x128xf32>
      %c0_24 = arith.constant 0 : index
      %c0_25 = arith.constant 0 : index
      %c0_26 = arith.constant 0 : index
      %30 = vector.load %arg6[%c0_24, %c0_25, %c0_26] : memref<1x1x128xf32, #tpu.memory_space<vmem>>, vector<1x1x128xf32>
      tpu.vector_store %arg6[%c0_24, %c0_25, %c0_26], %29 {strides = array<i32>} : memref<1x1x128xf32, #tpu.memory_space<vmem>>, vector<1x1x128xf32>,
      %cst_27 = arith.constant 0.000000e+00 : f32
      %31 = vector.broadcast %cst_27 : f32 to vector<1x1x128xf32>
      %c0_28 = arith.constant 0 : index
      %c0_29 = arith.constant 0 : index
      %c0_30 = arith.constant 0 : index
      %32 = vector.load %arg7[%c0_28, %c0_29, %c0_30] : memref<1x1x128xf32, #tpu.memory_space<vmem>>, vector<1x1x128xf32>
      tpu.vector_store %arg7[%c0_28, %c0_29, %c0_30], %31 {strides = array<i32>} : memref<1x1x128xf32, #tpu.memory_space<vmem>>, vector<1x1x128xf32>,
    } else {
    }
    %c0 = arith.constant 0 : index
    %c0_1 = arith.constant 0 : index
    %c0_2 = arith.constant 0 : index
    %3 = vector.load %arg3[%c0, %c0_1, %c0_2] : memref<1x32x256xbf16, #tpu.memory_space<vmem>>, vector<1x32x256xbf16>
    %4 = vector.shape_cast %3 : vector<1x32x256xbf16> to vector<32x256xbf16>
    %c0_3 = arith.constant 0 : index
    %c0_4 = arith.constant 0 : index
    %c0_5 = arith.constant 0 : index
    %5 = vector.load %arg4[%c0_3, %c0_4, %c0_5] : memref<1x256x128xbf16, #tpu.memory_space<vmem>>, vector<1x256x128xbf16>
    %6 = vector.shape_cast %5 : vector<1x256x128xbf16> to vector<256x128xbf16>
    %cst = arith.constant dense<0.000000e+00> : vector<32x128xf32>
    %7 = tpu.matmul %4, %6, %cst {dimension_numbers = #tpu.dot_dimension_numbers<[1], [0], [0], [1], [0, 0, 1, 1], [], []>} : vector<32x256xbf16>, vector<256x128xbf16>, vector<32x128xf32> -> vector<32x128xf32>
    %8 = arith.truncf %7 : vector<32x128xf32> to vector<32x128xbf16>
    %c0_6 = arith.constant 0 : index
    %c0_7 = arith.constant 0 : index
    %c0_8 = arith.constant 0 : index
    %9 = vector.load %arg5[%c0_6, %c0_7, %c0_8] : memref<1x32x128xbf16, #tpu.memory_space<vmem>>, vector<1x32x128xbf16>
    %10 = vector.shape_cast %9 : vector<1x32x128xbf16> to vector<32x128xbf16>
    %11 = vector.shape_cast %8 : vector<32x128xbf16> to vector<1x32x128xbf16>
    tpu.vector_store %arg5[%c0_6, %c0_7, %c0_8], %11 {strides = array<i32>} : memref<1x32x128xbf16, #tpu.memory_space<vmem>>, vector<1x32x128xbf16>,
    %c0_9 = arith.constant 0 : index
    %c0_10 = arith.constant 0 : index
    %c0_11 = arith.constant 0 : index
    %12 = vector.load %arg6[%c0_9, %c0_10, %c0_11] : memref<1x1x128xf32, #tpu.memory_space<vmem>>, vector<1x1x128xf32>
    %13 = vector.shape_cast %12 : vector<1x1x128xf32> to vector<1x128xf32>
    %cst_12 = arith.constant dense<0.000000e+00> : vector<128xf32>
    %14 = vector.multi_reduction <add>, %7, %cst_12 [0] : vector<32x128xf32> to vector<128xf32>
    %15 = vector.shape_cast %14 : vector<128xf32> to vector<1x128xf32>
    %16 = arith.addf %13, %15 : vector<1x128xf32>
    %c0_13 = arith.constant 0 : index
    %c0_14 = arith.constant 0 : index
    %c0_15 = arith.constant 0 : index
    %17 = vector.load %arg6[%c0_13, %c0_14, %c0_15] : memref<1x1x128xf32, #tpu.memory_space<vmem>>, vector<1x1x128xf32>
    %18 = vector.shape_cast %17 : vector<1x1x128xf32> to vector<1x128xf32>
    %19 = vector.shape_cast %16 : vector<1x128xf32> to vector<1x1x128xf32>
    tpu.vector_store %arg6[%c0_13, %c0_14, %c0_15], %19 {strides = array<i32>} : memref<1x1x128xf32, #tpu.memory_space<vmem>>, vector<1x1x128xf32>,
    %c0_16 = arith.constant 0 : index
    %c0_17 = arith.constant 0 : index
    %c0_18 = arith.constant 0 : index
    %20 = vector.load %arg7[%c0_16, %c0_17, %c0_18] : memref<1x1x128xf32, #tpu.memory_space<vmem>>, vector<1x1x128xf32>
    %21 = vector.shape_cast %20 : vector<1x1x128xf32> to vector<1x128xf32>
    %22 = arith.mulf %7, %7 : vector<32x128xf32>
    %cst_19 = arith.constant dense<0.000000e+00> : vector<128xf32>
    %23 = vector.multi_reduction <add>, %22, %cst_19 [0] : vector<32x128xf32> to vector<128xf32>
    %24 = vector.shape_cast %23 : vector<128xf32> to vector<1x128xf32>
    %25 = arith.addf %21, %24 : vector<1x128xf32>
    %c0_20 = arith.constant 0 : index
    %c0_21 = arith.constant 0 : index
    %c0_22 = arith.constant 0 : index
    %26 = vector.load %arg7[%c0_20, %c0_21, %c0_22] : memref<1x1x128xf32, #tpu.memory_space<vmem>>, vector<1x1x128xf32>
    %27 = vector.shape_cast %26 : vector<1x1x128xf32> to vector<1x128xf32>
    %28 = vector.shape_cast %25 : vector<1x128xf32> to vector<1x1x128xf32>
    tpu.vector_store %arg7[%c0_20, %c0_21, %c0_22], %28 {strides = array<i32>} : memref<1x1x128xf32, #tpu.memory_space<vmem>>, vector<1x1x128xf32>,
    return
  }
  func.func @transform_0(%arg0: i32, %arg1: i32, %arg2: i32) -> (i32, i32, i32) {
    %c0_i32 = arith.constant 0 : i32
    %c0_i32_0 = arith.constant 0 : i32
    return %arg1, %arg2, %c0_i32 : i32, i32, i32
  }
  func.func @transform_1(%arg0: i32, %arg1: i32, %arg2: i32) -> (i32, i32, i32) {
    %c0_i32 = arith.constant 0 : i32
    %c0_i32_0 = arith.constant 0 : i32
    return %arg1, %c0_i32, %arg0 : i32, i32, i32
  }
  func.func @transform_2(%arg0: i32, %arg1: i32, %arg2: i32) -> (i32, i32, i32) {
    %c0_i32 = arith.constant 0 : i32
    return %arg1, %arg2, %arg0 : i32, i32, i32
  }
  func.func @transform_3(%arg0: i32, %arg1: i32, %arg2: i32) -> (i32, i32, i32) {
    %c0_i32 = arith.constant 0 : i32
    %c0_i32_0 = arith.constant 0 : i32
    return %arg1, %c0_i32, %arg0 : i32, i32, i32
  }
  func.func @transform_4(%arg0: i32, %arg1: i32, %arg2: i32) -> (i32, i32, i32) {
    %c0_i32 = arith.constant 0 : i32
    %c0_i32_0 = arith.constant 0 : i32
    return %arg1, %c0_i32, %arg0 : i32, i32, i32
  }
}

module attributes {stable_mosaic.version = 11 : i64} {
  func.func @_bn_relu_kernel(%arg0: i32, %arg1: memref<4x32x128xbf16, #tpu.memory_space<vmem>>, %arg2: memref<1x1x128xf32, #tpu.memory_space<vmem>>, %arg3: memref<1x1x128xf32, #tpu.memory_space<vmem>>, %arg4: memref<4x32x128xbf16, #tpu.memory_space<vmem>>) attributes {dimension_semantics = [#tpu.dimension_semantics<parallel>], iteration_bounds = array<i64: 1>, scalar_prefetch = 0 : i64, scratch_operands = 0 : i64, tpu.core_type = #tpu.core_type<tc>, window_params = [{transform_indices = @transform_0, window_bounds = array<i64: 4, 32, 128>}, {pipeline_mode = #tpu.pipeline_mode<synchronous>, transform_indices = @transform_1, window_bounds = array<i64: 1, 1, 128>}, {pipeline_mode = #tpu.pipeline_mode<synchronous>, transform_indices = @transform_2, window_bounds = array<i64: 1, 1, 128>}, {transform_indices = @transform_3, window_bounds = array<i64: 4, 32, 128>}]} {
    %c0 = arith.constant 0 : index
    %c0_0 = arith.constant 0 : index
    %c0_1 = arith.constant 0 : index
    %0 = vector.load %arg1[%c0, %c0_0, %c0_1] : memref<4x32x128xbf16, #tpu.memory_space<vmem>>, vector<4x32x128xbf16>
    %1 = arith.extf %0 : vector<4x32x128xbf16> to vector<4x32x128xf32>
    %c0_2 = arith.constant 0 : index
    %c0_3 = arith.constant 0 : index
    %c0_4 = arith.constant 0 : index
    %2 = vector.load %arg2[%c0_2, %c0_3, %c0_4] : memref<1x1x128xf32, #tpu.memory_space<vmem>>, vector<1x1x128xf32>
    %3 = vector.broadcast %2 : vector<1x1x128xf32> to vector<4x32x128xf32>
    %4 = arith.mulf %1, %3 : vector<4x32x128xf32>
    %c0_5 = arith.constant 0 : index
    %c0_6 = arith.constant 0 : index
    %c0_7 = arith.constant 0 : index
    %5 = vector.load %arg3[%c0_5, %c0_6, %c0_7] : memref<1x1x128xf32, #tpu.memory_space<vmem>>, vector<1x1x128xf32>
    %6 = vector.broadcast %5 : vector<1x1x128xf32> to vector<4x32x128xf32>
    %7 = arith.addf %4, %6 : vector<4x32x128xf32>
    %cst = arith.constant 0.000000e+00 : f32
    %8 = vector.broadcast %cst : f32 to vector<4x32x128xf32>
    %9 = arith.maximumf %7, %8 : vector<4x32x128xf32>
    %10 = arith.truncf %9 : vector<4x32x128xf32> to vector<4x32x128xbf16>
    %c0_8 = arith.constant 0 : index
    %c0_9 = arith.constant 0 : index
    %c0_10 = arith.constant 0 : index
    %11 = vector.load %arg4[%c0_8, %c0_9, %c0_10] : memref<4x32x128xbf16, #tpu.memory_space<vmem>>, vector<4x32x128xbf16>
    tpu.vector_store %arg4[%c0_8, %c0_9, %c0_10], %10 {strides = array<i32>} : memref<4x32x128xbf16, #tpu.memory_space<vmem>>, vector<4x32x128xbf16>,
    return
  }
  func.func @transform_0(%arg0: i32) -> (i32, i32, i32) {
    %c0_i32 = arith.constant 0 : i32
    %c0_i32_0 = arith.constant 0 : i32
    %c0_i32_1 = arith.constant 0 : i32
    return %c0_i32, %arg0, %c0_i32_0 : i32, i32, i32
  }
  func.func @transform_1(%arg0: i32) -> (i32, i32, i32) {
    %c0_i32 = arith.constant 0 : i32
    %c0_i32_0 = arith.constant 0 : i32
    %c0_i32_1 = arith.constant 0 : i32
    %c0_i32_2 = arith.constant 0 : i32
    return %c0_i32, %c0_i32_0, %c0_i32_1 : i32, i32, i32
  }
  func.func @transform_2(%arg0: i32) -> (i32, i32, i32) {
    %c0_i32 = arith.constant 0 : i32
    %c0_i32_0 = arith.constant 0 : i32
    %c0_i32_1 = arith.constant 0 : i32
    %c0_i32_2 = arith.constant 0 : i32
    return %c0_i32, %c0_i32_0, %c0_i32_1 : i32, i32, i32
  }
  func.func @transform_3(%arg0: i32) -> (i32, i32, i32) {
    %c0_i32 = arith.constant 0 : i32
    %c0_i32_0 = arith.constant 0 : i32
    %c0_i32_1 = arith.constant 0 : i32
    return %c0_i32, %arg0, %c0_i32_0 : i32, i32, i32
  }
}

module attributes {stable_mosaic.version = 11 : i64} {
  func.func @_gemm_stats_kernel(%arg0: i32, %arg1: i32, %arg2: i32, %arg3: memref<1x128x128xbf16, #tpu.memory_space<vmem>>, %arg4: memref<1x128x128xbf16, #tpu.memory_space<vmem>>, %arg5: memref<1x128x128xbf16, #tpu.memory_space<vmem>>, %arg6: memref<1x1x128xf32, #tpu.memory_space<vmem>>, %arg7: memref<1x1x128xf32, #tpu.memory_space<vmem>>) attributes {dimension_semantics = [#tpu.dimension_semantics<parallel>, #tpu.dimension_semantics<parallel>, #tpu.dimension_semantics<arbitrary>], iteration_bounds = array<i64: 1, 4, 1>, scalar_prefetch = 0 : i64, scratch_operands = 0 : i64, tpu.core_type = #tpu.core_type<tc>, window_params = [{transform_indices = @transform_0, window_bounds = array<i64: 1, 128, 128>}, {transform_indices = @transform_1, window_bounds = array<i64: 1, 128, 128>}, {transform_indices = @transform_2, window_bounds = array<i64: 1, 128, 128>}, {transform_indices = @transform_3, window_bounds = array<i64: 1, 1, 128>}, {transform_indices = @transform_4, window_bounds = array<i64: 1, 1, 128>}]} {
    %c0_i32 = arith.constant 0 : i32
    %0 = arith.cmpi eq, %arg2, %c0_i32 : i32
    %1 = arith.extui %0 : i1 to i32
    %c0_i32_0 = arith.constant 0 : i32
    %2 = arith.cmpi ne, %1, %c0_i32_0 : i32
    scf.if %2 {
      %cst_23 = arith.constant 0.000000e+00 : f32
      %29 = vector.broadcast %cst_23 : f32 to vector<1x1x128xf32>
      %c0_24 = arith.constant 0 : index
      %c0_25 = arith.constant 0 : index
      %c0_26 = arith.constant 0 : index
      %30 = vector.load %arg6[%c0_24, %c0_25, %c0_26] : memref<1x1x128xf32, #tpu.memory_space<vmem>>, vector<1x1x128xf32>
      tpu.vector_store %arg6[%c0_24, %c0_25, %c0_26], %29 {strides = array<i32>} : memref<1x1x128xf32, #tpu.memory_space<vmem>>, vector<1x1x128xf32>,
      %cst_27 = arith.constant 0.000000e+00 : f32
      %31 = vector.broadcast %cst_27 : f32 to vector<1x1x128xf32>
      %c0_28 = arith.constant 0 : index
      %c0_29 = arith.constant 0 : index
      %c0_30 = arith.constant 0 : index
      %32 = vector.load %arg7[%c0_28, %c0_29, %c0_30] : memref<1x1x128xf32, #tpu.memory_space<vmem>>, vector<1x1x128xf32>
      tpu.vector_store %arg7[%c0_28, %c0_29, %c0_30], %31 {strides = array<i32>} : memref<1x1x128xf32, #tpu.memory_space<vmem>>, vector<1x1x128xf32>,
    } else {
    }
    %c0 = arith.constant 0 : index
    %c0_1 = arith.constant 0 : index
    %c0_2 = arith.constant 0 : index
    %3 = vector.load %arg3[%c0, %c0_1, %c0_2] : memref<1x128x128xbf16, #tpu.memory_space<vmem>>, vector<1x128x128xbf16>
    %4 = vector.shape_cast %3 : vector<1x128x128xbf16> to vector<128x128xbf16>
    %c0_3 = arith.constant 0 : index
    %c0_4 = arith.constant 0 : index
    %c0_5 = arith.constant 0 : index
    %5 = vector.load %arg4[%c0_3, %c0_4, %c0_5] : memref<1x128x128xbf16, #tpu.memory_space<vmem>>, vector<1x128x128xbf16>
    %6 = vector.shape_cast %5 : vector<1x128x128xbf16> to vector<128x128xbf16>
    %cst = arith.constant dense<0.000000e+00> : vector<128x128xf32>
    %7 = tpu.matmul %4, %6, %cst {dimension_numbers = #tpu.dot_dimension_numbers<[1], [0], [0], [1], [0, 0, 1, 1], [], []>} : vector<128x128xbf16>, vector<128x128xbf16>, vector<128x128xf32> -> vector<128x128xf32>
    %8 = arith.truncf %7 : vector<128x128xf32> to vector<128x128xbf16>
    %c0_6 = arith.constant 0 : index
    %c0_7 = arith.constant 0 : index
    %c0_8 = arith.constant 0 : index
    %9 = vector.load %arg5[%c0_6, %c0_7, %c0_8] : memref<1x128x128xbf16, #tpu.memory_space<vmem>>, vector<1x128x128xbf16>
    %10 = vector.shape_cast %9 : vector<1x128x128xbf16> to vector<128x128xbf16>
    %11 = vector.shape_cast %8 : vector<128x128xbf16> to vector<1x128x128xbf16>
    tpu.vector_store %arg5[%c0_6, %c0_7, %c0_8], %11 {strides = array<i32>} : memref<1x128x128xbf16, #tpu.memory_space<vmem>>, vector<1x128x128xbf16>,
    %c0_9 = arith.constant 0 : index
    %c0_10 = arith.constant 0 : index
    %c0_11 = arith.constant 0 : index
    %12 = vector.load %arg6[%c0_9, %c0_10, %c0_11] : memref<1x1x128xf32, #tpu.memory_space<vmem>>, vector<1x1x128xf32>
    %13 = vector.shape_cast %12 : vector<1x1x128xf32> to vector<1x128xf32>
    %cst_12 = arith.constant dense<0.000000e+00> : vector<128xf32>
    %14 = vector.multi_reduction <add>, %7, %cst_12 [0] : vector<128x128xf32> to vector<128xf32>
    %15 = vector.shape_cast %14 : vector<128xf32> to vector<1x128xf32>
    %16 = arith.addf %13, %15 : vector<1x128xf32>
    %c0_13 = arith.constant 0 : index
    %c0_14 = arith.constant 0 : index
    %c0_15 = arith.constant 0 : index
    %17 = vector.load %arg6[%c0_13, %c0_14, %c0_15] : memref<1x1x128xf32, #tpu.memory_space<vmem>>, vector<1x1x128xf32>
    %18 = vector.shape_cast %17 : vector<1x1x128xf32> to vector<1x128xf32>
    %19 = vector.shape_cast %16 : vector<1x128xf32> to vector<1x1x128xf32>
    tpu.vector_store %arg6[%c0_13, %c0_14, %c0_15], %19 {strides = array<i32>} : memref<1x1x128xf32, #tpu.memory_space<vmem>>, vector<1x1x128xf32>,
    %c0_16 = arith.constant 0 : index
    %c0_17 = arith.constant 0 : index
    %c0_18 = arith.constant 0 : index
    %20 = vector.load %arg7[%c0_16, %c0_17, %c0_18] : memref<1x1x128xf32, #tpu.memory_space<vmem>>, vector<1x1x128xf32>
    %21 = vector.shape_cast %20 : vector<1x1x128xf32> to vector<1x128xf32>
    %22 = arith.mulf %7, %7 : vector<128x128xf32>
    %cst_19 = arith.constant dense<0.000000e+00> : vector<128xf32>
    %23 = vector.multi_reduction <add>, %22, %cst_19 [0] : vector<128x128xf32> to vector<128xf32>
    %24 = vector.shape_cast %23 : vector<128xf32> to vector<1x128xf32>
    %25 = arith.addf %21, %24 : vector<1x128xf32>
    %c0_20 = arith.constant 0 : index
    %c0_21 = arith.constant 0 : index
    %c0_22 = arith.constant 0 : index
    %26 = vector.load %arg7[%c0_20, %c0_21, %c0_22] : memref<1x1x128xf32, #tpu.memory_space<vmem>>, vector<1x1x128xf32>
    %27 = vector.shape_cast %26 : vector<1x1x128xf32> to vector<1x128xf32>
    %28 = vector.shape_cast %25 : vector<1x128xf32> to vector<1x1x128xf32>
    tpu.vector_store %arg7[%c0_20, %c0_21, %c0_22], %28 {strides = array<i32>} : memref<1x1x128xf32, #tpu.memory_space<vmem>>, vector<1x1x128xf32>,
    return
  }
  func.func @transform_0(%arg0: i32, %arg1: i32, %arg2: i32) -> (i32, i32, i32) {
    %c0_i32 = arith.constant 0 : i32
    %c0_i32_0 = arith.constant 0 : i32
    return %arg1, %arg2, %c0_i32 : i32, i32, i32
  }
  func.func @transform_1(%arg0: i32, %arg1: i32, %arg2: i32) -> (i32, i32, i32) {
    %c0_i32 = arith.constant 0 : i32
    %c0_i32_0 = arith.constant 0 : i32
    return %arg1, %c0_i32, %arg0 : i32, i32, i32
  }
  func.func @transform_2(%arg0: i32, %arg1: i32, %arg2: i32) -> (i32, i32, i32) {
    %c0_i32 = arith.constant 0 : i32
    return %arg1, %arg2, %arg0 : i32, i32, i32
  }
  func.func @transform_3(%arg0: i32, %arg1: i32, %arg2: i32) -> (i32, i32, i32) {
    %c0_i32 = arith.constant 0 : i32
    %c0_i32_0 = arith.constant 0 : i32
    return %arg1, %c0_i32, %arg0 : i32, i32, i32
  }
  func.func @transform_4(%arg0: i32, %arg1: i32, %arg2: i32) -> (i32, i32, i32) {
    %c0_i32 = arith.constant 0 : i32
    %c0_i32_0 = arith.constant 0 : i32
    return %arg1, %c0_i32, %arg0 : i32, i32, i32
  }
}

module attributes {stable_mosaic.version = 11 : i64} {
  func.func @_bn_relu_kernel(%arg0: i32, %arg1: memref<4x128x128xbf16, #tpu.memory_space<vmem>>, %arg2: memref<1x1x128xf32, #tpu.memory_space<vmem>>, %arg3: memref<1x1x128xf32, #tpu.memory_space<vmem>>, %arg4: memref<4x128x128xbf16, #tpu.memory_space<vmem>>) attributes {dimension_semantics = [#tpu.dimension_semantics<parallel>], iteration_bounds = array<i64: 1>, scalar_prefetch = 0 : i64, scratch_operands = 0 : i64, tpu.core_type = #tpu.core_type<tc>, window_params = [{transform_indices = @transform_0, window_bounds = array<i64: 4, 128, 128>}, {pipeline_mode = #tpu.pipeline_mode<synchronous>, transform_indices = @transform_1, window_bounds = array<i64: 1, 1, 128>}, {pipeline_mode = #tpu.pipeline_mode<synchronous>, transform_indices = @transform_2, window_bounds = array<i64: 1, 1, 128>}, {transform_indices = @transform_3, window_bounds = array<i64: 4, 128, 128>}]} {
    %c0 = arith.constant 0 : index
    %c0_0 = arith.constant 0 : index
    %c0_1 = arith.constant 0 : index
    %0 = vector.load %arg1[%c0, %c0_0, %c0_1] : memref<4x128x128xbf16, #tpu.memory_space<vmem>>, vector<4x128x128xbf16>
    %1 = arith.extf %0 : vector<4x128x128xbf16> to vector<4x128x128xf32>
    %c0_2 = arith.constant 0 : index
    %c0_3 = arith.constant 0 : index
    %c0_4 = arith.constant 0 : index
    %2 = vector.load %arg2[%c0_2, %c0_3, %c0_4] : memref<1x1x128xf32, #tpu.memory_space<vmem>>, vector<1x1x128xf32>
    %3 = vector.broadcast %2 : vector<1x1x128xf32> to vector<4x128x128xf32>
    %4 = arith.mulf %1, %3 : vector<4x128x128xf32>
    %c0_5 = arith.constant 0 : index
    %c0_6 = arith.constant 0 : index
    %c0_7 = arith.constant 0 : index
    %5 = vector.load %arg3[%c0_5, %c0_6, %c0_7] : memref<1x1x128xf32, #tpu.memory_space<vmem>>, vector<1x1x128xf32>
    %6 = vector.broadcast %5 : vector<1x1x128xf32> to vector<4x128x128xf32>
    %7 = arith.addf %4, %6 : vector<4x128x128xf32>
    %cst = arith.constant 0.000000e+00 : f32
    %8 = vector.broadcast %cst : f32 to vector<4x128x128xf32>
    %9 = arith.maximumf %7, %8 : vector<4x128x128xf32>
    %10 = arith.truncf %9 : vector<4x128x128xf32> to vector<4x128x128xbf16>
    %c0_8 = arith.constant 0 : index
    %c0_9 = arith.constant 0 : index
    %c0_10 = arith.constant 0 : index
    %11 = vector.load %arg4[%c0_8, %c0_9, %c0_10] : memref<4x128x128xbf16, #tpu.memory_space<vmem>>, vector<4x128x128xbf16>
    tpu.vector_store %arg4[%c0_8, %c0_9, %c0_10], %10 {strides = array<i32>} : memref<4x128x128xbf16, #tpu.memory_space<vmem>>, vector<4x128x128xbf16>,
    return
  }
  func.func @transform_0(%arg0: i32) -> (i32, i32, i32) {
    %c0_i32 = arith.constant 0 : i32
    %c0_i32_0 = arith.constant 0 : i32
    %c0_i32_1 = arith.constant 0 : i32
    return %c0_i32, %arg0, %c0_i32_0 : i32, i32, i32
  }
  func.func @transform_1(%arg0: i32) -> (i32, i32, i32) {
    %c0_i32 = arith.constant 0 : i32
    %c0_i32_0 = arith.constant 0 : i32
    %c0_i32_1 = arith.constant 0 : i32
    %c0_i32_2 = arith.constant 0 : i32
    return %c0_i32, %c0_i32_0, %c0_i32_1 : i32, i32, i32
  }
  func.func @transform_2(%arg0: i32) -> (i32, i32, i32) {
    %c0_i32 = arith.constant 0 : i32
    %c0_i32_0 = arith.constant 0 : i32
    %c0_i32_1 = arith.constant 0 : i32
    %c0_i32_2 = arith.constant 0 : i32
    return %c0_i32, %c0_i32_0, %c0_i32_1 : i32, i32, i32
  }
  func.func @transform_3(%arg0: i32) -> (i32, i32, i32) {
    %c0_i32 = arith.constant 0 : i32
    %c0_i32_0 = arith.constant 0 : i32
    %c0_i32_1 = arith.constant 0 : i32
    return %c0_i32, %arg0, %c0_i32_0 : i32, i32, i32
  }
}

module attributes {stable_mosaic.version = 11 : i64} {
  func.func @_bn_relu_kernel(%arg0: i32, %arg1: memref<4x512x128xbf16, #tpu.memory_space<vmem>>, %arg2: memref<1x1x128xf32, #tpu.memory_space<vmem>>, %arg3: memref<1x1x128xf32, #tpu.memory_space<vmem>>, %arg4: memref<4x512x128xbf16, #tpu.memory_space<vmem>>) attributes {dimension_semantics = [#tpu.dimension_semantics<parallel>], iteration_bounds = array<i64: 1>, scalar_prefetch = 0 : i64, scratch_operands = 0 : i64, tpu.core_type = #tpu.core_type<tc>, window_params = [{transform_indices = @transform_0, window_bounds = array<i64: 4, 512, 128>}, {pipeline_mode = #tpu.pipeline_mode<synchronous>, transform_indices = @transform_1, window_bounds = array<i64: 1, 1, 128>}, {pipeline_mode = #tpu.pipeline_mode<synchronous>, transform_indices = @transform_2, window_bounds = array<i64: 1, 1, 128>}, {transform_indices = @transform_3, window_bounds = array<i64: 4, 512, 128>}]} {
    %c0 = arith.constant 0 : index
    %c0_0 = arith.constant 0 : index
    %c0_1 = arith.constant 0 : index
    %0 = vector.load %arg1[%c0, %c0_0, %c0_1] : memref<4x512x128xbf16, #tpu.memory_space<vmem>>, vector<4x512x128xbf16>
    %1 = arith.extf %0 : vector<4x512x128xbf16> to vector<4x512x128xf32>
    %c0_2 = arith.constant 0 : index
    %c0_3 = arith.constant 0 : index
    %c0_4 = arith.constant 0 : index
    %2 = vector.load %arg2[%c0_2, %c0_3, %c0_4] : memref<1x1x128xf32, #tpu.memory_space<vmem>>, vector<1x1x128xf32>
    %3 = vector.broadcast %2 : vector<1x1x128xf32> to vector<4x512x128xf32>
    %4 = arith.mulf %1, %3 : vector<4x512x128xf32>
    %c0_5 = arith.constant 0 : index
    %c0_6 = arith.constant 0 : index
    %c0_7 = arith.constant 0 : index
    %5 = vector.load %arg3[%c0_5, %c0_6, %c0_7] : memref<1x1x128xf32, #tpu.memory_space<vmem>>, vector<1x1x128xf32>
    %6 = vector.broadcast %5 : vector<1x1x128xf32> to vector<4x512x128xf32>
    %7 = arith.addf %4, %6 : vector<4x512x128xf32>
    %cst = arith.constant 0.000000e+00 : f32
    %8 = vector.broadcast %cst : f32 to vector<4x512x128xf32>
    %9 = arith.maximumf %7, %8 : vector<4x512x128xf32>
    %10 = arith.truncf %9 : vector<4x512x128xf32> to vector<4x512x128xbf16>
    %c0_8 = arith.constant 0 : index
    %c0_9 = arith.constant 0 : index
    %c0_10 = arith.constant 0 : index
    %11 = vector.load %arg4[%c0_8, %c0_9, %c0_10] : memref<4x512x128xbf16, #tpu.memory_space<vmem>>, vector<4x512x128xbf16>
    tpu.vector_store %arg4[%c0_8, %c0_9, %c0_10], %10 {strides = array<i32>} : memref<4x512x128xbf16, #tpu.memory_space<vmem>>, vector<4x512x128xbf16>,
    return
  }
  func.func @transform_0(%arg0: i32) -> (i32, i32, i32) {
    %c0_i32 = arith.constant 0 : i32
    %c0_i32_0 = arith.constant 0 : i32
    %c0_i32_1 = arith.constant 0 : i32
    return %c0_i32, %arg0, %c0_i32_0 : i32, i32, i32
  }
  func.func @transform_1(%arg0: i32) -> (i32, i32, i32) {
    %c0_i32 = arith.constant 0 : i32
    %c0_i32_0 = arith.constant 0 : i32
    %c0_i32_1 = arith.constant 0 : i32
    %c0_i32_2 = arith.constant 0 : i32
    return %c0_i32, %c0_i32_0, %c0_i32_1 : i32, i32, i32
  }
  func.func @transform_2(%arg0: i32) -> (i32, i32, i32) {
    %c0_i32 = arith.constant 0 : i32
    %c0_i32_0 = arith.constant 0 : i32
    %c0_i32_1 = arith.constant 0 : i32
    %c0_i32_2 = arith.constant 0 : i32
    return %c0_i32, %c0_i32_0, %c0_i32_1 : i32, i32, i32
  }
  func.func @transform_3(%arg0: i32) -> (i32, i32, i32) {
    %c0_i32 = arith.constant 0 : i32
    %c0_i32_0 = arith.constant 0 : i32
    %c0_i32_1 = arith.constant 0 : i32
    return %c0_i32, %arg0, %c0_i32_0 : i32, i32, i32
  }
}

module attributes {stable_mosaic.version = 11 : i64} {
  func.func @_gemm_stats_kernel(%arg0: i32, %arg1: i32, %arg2: i32, %arg3: memref<1x512x128xbf16, #tpu.memory_space<vmem>>, %arg4: memref<1x128x128xbf16, #tpu.memory_space<vmem>>, %arg5: memref<1x512x128xbf16, #tpu.memory_space<vmem>>, %arg6: memref<1x1x128xf32, #tpu.memory_space<vmem>>, %arg7: memref<1x1x128xf32, #tpu.memory_space<vmem>>) attributes {dimension_semantics = [#tpu.dimension_semantics<parallel>, #tpu.dimension_semantics<parallel>, #tpu.dimension_semantics<arbitrary>], iteration_bounds = array<i64: 1, 4, 1>, scalar_prefetch = 0 : i64, scratch_operands = 0 : i64, tpu.core_type = #tpu.core_type<tc>, window_params = [{transform_indices = @transform_0, window_bounds = array<i64: 1, 512, 128>}, {transform_indices = @transform_1, window_bounds = array<i64: 1, 128, 128>}, {transform_indices = @transform_2, window_bounds = array<i64: 1, 512, 128>}, {transform_indices = @transform_3, window_bounds = array<i64: 1, 1, 128>}, {transform_indices = @transform_4, window_bounds = array<i64: 1, 1, 128>}]} {
    %c0_i32 = arith.constant 0 : i32
    %0 = arith.cmpi eq, %arg2, %c0_i32 : i32
    %1 = arith.extui %0 : i1 to i32
    %c0_i32_0 = arith.constant 0 : i32
    %2 = arith.cmpi ne, %1, %c0_i32_0 : i32
    scf.if %2 {
      %cst_23 = arith.constant 0.000000e+00 : f32
      %29 = vector.broadcast %cst_23 : f32 to vector<1x1x128xf32>
      %c0_24 = arith.constant 0 : index
      %c0_25 = arith.constant 0 : index
      %c0_26 = arith.constant 0 : index
      %30 = vector.load %arg6[%c0_24, %c0_25, %c0_26] : memref<1x1x128xf32, #tpu.memory_space<vmem>>, vector<1x1x128xf32>
      tpu.vector_store %arg6[%c0_24, %c0_25, %c0_26], %29 {strides = array<i32>} : memref<1x1x128xf32, #tpu.memory_space<vmem>>, vector<1x1x128xf32>,
      %cst_27 = arith.constant 0.000000e+00 : f32
      %31 = vector.broadcast %cst_27 : f32 to vector<1x1x128xf32>
      %c0_28 = arith.constant 0 : index
      %c0_29 = arith.constant 0 : index
      %c0_30 = arith.constant 0 : index
      %32 = vector.load %arg7[%c0_28, %c0_29, %c0_30] : memref<1x1x128xf32, #tpu.memory_space<vmem>>, vector<1x1x128xf32>
      tpu.vector_store %arg7[%c0_28, %c0_29, %c0_30], %31 {strides = array<i32>} : memref<1x1x128xf32, #tpu.memory_space<vmem>>, vector<1x1x128xf32>,
    } else {
    }
    %c0 = arith.constant 0 : index
    %c0_1 = arith.constant 0 : index
    %c0_2 = arith.constant 0 : index
    %3 = vector.load %arg3[%c0, %c0_1, %c0_2] : memref<1x512x128xbf16, #tpu.memory_space<vmem>>, vector<1x512x128xbf16>
    %4 = vector.shape_cast %3 : vector<1x512x128xbf16> to vector<512x128xbf16>
    %c0_3 = arith.constant 0 : index
    %c0_4 = arith.constant 0 : index
    %c0_5 = arith.constant 0 : index
    %5 = vector.load %arg4[%c0_3, %c0_4, %c0_5] : memref<1x128x128xbf16, #tpu.memory_space<vmem>>, vector<1x128x128xbf16>
    %6 = vector.shape_cast %5 : vector<1x128x128xbf16> to vector<128x128xbf16>
    %cst = arith.constant dense<0.000000e+00> : vector<512x128xf32>
    %7 = tpu.matmul %4, %6, %cst {dimension_numbers = #tpu.dot_dimension_numbers<[1], [0], [0], [1], [0, 0, 1, 1], [], []>} : vector<512x128xbf16>, vector<128x128xbf16>, vector<512x128xf32> -> vector<512x128xf32>
    %8 = arith.truncf %7 : vector<512x128xf32> to vector<512x128xbf16>
    %c0_6 = arith.constant 0 : index
    %c0_7 = arith.constant 0 : index
    %c0_8 = arith.constant 0 : index
    %9 = vector.load %arg5[%c0_6, %c0_7, %c0_8] : memref<1x512x128xbf16, #tpu.memory_space<vmem>>, vector<1x512x128xbf16>
    %10 = vector.shape_cast %9 : vector<1x512x128xbf16> to vector<512x128xbf16>
    %11 = vector.shape_cast %8 : vector<512x128xbf16> to vector<1x512x128xbf16>
    tpu.vector_store %arg5[%c0_6, %c0_7, %c0_8], %11 {strides = array<i32>} : memref<1x512x128xbf16, #tpu.memory_space<vmem>>, vector<1x512x128xbf16>,
    %c0_9 = arith.constant 0 : index
    %c0_10 = arith.constant 0 : index
    %c0_11 = arith.constant 0 : index
    %12 = vector.load %arg6[%c0_9, %c0_10, %c0_11] : memref<1x1x128xf32, #tpu.memory_space<vmem>>, vector<1x1x128xf32>
    %13 = vector.shape_cast %12 : vector<1x1x128xf32> to vector<1x128xf32>
    %cst_12 = arith.constant dense<0.000000e+00> : vector<128xf32>
    %14 = vector.multi_reduction <add>, %7, %cst_12 [0] : vector<512x128xf32> to vector<128xf32>
    %15 = vector.shape_cast %14 : vector<128xf32> to vector<1x128xf32>
    %16 = arith.addf %13, %15 : vector<1x128xf32>
    %c0_13 = arith.constant 0 : index
    %c0_14 = arith.constant 0 : index
    %c0_15 = arith.constant 0 : index
    %17 = vector.load %arg6[%c0_13, %c0_14, %c0_15] : memref<1x1x128xf32, #tpu.memory_space<vmem>>, vector<1x1x128xf32>
    %18 = vector.shape_cast %17 : vector<1x1x128xf32> to vector<1x128xf32>
    %19 = vector.shape_cast %16 : vector<1x128xf32> to vector<1x1x128xf32>
    tpu.vector_store %arg6[%c0_13, %c0_14, %c0_15], %19 {strides = array<i32>} : memref<1x1x128xf32, #tpu.memory_space<vmem>>, vector<1x1x128xf32>,
    %c0_16 = arith.constant 0 : index
    %c0_17 = arith.constant 0 : index
    %c0_18 = arith.constant 0 : index
    %20 = vector.load %arg7[%c0_16, %c0_17, %c0_18] : memref<1x1x128xf32, #tpu.memory_space<vmem>>, vector<1x1x128xf32>
    %21 = vector.shape_cast %20 : vector<1x1x128xf32> to vector<1x128xf32>
    %22 = arith.mulf %7, %7 : vector<512x128xf32>
    %cst_19 = arith.constant dense<0.000000e+00> : vector<128xf32>
    %23 = vector.multi_reduction <add>, %22, %cst_19 [0] : vector<512x128xf32> to vector<128xf32>
    %24 = vector.shape_cast %23 : vector<128xf32> to vector<1x128xf32>
    %25 = arith.addf %21, %24 : vector<1x128xf32>
    %c0_20 = arith.constant 0 : index
    %c0_21 = arith.constant 0 : index
    %c0_22 = arith.constant 0 : index
    %26 = vector.load %arg7[%c0_20, %c0_21, %c0_22] : memref<1x1x128xf32, #tpu.memory_space<vmem>>, vector<1x1x128xf32>
    %27 = vector.shape_cast %26 : vector<1x1x128xf32> to vector<1x128xf32>
    %28 = vector.shape_cast %25 : vector<1x128xf32> to vector<1x1x128xf32>
    tpu.vector_store %arg7[%c0_20, %c0_21, %c0_22], %28 {strides = array<i32>} : memref<1x1x128xf32, #tpu.memory_space<vmem>>, vector<1x1x128xf32>,
    return
  }
  func.func @transform_0(%arg0: i32, %arg1: i32, %arg2: i32) -> (i32, i32, i32) {
    %c0_i32 = arith.constant 0 : i32
    %c0_i32_0 = arith.constant 0 : i32
    return %arg1, %arg2, %c0_i32 : i32, i32, i32
  }
  func.func @transform_1(%arg0: i32, %arg1: i32, %arg2: i32) -> (i32, i32, i32) {
    %c0_i32 = arith.constant 0 : i32
    %c0_i32_0 = arith.constant 0 : i32
    return %arg1, %c0_i32, %arg0 : i32, i32, i32
  }
  func.func @transform_2(%arg0: i32, %arg1: i32, %arg2: i32) -> (i32, i32, i32) {
    %c0_i32 = arith.constant 0 : i32
    return %arg1, %arg2, %arg0 : i32, i32, i32
  }
  func.func @transform_3(%arg0: i32, %arg1: i32, %arg2: i32) -> (i32, i32, i32) {
    %c0_i32 = arith.constant 0 : i32
    %c0_i32_0 = arith.constant 0 : i32
    return %arg1, %c0_i32, %arg0 : i32, i32, i32
  }
  func.func @transform_4(%arg0: i32, %arg1: i32, %arg2: i32) -> (i32, i32, i32) {
    %c0_i32 = arith.constant 0 : i32
    %c0_i32_0 = arith.constant 0 : i32
    return %arg1, %c0_i32, %arg0 : i32, i32, i32
  }
}

module attributes {stable_mosaic.version = 11 : i64} {
  func.func @_gemm_tanh_kernel(%arg0: i32, %arg1: i32, %arg2: i32, %arg3: memref<1x1024x128xbf16, #tpu.memory_space<vmem>>, %arg4: memref<1x128x128xbf16, #tpu.memory_space<vmem>>, %arg5: memref<1x1024x128xbf16, #tpu.memory_space<vmem>>) attributes {dimension_semantics = [#tpu.dimension_semantics<parallel>, #tpu.dimension_semantics<parallel>, #tpu.dimension_semantics<parallel>], iteration_bounds = array<i64: 1, 4, 2>, scalar_prefetch = 0 : i64, scratch_operands = 0 : i64, tpu.core_type = #tpu.core_type<tc>, window_params = [{transform_indices = @transform_0, window_bounds = array<i64: 1, 1024, 128>}, {transform_indices = @transform_1, window_bounds = array<i64: 1, 128, 128>}, {transform_indices = @transform_2, window_bounds = array<i64: 1, 1024, 128>}]} {
    %c0 = arith.constant 0 : index
    %c0_0 = arith.constant 0 : index
    %c0_1 = arith.constant 0 : index
    %0 = vector.load %arg3[%c0, %c0_0, %c0_1] : memref<1x1024x128xbf16, #tpu.memory_space<vmem>>, vector<1x1024x128xbf16>
    %1 = vector.shape_cast %0 : vector<1x1024x128xbf16> to vector<1024x128xbf16>
    %c0_2 = arith.constant 0 : index
    %c0_3 = arith.constant 0 : index
    %c0_4 = arith.constant 0 : index
    %2 = vector.load %arg4[%c0_2, %c0_3, %c0_4] : memref<1x128x128xbf16, #tpu.memory_space<vmem>>, vector<1x128x128xbf16>
    %3 = vector.shape_cast %2 : vector<1x128x128xbf16> to vector<128x128xbf16>
    %cst = arith.constant dense<0.000000e+00> : vector<1024x128xf32>
    %4 = tpu.matmul %1, %3, %cst {dimension_numbers = #tpu.dot_dimension_numbers<[1], [0], [0], [1], [0, 0, 1, 1], [], []>} : vector<1024x128xbf16>, vector<128x128xbf16>, vector<1024x128xf32> -> vector<1024x128xf32>
    %5 = math.tanh %4 : vector<1024x128xf32>
    %6 = arith.truncf %5 : vector<1024x128xf32> to vector<1024x128xbf16>
    %c0_5 = arith.constant 0 : index
    %c0_6 = arith.constant 0 : index
    %c0_7 = arith.constant 0 : index
    %7 = vector.load %arg5[%c0_5, %c0_6, %c0_7] : memref<1x1024x128xbf16, #tpu.memory_space<vmem>>, vector<1x1024x128xbf16>
    %8 = vector.shape_cast %7 : vector<1x1024x128xbf16> to vector<1024x128xbf16>
    %9 = vector.shape_cast %6 : vector<1024x128xbf16> to vector<1x1024x128xbf16>
    tpu.vector_store %arg5[%c0_5, %c0_6, %c0_7], %9 {strides = array<i32>} : memref<1x1024x128xbf16, #tpu.memory_space<vmem>>, vector<1x1024x128xbf16>,
    return
  }
  func.func @transform_0(%arg0: i32, %arg1: i32, %arg2: i32) -> (i32, i32, i32) {
    %c0_i32 = arith.constant 0 : i32
    %c0_i32_0 = arith.constant 0 : i32
    return %arg1, %arg2, %c0_i32 : i32, i32, i32
  }
  func.func @transform_1(%arg0: i32, %arg1: i32, %arg2: i32) -> (i32, i32, i32) {
    %c0_i32 = arith.constant 0 : i32
    %c0_i32_0 = arith.constant 0 : i32
    return %arg1, %c0_i32, %arg0 : i32, i32, i32
  }
  func.func @transform_2(%arg0: i32, %arg1: i32, %arg2: i32) -> (i32, i32, i32) {
    %c0_i32 = arith.constant 0 : i32
    return %arg1, %arg2, %arg0 : i32, i32, i32
  }
}

</mosaic_0001>

<llo_original>
// kernel: generator_forward.10
$region0: #{generator_forward.10}
  #allocation0 [shape = 'u32[]', space=smem, size = 0x4, offset = 0x4, fixed_abs, tag = 'smem constant byte address 0x4 - core index']
  #allocation1 [shape = 'u32[144,128]{1,0:T(1,128)}', space=vmem, size = 0x12000, scoped, tag = 'internal scratch']
  %s0 = inlined_call_operand.vmem [shape: bf16[1,32,128], index: 0, kind: input, shape index: {}]
  %s1 = inlined_call_operand.vmem [shape: f32[1,1,128], index: 1, kind: input, shape index: {}]
  %s2 = inlined_call_operand.vmem [shape: f32[1,1,128], index: 2, kind: input, shape index: {}]
  %s3 = inlined_call_operand.vmem [shape: bf16[1,32,128], index: 3, kind: output, shape index: {}]
  %s4 = sld [smem:[#allocation0]]
  $region22: #{generator_forward.10} parent=0
    _
  %s6 = ssub.s32 1, %s4
  %s7 = scalar_select 0, %s6, %s4
  // Predicated region
  $region2: #{generator_forward.10} parent=0 // pred_check
    _
  $region3: #{generator_forward.10} parent=0 // pred_check_branch
    %9 = sbr.rel (0) target = $region5
  $region4: #{generator_forward.10} parent=0 // pred_region
    _
  $region5: #{generator_forward.10} parent=0 // pred_fallthru
    _
  // Predicated region
  $region6: #{generator_forward.10} parent=0 // pred_check
    _
  $region7: #{generator_forward.10} parent=0 // pred_check_branch
    %11 = sbr.rel (0) target = $region9
  $region8: #{generator_forward.10} parent=0 // pred_region
    _
  $region9: #{generator_forward.10} parent=0 // pred_fallthru
    _
  // Predicated region
  $region10: #{generator_forward.10} parent=0 // pred_check
    _
  $region11: #{generator_forward.10} parent=0 // pred_check_branch
    %13 = sbr.rel (0) target = $region13
  $region12: #{generator_forward.10} parent=0 // pred_region
    _
  $region13: #{generator_forward.10} parent=0 // pred_fallthru
    _
  %v14 = vld [vmem:[%s0] sm:$0xf]
  %v15 = vld [vmem:[%s0 + $0x4] sm:$0xf]
  %v16 = vld [vmem:[%s0 + $0x8] sm:$0xf]
  %v17 = vld [vmem:[%s0 + $0xc] sm:$0xf]
  %v18 = vunpack.c.l.bf16 %v14
  %v19 = vunpack.c.l.bf16 %v15
  %v20 = vunpack.c.l.bf16 %v16
  %v21 = vunpack.c.l.bf16 %v17
  %v22 = vld [vmem:[%s1] sm:$0x1]
  %v24 = vlaneseq
  %v25 = vshrl.u32 %v24, 7
  %v26 = vsub.s32 0, %v25
  %v27 = vrot.slane %v22, %v26
  %v29 = vmul.f32 %v18, %v27
  %v30 = vmul.f32 %v19, %v27
  %v31 = vmul.f32 %v20, %v27
  %v32 = vmul.f32 %v21, %v27
  %v33 = vld [vmem:[%s2] sm:$0x1]
  %v35 = vlaneseq
  %v36 = vshrl.u32 %v35, 7
  %v37 = vsub.s32 0, %v36
  %v38 = vrot.slane %v33, %v37
  %v40 = vadd.f32 %v29, %v38
  %v41 = vadd.f32 %v30, %v38
  %v42 = vadd.f32 %v31, %v38
  %v43 = vadd.f32 %v32, %v38
  %v44 = vmax.f32 %v40, 0.0
  %v45 = vmax.f32 %v41, 0.0
  %v46 = vmax.f32 %v42, 0.0
  %v47 = vmax.f32 %v43, 0.0
  %v48 = vpack.c.bf16 %v45, %v44
  %v49 = vpack.c.bf16 %v47, %v46
  %v52 = vunpack.c.l.b16 %v48
  %v53 = vunpack.c.h.b16 %v48
  %v54 = vunpack.c.l.b16 %v49
  %v55 = vunpack.c.h.b16 %v49
  %v56 = vpack.c.b16 %v52, %v52
  %v57 = vpack.c.b16 %v53, %v53
  %v58 = vpack.c.b16 %v54, %v54
  %v59 = vpack.c.b16 %v55, %v55
  %64 = vst [vmem:[%s3] sm:$0xf] %v56
  %65 = vst [vmem:[%s3 + $0x4] sm:$0xf] %v57
  %66 = vst [vmem:[%s3 + $0x8] sm:$0xf] %v58
  %67 = vst [vmem:[%s3 + $0xc] sm:$0xf] %v59
  // Predicated region
  $region14: #{generator_forward.10} parent=0 // pred_check
    _
  $region15: #{generator_forward.10} parent=0 // pred_check_branch
    %69 = sbr.rel (0) target = $region17
  $region16: #{generator_forward.10} parent=0 // pred_region
    _
  $region17: #{generator_forward.10} parent=0 // pred_fallthru
    _
  // Predicated region
  $region18: #{generator_forward.10} parent=0 // pred_check
    _
  $region19: #{generator_forward.10} parent=0 // pred_check_branch
    %71 = sbr.rel (0) target = $region21
  $region20: #{generator_forward.10} parent=0 // pred_region
    _
  $region21: #{generator_forward.10} parent=0 // pred_fallthru
    _

// kernel: generator_forward.9
$region0: #{generator_forward.9}
  #allocation0 [shape = 'u32[]', space=smem, size = 0x4, offset = 0x4, fixed_abs, tag = 'smem constant byte address 0x4 - core index']
  #allocation1 [shape = 'u32[144,128]{1,0:T(1,128)}', space=vmem, size = 0x12000, scoped, tag = 'internal scratch']
  %s0 = inlined_call_operand.vmem [shape: bf16[1,32,256], index: 0, kind: input, shape index: {}]
  %s1 = inlined_call_operand.vmem [shape: bf16[1,256,128], index: 1, kind: input, shape index: {}]
  %s2 = inlined_call_operand.vmem [shape: bf16[1,32,128], index: 2, kind: output, shape index: {0}]
  %s3 = inlined_call_operand.vmem [shape: f32[1,1,128], index: 3, kind: output, shape index: {1}]
  %s4 = inlined_call_operand.vmem [shape: f32[1,1,128], index: 4, kind: output, shape index: {2}]
  %5 = xla_tuple %s2, %s3, %s4
  %s6 = sld [smem:[#allocation0]]
  $region38: #{generator_forward.9} parent=0
    _
  %s8 = ssub.s32 1, %s6
  %s9 = scalar_select 0, %s8, %s6
  // Predicated region
  $region2: #{generator_forward.9} parent=0 // pred_check
    _
  $region3: #{generator_forward.9} parent=0 // pred_check_branch
    %11 = sbr.rel (0) target = $region5
  $region4: #{generator_forward.9} parent=0 // pred_region
    _
  $region5: #{generator_forward.9} parent=0 // pred_fallthru
    _
  // Predicated region
  $region6: #{generator_forward.9} parent=0 // pred_check
    _
  $region7: #{generator_forward.9} parent=0 // pred_check_branch
    %13 = sbr.rel (0) target = $region9
  $region8: #{generator_forward.9} parent=0 // pred_region
    _
  $region9: #{generator_forward.9} parent=0 // pred_fallthru
    _
  %p15 = scmp.eq.s32.totalorder 0, 0
  // Predicated region
  $region10: #{generator_forward.9} parent=0 // pred_check
    %p16 = pneg %p15
  $region11: #{generator_forward.9} parent=0 // pred_check_branch
    %18 = sbr.rel (%p16) target = $region13
  $region12: #{generator_forward.9} parent=0 // pred_region
    %19 = vst [vmem:[%s3] sm:$0x1] 0.0
    %20 = vst [vmem:[%s4] sm:$0x1] 0.0
  $region13: #{generator_forward.9} parent=0 // pred_fallthru
    _
  %v21 = vld [vmem:[%s0] sm:$0xff]
  %v22 = vld [vmem:[%s0 + $0x8] sm:$0xff]
  %v23 = vld [vmem:[%s0 + $0x10] sm:$0xff]
  %v24 = vld [vmem:[%s0 + $0x18] sm:$0xff]
  %v25 = vld [vmem:[%s1] sm:$0xf]
  %v26 = vld [vmem:[%s1 + $0x4] sm:$0xf]
  %v27 = vld [vmem:[%s1 + $0x8] sm:$0xf]
  %v28 = vld [vmem:[%s1 + $0xc] sm:$0xf]
  %v29 = vld [vmem:[%s1 + $0x10] sm:$0xf]
  %v30 = vld [vmem:[%s1 + $0x14] sm:$0xf]
  %v31 = vld [vmem:[%s1 + $0x18] sm:$0xf]
  %v32 = vld [vmem:[%s1 + $0x1c] sm:$0xf]
  %v33 = vld [vmem:[%s1 + $0x20] sm:$0xf]
  %v34 = vld [vmem:[%s1 + $0x24] sm:$0xf]
  %v35 = vld [vmem:[%s1 + $0x28] sm:$0xf]
  %v36 = vld [vmem:[%s1 + $0x2c] sm:$0xf]
  %v37 = vld [vmem:[%s1 + $0x30] sm:$0xf]
  %v38 = vld [vmem:[%s1 + $0x34] sm:$0xf]
  %v39 = vld [vmem:[%s1 + $0x38] sm:$0xf]
  %v40 = vld [vmem:[%s1 + $0x3c] sm:$0xf]
  %v41 = vld [vmem:[%s1 + $0x40] sm:$0xf]
  %v42 = vld [vmem:[%s1 + $0x44] sm:$0xf]
  %v43 = vld [vmem:[%s1 + $0x48] sm:$0xf]
  %v44 = vld [vmem:[%s1 + $0x4c] sm:$0xf]
  %v45 = vld [vmem:[%s1 + $0x50] sm:$0xf]
  %v46 = vld [vmem:[%s1 + $0x54] sm:$0xf]
  %v47 = vld [vmem:[%s1 + $0x58] sm:$0xf]
  %v48 = vld [vmem:[%s1 + $0x5c] sm:$0xf]
  %v49 = vld [vmem:[%s1 + $0x60] sm:$0xf]
  %v50 = vld [vmem:[%s1 + $0x64] sm:$0xf]
  %v51 = vld [vmem:[%s1 + $0x68] sm:$0xf]
  %v52 = vld [vmem:[%s1 + $0x6c] sm:$0xf]
  %v53 = vld [vmem:[%s1 + $0x70] sm:$0xf]
  %v54 = vld [vmem:[%s1 + $0x74] sm:$0xf]
  %v55 = vld [vmem:[%s1 + $0x78] sm:$0xf]
  %v56 = vld [vmem:[%s1 + $0x7c] sm:$0xf]
  %v61 = vunpack.c.l.b16 %v21
  %v62 = vunpack.c.h.b16 %v21
  %v63 = vunpack.c.l.b16 %v22
  %v64 = vunpack.c.h.b16 %v22
  %v65 = vunpack.c.l.b16 %v23
  %v66 = vunpack.c.h.b16 %v23
  %v67 = vunpack.c.l.b16 %v24
  %v68 = vunpack.c.h.b16 %v24
  %v69 = vpack.c.b16 %v63, %v61
  %v70 = vpack.c.b16 %v64, %v62
  %v71 = vpack.c.b16 %v67, %v65
  %v72 = vpack.c.b16 %v68, %v66
  %v109 = vunpack.c.l.b16 %v25
  %v110 = vunpack.c.l.b16 %v26
  %v111 = vunpack.c.l.b16 %v27
  %v112 = vunpack.c.l.b16 %v28
  %v113 = vunpack.c.l.b16 %v29
  %v114 = vunpack.c.l.b16 %v30
  %v115 = vunpack.c.l.b16 %v31
  %v116 = vunpack.c.l.b16 %v32
  %v117 = vunpack.c.l.b16 %v33
  %v118 = vunpack.c.l.b16 %v34
  %v119 = vunpack.c.l.b16 %v35
  %v120 = vunpack.c.l.b16 %v36
  %v121 = vunpack.c.l.b16 %v37
  %v122 = vunpack.c.l.b16 %v38
  %v123 = vunpack.c.l.b16 %v39
  %v124 = vunpack.c.l.b16 %v40
  %v125 = vunpack.c.l.b16 %v41
  %v126 = vunpack.c.l.b16 %v42
  %v127 = vunpack.c.l.b16 %v43
  %v128 = vunpack.c.l.b16 %v44
  %v129 = vunpack.c.l.b16 %v45
  %v130 = vunpack.c.l.b16 %v46
  %v131 = vunpack.c.l.b16 %v47
  %v132 = vunpack.c.l.b16 %v48
  %v133 = vunpack.c.l.b16 %v49
  %v134 = vunpack.c.l.b16 %v50
  %v135 = vunpack.c.l.b16 %v51
  %v136 = vunpack.c.l.b16 %v52
  %v137 = vunpack.c.l.b16 %v53
  %v138 = vunpack.c.l.b16 %v54
  %v139 = vunpack.c.l.b16 %v55
  %v140 = vunpack.c.l.b16 %v56
  %v141 = vpack.c.b16 %v110, %v109
  %v142 = vpack.c.b16 %v112, %v111
  %v143 = vpack.c.b16 %v114, %v113
  %v144 = vpack.c.b16 %v116, %v115
  %v145 = vpack.c.b16 %v118, %v117
  %v146 = vpack.c.b16 %v120, %v119
  %v147 = vpack.c.b16 %v122, %v121
  %v148 = vpack.c.b16 %v124, %v123
  %v149 = vpack.c.b16 %v126, %v125
  %v150 = vpack.c.b16 %v128, %v127
  %v151 = vpack.c.b16 %v130, %v129
  %v152 = vpack.c.b16 %v132, %v131
  %v153 = vpack.c.b16 %v134, %v133
  %v154 = vpack.c.b16 %v136, %v135
  %v155 = vpack.c.b16 %v138, %v137
  %v156 = vpack.c.b16 %v140, %v139
  %173 = vmatprep.subr.bf16.mxu0 0
  %174 = vmatpush1.bf16.msra.mxu0 %v148
  %175 = vmatprep.subr.bf16.mxu0 0
  %176 = vmatpush1.bf16.msra.mxu0 %v147
  %177 = vmatprep.subr.bf16.mxu0 0
  %178 = vmatpush1.bf16.msra.mxu0 %v146
  %179 = vmatprep.subr.bf16.mxu0 0
  %180 = vmatpush1.bf16.msra.mxu0 %v145
  %181 = vmatprep.subr.bf16.mxu0 0
  %182 = vmatpush1.bf16.msra.mxu0 %v144
  %183 = vmatprep.subr.bf16.mxu0 0
  %184 = vmatpush1.bf16.msra.mxu0 %v143
  %185 = vmatprep.subr.bf16.mxu0 0
  %186 = vmatpush1.bf16.msra.mxu0 %v142
  %187 = vmatprep.subr.bf16.mxu0 0
  %188 = vmatpush1.bf16.msra.mxu0 %v141
  %189 = vmatprep.subr.bf16.mxu0 0
  %190 = vmatpush2.bf16.msra.mxu0 %v156
  %191 = vmatprep.subr.bf16.mxu0 0
  %192 = vmatpush2.bf16.msra.mxu0 %v155
  %193 = vmatprep.subr.bf16.mxu0 0
  %194 = vmatpush2.bf16.msra.mxu0 %v154
  %195 = vmatprep.subr.bf16.mxu0 0
  %196 = vmatpush2.bf16.msra.mxu0 %v153
  %197 = vmatprep.subr.bf16.mxu0 0
  %198 = vmatpush2.bf16.msra.mxu0 %v152
  %199 = vmatprep.subr.bf16.mxu0 0
  %200 = vmatpush2.bf16.msra.mxu0 %v151
  %201 = vmatprep.subr.bf16.mxu0 0
  %202 = vmatpush2.bf16.msra.mxu0 %v150
  %203 = vmatprep.subr.bf16.mxu0 0
  %204 = vmatpush2.bf16.msra.mxu0 %v149
  %205 = vmatprep.mubr.bf16.mxu0 %v70
  %206 = vmatmul.mubr.bf16.gmra.mxu0 %v69
  %v207 = vpop.f32.mrf.mxu0
  %v208 = vadd.f32 0.0, %v207
  %v209 = vpop.f32.mrf.mxu0
  %v210 = vpop.f32.mrf.mxu0
  %v211 = vadd.f32 0.0, %v210
  %v212 = vpop.f32.mrf.mxu0
  %213 = vmatprep.mubr.bf16.mxu0 %v72
  %214 = vmatmul.mubr.bf16.gmra.mxu0 %v71
  %v215 = vpop.f32.mrf.mxu0
  %v216 = vadd.f32 0.0, %v215
  %v217 = vpop.f32.mrf.mxu0
  %v218 = vpop.f32.mrf.mxu0
  %v219 = vadd.f32 0.0, %v218
  %v220 = vpop.f32.mrf.mxu0
  %221 = vdwg.mxu0
  %v222 = vpack.c.bf16 %v211, %v208
  %v223 = vpack.c.bf16 %v219, %v216
  %v226 = vunpack.c.l.b16 %v222
  %v227 = vunpack.c.h.b16 %v222
  %v228 = vunpack.c.l.b16 %v223
  %v229 = vunpack.c.h.b16 %v223
  %v230 = vpack.c.b16 %v226, %v226
  %v231 = vpack.c.b16 %v227, %v227
  %v232 = vpack.c.b16 %v228, %v228
  %v233 = vpack.c.b16 %v229, %v229
  %238 = vst [vmem:[%s2] sm:$0xf] %v230
  %239 = vst [vmem:[%s2 + $0x4] sm:$0xf] %v231
  %240 = vst [vmem:[%s2 + $0x8] sm:$0xf] %v232
  %241 = vst [vmem:[%s2 + $0xc] sm:$0xf] %v233
  %v242 = vld [vmem:[%s3] sm:$0x1]
  %v243 = vadd.f32 %v208, %v211
  %v244 = vadd.f32 %v243, %v216
  %v245 = vadd.f32 %v244, %v219
  %v246 = vrot.slane %v245, 4
  %v247 = vadd.f32 %v245, %v246
  %v248 = vrot.slane %v247, 2
  %v249 = vadd.f32 %v247, %v248
  %v250 = vrot.slane %v249, 1
  %v251 = vadd.f32 %v249, %v250
  %v252 = vadd.f32 %v242, %v251
  %253 = vst [vmem:[%s3] sm:$0x1] %v252
  %v254 = vld [vmem:[%s4] sm:$0x1]
  %v255 = vmul.f32 %v208, %v208
  %v256 = vmul.f32 %v211, %v211
  %v257 = vmul.f32 %v216, %v216
  %v258 = vmul.f32 %v219, %v219
  %v259 = vadd.f32 %v255, %v256
  %v260 = vadd.f32 %v259, %v257
  %v261 = vadd.f32 %v260, %v258
  %v262 = vrot.slane %v261, 4
  %v263 = vadd.f32 %v261, %v262
  %v264 = vrot.slane %v263, 2
  %v265 = vadd.f32 %v263, %v264
  %v266 = vrot.slane %v265, 1
  %v267 = vadd.f32 %v265, %v266
  %v268 = vadd.f32 %v254, %v267
  %269 = vst [vmem:[%s4] sm:$0x1] %v268
  // Predicated region
  $region14: #{generator_forward.9} parent=0 // pred_check
    _
  $region15: #{generator_forward.9} parent=0 // pred_check_branch
    %271 = sbr.rel (0) target = $region17
  $region16: #{generator_forward.9} parent=0 // pred_region
    _
  $region17: #{generator_forward.9} parent=0 // pred_fallthru
    _
  // Predicated region
  $region18: #{generator_forward.9} parent=0 // pred_check
    _
  $region19: #{generator_forward.9} parent=0 // pred_check_branch
    %273 = sbr.rel (0) target = $region21
  $region20: #{generator_forward.9} parent=0 // pred_region
    _
  $region21: #{generator_forward.9} parent=0 // pred_fallthru
    _
  // Predicated region
  $region22: #{generator_forward.9} parent=0 // pred_check
    _
  $region23: #{generator_forward.9} parent=0 // pred_check_branch
    %275 = sbr.rel (0) target = $region25
  $region24: #{generator_forward.9} parent=0 // pred_region
    _
  $region25: #{generator_forward.9} parent=0 // pred_fallthru
    _
  // Predicated region
  $region26: #{generator_forward.9} parent=0 // pred_check
    _
  $region27: #{generator_forward.9} parent=0 // pred_check_branch
    %277 = sbr.rel (0) target = $region29
  $region28: #{generator_forward.9} parent=0 // pred_region
    _
  $region29: #{generator_forward.9} parent=0 // pred_fallthru
    _
  // Predicated region
  $region30: #{generator_forward.9} parent=0 // pred_check
    _
  $region31: #{generator_forward.9} parent=0 // pred_check_branch
    %279 = sbr.rel (0) target = $region33
  $region32: #{generator_forward.9} parent=0 // pred_region
    _
  $region33: #{generator_forward.9} parent=0 // pred_fallthru
    _
  // Predicated region
  $region34: #{generator_forward.9} parent=0 // pred_check
    _
  $region35: #{generator_forward.9} parent=0 // pred_check_branch
    %281 = sbr.rel (0) target = $region37
  $region36: #{generator_forward.9} parent=0 // pred_region
    _
  $region37: #{generator_forward.9} parent=0 // pred_fallthru
    _

// kernel: generator_forward.12
$region0: #{generator_forward.12}
  #allocation0 [shape = 'u32[]', space=smem, size = 0x4, offset = 0x4, fixed_abs, tag = 'smem constant byte address 0x4 - core index']
  #allocation1 [shape = 'u32[144,128]{1,0:T(1,128)}', space=vmem, size = 0x12000, scoped, tag = 'internal scratch']
  %s0 = inlined_call_operand.vmem [shape: bf16[4,32,128], index: 0, kind: input, shape index: {}]
  %s1 = inlined_call_operand.vmem [shape: f32[1,1,128], index: 1, kind: input, shape index: {}]
  %s2 = inlined_call_operand.vmem [shape: f32[1,1,128], index: 2, kind: input, shape index: {}]
  %s3 = inlined_call_operand.vmem [shape: bf16[4,32,128], index: 3, kind: output, shape index: {}]
  %s4 = sld [smem:[#allocation0]]
  $region22: #{generator_forward.12} parent=0
    _
  %s6 = ssub.s32 1, %s4
  %s7 = scalar_select 0, %s6, %s4
  // Predicated region
  $region2: #{generator_forward.12} parent=0 // pred_check
    _
  $region3: #{generator_forward.12} parent=0 // pred_check_branch
    %9 = sbr.rel (0) target = $region5
  $region4: #{generator_forward.12} parent=0 // pred_region
    _
  $region5: #{generator_forward.12} parent=0 // pred_fallthru
    _
  // Predicated region
  $region6: #{generator_forward.12} parent=0 // pred_check
    _
  $region7: #{generator_forward.12} parent=0 // pred_check_branch
    %11 = sbr.rel (0) target = $region9
  $region8: #{generator_forward.12} parent=0 // pred_region
    _
  $region9: #{generator_forward.12} parent=0 // pred_fallthru
    _
  // Predicated region
  $region10: #{generator_forward.12} parent=0 // pred_check
    _
  $region11: #{generator_forward.12} parent=0 // pred_check_branch
    %13 = sbr.rel (0) target = $region13
  $region12: #{generator_forward.12} parent=0 // pred_region
    _
  $region13: #{generator_forward.12} parent=0 // pred_fallthru
    _
  %v14 = vld [vmem:[%s0] sm:$0xf]
  %v15 = vld [vmem:[%s0 + $0x4] sm:$0xf]
  %v16 = vld [vmem:[%s0 + $0x8] sm:$0xf]
  %v17 = vld [vmem:[%s0 + $0xc] sm:$0xf]
  %v18 = vld [vmem:[%s0 + $0x10] sm:$0xf]
  %v19 = vld [vmem:[%s0 + $0x14] sm:$0xf]
  %v20 = vld [vmem:[%s0 + $0x18] sm:$0xf]
  %v21 = vld [vmem:[%s0 + $0x1c] sm:$0xf]
  %v22 = vld [vmem:[%s0 + $0x20] sm:$0xf]
  %v23 = vld [vmem:[%s0 + $0x24] sm:$0xf]
  %v24 = vld [vmem:[%s0 + $0x28] sm:$0xf]
  %v25 = vld [vmem:[%s0 + $0x2c] sm:$0xf]
  %v26 = vld [vmem:[%s0 + $0x30] sm:$0xf]
  %v27 = vld [vmem:[%s0 + $0x34] sm:$0xf]
  %v28 = vld [vmem:[%s0 + $0x38] sm:$0xf]
  %v29 = vld [vmem:[%s0 + $0x3c] sm:$0xf]
  %v30 = vunpack.c.l.bf16 %v14
  %v31 = vunpack.c.l.bf16 %v15
  %v32 = vunpack.c.l.bf16 %v16
  %v33 = vunpack.c.l.bf16 %v17
  %v34 = vunpack.c.l.bf16 %v18
  %v35 = vunpack.c.l.bf16 %v19
  %v36 = vunpack.c.l.bf16 %v20
  %v37 = vunpack.c.l.bf16 %v21
  %v38 = vunpack.c.l.bf16 %v22
  %v39 = vunpack.c.l.bf16 %v23
  %v40 = vunpack.c.l.bf16 %v24
  %v41 = vunpack.c.l.bf16 %v25
  %v42 = vunpack.c.l.bf16 %v26
  %v43 = vunpack.c.l.bf16 %v27
  %v44 = vunpack.c.l.bf16 %v28
  %v45 = vunpack.c.l.bf16 %v29
  %v46 = vld [vmem:[%s1] sm:$0x1]
  %v48 = vlaneseq
  %v49 = vshrl.u32 %v48, 7
  %v50 = vsub.s32 0, %v49
  %v51 = vrot.slane %v46, %v50
  %v53 = vmul.f32 %v30, %v51
  %v54 = vmul.f32 %v31, %v51
  %v55 = vmul.f32 %v32, %v51
  %v56 = vmul.f32 %v33, %v51
  %v57 = vmul.f32 %v34, %v51
  %v58 = vmul.f32 %v35, %v51
  %v59 = vmul.f32 %v36, %v51
  %v60 = vmul.f32 %v37, %v51
  %v61 = vmul.f32 %v38, %v51
  %v62 = vmul.f32 %v39, %v51
  %v63 = vmul.f32 %v40, %v51
  %v64 = vmul.f32 %v41, %v51
  %v65 = vmul.f32 %v42, %v51
  %v66 = vmul.f32 %v43, %v51
  %v67 = vmul.f32 %v44, %v51
  %v68 = vmul.f32 %v45, %v51
  %v69 = vld [vmem:[%s2] sm:$0x1]
  %v71 = vlaneseq
  %v72 = vshrl.u32 %v71, 7
  %v73 = vsub.s32 0, %v72
  %v74 = vrot.slane %v69, %v73
  %v76 = vadd.f32 %v53, %v74
  %v77 = vadd.f32 %v54, %v74
  %v78 = vadd.f32 %v55, %v74
  %v79 = vadd.f32 %v56, %v74
  %v80 = vadd.f32 %v57, %v74
  %v81 = vadd.f32 %v58, %v74
  %v82 = vadd.f32 %v59, %v74
  %v83 = vadd.f32 %v60, %v74
  %v84 = vadd.f32 %v61, %v74
  %v85 = vadd.f32 %v62, %v74
  %v86 = vadd.f32 %v63, %v74
  %v87 = vadd.f32 %v64, %v74
  %v88 = vadd.f32 %v65, %v74
  %v89 = vadd.f32 %v66, %v74
  %v90 = vadd.f32 %v67, %v74
  %v91 = vadd.f32 %v68, %v74
  %v92 = vmax.f32 %v76, 0.0
  %v93 = vmax.f32 %v77, 0.0
  %v94 = vmax.f32 %v78, 0.0
  %v95 = vmax.f32 %v79, 0.0
  %v96 = vmax.f32 %v80, 0.0
  %v97 = vmax.f32 %v81, 0.0
  %v98 = vmax.f32 %v82, 0.0
  %v99 = vmax.f32 %v83, 0.0
  %v100 = vmax.f32 %v84, 0.0
  %v101 = vmax.f32 %v85, 0.0
  %v102 = vmax.f32 %v86, 0.0
  %v103 = vmax.f32 %v87, 0.0
  %v104 = vmax.f32 %v88, 0.0
  %v105 = vmax.f32 %v89, 0.0
  %v106 = vmax.f32 %v90, 0.0
  %v107 = vmax.f32 %v91, 0.0
  %v108 = vpack.c.bf16 %v93, %v92
  %v109 = vpack.c.bf16 %v95, %v94
  %v110 = vpack.c.bf16 %v97, %v96
  %v111 = vpack.c.bf16 %v99, %v98
  %v112 = vpack.c.bf16 %v101, %v100
  %v113 = vpack.c.bf16 %v103, %v102
  %v114 = vpack.c.bf16 %v105, %v104
  %v115 = vpack.c.bf16 %v107, %v106
  %v124 = vunpack.c.l.b16 %v108
  %v125 = vunpack.c.h.b16 %v108
  %v126 = vunpack.c.l.b16 %v109
  %v127 = vunpack.c.h.b16 %v109
  %v128 = vunpack.c.l.b16 %v110
  %v129 = vunpack.c.h.b16 %v110
  %v130 = vunpack.c.l.b16 %v111
  %v131 = vunpack.c.h.b16 %v111
  %v132 = vunpack.c.l.b16 %v112
  %v133 = vunpack.c.h.b16 %v112
  %v134 = vunpack.c.l.b16 %v113
  %v135 = vunpack.c.h.b16 %v113
  %v136 = vunpack.c.l.b16 %v114
  %v137 = vunpack.c.h.b16 %v114
  %v138 = vunpack.c.l.b16 %v115
  %v139 = vunpack.c.h.b16 %v115
  %v140 = vpack.c.b16 %v124, %v124
  %v141 = vpack.c.b16 %v125, %v125
  %v142 = vpack.c.b16 %v126, %v126
  %v143 = vpack.c.b16 %v127, %v127
  %v144 = vpack.c.b16 %v128, %v128
  %v145 = vpack.c.b16 %v129, %v129
  %v146 = vpack.c.b16 %v130, %v130
  %v147 = vpack.c.b16 %v131, %v131
  %v148 = vpack.c.b16 %v132, %v132
  %v149 = vpack.c.b16 %v133, %v133
  %v150 = vpack.c.b16 %v134, %v134
  %v151 = vpack.c.b16 %v135, %v135
  %v152 = vpack.c.b16 %v136, %v136
  %v153 = vpack.c.b16 %v137, %v137
  %v154 = vpack.c.b16 %v138, %v138
  %v155 = vpack.c.b16 %v139, %v139
  %172 = vst [vmem:[%s3] sm:$0xf] %v140
  %173 = vst [vmem:[%s3 + $0x4] sm:$0xf] %v141
  %174 = vst [vmem:[%s3 + $0x8] sm:$0xf] %v142
  %175 = vst [vmem:[%s3 + $0xc] sm:$0xf] %v143
  %176 = vst [vmem:[%s3 + $0x10] sm:$0xf] %v144
  %177 = vst [vmem:[%s3 + $0x14] sm:$0xf] %v145
  %178 = vst [vmem:[%s3 + $0x18] sm:$0xf] %v146
  %179 = vst [vmem:[%s3 + $0x1c] sm:$0xf] %v147
  %180 = vst [vmem:[%s3 + $0x20] sm:$0xf] %v148
  %181 = vst [vmem:[%s3 + $0x24] sm:$0xf] %v149
  %182 = vst [vmem:[%s3 + $0x28] sm:$0xf] %v150
  %183 = vst [vmem:[%s3 + $0x2c] sm:$0xf] %v151
  %184 = vst [vmem:[%s3 + $0x30] sm:$0xf] %v152
  %185 = vst [vmem:[%s3 + $0x34] sm:$0xf] %v153
  %186 = vst [vmem:[%s3 + $0x38] sm:$0xf] %v154
  %187 = vst [vmem:[%s3 + $0x3c] sm:$0xf] %v155
  // Predicated region
  $region14: #{generator_forward.12} parent=0 // pred_check
    _
  $region15: #{generator_forward.12} parent=0 // pred_check_branch
    %189 = sbr.rel (0) target = $region17
  $region16: #{generator_forward.12} parent=0 // pred_region
    _
  $region17: #{generator_forward.12} parent=0 // pred_fallthru
    _
  // Predicated region
  $region18: #{generator_forward.12} parent=0 // pred_check
    _
  $region19: #{generator_forward.12} parent=0 // pred_check_branch
    %191 = sbr.rel (0) target = $region21
  $region20: #{generator_forward.12} parent=0 // pred_region
    _
  $region21: #{generator_forward.12} parent=0 // pred_fallthru
    _

// kernel: generator_forward.11
$region0: #{generator_forward.11}
  #allocation0 [shape = 'u32[]', space=smem, size = 0x4, offset = 0x4, fixed_abs, tag = 'smem constant byte address 0x4 - core index']
  #allocation1 [shape = 'u32[144,128]{1,0:T(1,128)}', space=vmem, size = 0x12000, scoped, tag = 'internal scratch']
  %s0 = inlined_call_operand.vmem [shape: bf16[4,32,256], index: 0, kind: input, shape index: {}]
  %s1 = inlined_call_operand.vmem [shape: bf16[4,256,128], index: 1, kind: input, shape index: {}]
  %s2 = inlined_call_operand.vmem [shape: bf16[4,32,128], index: 2, kind: output, shape index: {0}]
  %s3 = inlined_call_operand.vmem [shape: f32[4,1,128], index: 3, kind: output, shape index: {1}]
  %s4 = inlined_call_operand.vmem [shape: f32[4,1,128], index: 4, kind: output, shape index: {2}]
  %5 = xla_tuple %s2, %s3, %s4
  %s6 = sld [smem:[#allocation0]]
  $region61: #{generator_forward.11} parent=0
    _
  %s8 = ssub.s32 1, %s6
  %s9 = scalar_select 0, %s8, %s6
  loop: start=0, step=1, limit=6
  $region2: #{generator_forward.11} parent=0 // loop_pre_header
    _
  $region3: #{generator_forward.11} parent=0 // loop_header
    %s11 = sphi 0, %s15
    %p12 = scmp.ge.s32.totalorder %s11, 6
    %s18 = sphi 0, %s37
    %s19 = sphi 0, %s33
    %s20 = sphi 0, %s29
    %s21 = sphi 0, %s18
    %s22 = sphi 0, %s19
    %s23 = sphi 0, %s20
    %s24 = sphi 0, %s21
    %s25 = sphi 0, %s22
    %s26 = sphi 0, %s23
    %s42 = sphi 0, %s44
    %s45 = sphi 0, %s42
    %s46 = sphi 0, %s45
    %s62 = sphi 0, %s46
    %s70 = sphi 0, %s72
    %s73 = sphi 0, %s70
    %s74 = sphi 0, %s73
    %s90 = sphi 0, %s74
    %s100 = sphi 0, %s102
    %s103 = sphi 0, %s100
    %s104 = sphi 0, %s103
    %s120 = sphi 0, %s104
    %s128 = sphi 0, %s130
    %s131 = sphi 0, %s128
    %s132 = sphi 0, %s131
    %s148 = sphi 0, %s132
    %s156 = sphi 0, %s158
    %s159 = sphi 0, %s156
    %s160 = sphi 0, %s159
    %s176 = sphi 0, %s160
  $region4: #{generator_forward.11} parent=0 // loop_header_branch
    %14 = sbr.rel (%p12) target = $region8
  $region5: #{generator_forward.11} parent=0 // loop_body
    %s16 = ssub.s32 %s11, 1
    %s17 = ssub.s32 %s11, 2
    %s27 = sadd.s32 1, %s20
    %p28 = scmp.ge.s32.totalorder %s27, 1
    %s29 = scalar_select %p28, 0, %s27
    %s30 = sadd.s32 1, %s19
    %s31 = scalar_select %p28, %s30, %s19
    %p32 = scmp.ge.s32.totalorder %s31, 4
    %s33 = scalar_select %p32, 0, %s31
    %s34 = sadd.s32 1, %s18
    %s35 = scalar_select %p32, %s34, %s18
    %p36 = scmp.ge.s32.totalorder %s35, 1
    %s37 = scalar_select %p36, 0, %s35
    %s38 = ssub.s32 %s19, %s33
    %s39 = ssub.s32 %s20, %s29
    %s40 = sor.u32 %s38, %s39
    %p41 = scmp.eq.s32.totalorder %s40, 0
    %s43 = sadd.s32 %s42, 1
    %s44 = scalar_select %p41, %s42, %s43
    %p47 = pneg %p41
    %p48 = scmp.eq.s32.totalorder %s11, 3
    %p49 = por %p47, %p48
    %p50 = scmp.ne.s32.totalorder %s42, %s45
    %p51 = scmp.eq.s32.totalorder %s11, 0
    %p52 = por %p50, %p51
    %p53 = scmp.ne.s32.totalorder %s42, %s45
    %p54 = scmp.eq.s32.totalorder %s16, 3
    %p55 = por %p53, %p54
    %p56 = scmp.ne.s32.totalorder %s45, %s46
    %p57 = scmp.eq.s32.totalorder %s16, 0
    %p58 = por %p56, %p57
    %p59 = scmp.ne.s32.totalorder %s45, %s46
    %p60 = scmp.eq.s32.totalorder %s17, 3
    %p61 = por %p59, %p60
    %p63 = scmp.ne.s32.totalorder %s46, %s62
    %p64 = scmp.eq.s32.totalorder %s17, 0
    %p65 = por %p63, %p64
    %s66 = ssub.s32 %s19, %s33
    %s67 = ssub.s32 %s18, %s37
    %s68 = sor.u32 %s66, %s67
    %p69 = scmp.eq.s32.totalorder %s68, 0
    %s71 = sadd.s32 %s70, 1
    %s72 = scalar_select %p69, %s70, %s71
    %p75 = pneg %p69
    %p76 = scmp.eq.s32.totalorder %s11, 3
    %p77 = por %p75, %p76
    %p78 = scmp.ne.s32.totalorder %s70, %s73
    %p79 = scmp.eq.s32.totalorder %s11, 0
    %p80 = por %p78, %p79
    %p81 = scmp.ne.s32.totalorder %s70, %s73
    %p82 = scmp.eq.s32.totalorder %s16, 3
    %p83 = por %p81, %p82
    %p84 = scmp.ne.s32.totalorder %s73, %s74
    %p85 = scmp.eq.s32.totalorder %s16, 0
    %p86 = por %p84, %p85
    %p87 = scmp.ne.s32.totalorder %s73, %s74
    %p88 = scmp.eq.s32.totalorder %s17, 3
    %p89 = por %p87, %p88
    %p91 = scmp.ne.s32.totalorder %s74, %s90
    %p92 = scmp.eq.s32.totalorder %s17, 0
    %p93 = por %p91, %p92
    %s94 = ssub.s32 %s19, %s33
    %s95 = ssub.s32 %s20, %s29
    %s96 = sor.u32 %s94, %s95
    %s97 = ssub.s32 %s18, %s37
    %s98 = sor.u32 %s96, %s97
    %p99 = scmp.eq.s32.totalorder %s98, 0
    %s101 = sadd.s32 %s100, 1
    %s102 = scalar_select %p99, %s100, %s101
    %p105 = pneg %p99
    %p106 = scmp.eq.s32.totalorder %s11, 3
    %p107 = por %p105, %p106
    %p108 = scmp.ne.s32.totalorder %s100, %s103
    %p109 = scmp.eq.s32.totalorder %s11, 0
    %p110 = por %p108, %p109
    %p111 = scmp.ne.s32.totalorder %s100, %s103
    %p112 = scmp.eq.s32.totalorder %s16, 3
    %p113 = por %p111, %p112
    %p114 = scmp.ne.s32.totalorder %s103, %s104
    %p115 = scmp.eq.s32.totalorder %s16, 0
    %p116 = por %p114, %p115
    %p117 = scmp.ne.s32.totalorder %s103, %s104
    %p118 = scmp.eq.s32.totalorder %s17, 3
    %p119 = por %p117, %p118
    %p121 = scmp.ne.s32.totalorder %s104, %s120
    %p122 = scmp.eq.s32.totalorder %s17, 0
    %p123 = por %p121, %p122
    %s124 = ssub.s32 %s19, %s33
    %s125 = ssub.s32 %s18, %s37
    %s126 = sor.u32 %s124, %s125
    %p127 = scmp.eq.s32.totalorder %s126, 0
    %s129 = sadd.s32 %s128, 1
    %s130 = scalar_select %p127, %s128, %s129
    %p133 = pneg %p127
    %p134 = scmp.eq.s32.totalorder %s11, 3
    %p135 = por %p133, %p134
    %p136 = scmp.ne.s32.totalorder %s128, %s131
    %p137 = scmp.eq.s32.totalorder %s11, 0
    %p138 = por %p136, %p137
    %p139 = scmp.ne.s32.totalorder %s128, %s131
    %p140 = scmp.eq.s32.totalorder %s16, 3
    %p141 = por %p139, %p140
    %p142 = scmp.ne.s32.totalorder %s131, %s132
    %p143 = scmp.eq.s32.totalorder %s16, 0
    %p144 = por %p142, %p143
    %p145 = scmp.ne.s32.totalorder %s131, %s132
    %p146 = scmp.eq.s32.totalorder %s17, 3
    %p147 = por %p145, %p146
    %p149 = scmp.ne.s32.totalorder %s132, %s148
    %p150 = scmp.eq.s32.totalorder %s17, 0
    %p151 = por %p149, %p150
    %s152 = ssub.s32 %s19, %s33
    %s153 = ssub.s32 %s18, %s37
    %s154 = sor.u32 %s152, %s153
    %p155 = scmp.eq.s32.totalorder %s154, 0
    %s157 = sadd.s32 %s156, 1
    %s158 = scalar_select %p155, %s156, %s157
    %p161 = pneg %p155
    %p162 = scmp.eq.s32.totalorder %s11, 3
    %p163 = por %p161, %p162
    %p164 = scmp.ne.s32.totalorder %s156, %s159
    %p165 = scmp.eq.s32.totalorder %s11, 0
    %p166 = por %p164, %p165
    %p167 = scmp.ne.s32.totalorder %s156, %s159
    %p168 = scmp.eq.s32.totalorder %s16, 3
    %p169 = por %p167, %p168
    %p170 = scmp.ne.s32.totalorder %s159, %s160
    %p171 = scmp.eq.s32.totalorder %s16, 0
    %p172 = por %p170, %p171
    %p173 = scmp.ne.s32.totalorder %s159, %s160
    %p174 = scmp.eq.s32.totalorder %s17, 3
    %p175 = por %p173, %p174
    %p177 = scmp.ne.s32.totalorder %s160, %s176
    %p178 = scmp.eq.s32.totalorder %s17, 0
    %p179 = por %p177, %p178
    %p180 = scmp.le.s32.totalorder 1, %s11
    %p181 = scmp.lt.s32.totalorder %s11, 5
    %p182 = pnand %p180, %p181
    %p183 = pneg %p182
    // Predicated region
    $region9: #{generator_forward.11} parent=5 // pred_check
      _
    $region10: #{generator_forward.11} parent=5 // pred_check_branch
      %185 = sbr.rel (%p182) target = $region12
    $region11: #{generator_forward.11} parent=5 // pred_region
      %s186 = ssub.s32 %s11, 1
    $region12: #{generator_forward.11} parent=5 // pred_fallthru
      _
    %p187 = scmp.lt.s32.totalorder %s11, 4
    // Predicated region
    $region13: #{generator_forward.11} parent=5 // pred_check
      %p188 = pneg %p187
    $region14: #{generator_forward.11} parent=5 // pred_check_branch
      %190 = sbr.rel (%p188) target = $region16
    $region15: #{generator_forward.11} parent=5 // pred_region
      // Predicated region
      $region17: #{generator_forward.11} parent=15 // pred_check
        %p191 = pneg %p52
      $region18: #{generator_forward.11} parent=15 // pred_check_branch
        %193 = sbr.rel (%p191) target = $region20
      $region19: #{generator_forward.11} parent=15 // pred_region
        %s194 = smul.u32 4, %s20
        %p195 = scmp.lt.s32.totalorder %s19, 3
        %s196 = scalar_select %p195, %s19, 3
        %p197 = scmp.lt.s32.totalorder %s194, 3
        %s198 = scalar_select %p197, %s194, 3
        %s199 = smul.addr %s198, 2
        %s200 = smul.addr %s196, 8
        %s201 = sadd.s32 %s199, %s200
        %s202 = smul.addr %s201, 4
        %s203 = scalar_lea.vmem %s0, %s202
        %s204 = smul.u32 4, %s20
      $region20: #{generator_forward.11} parent=15 // pred_fallthru
        _
      // Predicated region
      $region21: #{generator_forward.11} parent=15 // pred_check
        %p205 = pneg %p80
      $region22: #{generator_forward.11} parent=15 // pred_check_branch
        %207 = sbr.rel (%p205) target = $region24
      $region23: #{generator_forward.11} parent=15 // pred_region
        %p208 = scmp.lt.s32.totalorder %s19, 3
        %s209 = scalar_select %p208, %s19, 3
        %p210 = scmp.lt.s32.totalorder %s18, 0
        %s211 = scalar_select %p210, %s18, 0
        %s212 = smul.addr %s209, 32
        %s213 = sadd.s32 %s211, %s212
        %s214 = smul.addr %s213, 4
        %s215 = scalar_lea.vmem %s1, %s214
      $region24: #{generator_forward.11} parent=15 // pred_fallthru
        _
    $region16: #{generator_forward.11} parent=5 // pred_fallthru
      _
    %p216 = scmp.le.s32.totalorder 1, %s11
    %p217 = scmp.lt.s32.totalorder %s11, 5
    %p218 = pnand %p216, %p217
    %p219 = pneg %p218
    // Predicated region
    $region25: #{generator_forward.11} parent=5 // pred_check
      _
    $region26: #{generator_forward.11} parent=5 // pred_check_branch
      %221 = sbr.rel (%p218) target = $region28
    $region27: #{generator_forward.11} parent=5 // pred_region
      %s222 = ssub.s32 %s11, 1
      %s223 = smul.u32 4, %s23
      %p224 = scmp.lt.s32.totalorder %s22, 3
      %s225 = scalar_select %p224, %s22, 3
      %p226 = scmp.lt.s32.totalorder %s223, 3
      %s227 = scalar_select %p226, %s223, 3
      %s228 = smul.addr %s227, 2
      %s229 = smul.addr %s225, 8
      %s230 = sadd.s32 %s228, %s229
      %s231 = smul.addr %s230, 4
      %s232 = scalar_lea.vmem %s0, %s231
      %p233 = pneg %p58
      %p234 = pneg %p55
      %p235 = scmp.lt.s32.totalorder %s22, 3
      %s236 = scalar_select %p235, %s22, 3
      %p237 = scmp.lt.s32.totalorder %s21, 0
      %s238 = scalar_select %p237, %s21, 0
      %s239 = smul.addr %s236, 32
      %s240 = sadd.s32 %s238, %s239
      %s241 = smul.addr %s240, 4
      %s242 = scalar_lea.vmem %s1, %s241
      %p243 = pneg %p86
      %p244 = pneg %p83
      %p245 = pneg %p116
      %p246 = pneg %p113
      %s247 = smul.u32 4, %s23
      %p248 = scmp.lt.s32.totalorder %s22, 3
      %s249 = scalar_select %p248, %s22, 3
      %p250 = scmp.lt.s32.totalorder %s247, 3
      %s251 = scalar_select %p250, %s247, 3
      %p252 = scmp.lt.s32.totalorder %s21, 0
      %s253 = scalar_select %p252, %s21, 0
      %s254 = sadd.s32 %s253, %s251
      %s255 = smul.addr %s249, 4
      %s256 = sadd.s32 %s254, %s255
      %s257 = smul.addr %s256, 4
      %s258 = scalar_lea.vmem %s2, %s257
      %p259 = pneg %p144
      %p260 = pneg %p141
      %p261 = scmp.lt.s32.totalorder %s22, 3
      %s262 = scalar_select %p261, %s22, 3
      %p263 = scmp.lt.s32.totalorder %s21, 0
      %s264 = scalar_select %p263, %s21, 0
      %s265 = sadd.s32 %s264, %s262
      %s266 = scalar_lea.vmem %s3, %s265
      %p267 = pneg %p172
      %p268 = pneg %p169
      %p269 = scmp.lt.s32.totalorder %s22, 3
      %s270 = scalar_select %p269, %s22, 3
      %p271 = scmp.lt.s32.totalorder %s21, 0
      %s272 = scalar_select %p271, %s21, 0
      %s273 = sadd.s32 %s272, %s270
      %s274 = scalar_lea.vmem %s4, %s273
      %s275 = smul.u32 4, %s23
      %p276 = scmp.lt.s32.totalorder %s22, 3
      %s277 = scalar_select %p276, %s22, 3
      %p278 = scmp.lt.s32.totalorder %s275, 3
      %s279 = scalar_select %p278, %s275, 3
      %s280 = smul.addr %s279, 2
      %s281 = smul.addr %s277, 8
      %s282 = sadd.s32 %s280, %s281
      %s283 = smul.addr %s282, 4
      %s284 = scalar_lea.vmem %s0, %s283
      %s285 = smul.u32 4, %s23
      %p286 = scmp.lt.s32.totalorder %s22, 3
      %s287 = scalar_select %p286, %s22, 3
      %p288 = scmp.lt.s32.totalorder %s21, 0
      %s289 = scalar_select %p288, %s21, 0
      %s290 = smul.addr %s287, 32
      %s291 = sadd.s32 %s289, %s290
      %s292 = smul.addr %s291, 4
      %s293 = scalar_lea.vmem %s1, %s292
      %s294 = smul.u32 4, %s23
      %p295 = scmp.lt.s32.totalorder %s22, 3
      %s296 = scalar_select %p295, %s22, 3
      %p297 = scmp.lt.s32.totalorder %s294, 3
      %s298 = scalar_select %p297, %s294, 3
      %p299 = scmp.lt.s32.totalorder %s21, 0
      %s300 = scalar_select %p299, %s21, 0
      %s301 = sadd.s32 %s300, %s298
      %s302 = smul.addr %s296, 4
      %s303 = sadd.s32 %s301, %s302
      %s304 = smul.addr %s303, 4
      %s305 = scalar_lea.vmem %s2, %s304
      %s306 = smul.u32 4, %s23
      %p307 = scmp.lt.s32.totalorder %s22, 3
      %s308 = scalar_select %p307, %s22, 3
      %p309 = scmp.lt.s32.totalorder %s21, 0
      %s310 = scalar_select %p309, %s21, 0
      %s311 = sadd.s32 %s310, %s308
      %s312 = scalar_lea.vmem %s3, %s311
      %p313 = scmp.lt.s32.totalorder %s22, 3
      %s314 = scalar_select %p313, %s22, 3
      %p315 = scmp.lt.s32.totalorder %s21, 0
      %s316 = scalar_select %p315, %s21, 0
      %s317 = sadd.s32 %s316, %s314
      %s318 = scalar_lea.vmem %s4, %s317
      %p320 = scmp.eq.s32.totalorder %s23, 0
      // Predicated region
      $region29: #{generator_forward.11} parent=27 // pred_check
        %p321 = pneg %p320
      $region30: #{generator_forward.11} parent=27 // pred_check_branch
        %323 = sbr.rel (%p321) target = $region32
      $region31: #{generator_forward.11} parent=27 // pred_region
        %324 = vst [vmem:[%s312] sm:$0x1] 0.0
        %325 = vst [vmem:[%s318] sm:$0x1] 0.0
      $region32: #{generator_forward.11} parent=27 // pred_fallthru
        _
      %v326 = vld [vmem:[%s284] sm:$0xff]
      %v327 = vld [vmem:[%s284 + $0x8] sm:$0xff]
      %v328 = vld [vmem:[%s284 + $0x10] sm:$0xff]
      %v329 = vld [vmem:[%s284 + $0x18] sm:$0xff]
      %v330 = vld [vmem:[%s293] sm:$0xf]
      %v331 = vld [vmem:[%s293 + $0x4] sm:$0xf]
      %v332 = vld [vmem:[%s293 + $0x8] sm:$0xf]
      %v333 = vld [vmem:[%s293 + $0xc] sm:$0xf]
      %v334 = vld [vmem:[%s293 + $0x10] sm:$0xf]
      %v335 = vld [vmem:[%s293 + $0x14] sm:$0xf]
      %v336 = vld [vmem:[%s293 + $0x18] sm:$0xf]
      %v337 = vld [vmem:[%s293 + $0x1c] sm:$0xf]
      %v338 = vld [vmem:[%s293 + $0x20] sm:$0xf]
      %v339 = vld [vmem:[%s293 + $0x24] sm:$0xf]
      %v340 = vld [vmem:[%s293 + $0x28] sm:$0xf]
      %v341 = vld [vmem:[%s293 + $0x2c] sm:$0xf]
      %v342 = vld [vmem:[%s293 + $0x30] sm:$0xf]
      %v343 = vld [vmem:[%s293 + $0x34] sm:$0xf]
      %v344 = vld [vmem:[%s293 + $0x38] sm:$0xf]
      %v345 = vld [vmem:[%s293 + $0x3c] sm:$0xf]
      %v346 = vld [vmem:[%s293 + $0x40] sm:$0xf]
      %v347 = vld [vmem:[%s293 + $0x44] sm:$0xf]
      %v348 = vld [vmem:[%s293 + $0x48] sm:$0xf]
      %v349 = vld [vmem:[%s293 + $0x4c] sm:$0xf]
      %v350 = vld [vmem:[%s293 + $0x50] sm:$0xf]
      %v351 = vld [vmem:[%s293 + $0x54] sm:$0xf]
      %v352 = vld [vmem:[%s293 + $0x58] sm:$0xf]
      %v353 = vld [vmem:[%s293 + $0x5c] sm:$0xf]
      %v354 = vld [vmem:[%s293 + $0x60] sm:$0xf]
      %v355 = vld [vmem:[%s293 + $0x64] sm:$0xf]
      %v356 = vld [vmem:[%s293 + $0x68] sm:$0xf]
      %v357 = vld [vmem:[%s293 + $0x6c] sm:$0xf]
      %v358 = vld [vmem:[%s293 + $0x70] sm:$0xf]
      %v359 = vld [vmem:[%s293 + $0x74] sm:$0xf]
      %v360 = vld [vmem:[%s293 + $0x78] sm:$0xf]
      %v361 = vld [vmem:[%s293 + $0x7c] sm:$0xf]
      %v366 = vunpack.c.l.b16 %v326
      %v367 = vunpack.c.h.b16 %v326
      %v368 = vunpack.c.l.b16 %v327
      %v369 = vunpack.c.h.b16 %v327
      %v370 = vunpack.c.l.b16 %v328
      %v371 = vunpack.c.h.b16 %v328
      %v372 = vunpack.c.l.b16 %v329
      %v373 = vunpack.c.h.b16 %v329
      %v374 = vpack.c.b16 %v368, %v366
      %v375 = vpack.c.b16 %v369, %v367
      %v376 = vpack.c.b16 %v372, %v370
      %v377 = vpack.c.b16 %v373, %v371
      %v414 = vunpack.c.l.b16 %v330
      %v415 = vunpack.c.l.b16 %v331
      %v416 = vunpack.c.l.b16 %v332
      %v417 = vunpack.c.l.b16 %v333
      %v418 = vunpack.c.l.b16 %v334
      %v419 = vunpack.c.l.b16 %v335
      %v420 = vunpack.c.l.b16 %v336
      %v421 = vunpack.c.l.b16 %v337
      %v422 = vunpack.c.l.b16 %v338
      %v423 = vunpack.c.l.b16 %v339
      %v424 = vunpack.c.l.b16 %v340
      %v425 = vunpack.c.l.b16 %v341
      %v426 = vunpack.c.l.b16 %v342
      %v427 = vunpack.c.l.b16 %v343
      %v428 = vunpack.c.l.b16 %v344
      %v429 = vunpack.c.l.b16 %v345
      %v430 = vunpack.c.l.b16 %v346
      %v431 = vunpack.c.l.b16 %v347
      %v432 = vunpack.c.l.b16 %v348
      %v433 = vunpack.c.l.b16 %v349
      %v434 = vunpack.c.l.b16 %v350
      %v435 = vunpack.c.l.b16 %v351
      %v436 = vunpack.c.l.b16 %v352
      %v437 = vunpack.c.l.b16 %v353
      %v438 = vunpack.c.l.b16 %v354
      %v439 = vunpack.c.l.b16 %v355
      %v440 = vunpack.c.l.b16 %v356
      %v441 = vunpack.c.l.b16 %v357
      %v442 = vunpack.c.l.b16 %v358
      %v443 = vunpack.c.l.b16 %v359
      %v444 = vunpack.c.l.b16 %v360
      %v445 = vunpack.c.l.b16 %v361
      %v446 = vpack.c.b16 %v415, %v414
      %v447 = vpack.c.b16 %v417, %v416
      %v448 = vpack.c.b16 %v419, %v418
      %v449 = vpack.c.b16 %v421, %v420
      %v450 = vpack.c.b16 %v423, %v422
      %v451 = vpack.c.b16 %v425, %v424
      %v452 = vpack.c.b16 %v427, %v426
      %v453 = vpack.c.b16 %v429, %v428
      %v454 = vpack.c.b16 %v431, %v430
      %v455 = vpack.c.b16 %v433, %v432
      %v456 = vpack.c.b16 %v435, %v434
      %v457 = vpack.c.b16 %v437, %v436
      %v458 = vpack.c.b16 %v439, %v438
      %v459 = vpack.c.b16 %v441, %v440
      %v460 = vpack.c.b16 %v443, %v442
      %v461 = vpack.c.b16 %v445, %v444
      %478 = vmatprep.subr.bf16.mxu0 0
      %479 = vmatpush1.bf16.msra.mxu0 %v453
      %480 = vmatprep.subr.bf16.mxu0 0
      %481 = vmatpush1.bf16.msra.mxu0 %v452
      %482 = vmatprep.subr.bf16.mxu0 0
      %483 = vmatpush1.bf16.msra.mxu0 %v451
      %484 = vmatprep.subr.bf16.mxu0 0
      %485 = vmatpush1.bf16.msra.mxu0 %v450
      %486 = vmatprep.subr.bf16.mxu0 0
      %487 = vmatpush1.bf16.msra.mxu0 %v449
      %488 = vmatprep.subr.bf16.mxu0 0
      %489 = vmatpush1.bf16.msra.mxu0 %v448
      %490 = vmatprep.subr.bf16.mxu0 0
      %491 = vmatpush1.bf16.msra.mxu0 %v447
      %492 = vmatprep.subr.bf16.mxu0 0
      %493 = vmatpush1.bf16.msra.mxu0 %v446
      %494 = vmatprep.subr.bf16.mxu0 0
      %495 = vmatpush2.bf16.msra.mxu0 %v461
      %496 = vmatprep.subr.bf16.mxu0 0
      %497 = vmatpush2.bf16.msra.mxu0 %v460
      %498 = vmatprep.subr.bf16.mxu0 0
      %499 = vmatpush2.bf16.msra.mxu0 %v459
      %500 = vmatprep.subr.bf16.mxu0 0
      %501 = vmatpush2.bf16.msra.mxu0 %v458
      %502 = vmatprep.subr.bf16.mxu0 0
      %503 = vmatpush2.bf16.msra.mxu0 %v457
      %504 = vmatprep.subr.bf16.mxu0 0
      %505 = vmatpush2.bf16.msra.mxu0 %v456
      %506 = vmatprep.subr.bf16.mxu0 0
      %507 = vmatpush2.bf16.msra.mxu0 %v455
      %508 = vmatprep.subr.bf16.mxu0 0
      %509 = vmatpush2.bf16.msra.mxu0 %v454
      %510 = vmatprep.mubr.bf16.mxu0 %v375
      %511 = vmatmul.mubr.bf16.gmra.mxu0 %v374
      %v512 = vpop.f32.mrf.mxu0
      %v513 = vadd.f32 0.0, %v512
      %v514 = vpop.f32.mrf.mxu0
      %v515 = vpop.f32.mrf.mxu0
      %v516 = vadd.f32 0.0, %v515
      %v517 = vpop.f32.mrf.mxu0
      %518 = vmatprep.mubr.bf16.mxu0 %v377
      %519 = vmatmul.mubr.bf16.gmra.mxu0 %v376
      %v520 = vpop.f32.mrf.mxu0
      %v521 = vadd.f32 0.0, %v520
      %v522 = vpop.f32.mrf.mxu0
      %v523 = vpop.f32.mrf.mxu0
      %v524 = vadd.f32 0.0, %v523
      %v525 = vpop.f32.mrf.mxu0
      %526 = vdwg.mxu0
      %v527 = vpack.c.bf16 %v516, %v513
      %v528 = vpack.c.bf16 %v524, %v521
      %v531 = vunpack.c.l.b16 %v527
      %v532 = vunpack.c.h.b16 %v527
      %v533 = vunpack.c.l.b16 %v528
      %v534 = vunpack.c.h.b16 %v528
      %v535 = vpack.c.b16 %v531, %v531
      %v536 = vpack.c.b16 %v532, %v532
      %v537 = vpack.c.b16 %v533, %v533
      %v538 = vpack.c.b16 %v534, %v534
      %543 = vst [vmem:[%s305] sm:$0xf] %v535
      %544 = vst [vmem:[%s305 + $0x4] sm:$0xf] %v536
      %545 = vst [vmem:[%s305 + $0x8] sm:$0xf] %v537
      %546 = vst [vmem:[%s305 + $0xc] sm:$0xf] %v538
      %v547 = vld [vmem:[%s312] sm:$0x1]
      %v548 = vadd.f32 %v513, %v516
      %v549 = vadd.f32 %v548, %v521
      %v550 = vadd.f32 %v549, %v524
      %v551 = vrot.slane %v550, 4
      %v552 = vadd.f32 %v550, %v551
      %v553 = vrot.slane %v552, 2
      %v554 = vadd.f32 %v552, %v553
      %v555 = vrot.slane %v554, 1
      %v556 = vadd.f32 %v554, %v555
      %v557 = vadd.f32 %v547, %v556
      %558 = vst [vmem:[%s312] sm:$0x1] %v557
      %v559 = vld [vmem:[%s318] sm:$0x1]
      %v560 = vmul.f32 %v513, %v513
      %v561 = vmul.f32 %v516, %v516
      %v562 = vmul.f32 %v521, %v521
      %v563 = vmul.f32 %v524, %v524
      %v564 = vadd.f32 %v560, %v561
      %v565 = vadd.f32 %v564, %v562
      %v566 = vadd.f32 %v565, %v563
      %v567 = vrot.slane %v566, 4
      %v568 = vadd.f32 %v566, %v567
      %v569 = vrot.slane %v568, 2
      %v570 = vadd.f32 %v568, %v569
      %v571 = vrot.slane %v570, 1
      %v572 = vadd.f32 %v570, %v571
      %v573 = vadd.f32 %v559, %v572
      %574 = vst [vmem:[%s318] sm:$0x1] %v573
      %s575 = smul.u32 4, %s23
      %p576 = scmp.lt.s32.totalorder %s22, 3
      %s577 = scalar_select %p576, %s22, 3
      %p578 = scmp.lt.s32.totalorder %s575, 3
      %s579 = scalar_select %p578, %s575, 3
      %p580 = scmp.lt.s32.totalorder %s21, 0
      %s581 = scalar_select %p580, %s21, 0
      %s582 = sadd.s32 %s581, %s579
      %s583 = smul.addr %s577, 4
      %s584 = sadd.s32 %s582, %s583
      %s585 = smul.addr %s584, 4
      %s586 = scalar_lea.vmem %s2, %s585
      %p587 = scmp.lt.s32.totalorder %s22, 3
      %s588 = scalar_select %p587, %s22, 3
      %p589 = scmp.lt.s32.totalorder %s21, 0
      %s590 = scalar_select %p589, %s21, 0
      %s591 = sadd.s32 %s590, %s588
      %s592 = scalar_lea.vmem %s3, %s591
      %p593 = scmp.lt.s32.totalorder %s22, 3
      %s594 = scalar_select %p593, %s22, 3
      %p595 = scmp.lt.s32.totalorder %s21, 0
      %s596 = scalar_select %p595, %s21, 0
      %s597 = sadd.s32 %s596, %s594
      %s598 = scalar_lea.vmem %s4, %s597
      // Predicated region
      $region33: #{generator_forward.11} parent=27 // pred_check
        %p599 = pneg %p113
      $region34: #{generator_forward.11} parent=27 // pred_check_branch
        %601 = sbr.rel (%p599) target = $region36
      $region35: #{generator_forward.11} parent=27 // pred_region
        %s602 = smul.u32 4, %s23
      $region36: #{generator_forward.11} parent=27 // pred_fallthru
        _
      // Predicated region
      $region37: #{generator_forward.11} parent=27 // pred_check
        %p603 = pneg %p141
      $region38: #{generator_forward.11} parent=27 // pred_check_branch
        %605 = sbr.rel (%p603) target = $region40
      $region39: #{generator_forward.11} parent=27 // pred_region
        _
      $region40: #{generator_forward.11} parent=27 // pred_fallthru
        _
      // Predicated region
      $region41: #{generator_forward.11} parent=27 // pred_check
        %p606 = pneg %p169
      $region42: #{generator_forward.11} parent=27 // pred_check_branch
        %608 = sbr.rel (%p606) target = $region44
      $region43: #{generator_forward.11} parent=27 // pred_region
        _
      $region44: #{generator_forward.11} parent=27 // pred_fallthru
        _
    $region28: #{generator_forward.11} parent=5 // pred_fallthru
      _
    %p609 = scmp.le.s32.totalorder 2, %s11
    // Predicated region
    $region45: #{generator_forward.11} parent=5 // pred_check
      %p610 = pneg %p609
    $region46: #{generator_forward.11} parent=5 // pred_check_branch
      %612 = sbr.rel (%p610) target = $region48
    $region47: #{generator_forward.11} parent=5 // pred_region
      %s613 = ssub.s32 %s11, 2
      // Predicated region
      $region49: #{generator_forward.11} parent=47 // pred_check
        %p614 = pneg %p119
      $region50: #{generator_forward.11} parent=47 // pred_check_branch
        %616 = sbr.rel (%p614) target = $region52
      $region51: #{generator_forward.11} parent=47 // pred_region
        %s617 = smul.u32 4, %s26
        %p618 = scmp.lt.s32.totalorder %s25, 3
        %s619 = scalar_select %p618, %s25, 3
        %p620 = scmp.lt.s32.totalorder %s617, 3
        %s621 = scalar_select %p620, %s617, 3
        %p622 = scmp.lt.s32.totalorder %s24, 0
        %s623 = scalar_select %p622, %s24, 0
        %s624 = sadd.s32 %s623, %s621
        %s625 = smul.addr %s619, 4
        %s626 = sadd.s32 %s624, %s625
        %s627 = smul.addr %s626, 4
        %s628 = scalar_lea.vmem %s2, %s627
      $region52: #{generator_forward.11} parent=47 // pred_fallthru
        _
      // Predicated region
      $region53: #{generator_forward.11} parent=47 // pred_check
        %p629 = pneg %p147
      $region54: #{generator_forward.11} parent=47 // pred_check_branch
        %631 = sbr.rel (%p629) target = $region56
      $region55: #{generator_forward.11} parent=47 // pred_region
        %p632 = scmp.lt.s32.totalorder %s25, 3
        %s633 = scalar_select %p632, %s25, 3
        %p634 = scmp.lt.s32.totalorder %s24, 0
        %s635 = scalar_select %p634, %s24, 0
        %s636 = sadd.s32 %s635, %s633
        %s637 = scalar_lea.vmem %s3, %s636
      $region56: #{generator_forward.11} parent=47 // pred_fallthru
        _
      // Predicated region
      $region57: #{generator_forward.11} parent=47 // pred_check
        %p638 = pneg %p175
      $region58: #{generator_forward.11} parent=47 // pred_check_branch
        %640 = sbr.rel (%p638) target = $region60
      $region59: #{generator_forward.11} parent=47 // pred_region
        %p641 = scmp.lt.s32.totalorder %s25, 3
        %s642 = scalar_select %p641, %s25, 3
        %p643 = scmp.lt.s32.totalorder %s24, 0
        %s644 = scalar_select %p643, %s24, 0
        %s645 = sadd.s32 %s644, %s642
        %s646 = scalar_lea.vmem %s4, %s645
      $region60: #{generator_forward.11} parent=47 // pred_fallthru
        _
    $region48: #{generator_forward.11} parent=5 // pred_fallthru
      _
  $region6: #{generator_forward.11} parent=0 // loop_footer
    %s15 = sadd.s32 1, %s11
  $region7: #{generator_forward.11} parent=0 // loop_footer_branch
    %10 = sbr.rel target = $region3
  $region8: #{generator_forward.11} parent=0 // loop_exit
    _

// kernel: generator_forward.14
$region0: #{generator_forward.14}
  #allocation0 [shape = 'u32[]', space=smem, size = 0x4, offset = 0x4, fixed_abs, tag = 'smem constant byte address 0x4 - core index']
  #allocation1 [shape = 'u32[144,128]{1,0:T(1,128)}', space=vmem, size = 0x12000, scoped, tag = 'internal scratch']
  %s0 = inlined_call_operand.vmem [shape: bf16[4,128,128], index: 0, kind: input, shape index: {}]
  %s1 = inlined_call_operand.vmem [shape: f32[1,1,128], index: 1, kind: input, shape index: {}]
  %s2 = inlined_call_operand.vmem [shape: f32[1,1,128], index: 2, kind: input, shape index: {}]
  %s3 = inlined_call_operand.vmem [shape: bf16[4,128,128], index: 3, kind: output, shape index: {}]
  %s4 = sld [smem:[#allocation0]]
  $region22: #{generator_forward.14} parent=0
    _
  %s6 = ssub.s32 1, %s4
  %s7 = scalar_select 0, %s6, %s4
  // Predicated region
  $region2: #{generator_forward.14} parent=0 // pred_check
    _
  $region3: #{generator_forward.14} parent=0 // pred_check_branch
    %9 = sbr.rel (0) target = $region5
  $region4: #{generator_forward.14} parent=0 // pred_region
    _
  $region5: #{generator_forward.14} parent=0 // pred_fallthru
    _
  // Predicated region
  $region6: #{generator_forward.14} parent=0 // pred_check
    _
  $region7: #{generator_forward.14} parent=0 // pred_check_branch
    %11 = sbr.rel (0) target = $region9
  $region8: #{generator_forward.14} parent=0 // pred_region
    _
  $region9: #{generator_forward.14} parent=0 // pred_fallthru
    _
  // Predicated region
  $region10: #{generator_forward.14} parent=0 // pred_check
    _
  $region11: #{generator_forward.14} parent=0 // pred_check_branch
    %13 = sbr.rel (0) target = $region13
  $region12: #{generator_forward.14} parent=0 // pred_region
    _
  $region13: #{generator_forward.14} parent=0 // pred_fallthru
    _
  %v14 = vld [vmem:[%s0] sm:$0xf]
  %v15 = vld [vmem:[%s0 + $0x4] sm:$0xf]
  %v16 = vld [vmem:[%s0 + $0x8] sm:$0xf]
  %v17 = vld [vmem:[%s0 + $0xc] sm:$0xf]
  %v18 = vld [vmem:[%s0 + $0x10] sm:$0xf]
  %v19 = vld [vmem:[%s0 + $0x14] sm:$0xf]
  %v20 = vld [vmem:[%s0 + $0x18] sm:$0xf]
  %v21 = vld [vmem:[%s0 + $0x1c] sm:$0xf]
  %v22 = vld [vmem:[%s0 + $0x20] sm:$0xf]
  %v23 = vld [vmem:[%s0 + $0x24] sm:$0xf]
  %v24 = vld [vmem:[%s0 + $0x28] sm:$0xf]
  %v25 = vld [vmem:[%s0 + $0x2c] sm:$0xf]
  %v26 = vld [vmem:[%s0 + $0x30] sm:$0xf]
  %v27 = vld [vmem:[%s0 + $0x34] sm:$0xf]
  %v28 = vld [vmem:[%s0 + $0x38] sm:$0xf]
  %v29 = vld [vmem:[%s0 + $0x3c] sm:$0xf]
  %v30 = vld [vmem:[%s0 + $0x40] sm:$0xf]
  %v31 = vld [vmem:[%s0 + $0x44] sm:$0xf]
  %v32 = vld [vmem:[%s0 + $0x48] sm:$0xf]
  %v33 = vld [vmem:[%s0 + $0x4c] sm:$0xf]
  %v34 = vld [vmem:[%s0 + $0x50] sm:$0xf]
  %v35 = vld [vmem:[%s0 + $0x54] sm:$0xf]
  %v36 = vld [vmem:[%s0 + $0x58] sm:$0xf]
  %v37 = vld [vmem:[%s0 + $0x5c] sm:$0xf]
  %v38 = vld [vmem:[%s0 + $0x60] sm:$0xf]
  %v39 = vld [vmem:[%s0 + $0x64] sm:$0xf]
  %v40 = vld [vmem:[%s0 + $0x68] sm:$0xf]
  %v41 = vld [vmem:[%s0 + $0x6c] sm:$0xf]
  %v42 = vld [vmem:[%s0 + $0x70] sm:$0xf]
  %v43 = vld [vmem:[%s0 + $0x74] sm:$0xf]
  %v44 = vld [vmem:[%s0 + $0x78] sm:$0xf]
  %v45 = vld [vmem:[%s0 + $0x7c] sm:$0xf]
  %v46 = vld [vmem:[%s0 + $0x80] sm:$0xf]
  %v47 = vld [vmem:[%s0 + $0x84] sm:$0xf]
  %v48 = vld [vmem:[%s0 + $0x88] sm:$0xf]
  %v49 = vld [vmem:[%s0 + $0x8c] sm:$0xf]
  %v50 = vld [vmem:[%s0 + $0x90] sm:$0xf]
  %v51 = vld [vmem:[%s0 + $0x94] sm:$0xf]
  %v52 = vld [vmem:[%s0 + $0x98] sm:$0xf]
  %v53 = vld [vmem:[%s0 + $0x9c] sm:$0xf]
  %v54 = vld [vmem:[%s0 + $0xa0] sm:$0xf]
  %v55 = vld [vmem:[%s0 + $0xa4] sm:$0xf]
  %v56 = vld [vmem:[%s0 + $0xa8] sm:$0xf]
  %v57 = vld [vmem:[%s0 + $0xac] sm:$0xf]
  %v58 = vld [vmem:[%s0 + $0xb0] sm:$0xf]
  %v59 = vld [vmem:[%s0 + $0xb4] sm:$0xf]
  %v60 = vld [vmem:[%s0 + $0xb8] sm:$0xf]
  %v61 = vld [vmem:[%s0 + $0xbc] sm:$0xf]
  %v62 = vld [vmem:[%s0 + $0xc0] sm:$0xf]
  %v63 = vld [vmem:[%s0 + $0xc4] sm:$0xf]
  %v64 = vld [vmem:[%s0 + $0xc8] sm:$0xf]
  %v65 = vld [vmem:[%s0 + $0xcc] sm:$0xf]
  %v66 = vld [vmem:[%s0 + $0xd0] sm:$0xf]
  %v67 = vld [vmem:[%s0 + $0xd4] sm:$0xf]
  %v68 = vld [vmem:[%s0 + $0xd8] sm:$0xf]
  %v69 = vld [vmem:[%s0 + $0xdc] sm:$0xf]
  %v70 = vld [vmem:[%s0 + $0xe0] sm:$0xf]
  %v71 = vld [vmem:[%s0 + $0xe4] sm:$0xf]
  %v72 = vld [vmem:[%s0 + $0xe8] sm:$0xf]
  %v73 = vld [vmem:[%s0 + $0xec] sm:$0xf]
  %v74 = vld [vmem:[%s0 + $0xf0] sm:$0xf]
  %v75 = vld [vmem:[%s0 + $0xf4] sm:$0xf]
  %v76 = vld [vmem:[%s0 + $0xf8] sm:$0xf]
  %v77 = vld [vmem:[%s0 + $0xfc] sm:$0xf]
  %v78 = vunpack.c.l.bf16 %v14
  %v79 = vunpack.c.l.bf16 %v15
  %v80 = vunpack.c.l.bf16 %v16
  %v81 = vunpack.c.l.bf16 %v17
  %v82 = vunpack.c.l.bf16 %v18
  %v83 = vunpack.c.l.bf16 %v19
  %v84 = vunpack.c.l.bf16 %v20
  %v85 = vunpack.c.l.bf16 %v21
  %v86 = vunpack.c.l.bf16 %v22
  %v87 = vunpack.c.l.bf16 %v23
  %v88 = vunpack.c.l.bf16 %v24
  %v89 = vunpack.c.l.bf16 %v25
  %v90 = vunpack.c.l.bf16 %v26
  %v91 = vunpack.c.l.bf16 %v27
  %v92 = vunpack.c.l.bf16 %v28
  %v93 = vunpack.c.l.bf16 %v29
  %v94 = vunpack.c.l.bf16 %v30
  %v95 = vunpack.c.l.bf16 %v31
  %v96 = vunpack.c.l.bf16 %v32
  %v97 = vunpack.c.l.bf16 %v33
  %v98 = vunpack.c.l.bf16 %v34
  %v99 = vunpack.c.l.bf16 %v35
  %v100 = vunpack.c.l.bf16 %v36
  %v101 = vunpack.c.l.bf16 %v37
  %v102 = vunpack.c.l.bf16 %v38
  %v103 = vunpack.c.l.bf16 %v39
  %v104 = vunpack.c.l.bf16 %v40
  %v105 = vunpack.c.l.bf16 %v41
  %v106 = vunpack.c.l.bf16 %v42
  %v107 = vunpack.c.l.bf16 %v43
  %v108 = vunpack.c.l.bf16 %v44
  %v109 = vunpack.c.l.bf16 %v45
  %v110 = vunpack.c.l.bf16 %v46
  %v111 = vunpack.c.l.bf16 %v47
  %v112 = vunpack.c.l.bf16 %v48
  %v113 = vunpack.c.l.bf16 %v49
  %v114 = vunpack.c.l.bf16 %v50
  %v115 = vunpack.c.l.bf16 %v51
  %v116 = vunpack.c.l.bf16 %v52
  %v117 = vunpack.c.l.bf16 %v53
  %v118 = vunpack.c.l.bf16 %v54
  %v119 = vunpack.c.l.bf16 %v55
  %v120 = vunpack.c.l.bf16 %v56
  %v121 = vunpack.c.l.bf16 %v57
  %v122 = vunpack.c.l.bf16 %v58
  %v123 = vunpack.c.l.bf16 %v59
  %v124 = vunpack.c.l.bf16 %v60
  %v125 = vunpack.c.l.bf16 %v61
  %v126 = vunpack.c.l.bf16 %v62
  %v127 = vunpack.c.l.bf16 %v63
  %v128 = vunpack.c.l.bf16 %v64
  %v129 = vunpack.c.l.bf16 %v65
  %v130 = vunpack.c.l.bf16 %v66
  %v131 = vunpack.c.l.bf16 %v67
  %v132 = vunpack.c.l.bf16 %v68
  %v133 = vunpack.c.l.bf16 %v69
  %v134 = vunpack.c.l.bf16 %v70
  %v135 = vunpack.c.l.bf16 %v71
  %v136 = vunpack.c.l.bf16 %v72
  %v137 = vunpack.c.l.bf16 %v73
  %v138 = vunpack.c.l.bf16 %v74
  %v139 = vunpack.c.l.bf16 %v75
  %v140 = vunpack.c.l.bf16 %v76
  %v141 = vunpack.c.l.bf16 %v77
  %v142 = vld [vmem:[%s1] sm:$0x1]
  %v144 = vlaneseq
  %v145 = vshrl.u32 %v144, 7
  %v146 = vsub.s32 0, %v145
  %v147 = vrot.slane %v142, %v146
  %v149 = vmul.f32 %v78, %v147
  %v150 = vmul.f32 %v79, %v147
  %v151 = vmul.f32 %v80, %v147
  %v152 = vmul.f32 %v81, %v147
  %v153 = vmul.f32 %v82, %v147
  %v154 = vmul.f32 %v83, %v147
  %v155 = vmul.f32 %v84, %v147
  %v156 = vmul.f32 %v85, %v147
  %v157 = vmul.f32 %v86, %v147
  %v158 = vmul.f32 %v87, %v147
  %v159 = vmul.f32 %v88, %v147
  %v160 = vmul.f32 %v89, %v147
  %v161 = vmul.f32 %v90, %v147
  %v162 = vmul.f32 %v91, %v147
  %v163 = vmul.f32 %v92, %v147
  %v164 = vmul.f32 %v93, %v147
  %v165 = vmul.f32 %v94, %v147
  %v166 = vmul.f32 %v95, %v147
  %v167 = vmul.f32 %v96, %v147
  %v168 = vmul.f32 %v97, %v147
  %v169 = vmul.f32 %v98, %v147
  %v170 = vmul.f32 %v99, %v147
  %v171 = vmul.f32 %v100, %v147
  %v172 = vmul.f32 %v101, %v147
  %v173 = vmul.f32 %v102, %v147
  %v174 = vmul.f32 %v103, %v147
  %v175 = vmul.f32 %v104, %v147
  %v176 = vmul.f32 %v105, %v147
  %v177 = vmul.f32 %v106, %v147
  %v178 = vmul.f32 %v107, %v147
  %v179 = vmul.f32 %v108, %v147
  %v180 = vmul.f32 %v109, %v147
  %v181 = vmul.f32 %v110, %v147
  %v182 = vmul.f32 %v111, %v147
  %v183 = vmul.f32 %v112, %v147
  %v184 = vmul.f32 %v113, %v147
  %v185 = vmul.f32 %v114, %v147
  %v186 = vmul.f32 %v115, %v147
  %v187 = vmul.f32 %v116, %v147
  %v188 = vmul.f32 %v117, %v147
  %v189 = vmul.f32 %v118, %v147
  %v190 = vmul.f32 %v119, %v147
  %v191 = vmul.f32 %v120, %v147
  %v192 = vmul.f32 %v121, %v147
  %v193 = vmul.f32 %v122, %v147
  %v194 = vmul.f32 %v123, %v147
  %v195 = vmul.f32 %v124, %v147
  %v196 = vmul.f32 %v125, %v147
  %v197 = vmul.f32 %v126, %v147
  %v198 = vmul.f32 %v127, %v147
  %v199 = vmul.f32 %v128, %v147
  %v200 = vmul.f32 %v129, %v147
  %v201 = vmul.f32 %v130, %v147
  %v202 = vmul.f32 %v131, %v147
  %v203 = vmul.f32 %v132, %v147
  %v204 = vmul.f32 %v133, %v147
  %v205 = vmul.f32 %v134, %v147
  %v206 = vmul.f32 %v135, %v147
  %v207 = vmul.f32 %v136, %v147
  %v208 = vmul.f32 %v137, %v147
  %v209 = vmul.f32 %v138, %v147
  %v210 = vmul.f32 %v139, %v147
  %v211 = vmul.f32 %v140, %v147
  %v212 = vmul.f32 %v141, %v147
  %v213 = vld [vmem:[%s2] sm:$0x1]
  %v215 = vlaneseq
  %v216 = vshrl.u32 %v215, 7
  %v217 = vsub.s32 0, %v216
  %v218 = vrot.slane %v213, %v217
  %v220 = vadd.f32 %v149, %v218
  %v221 = vadd.f32 %v150, %v218
  %v222 = vadd.f32 %v151, %v218
  %v223 = vadd.f32 %v152, %v218
  %v224 = vadd.f32 %v153, %v218
  %v225 = vadd.f32 %v154, %v218
  %v226 = vadd.f32 %v155, %v218
  %v227 = vadd.f32 %v156, %v218
  %v228 = vadd.f32 %v157, %v218
  %v229 = vadd.f32 %v158, %v218
  %v230 = vadd.f32 %v159, %v218
  %v231 = vadd.f32 %v160, %v218
  %v232 = vadd.f32 %v161, %v218
  %v233 = vadd.f32 %v162, %v218
  %v234 = vadd.f32 %v163, %v218
  %v235 = vadd.f32 %v164, %v218
  %v236 = vadd.f32 %v165, %v218
  %v237 = vadd.f32 %v166, %v218
  %v238 = vadd.f32 %v167, %v218
  %v239 = vadd.f32 %v168, %v218
  %v240 = vadd.f32 %v169, %v218
  %v241 = vadd.f32 %v170, %v218
  %v242 = vadd.f32 %v171, %v218
  %v243 = vadd.f32 %v172, %v218
  %v244 = vadd.f32 %v173, %v218
  %v245 = vadd.f32 %v174, %v218
  %v246 = vadd.f32 %v175, %v218
  %v247 = vadd.f32 %v176, %v218
  %v248 = vadd.f32 %v177, %v218
  %v249 = vadd.f32 %v178, %v218
  %v250 = vadd.f32 %v179, %v218
  %v251 = vadd.f32 %v180, %v218
  %v252 = vadd.f32 %v181, %v218
  %v253 = vadd.f32 %v182, %v218
  %v254 = vadd.f32 %v183, %v218
  %v255 = vadd.f32 %v184, %v218
  %v256 = vadd.f32 %v185, %v218
  %v257 = vadd.f32 %v186, %v218
  %v258 = vadd.f32 %v187, %v218
  %v259 = vadd.f32 %v188, %v218
  %v260 = vadd.f32 %v189, %v218
  %v261 = vadd.f32 %v190, %v218
  %v262 = vadd.f32 %v191, %v218
  %v263 = vadd.f32 %v192, %v218
  %v264 = vadd.f32 %v193, %v218
  %v265 = vadd.f32 %v194, %v218
  %v266 = vadd.f32 %v195, %v218
  %v267 = vadd.f32 %v196, %v218
  %v268 = vadd.f32 %v197, %v218
  %v269 = vadd.f32 %v198, %v218
  %v270 = vadd.f32 %v199, %v218
  %v271 = vadd.f32 %v200, %v218
  %v272 = vadd.f32 %v201, %v218
  %v273 = vadd.f32 %v202, %v218
  %v274 = vadd.f32 %v203, %v218
  %v275 = vadd.f32 %v204, %v218
  %v276 = vadd.f32 %v205, %v218
  %v277 = vadd.f32 %v206, %v218
  %v278 = vadd.f32 %v207, %v218
  %v279 = vadd.f32 %v208, %v218
  %v280 = vadd.f32 %v209, %v218
  %v281 = vadd.f32 %v210, %v218
  %v282 = vadd.f32 %v211, %v218
  %v283 = vadd.f32 %v212, %v218
  %v284 = vmax.f32 %v220, 0.0
  %v285 = vmax.f32 %v221, 0.0
  %v286 = vmax.f32 %v222, 0.0
  %v287 = vmax.f32 %v223, 0.0
  %v288 = vmax.f32 %v224, 0.0
  %v289 = vmax.f32 %v225, 0.0
  %v290 = vmax.f32 %v226, 0.0
  %v291 = vmax.f32 %v227, 0.0
  %v292 = vmax.f32 %v228, 0.0
  %v293 = vmax.f32 %v229, 0.0
  %v294 = vmax.f32 %v230, 0.0
  %v295 = vmax.f32 %v231, 0.0
  %v296 = vmax.f32 %v232, 0.0
  %v297 = vmax.f32 %v233, 0.0
  %v298 = vmax.f32 %v234, 0.0
  %v299 = vmax.f32 %v235, 0.0
  %v300 = vmax.f32 %v236, 0.0
  %v301 = vmax.f32 %v237, 0.0
  %v302 = vmax.f32 %v238, 0.0
  %v303 = vmax.f32 %v239, 0.0
  %v304 = vmax.f32 %v240, 0.0
  %v305 = vmax.f32 %v241, 0.0
  %v306 = vmax.f32 %v242, 0.0
  %v307 = vmax.f32 %v243, 0.0
  %v308 = vmax.f32 %v244, 0.0
  %v309 = vmax.f32 %v245, 0.0
  %v310 = vmax.f32 %v246, 0.0
  %v311 = vmax.f32 %v247, 0.0
  %v312 = vmax.f32 %v248, 0.0
  %v313 = vmax.f32 %v249, 0.0
  %v314 = vmax.f32 %v250, 0.0
  %v315 = vmax.f32 %v251, 0.0
  %v316 = vmax.f32 %v252, 0.0
  %v317 = vmax.f32 %v253, 0.0
  %v318 = vmax.f32 %v254, 0.0
  %v319 = vmax.f32 %v255, 0.0
  %v320 = vmax.f32 %v256, 0.0
  %v321 = vmax.f32 %v257, 0.0
  %v322 = vmax.f32 %v258, 0.0
  %v323 = vmax.f32 %v259, 0.0
  %v324 = vmax.f32 %v260, 0.0
  %v325 = vmax.f32 %v261, 0.0
  %v326 = vmax.f32 %v262, 0.0
  %v327 = vmax.f32 %v263, 0.0
  %v328 = vmax.f32 %v264, 0.0
  %v329 = vmax.f32 %v265, 0.0
  %v330 = vmax.f32 %v266, 0.0
  %v331 = vmax.f32 %v267, 0.0
  %v332 = vmax.f32 %v268, 0.0
  %v333 = vmax.f32 %v269, 0.0
  %v334 = vmax.f32 %v270, 0.0
  %v335 = vmax.f32 %v271, 0.0
  %v336 = vmax.f32 %v272, 0.0
  %v337 = vmax.f32 %v273, 0.0
  %v338 = vmax.f32 %v274, 0.0
  %v339 = vmax.f32 %v275, 0.0
  %v340 = vmax.f32 %v276, 0.0
  %v341 = vmax.f32 %v277, 0.0
  %v342 = vmax.f32 %v278, 0.0
  %v343 = vmax.f32 %v279, 0.0
  %v344 = vmax.f32 %v280, 0.0
  %v345 = vmax.f32 %v281, 0.0
  %v346 = vmax.f32 %v282, 0.0
  %v347 = vmax.f32 %v283, 0.0
  %v348 = vpack.c.bf16 %v285, %v284
  %v349 = vpack.c.bf16 %v287, %v286
  %v350 = vpack.c.bf16 %v289, %v288
  %v351 = vpack.c.bf16 %v291, %v290
  %v352 = vpack.c.bf16 %v293, %v292
  %v353 = vpack.c.bf16 %v295, %v294
  %v354 = vpack.c.bf16 %v297, %v296
  %v355 = vpack.c.bf16 %v299, %v298
  %v356 = vpack.c.bf16 %v301, %v300
  %v357 = vpack.c.bf16 %v303, %v302
  %v358 = vpack.c.bf16 %v305, %v304
  %v359 = vpack.c.bf16 %v307, %v306
  %v360 = vpack.c.bf16 %v309, %v308
  %v361 = vpack.c.bf16 %v311, %v310
  %v362 = vpack.c.bf16 %v313, %v312
  %v363 = vpack.c.bf16 %v315, %v314
  %v364 = vpack.c.bf16 %v317, %v316
  %v365 = vpack.c.bf16 %v319, %v318
  %v366 = vpack.c.bf16 %v321, %v320
  %v367 = vpack.c.bf16 %v323, %v322
  %v368 = vpack.c.bf16 %v325, %v324
  %v369 = vpack.c.bf16 %v327, %v326
  %v370 = vpack.c.bf16 %v329, %v328
  %v371 = vpack.c.bf16 %v331, %v330
  %v372 = vpack.c.bf16 %v333, %v332
  %v373 = vpack.c.bf16 %v335, %v334
  %v374 = vpack.c.bf16 %v337, %v336
  %v375 = vpack.c.bf16 %v339, %v338
  %v376 = vpack.c.bf16 %v341, %v340
  %v377 = vpack.c.bf16 %v343, %v342
  %v378 = vpack.c.bf16 %v345, %v344
  %v379 = vpack.c.bf16 %v347, %v346
  %v412 = vunpack.c.l.b16 %v348
  %v413 = vunpack.c.h.b16 %v348
  %v414 = vunpack.c.l.b16 %v349
  %v415 = vunpack.c.h.b16 %v349
  %v416 = vunpack.c.l.b16 %v350
  %v417 = vunpack.c.h.b16 %v350
  %v418 = vunpack.c.l.b16 %v351
  %v419 = vunpack.c.h.b16 %v351
  %v420 = vunpack.c.l.b16 %v352
  %v421 = vunpack.c.h.b16 %v352
  %v422 = vunpack.c.l.b16 %v353
  %v423 = vunpack.c.h.b16 %v353
  %v424 = vunpack.c.l.b16 %v354
  %v425 = vunpack.c.h.b16 %v354
  %v426 = vunpack.c.l.b16 %v355
  %v427 = vunpack.c.h.b16 %v355
  %v428 = vunpack.c.l.b16 %v356
  %v429 = vunpack.c.h.b16 %v356
  %v430 = vunpack.c.l.b16 %v357
  %v431 = vunpack.c.h.b16 %v357
  %v432 = vunpack.c.l.b16 %v358
  %v433 = vunpack.c.h.b16 %v358
  %v434 = vunpack.c.l.b16 %v359
  %v435 = vunpack.c.h.b16 %v359
  %v436 = vunpack.c.l.b16 %v360
  %v437 = vunpack.c.h.b16 %v360
  %v438 = vunpack.c.l.b16 %v361
  %v439 = vunpack.c.h.b16 %v361
  %v440 = vunpack.c.l.b16 %v362
  %v441 = vunpack.c.h.b16 %v362
  %v442 = vunpack.c.l.b16 %v363
  %v443 = vunpack.c.h.b16 %v363
  %v444 = vunpack.c.l.b16 %v364
  %v445 = vunpack.c.h.b16 %v364
  %v446 = vunpack.c.l.b16 %v365
  %v447 = vunpack.c.h.b16 %v365
  %v448 = vunpack.c.l.b16 %v366
  %v449 = vunpack.c.h.b16 %v366
  %v450 = vunpack.c.l.b16 %v367
  %v451 = vunpack.c.h.b16 %v367
  %v452 = vunpack.c.l.b16 %v368
  %v453 = vunpack.c.h.b16 %v368
  %v454 = vunpack.c.l.b16 %v369
  %v455 = vunpack.c.h.b16 %v369
  %v456 = vunpack.c.l.b16 %v370
  %v457 = vunpack.c.h.b16 %v370
  %v458 = vunpack.c.l.b16 %v371
  %v459 = vunpack.c.h.b16 %v371
  %v460 = vunpack.c.l.b16 %v372
  %v461 = vunpack.c.h.b16 %v372
  %v462 = vunpack.c.l.b16 %v373
  %v463 = vunpack.c.h.b16 %v373
  %v464 = vunpack.c.l.b16 %v374
  %v465 = vunpack.c.h.b16 %v374
  %v466 = vunpack.c.l.b16 %v375
  %v467 = vunpack.c.h.b16 %v375
  %v468 = vunpack.c.l.b16 %v376
  %v469 = vunpack.c.h.b16 %v376
  %v470 = vunpack.c.l.b16 %v377
  %v471 = vunpack.c.h.b16 %v377
  %v472 = vunpack.c.l.b16 %v378
  %v473 = vunpack.c.h.b16 %v378
  %v474 = vunpack.c.l.b16 %v379
  %v475 = vunpack.c.h.b16 %v379
  %v476 = vpack.c.b16 %v412, %v412
  %v477 = vpack.c.b16 %v413, %v413
  %v478 = vpack.c.b16 %v414, %v414
  %v479 = vpack.c.b16 %v415, %v415
  %v480 = vpack.c.b16 %v416, %v416
  %v481 = vpack.c.b16 %v417, %v417
  %v482 = vpack.c.b16 %v418, %v418
  %v483 = vpack.c.b16 %v419, %v419
  %v484 = vpack.c.b16 %v420, %v420
  %v485 = vpack.c.b16 %v421, %v421
  %v486 = vpack.c.b16 %v422, %v422
  %v487 = vpack.c.b16 %v423, %v423
  %v488 = vpack.c.b16 %v424, %v424
  %v489 = vpack.c.b16 %v425, %v425
  %v490 = vpack.c.b16 %v426, %v426
  %v491 = vpack.c.b16 %v427, %v427
  %v492 = vpack.c.b16 %v428, %v428
  %v493 = vpack.c.b16 %v429, %v429
  %v494 = vpack.c.b16 %v430, %v430
  %v495 = vpack.c.b16 %v431, %v431
  %v496 = vpack.c.b16 %v432, %v432
  %v497 = vpack.c.b16 %v433, %v433
  %v498 = vpack.c.b16 %v434, %v434
  %v499 = vpack.c.b16 %v435, %v435
  %v500 = vpack.c.b16 %v436, %v436
  %v501 = vpack.c.b16 %v437, %v437
  %v502 = vpack.c.b16 %v438, %v438
  %v503 = vpack.c.b16 %v439, %v439
  %v504 = vpack.c.b16 %v440, %v440
  %v505 = vpack.c.b16 %v441, %v441
  %v506 = vpack.c.b16 %v442, %v442
  %v507 = vpack.c.b16 %v443, %v443
  %v508 = vpack.c.b16 %v444, %v444
  %v509 = vpack.c.b16 %v445, %v445
  %v510 = vpack.c.b16 %v446, %v446
  %v511 = vpack.c.b16 %v447, %v447
  %v512 = vpack.c.b16 %v448, %v448
  %v513 = vpack.c.b16 %v449, %v449
  %v514 = vpack.c.b16 %v450, %v450
  %v515 = vpack.c.b16 %v451, %v451
  %v516 = vpack.c.b16 %v452, %v452
  %v517 = vpack.c.b16 %v453, %v453
  %v518 = vpack.c.b16 %v454, %v454
  %v519 = vpack.c.b16 %v455, %v455
  %v520 = vpack.c.b16 %v456, %v456
  %v521 = vpack.c.b16 %v457, %v457
  %v522 = vpack.c.b16 %v458, %v458
  %v523 = vpack.c.b16 %v459, %v459
  %v524 = vpack.c.b16 %v460, %v460
  %v525 = vpack.c.b16 %v461, %v461
  %v526 = vpack.c.b16 %v462, %v462
  %v527 = vpack.c.b16 %v463, %v463
  %v528 = vpack.c.b16 %v464, %v464
  %v529 = vpack.c.b16 %v465, %v465
  %v530 = vpack.c.b16 %v466, %v466
  %v531 = vpack.c.b16 %v467, %v467
  %v532 = vpack.c.b16 %v468, %v468
  %v533 = vpack.c.b16 %v469, %v469
  %v534 = vpack.c.b16 %v470, %v470
  %v535 = vpack.c.b16 %v471, %v471
  %v536 = vpack.c.b16 %v472, %v472
  %v537 = vpack.c.b16 %v473, %v473
  %v538 = vpack.c.b16 %v474, %v474
  %v539 = vpack.c.b16 %v475, %v475
  %604 = vst [vmem:[%s3] sm:$0xf] %v476
  %605 = vst [vmem:[%s3 + $0x4] sm:$0xf] %v477
  %606 = vst [vmem:[%s3 + $0x8] sm:$0xf] %v478
  %607 = vst [vmem:[%s3 + $0xc] sm:$0xf] %v479
  %608 = vst [vmem:[%s3 + $0x10] sm:$0xf] %v480
  %609 = vst [vmem:[%s3 + $0x14] sm:$0xf] %v481
  %610 = vst [vmem:[%s3 + $0x18] sm:$0xf] %v482
  %611 = vst [vmem:[%s3 + $0x1c] sm:$0xf] %v483
  %612 = vst [vmem:[%s3 + $0x20] sm:$0xf] %v484
  %613 = vst [vmem:[%s3 + $0x24] sm:$0xf] %v485
  %614 = vst [vmem:[%s3 + $0x28] sm:$0xf] %v486
  %615 = vst [vmem:[%s3 + $0x2c] sm:$0xf] %v487
  %616 = vst [vmem:[%s3 + $0x30] sm:$0xf] %v488
  %617 = vst [vmem:[%s3 + $0x34] sm:$0xf] %v489
  %618 = vst [vmem:[%s3 + $0x38] sm:$0xf] %v490
  %619 = vst [vmem:[%s3 + $0x3c] sm:$0xf] %v491
  %620 = vst [vmem:[%s3 + $0x40] sm:$0xf] %v492
  %621 = vst [vmem:[%s3 + $0x44] sm:$0xf] %v493
  %622 = vst [vmem:[%s3 + $0x48] sm:$0xf] %v494
  %623 = vst [vmem:[%s3 + $0x4c] sm:$0xf] %v495
  %624 = vst [vmem:[%s3 + $0x50] sm:$0xf] %v496
  %625 = vst [vmem:[%s3 + $0x54] sm:$0xf] %v497
  %626 = vst [vmem:[%s3 + $0x58] sm:$0xf] %v498
  %627 = vst [vmem:[%s3 + $0x5c] sm:$0xf] %v499
  %628 = vst [vmem:[%s3 + $0x60] sm:$0xf] %v500
  %629 = vst [vmem:[%s3 + $0x64] sm:$0xf] %v501
  %630 = vst [vmem:[%s3 + $0x68] sm:$0xf] %v502
  %631 = vst [vmem:[%s3 + $0x6c] sm:$0xf] %v503
  %632 = vst [vmem:[%s3 + $0x70] sm:$0xf] %v504
  %633 = vst [vmem:[%s3 + $0x74] sm:$0xf] %v505
  %634 = vst [vmem:[%s3 + $0x78] sm:$0xf] %v506
  %635 = vst [vmem:[%s3 + $0x7c] sm:$0xf] %v507
  %636 = vst [vmem:[%s3 + $0x80] sm:$0xf] %v508
  %637 = vst [vmem:[%s3 + $0x84] sm:$0xf] %v509
  %638 = vst [vmem:[%s3 + $0x88] sm:$0xf] %v510
  %639 = vst [vmem:[%s3 + $0x8c] sm:$0xf] %v511
  %640 = vst [vmem:[%s3 + $0x90] sm:$0xf] %v512
  %641 = vst [vmem:[%s3 + $0x94] sm:$0xf] %v513
  %642 = vst [vmem:[%s3 + $0x98] sm:$0xf] %v514
  %643 = vst [vmem:[%s3 + $0x9c] sm:$0xf] %v515
  %644 = vst [vmem:[%s3 + $0xa0] sm:$0xf] %v516
  %645 = vst [vmem:[%s3 + $0xa4] sm:$0xf] %v517
  %646 = vst [vmem:[%s3 + $0xa8] sm:$0xf] %v518
  %647 = vst [vmem:[%s3 + $0xac] sm:$0xf] %v519
  %648 = vst [vmem:[%s3 + $0xb0] sm:$0xf] %v520
  %649 = vst [vmem:[%s3 + $0xb4] sm:$0xf] %v521
  %650 = vst [vmem:[%s3 + $0xb8] sm:$0xf] %v522
  %651 = vst [vmem:[%s3 + $0xbc] sm:$0xf] %v523
  %652 = vst [vmem:[%s3 + $0xc0] sm:$0xf] %v524
  %653 = vst [vmem:[%s3 + $0xc4] sm:$0xf] %v525
  %654 = vst [vmem:[%s3 + $0xc8] sm:$0xf] %v526
  %655 = vst [vmem:[%s3 + $0xcc] sm:$0xf] %v527
  %656 = vst [vmem:[%s3 + $0xd0] sm:$0xf] %v528
  %657 = vst [vmem:[%s3 + $0xd4] sm:$0xf] %v529
  %658 = vst [vmem:[%s3 + $0xd8] sm:$0xf] %v530
  %659 = vst [vmem:[%s3 + $0xdc] sm:$0xf] %v531
  %660 = vst [vmem:[%s3 + $0xe0] sm:$0xf] %v532
  %661 = vst [vmem:[%s3 + $0xe4] sm:$0xf] %v533
  %662 = vst [vmem:[%s3 + $0xe8] sm:$0xf] %v534
  %663 = vst [vmem:[%s3 + $0xec] sm:$0xf] %v535
  %664 = vst [vmem:[%s3 + $0xf0] sm:$0xf] %v536
  %665 = vst [vmem:[%s3 + $0xf4] sm:$0xf] %v537
  %666 = vst [vmem:[%s3 + $0xf8] sm:$0xf] %v538
  %667 = vst [vmem:[%s3 + $0xfc] sm:$0xf] %v539
  // Predicated region
  $region14: #{generator_forward.14} parent=0 // pred_check
    _
  $region15: #{generator_forward.14} parent=0 // pred_check_branch
    %669 = sbr.rel (0) target = $region17
  $region16: #{generator_forward.14} parent=0 // pred_region
    _
  $region17: #{generator_forward.14} parent=0 // pred_fallthru
    _
  // Predicated region
  $region18: #{generator_forward.14} parent=0 // pred_check
    _
  $region19: #{generator_forward.14} parent=0 // pred_check_branch
    %671 = sbr.rel (0) target = $region21
  $region20: #{generator_forward.14} parent=0 // pred_region
    _
  $region21: #{generator_forward.14} parent=0 // pred_fallthru
    _

// kernel: generator_forward.13
$region0: #{generator_forward.13}
  #allocation0 [shape = 'u32[]', space=smem, size = 0x4, offset = 0x4, fixed_abs, tag = 'smem constant byte address 0x4 - core index']
  #allocation1 [shape = 'u32[144,128]{1,0:T(1,128)}', space=vmem, size = 0x12000, scoped, tag = 'internal scratch']
  %s0 = inlined_call_operand.vmem [shape: bf16[4,128,128], index: 0, kind: input, shape index: {}]
  %s1 = inlined_call_operand.vmem [shape: bf16[4,128,128], index: 1, kind: input, shape index: {}]
  %s2 = inlined_call_operand.vmem [shape: bf16[4,128,128], index: 2, kind: output, shape index: {0}]
  %s3 = inlined_call_operand.vmem [shape: f32[4,1,128], index: 3, kind: output, shape index: {1}]
  %s4 = inlined_call_operand.vmem [shape: f32[4,1,128], index: 4, kind: output, shape index: {2}]
  %5 = xla_tuple %s2, %s3, %s4
  %s6 = sld [smem:[#allocation0]]
  $region61: #{generator_forward.13} parent=0
    _
  %s8 = ssub.s32 1, %s6
  %s9 = scalar_select 0, %s8, %s6
  loop: start=0, step=1, limit=6
  $region2: #{generator_forward.13} parent=0 // loop_pre_header
    _
  $region3: #{generator_forward.13} parent=0 // loop_header
    %s11 = sphi 0, %s15
    %p12 = scmp.ge.s32.totalorder %s11, 6
    %s18 = sphi 0, %s37
    %s19 = sphi 0, %s33
    %s20 = sphi 0, %s29
    %s21 = sphi 0, %s18
    %s22 = sphi 0, %s19
    %s23 = sphi 0, %s20
    %s24 = sphi 0, %s21
    %s25 = sphi 0, %s22
    %s26 = sphi 0, %s23
    %s42 = sphi 0, %s44
    %s45 = sphi 0, %s42
    %s46 = sphi 0, %s45
    %s62 = sphi 0, %s46
    %s70 = sphi 0, %s72
    %s73 = sphi 0, %s70
    %s74 = sphi 0, %s73
    %s90 = sphi 0, %s74
    %s100 = sphi 0, %s102
    %s103 = sphi 0, %s100
    %s104 = sphi 0, %s103
    %s120 = sphi 0, %s104
    %s128 = sphi 0, %s130
    %s131 = sphi 0, %s128
    %s132 = sphi 0, %s131
    %s148 = sphi 0, %s132
    %s156 = sphi 0, %s158
    %s159 = sphi 0, %s156
    %s160 = sphi 0, %s159
    %s176 = sphi 0, %s160
  $region4: #{generator_forward.13} parent=0 // loop_header_branch
    %14 = sbr.rel (%p12) target = $region8
  $region5: #{generator_forward.13} parent=0 // loop_body
    %s16 = ssub.s32 %s11, 1
    %s17 = ssub.s32 %s11, 2
    %s27 = sadd.s32 1, %s20
    %p28 = scmp.ge.s32.totalorder %s27, 1
    %s29 = scalar_select %p28, 0, %s27
    %s30 = sadd.s32 1, %s19
    %s31 = scalar_select %p28, %s30, %s19
    %p32 = scmp.ge.s32.totalorder %s31, 4
    %s33 = scalar_select %p32, 0, %s31
    %s34 = sadd.s32 1, %s18
    %s35 = scalar_select %p32, %s34, %s18
    %p36 = scmp.ge.s32.totalorder %s35, 1
    %s37 = scalar_select %p36, 0, %s35
    %s38 = ssub.s32 %s19, %s33
    %s39 = ssub.s32 %s20, %s29
    %s40 = sor.u32 %s38, %s39
    %p41 = scmp.eq.s32.totalorder %s40, 0
    %s43 = sadd.s32 %s42, 1
    %s44 = scalar_select %p41, %s42, %s43
    %p47 = pneg %p41
    %p48 = scmp.eq.s32.totalorder %s11, 3
    %p49 = por %p47, %p48
    %p50 = scmp.ne.s32.totalorder %s42, %s45
    %p51 = scmp.eq.s32.totalorder %s11, 0
    %p52 = por %p50, %p51
    %p53 = scmp.ne.s32.totalorder %s42, %s45
    %p54 = scmp.eq.s32.totalorder %s16, 3
    %p55 = por %p53, %p54
    %p56 = scmp.ne.s32.totalorder %s45, %s46
    %p57 = scmp.eq.s32.totalorder %s16, 0
    %p58 = por %p56, %p57
    %p59 = scmp.ne.s32.totalorder %s45, %s46
    %p60 = scmp.eq.s32.totalorder %s17, 3
    %p61 = por %p59, %p60
    %p63 = scmp.ne.s32.totalorder %s46, %s62
    %p64 = scmp.eq.s32.totalorder %s17, 0
    %p65 = por %p63, %p64
    %s66 = ssub.s32 %s19, %s33
    %s67 = ssub.s32 %s18, %s37
    %s68 = sor.u32 %s66, %s67
    %p69 = scmp.eq.s32.totalorder %s68, 0
    %s71 = sadd.s32 %s70, 1
    %s72 = scalar_select %p69, %s70, %s71
    %p75 = pneg %p69
    %p76 = scmp.eq.s32.totalorder %s11, 3
    %p77 = por %p75, %p76
    %p78 = scmp.ne.s32.totalorder %s70, %s73
    %p79 = scmp.eq.s32.totalorder %s11, 0
    %p80 = por %p78, %p79
    %p81 = scmp.ne.s32.totalorder %s70, %s73
    %p82 = scmp.eq.s32.totalorder %s16, 3
    %p83 = por %p81, %p82
    %p84 = scmp.ne.s32.totalorder %s73, %s74
    %p85 = scmp.eq.s32.totalorder %s16, 0
    %p86 = por %p84, %p85
    %p87 = scmp.ne.s32.totalorder %s73, %s74
    %p88 = scmp.eq.s32.totalorder %s17, 3
    %p89 = por %p87, %p88
    %p91 = scmp.ne.s32.totalorder %s74, %s90
    %p92 = scmp.eq.s32.totalorder %s17, 0
    %p93 = por %p91, %p92
    %s94 = ssub.s32 %s19, %s33
    %s95 = ssub.s32 %s20, %s29
    %s96 = sor.u32 %s94, %s95
    %s97 = ssub.s32 %s18, %s37
    %s98 = sor.u32 %s96, %s97
    %p99 = scmp.eq.s32.totalorder %s98, 0
    %s101 = sadd.s32 %s100, 1
    %s102 = scalar_select %p99, %s100, %s101
    %p105 = pneg %p99
    %p106 = scmp.eq.s32.totalorder %s11, 3
    %p107 = por %p105, %p106
    %p108 = scmp.ne.s32.totalorder %s100, %s103
    %p109 = scmp.eq.s32.totalorder %s11, 0
    %p110 = por %p108, %p109
    %p111 = scmp.ne.s32.totalorder %s100, %s103
    %p112 = scmp.eq.s32.totalorder %s16, 3
    %p113 = por %p111, %p112
    %p114 = scmp.ne.s32.totalorder %s103, %s104
    %p115 = scmp.eq.s32.totalorder %s16, 0
    %p116 = por %p114, %p115
    %p117 = scmp.ne.s32.totalorder %s103, %s104
    %p118 = scmp.eq.s32.totalorder %s17, 3
    %p119 = por %p117, %p118
    %p121 = scmp.ne.s32.totalorder %s104, %s120
    %p122 = scmp.eq.s32.totalorder %s17, 0
    %p123 = por %p121, %p122
    %s124 = ssub.s32 %s19, %s33
    %s125 = ssub.s32 %s18, %s37
    %s126 = sor.u32 %s124, %s125
    %p127 = scmp.eq.s32.totalorder %s126, 0
    %s129 = sadd.s32 %s128, 1
    %s130 = scalar_select %p127, %s128, %s129
    %p133 = pneg %p127
    %p134 = scmp.eq.s32.totalorder %s11, 3
    %p135 = por %p133, %p134
    %p136 = scmp.ne.s32.totalorder %s128, %s131
    %p137 = scmp.eq.s32.totalorder %s11, 0
    %p138 = por %p136, %p137
    %p139 = scmp.ne.s32.totalorder %s128, %s131
    %p140 = scmp.eq.s32.totalorder %s16, 3
    %p141 = por %p139, %p140
    %p142 = scmp.ne.s32.totalorder %s131, %s132
    %p143 = scmp.eq.s32.totalorder %s16, 0
    %p144 = por %p142, %p143
    %p145 = scmp.ne.s32.totalorder %s131, %s132
    %p146 = scmp.eq.s32.totalorder %s17, 3
    %p147 = por %p145, %p146
    %p149 = scmp.ne.s32.totalorder %s132, %s148
    %p150 = scmp.eq.s32.totalorder %s17, 0
    %p151 = por %p149, %p150
    %s152 = ssub.s32 %s19, %s33
    %s153 = ssub.s32 %s18, %s37
    %s154 = sor.u32 %s152, %s153
    %p155 = scmp.eq.s32.totalorder %s154, 0
    %s157 = sadd.s32 %s156, 1
    %s158 = scalar_select %p155, %s156, %s157
    %p161 = pneg %p155
    %p162 = scmp.eq.s32.totalorder %s11, 3
    %p163 = por %p161, %p162
    %p164 = scmp.ne.s32.totalorder %s156, %s159
    %p165 = scmp.eq.s32.totalorder %s11, 0
    %p166 = por %p164, %p165
    %p167 = scmp.ne.s32.totalorder %s156, %s159
    %p168 = scmp.eq.s32.totalorder %s16, 3
    %p169 = por %p167, %p168
    %p170 = scmp.ne.s32.totalorder %s159, %s160
    %p171 = scmp.eq.s32.totalorder %s16, 0
    %p172 = por %p170, %p171
    %p173 = scmp.ne.s32.totalorder %s159, %s160
    %p174 = scmp.eq.s32.totalorder %s17, 3
    %p175 = por %p173, %p174
    %p177 = scmp.ne.s32.totalorder %s160, %s176
    %p178 = scmp.eq.s32.totalorder %s17, 0
    %p179 = por %p177, %p178
    %p180 = scmp.le.s32.totalorder 1, %s11
    %p181 = scmp.lt.s32.totalorder %s11, 5
    %p182 = pnand %p180, %p181
    %p183 = pneg %p182
    // Predicated region
    $region9: #{generator_forward.13} parent=5 // pred_check
      _
    $region10: #{generator_forward.13} parent=5 // pred_check_branch
      %185 = sbr.rel (%p182) target = $region12
    $region11: #{generator_forward.13} parent=5 // pred_region
      %s186 = ssub.s32 %s11, 1
    $region12: #{generator_forward.13} parent=5 // pred_fallthru
      _
    %p187 = scmp.lt.s32.totalorder %s11, 4
    // Predicated region
    $region13: #{generator_forward.13} parent=5 // pred_check
      %p188 = pneg %p187
    $region14: #{generator_forward.13} parent=5 // pred_check_branch
      %190 = sbr.rel (%p188) target = $region16
    $region15: #{generator_forward.13} parent=5 // pred_region
      // Predicated region
      $region17: #{generator_forward.13} parent=15 // pred_check
        %p191 = pneg %p52
      $region18: #{generator_forward.13} parent=15 // pred_check_branch
        %193 = sbr.rel (%p191) target = $region20
      $region19: #{generator_forward.13} parent=15 // pred_region
        %s194 = smul.u32 16, %s20
        %p195 = scmp.lt.s32.totalorder %s19, 3
        %s196 = scalar_select %p195, %s19, 3
        %p197 = scmp.lt.s32.totalorder %s194, 15
        %s198 = scalar_select %p197, %s194, 15
        %s199 = smul.addr %s196, 16
        %s200 = sadd.s32 %s198, %s199
        %s201 = smul.addr %s200, 4
        %s202 = scalar_lea.vmem %s0, %s201
        %s203 = smul.u32 16, %s20
      $region20: #{generator_forward.13} parent=15 // pred_fallthru
        _
      // Predicated region
      $region21: #{generator_forward.13} parent=15 // pred_check
        %p204 = pneg %p80
      $region22: #{generator_forward.13} parent=15 // pred_check_branch
        %206 = sbr.rel (%p204) target = $region24
      $region23: #{generator_forward.13} parent=15 // pred_region
        %p207 = scmp.lt.s32.totalorder %s19, 3
        %s208 = scalar_select %p207, %s19, 3
        %p209 = scmp.lt.s32.totalorder %s18, 0
        %s210 = scalar_select %p209, %s18, 0
        %s211 = smul.addr %s208, 16
        %s212 = sadd.s32 %s210, %s211
        %s213 = smul.addr %s212, 4
        %s214 = scalar_lea.vmem %s1, %s213
      $region24: #{generator_forward.13} parent=15 // pred_fallthru
        _
    $region16: #{generator_forward.13} parent=5 // pred_fallthru
      _
    %p215 = scmp.le.s32.totalorder 1, %s11
    %p216 = scmp.lt.s32.totalorder %s11, 5
    %p217 = pnand %p215, %p216
    %p218 = pneg %p217
    // Predicated region
    $region25: #{generator_forward.13} parent=5 // pred_check
      _
    $region26: #{generator_forward.13} parent=5 // pred_check_branch
      %220 = sbr.rel (%p217) target = $region28
    $region27: #{generator_forward.13} parent=5 // pred_region
      %s221 = ssub.s32 %s11, 1
      %s222 = smul.u32 16, %s23
      %p223 = scmp.lt.s32.totalorder %s22, 3
      %s224 = scalar_select %p223, %s22, 3
      %p225 = scmp.lt.s32.totalorder %s222, 15
      %s226 = scalar_select %p225, %s222, 15
      %s227 = smul.addr %s224, 16
      %s228 = sadd.s32 %s226, %s227
      %s229 = smul.addr %s228, 4
      %s230 = scalar_lea.vmem %s0, %s229
      %p231 = pneg %p58
      %p232 = pneg %p55
      %p233 = scmp.lt.s32.totalorder %s22, 3
      %s234 = scalar_select %p233, %s22, 3
      %p235 = scmp.lt.s32.totalorder %s21, 0
      %s236 = scalar_select %p235, %s21, 0
      %s237 = smul.addr %s234, 16
      %s238 = sadd.s32 %s236, %s237
      %s239 = smul.addr %s238, 4
      %s240 = scalar_lea.vmem %s1, %s239
      %p241 = pneg %p86
      %p242 = pneg %p83
      %p243 = pneg %p116
      %p244 = pneg %p113
      %s245 = smul.u32 16, %s23
      %p246 = scmp.lt.s32.totalorder %s22, 3
      %s247 = scalar_select %p246, %s22, 3
      %p248 = scmp.lt.s32.totalorder %s245, 15
      %s249 = scalar_select %p248, %s245, 15
      %p250 = scmp.lt.s32.totalorder %s21, 0
      %s251 = scalar_select %p250, %s21, 0
      %s252 = sadd.s32 %s251, %s249
      %s253 = smul.addr %s247, 16
      %s254 = sadd.s32 %s252, %s253
      %s255 = smul.addr %s254, 4
      %s256 = scalar_lea.vmem %s2, %s255
      %p257 = pneg %p144
      %p258 = pneg %p141
      %p259 = scmp.lt.s32.totalorder %s22, 3
      %s260 = scalar_select %p259, %s22, 3
      %p261 = scmp.lt.s32.totalorder %s21, 0
      %s262 = scalar_select %p261, %s21, 0
      %s263 = sadd.s32 %s262, %s260
      %s264 = scalar_lea.vmem %s3, %s263
      %p265 = pneg %p172
      %p266 = pneg %p169
      %p267 = scmp.lt.s32.totalorder %s22, 3
      %s268 = scalar_select %p267, %s22, 3
      %p269 = scmp.lt.s32.totalorder %s21, 0
      %s270 = scalar_select %p269, %s21, 0
      %s271 = sadd.s32 %s270, %s268
      %s272 = scalar_lea.vmem %s4, %s271
      %s273 = smul.u32 16, %s23
      %p274 = scmp.lt.s32.totalorder %s22, 3
      %s275 = scalar_select %p274, %s22, 3
      %p276 = scmp.lt.s32.totalorder %s273, 15
      %s277 = scalar_select %p276, %s273, 15
      %s278 = smul.addr %s275, 16
      %s279 = sadd.s32 %s277, %s278
      %s280 = smul.addr %s279, 4
      %s281 = scalar_lea.vmem %s0, %s280
      %s282 = smul.u32 16, %s23
      %p283 = scmp.lt.s32.totalorder %s22, 3
      %s284 = scalar_select %p283, %s22, 3
      %p285 = scmp.lt.s32.totalorder %s21, 0
      %s286 = scalar_select %p285, %s21, 0
      %s287 = smul.addr %s284, 16
      %s288 = sadd.s32 %s286, %s287
      %s289 = smul.addr %s288, 4
      %s290 = scalar_lea.vmem %s1, %s289
      %s291 = smul.u32 16, %s23
      %p292 = scmp.lt.s32.totalorder %s22, 3
      %s293 = scalar_select %p292, %s22, 3
      %p294 = scmp.lt.s32.totalorder %s291, 15
      %s295 = scalar_select %p294, %s291, 15
      %p296 = scmp.lt.s32.totalorder %s21, 0
      %s297 = scalar_select %p296, %s21, 0
      %s298 = sadd.s32 %s297, %s295
      %s299 = smul.addr %s293, 16
      %s300 = sadd.s32 %s298, %s299
      %s301 = smul.addr %s300, 4
      %s302 = scalar_lea.vmem %s2, %s301
      %s303 = smul.u32 16, %s23
      %p304 = scmp.lt.s32.totalorder %s22, 3
      %s305 = scalar_select %p304, %s22, 3
      %p306 = scmp.lt.s32.totalorder %s21, 0
      %s307 = scalar_select %p306, %s21, 0
      %s308 = sadd.s32 %s307, %s305
      %s309 = scalar_lea.vmem %s3, %s308
      %p310 = scmp.lt.s32.totalorder %s22, 3
      %s311 = scalar_select %p310, %s22, 3
      %p312 = scmp.lt.s32.totalorder %s21, 0
      %s313 = scalar_select %p312, %s21, 0
      %s314 = sadd.s32 %s313, %s311
      %s315 = scalar_lea.vmem %s4, %s314
      %p317 = scmp.eq.s32.totalorder %s23, 0
      // Predicated region
      $region29: #{generator_forward.13} parent=27 // pred_check
        %p318 = pneg %p317
      $region30: #{generator_forward.13} parent=27 // pred_check_branch
        %320 = sbr.rel (%p318) target = $region32
      $region31: #{generator_forward.13} parent=27 // pred_region
        %321 = vst [vmem:[%s309] sm:$0x1] 0.0
        %322 = vst [vmem:[%s315] sm:$0x1] 0.0
      $region32: #{generator_forward.13} parent=27 // pred_fallthru
        _
      %v323 = vld [vmem:[%s281] sm:$0xf]
      %v324 = vld [vmem:[%s281 + $0x4] sm:$0xf]
      %v325 = vld [vmem:[%s281 + $0x8] sm:$0xf]
      %v326 = vld [vmem:[%s281 + $0xc] sm:$0xf]
      %v327 = vld [vmem:[%s281 + $0x10] sm:$0xf]
      %v328 = vld [vmem:[%s281 + $0x14] sm:$0xf]
      %v329 = vld [vmem:[%s281 + $0x18] sm:$0xf]
      %v330 = vld [vmem:[%s281 + $0x1c] sm:$0xf]
      %v331 = vld [vmem:[%s281 + $0x20] sm:$0xf]
      %v332 = vld [vmem:[%s281 + $0x24] sm:$0xf]
      %v333 = vld [vmem:[%s281 + $0x28] sm:$0xf]
      %v334 = vld [vmem:[%s281 + $0x2c] sm:$0xf]
      %v335 = vld [vmem:[%s281 + $0x30] sm:$0xf]
      %v336 = vld [vmem:[%s281 + $0x34] sm:$0xf]
      %v337 = vld [vmem:[%s281 + $0x38] sm:$0xf]
      %v338 = vld [vmem:[%s281 + $0x3c] sm:$0xf]
      %v339 = vld [vmem:[%s290] sm:$0xf]
      %v340 = vld [vmem:[%s290 + $0x4] sm:$0xf]
      %v341 = vld [vmem:[%s290 + $0x8] sm:$0xf]
      %v342 = vld [vmem:[%s290 + $0xc] sm:$0xf]
      %v343 = vld [vmem:[%s290 + $0x10] sm:$0xf]
      %v344 = vld [vmem:[%s290 + $0x14] sm:$0xf]
      %v345 = vld [vmem:[%s290 + $0x18] sm:$0xf]
      %v346 = vld [vmem:[%s290 + $0x1c] sm:$0xf]
      %v347 = vld [vmem:[%s290 + $0x20] sm:$0xf]
      %v348 = vld [vmem:[%s290 + $0x24] sm:$0xf]
      %v349 = vld [vmem:[%s290 + $0x28] sm:$0xf]
      %v350 = vld [vmem:[%s290 + $0x2c] sm:$0xf]
      %v351 = vld [vmem:[%s290 + $0x30] sm:$0xf]
      %v352 = vld [vmem:[%s290 + $0x34] sm:$0xf]
      %v353 = vld [vmem:[%s290 + $0x38] sm:$0xf]
      %v354 = vld [vmem:[%s290 + $0x3c] sm:$0xf]
      %v371 = vunpack.c.l.b16 %v323
      %v372 = vunpack.c.l.b16 %v324
      %v373 = vunpack.c.l.b16 %v325
      %v374 = vunpack.c.l.b16 %v326
      %v375 = vunpack.c.l.b16 %v327
      %v376 = vunpack.c.l.b16 %v328
      %v377 = vunpack.c.l.b16 %v329
      %v378 = vunpack.c.l.b16 %v330
      %v379 = vunpack.c.l.b16 %v331
      %v380 = vunpack.c.l.b16 %v332
      %v381 = vunpack.c.l.b16 %v333
      %v382 = vunpack.c.l.b16 %v334
      %v383 = vunpack.c.l.b16 %v335
      %v384 = vunpack.c.l.b16 %v336
      %v385 = vunpack.c.l.b16 %v337
      %v386 = vunpack.c.l.b16 %v338
      %v387 = vpack.c.b16 %v372, %v371
      %v388 = vpack.c.b16 %v374, %v373
      %v389 = vpack.c.b16 %v376, %v375
      %v390 = vpack.c.b16 %v378, %v377
      %v391 = vpack.c.b16 %v380, %v379
      %v392 = vpack.c.b16 %v382, %v381
      %v393 = vpack.c.b16 %v384, %v383
      %v394 = vpack.c.b16 %v386, %v385
      %v419 = vunpack.c.l.b16 %v339
      %v420 = vunpack.c.l.b16 %v340
      %v421 = vunpack.c.l.b16 %v341
      %v422 = vunpack.c.l.b16 %v342
      %v423 = vunpack.c.l.b16 %v343
      %v424 = vunpack.c.l.b16 %v344
      %v425 = vunpack.c.l.b16 %v345
      %v426 = vunpack.c.l.b16 %v346
      %v427 = vunpack.c.l.b16 %v347
      %v428 = vunpack.c.l.b16 %v348
      %v429 = vunpack.c.l.b16 %v349
      %v430 = vunpack.c.l.b16 %v350
      %v431 = vunpack.c.l.b16 %v351
      %v432 = vunpack.c.l.b16 %v352
      %v433 = vunpack.c.l.b16 %v353
      %v434 = vunpack.c.l.b16 %v354
      %v435 = vpack.c.b16 %v420, %v419
      %v436 = vpack.c.b16 %v422, %v421
      %v437 = vpack.c.b16 %v424, %v423
      %v438 = vpack.c.b16 %v426, %v425
      %v439 = vpack.c.b16 %v428, %v427
      %v440 = vpack.c.b16 %v430, %v429
      %v441 = vpack.c.b16 %v432, %v431
      %v442 = vpack.c.b16 %v434, %v433
      %451 = vmatprep.subr.bf16.mxu0 0
      %452 = vmatpush1.bf16.msra.mxu0 %v442
      %453 = vmatprep.subr.bf16.mxu0 0
      %454 = vmatpush1.bf16.msra.mxu0 %v441
      %455 = vmatprep.subr.bf16.mxu0 0
      %456 = vmatpush1.bf16.msra.mxu0 %v440
      %457 = vmatprep.subr.bf16.mxu0 0
      %458 = vmatpush1.bf16.msra.mxu0 %v439
      %459 = vmatprep.subr.bf16.mxu0 0
      %460 = vmatpush1.bf16.msra.mxu0 %v438
      %461 = vmatprep.subr.bf16.mxu0 0
      %462 = vmatpush1.bf16.msra.mxu0 %v437
      %463 = vmatprep.subr.bf16.mxu0 0
      %464 = vmatpush1.bf16.msra.mxu0 %v436
      %465 = vmatprep.subr.bf16.mxu0 0
      %466 = vmatpush1.bf16.msra.mxu0 %v435
      %467 = vmatprep.subr.bf16.mxu0 0
      %468 = vmatpush2.bf16.msra.mxu0 0
      %469 = vmatprep.subr.bf16.mxu0 0
      %470 = vmatpush2.bf16.msra.mxu0 0
      %471 = vmatprep.subr.bf16.mxu0 0
      %472 = vmatpush2.bf16.msra.mxu0 0
      %473 = vmatprep.subr.bf16.mxu0 0
      %474 = vmatpush2.bf16.msra.mxu0 0
      %475 = vmatprep.subr.bf16.mxu0 0
      %476 = vmatpush2.bf16.msra.mxu0 0
      %477 = vmatprep.subr.bf16.mxu0 0
      %478 = vmatpush2.bf16.msra.mxu0 0
      %479 = vmatprep.subr.bf16.mxu0 0
      %480 = vmatpush2.bf16.msra.mxu0 0
      %481 = vmatprep.subr.bf16.mxu0 0
      %482 = vmatpush2.bf16.msra.mxu0 0
      %483 = vmatprep.mubr.bf16.mxu0 0
      %484 = vmatmul.mubr.bf16.gmra.mxu0 %v387
      %v485 = vpop.f32.mrf.mxu0
      %v486 = vadd.f32 0.0, %v485
      %v487 = vpop.f32.mrf.mxu0
      %v488 = vpop.f32.mrf.mxu0
      %v489 = vadd.f32 0.0, %v488
      %v490 = vpop.f32.mrf.mxu0
      %491 = vmatprep.mubr.bf16.mxu0 0
      %492 = vmatmul.mubr.bf16.gmra.mxu0 %v388
      %v493 = vpop.f32.mrf.mxu0
      %v494 = vadd.f32 0.0, %v493
      %v495 = vpop.f32.mrf.mxu0
      %v496 = vpop.f32.mrf.mxu0
      %v497 = vadd.f32 0.0, %v496
      %v498 = vpop.f32.mrf.mxu0
      %499 = vmatprep.mubr.bf16.mxu0 0
      %500 = vmatmul.mubr.bf16.gmra.mxu0 %v389
      %v501 = vpop.f32.mrf.mxu0
      %v502 = vadd.f32 0.0, %v501
      %v503 = vpop.f32.mrf.mxu0
      %v504 = vpop.f32.mrf.mxu0
      %v505 = vadd.f32 0.0, %v504
      %v506 = vpop.f32.mrf.mxu0
      %507 = vmatprep.mubr.bf16.mxu0 0
      %508 = vmatmul.mubr.bf16.gmra.mxu0 %v390
      %v509 = vpop.f32.mrf.mxu0
      %v510 = vadd.f32 0.0, %v509
      %v511 = vpop.f32.mrf.mxu0
      %v512 = vpop.f32.mrf.mxu0
      %v513 = vadd.f32 0.0, %v512
      %v514 = vpop.f32.mrf.mxu0
      %515 = vmatprep.mubr.bf16.mxu0 0
      %516 = vmatmul.mubr.bf16.gmra.mxu0 %v391
      %v517 = vpop.f32.mrf.mxu0
      %v518 = vadd.f32 0.0, %v517
      %v519 = vpop.f32.mrf.mxu0
      %v520 = vpop.f32.mrf.mxu0
      %v521 = vadd.f32 0.0, %v520
      %v522 = vpop.f32.mrf.mxu0
      %523 = vmatprep.mubr.bf16.mxu0 0
      %524 = vmatmul.mubr.bf16.gmra.mxu0 %v392
      %v525 = vpop.f32.mrf.mxu0
      %v526 = vadd.f32 0.0, %v525
      %v527 = vpop.f32.mrf.mxu0
      %v528 = vpop.f32.mrf.mxu0
      %v529 = vadd.f32 0.0, %v528
      %v530 = vpop.f32.mrf.mxu0
      %531 = vmatprep.mubr.bf16.mxu0 0
      %532 = vmatmul.mubr.bf16.gmra.mxu0 %v393
      %v533 = vpop.f32.mrf.mxu0
      %v534 = vadd.f32 0.0, %v533
      %v535 = vpop.f32.mrf.mxu0
      %v536 = vpop.f32.mrf.mxu0
      %v537 = vadd.f32 0.0, %v536
      %v538 = vpop.f32.mrf.mxu0
      %539 = vmatprep.mubr.bf16.mxu0 0
      %540 = vmatmul.mubr.bf16.gmra.mxu0 %v394
      %v541 = vpop.f32.mrf.mxu0
      %v542 = vadd.f32 0.0, %v541
      %v543 = vpop.f32.mrf.mxu0
      %v544 = vpop.f32.mrf.mxu0
      %v545 = vadd.f32 0.0, %v544
      %v546 = vpop.f32.mrf.mxu0
      %547 = vdwg.mxu0
      %v548 = vpack.c.bf16 %v489, %v486
      %v549 = vpack.c.bf16 %v497, %v494
      %v550 = vpack.c.bf16 %v505, %v502
      %v551 = vpack.c.bf16 %v513, %v510
      %v552 = vpack.c.bf16 %v521, %v518
      %v553 = vpack.c.bf16 %v529, %v526
      %v554 = vpack.c.bf16 %v537, %v534
      %v555 = vpack.c.bf16 %v545, %v542
      %v564 = vunpack.c.l.b16 %v548
      %v565 = vunpack.c.h.b16 %v548
      %v566 = vunpack.c.l.b16 %v549
      %v567 = vunpack.c.h.b16 %v549
      %v568 = vunpack.c.l.b16 %v550
      %v569 = vunpack.c.h.b16 %v550
      %v570 = vunpack.c.l.b16 %v551
      %v571 = vunpack.c.h.b16 %v551
      %v572 = vunpack.c.l.b16 %v552
      %v573 = vunpack.c.h.b16 %v552
      %v574 = vunpack.c.l.b16 %v553
      %v575 = vunpack.c.h.b16 %v553
      %v576 = vunpack.c.l.b16 %v554
      %v577 = vunpack.c.h.b16 %v554
      %v578 = vunpack.c.l.b16 %v555
      %v579 = vunpack.c.h.b16 %v555
      %v580 = vpack.c.b16 %v564, %v564
      %v581 = vpack.c.b16 %v565, %v565
      %v582 = vpack.c.b16 %v566, %v566
      %v583 = vpack.c.b16 %v567, %v567
      %v584 = vpack.c.b16 %v568, %v568
      %v585 = vpack.c.b16 %v569, %v569
      %v586 = vpack.c.b16 %v570, %v570
      %v587 = vpack.c.b16 %v571, %v571
      %v588 = vpack.c.b16 %v572, %v572
      %v589 = vpack.c.b16 %v573, %v573
      %v590 = vpack.c.b16 %v574, %v574
      %v591 = vpack.c.b16 %v575, %v575
      %v592 = vpack.c.b16 %v576, %v576
      %v593 = vpack.c.b16 %v577, %v577
      %v594 = vpack.c.b16 %v578, %v578
      %v595 = vpack.c.b16 %v579, %v579
      %612 = vst [vmem:[%s302] sm:$0xf] %v580
      %613 = vst [vmem:[%s302 + $0x4] sm:$0xf] %v581
      %614 = vst [vmem:[%s302 + $0x8] sm:$0xf] %v582
      %615 = vst [vmem:[%s302 + $0xc] sm:$0xf] %v583
      %616 = vst [vmem:[%s302 + $0x10] sm:$0xf] %v584
      %617 = vst [vmem:[%s302 + $0x14] sm:$0xf] %v585
      %618 = vst [vmem:[%s302 + $0x18] sm:$0xf] %v586
      %619 = vst [vmem:[%s302 + $0x1c] sm:$0xf] %v587
      %620 = vst [vmem:[%s302 + $0x20] sm:$0xf] %v588
      %621 = vst [vmem:[%s302 + $0x24] sm:$0xf] %v589
      %622 = vst [vmem:[%s302 + $0x28] sm:$0xf] %v590
      %623 = vst [vmem:[%s302 + $0x2c] sm:$0xf] %v591
      %624 = vst [vmem:[%s302 + $0x30] sm:$0xf] %v592
      %625 = vst [vmem:[%s302 + $0x34] sm:$0xf] %v593
      %626 = vst [vmem:[%s302 + $0x38] sm:$0xf] %v594
      %627 = vst [vmem:[%s302 + $0x3c] sm:$0xf] %v595
      %v628 = vld [vmem:[%s309] sm:$0x1]
      %v629 = vadd.f32 %v486, %v489
      %v630 = vadd.f32 %v629, %v494
      %v631 = vadd.f32 %v630, %v497
      %v632 = vadd.f32 %v631, %v502
      %v633 = vadd.f32 %v632, %v505
      %v634 = vadd.f32 %v633, %v510
      %v635 = vadd.f32 %v634, %v513
      %v636 = vadd.f32 %v635, %v518
      %v637 = vadd.f32 %v636, %v521
      %v638 = vadd.f32 %v637, %v526
      %v639 = vadd.f32 %v638, %v529
      %v640 = vadd.f32 %v639, %v534
      %v641 = vadd.f32 %v640, %v537
      %v642 = vadd.f32 %v641, %v542
      %v643 = vadd.f32 %v642, %v545
      %v644 = vrot.slane %v643, 4
      %v645 = vadd.f32 %v643, %v644
      %v646 = vrot.slane %v645, 2
      %v647 = vadd.f32 %v645, %v646
      %v648 = vrot.slane %v647, 1
      %v649 = vadd.f32 %v647, %v648
      %v650 = vadd.f32 %v628, %v649
      %651 = vst [vmem:[%s309] sm:$0x1] %v650
      %v652 = vld [vmem:[%s315] sm:$0x1]
      %v653 = vmul.f32 %v486, %v486
      %v654 = vmul.f32 %v489, %v489
      %v655 = vmul.f32 %v494, %v494
      %v656 = vmul.f32 %v497, %v497
      %v657 = vmul.f32 %v502, %v502
      %v658 = vmul.f32 %v505, %v505
      %v659 = vmul.f32 %v510, %v510
      %v660 = vmul.f32 %v513, %v513
      %v661 = vmul.f32 %v518, %v518
      %v662 = vmul.f32 %v521, %v521
      %v663 = vmul.f32 %v526, %v526
      %v664 = vmul.f32 %v529, %v529
      %v665 = vmul.f32 %v534, %v534
      %v666 = vmul.f32 %v537, %v537
      %v667 = vmul.f32 %v542, %v542
      %v668 = vmul.f32 %v545, %v545
      %v669 = vadd.f32 %v653, %v654
      %v670 = vadd.f32 %v669, %v655
      %v671 = vadd.f32 %v670, %v656
      %v672 = vadd.f32 %v671, %v657
      %v673 = vadd.f32 %v672, %v658
      %v674 = vadd.f32 %v673, %v659
      %v675 = vadd.f32 %v674, %v660
      %v676 = vadd.f32 %v675, %v661
      %v677 = vadd.f32 %v676, %v662
      %v678 = vadd.f32 %v677, %v663
      %v679 = vadd.f32 %v678, %v664
      %v680 = vadd.f32 %v679, %v665
      %v681 = vadd.f32 %v680, %v666
      %v682 = vadd.f32 %v681, %v667
      %v683 = vadd.f32 %v682, %v668
      %v684 = vrot.slane %v683, 4
      %v685 = vadd.f32 %v683, %v684
      %v686 = vrot.slane %v685, 2
      %v687 = vadd.f32 %v685, %v686
      %v688 = vrot.slane %v687, 1
      %v689 = vadd.f32 %v687, %v688
      %v690 = vadd.f32 %v652, %v689
      %691 = vst [vmem:[%s315] sm:$0x1] %v690
      %s692 = smul.u32 16, %s23
      %p693 = scmp.lt.s32.totalorder %s22, 3
      %s694 = scalar_select %p693, %s22, 3
      %p695 = scmp.lt.s32.totalorder %s692, 15
      %s696 = scalar_select %p695, %s692, 15
      %p697 = scmp.lt.s32.totalorder %s21, 0
      %s698 = scalar_select %p697, %s21, 0
      %s699 = sadd.s32 %s698, %s696
      %s700 = smul.addr %s694, 16
      %s701 = sadd.s32 %s699, %s700
      %s702 = smul.addr %s701, 4
      %s703 = scalar_lea.vmem %s2, %s702
      %p704 = scmp.lt.s32.totalorder %s22, 3
      %s705 = scalar_select %p704, %s22, 3
      %p706 = scmp.lt.s32.totalorder %s21, 0
      %s707 = scalar_select %p706, %s21, 0
      %s708 = sadd.s32 %s707, %s705
      %s709 = scalar_lea.vmem %s3, %s708
      %p710 = scmp.lt.s32.totalorder %s22, 3
      %s711 = scalar_select %p710, %s22, 3
      %p712 = scmp.lt.s32.totalorder %s21, 0
      %s713 = scalar_select %p712, %s21, 0
      %s714 = sadd.s32 %s713, %s711
      %s715 = scalar_lea.vmem %s4, %s714
      // Predicated region
      $region33: #{generator_forward.13} parent=27 // pred_check
        %p716 = pneg %p113
      $region34: #{generator_forward.13} parent=27 // pred_check_branch
        %718 = sbr.rel (%p716) target = $region36
      $region35: #{generator_forward.13} parent=27 // pred_region
        %s719 = smul.u32 16, %s23
      $region36: #{generator_forward.13} parent=27 // pred_fallthru
        _
      // Predicated region
      $region37: #{generator_forward.13} parent=27 // pred_check
        %p720 = pneg %p141
      $region38: #{generator_forward.13} parent=27 // pred_check_branch
        %722 = sbr.rel (%p720) target = $region40
      $region39: #{generator_forward.13} parent=27 // pred_region
        _
      $region40: #{generator_forward.13} parent=27 // pred_fallthru
        _
      // Predicated region
      $region41: #{generator_forward.13} parent=27 // pred_check
        %p723 = pneg %p169
      $region42: #{generator_forward.13} parent=27 // pred_check_branch
        %725 = sbr.rel (%p723) target = $region44
      $region43: #{generator_forward.13} parent=27 // pred_region
        _
      $region44: #{generator_forward.13} parent=27 // pred_fallthru
        _
    $region28: #{generator_forward.13} parent=5 // pred_fallthru
      _
    %p726 = scmp.le.s32.totalorder 2, %s11
    // Predicated region
    $region45: #{generator_forward.13} parent=5 // pred_check
      %p727 = pneg %p726
    $region46: #{generator_forward.13} parent=5 // pred_check_branch
      %729 = sbr.rel (%p727) target = $region48
    $region47: #{generator_forward.13} parent=5 // pred_region
      %s730 = ssub.s32 %s11, 2
      // Predicated region
      $region49: #{generator_forward.13} parent=47 // pred_check
        %p731 = pneg %p119
      $region50: #{generator_forward.13} parent=47 // pred_check_branch
        %733 = sbr.rel (%p731) target = $region52
      $region51: #{generator_forward.13} parent=47 // pred_region
        %s734 = smul.u32 16, %s26
        %p735 = scmp.lt.s32.totalorder %s25, 3
        %s736 = scalar_select %p735, %s25, 3
        %p737 = scmp.lt.s32.totalorder %s734, 15
        %s738 = scalar_select %p737, %s734, 15
        %p739 = scmp.lt.s32.totalorder %s24, 0
        %s740 = scalar_select %p739, %s24, 0
        %s741 = sadd.s32 %s740, %s738
        %s742 = smul.addr %s736, 16
        %s743 = sadd.s32 %s741, %s742
        %s744 = smul.addr %s743, 4
        %s745 = scalar_lea.vmem %s2, %s744
      $region52: #{generator_forward.13} parent=47 // pred_fallthru
        _
      // Predicated region
      $region53: #{generator_forward.13} parent=47 // pred_check
        %p746 = pneg %p147
      $region54: #{generator_forward.13} parent=47 // pred_check_branch
        %748 = sbr.rel (%p746) target = $region56
      $region55: #{generator_forward.13} parent=47 // pred_region
        %p749 = scmp.lt.s32.totalorder %s25, 3
        %s750 = scalar_select %p749, %s25, 3
        %p751 = scmp.lt.s32.totalorder %s24, 0
        %s752 = scalar_select %p751, %s24, 0
        %s753 = sadd.s32 %s752, %s750
        %s754 = scalar_lea.vmem %s3, %s753
      $region56: #{generator_forward.13} parent=47 // pred_fallthru
        _
      // Predicated region
      $region57: #{generator_forward.13} parent=47 // pred_check
        %p755 = pneg %p175
      $region58: #{generator_forward.13} parent=47 // pred_check_branch
        %757 = sbr.rel (%p755) target = $region60
      $region59: #{generator_forward.13} parent=47 // pred_region
        %p758 = scmp.lt.s32.totalorder %s25, 3
        %s759 = scalar_select %p758, %s25, 3
        %p760 = scmp.lt.s32.totalorder %s24, 0
        %s761 = scalar_select %p760, %s24, 0
        %s762 = sadd.s32 %s761, %s759
        %s763 = scalar_lea.vmem %s4, %s762
      $region60: #{generator_forward.13} parent=47 // pred_fallthru
        _
    $region48: #{generator_forward.13} parent=5 // pred_fallthru
      _
  $region6: #{generator_forward.13} parent=0 // loop_footer
    %s15 = sadd.s32 1, %s11
  $region7: #{generator_forward.13} parent=0 // loop_footer_branch
    %10 = sbr.rel target = $region3
  $region8: #{generator_forward.13} parent=0 // loop_exit
    _

// kernel: generator_forward.15
$region0: #{generator_forward.15}
  #allocation0 [shape = 'u32[]', space=smem, size = 0x4, offset = 0x4, fixed_abs, tag = 'smem constant byte address 0x4 - core index']
  #allocation1 [shape = 'u32[144,128]{1,0:T(1,128)}', space=vmem, size = 0x12000, scoped, tag = 'internal scratch']
  %s0 = inlined_call_operand.vmem [shape: bf16[4,512,128], index: 0, kind: input, shape index: {}]
  %s1 = inlined_call_operand.vmem [shape: bf16[4,128,128], index: 1, kind: input, shape index: {}]
  %s2 = inlined_call_operand.vmem [shape: bf16[4,512,128], index: 2, kind: output, shape index: {0}]
  %s3 = inlined_call_operand.vmem [shape: f32[4,1,128], index: 3, kind: output, shape index: {1}]
  %s4 = inlined_call_operand.vmem [shape: f32[4,1,128], index: 4, kind: output, shape index: {2}]
  %5 = xla_tuple %s2, %s3, %s4
  %s6 = sld [smem:[#allocation0]]
  $region61: #{generator_forward.15} parent=0
    _
  %s8 = ssub.s32 1, %s6
  %s9 = scalar_select 0, %s8, %s6
  loop: start=0, step=1, limit=6
  $region2: #{generator_forward.15} parent=0 // loop_pre_header
    _
  $region3: #{generator_forward.15} parent=0 // loop_header
    %s11 = sphi 0, %s15
    %p12 = scmp.ge.s32.totalorder %s11, 6
    %s18 = sphi 0, %s37
    %s19 = sphi 0, %s33
    %s20 = sphi 0, %s29
    %s21 = sphi 0, %s18
    %s22 = sphi 0, %s19
    %s23 = sphi 0, %s20
    %s24 = sphi 0, %s21
    %s25 = sphi 0, %s22
    %s26 = sphi 0, %s23
    %s42 = sphi 0, %s44
    %s45 = sphi 0, %s42
    %s46 = sphi 0, %s45
    %s62 = sphi 0, %s46
    %s70 = sphi 0, %s72
    %s73 = sphi 0, %s70
    %s74 = sphi 0, %s73
    %s90 = sphi 0, %s74
    %s100 = sphi 0, %s102
    %s103 = sphi 0, %s100
    %s104 = sphi 0, %s103
    %s120 = sphi 0, %s104
    %s128 = sphi 0, %s130
    %s131 = sphi 0, %s128
    %s132 = sphi 0, %s131
    %s148 = sphi 0, %s132
    %s156 = sphi 0, %s158
    %s159 = sphi 0, %s156
    %s160 = sphi 0, %s159
    %s176 = sphi 0, %s160
  $region4: #{generator_forward.15} parent=0 // loop_header_branch
    %14 = sbr.rel (%p12) target = $region8
  $region5: #{generator_forward.15} parent=0 // loop_body
    %s16 = ssub.s32 %s11, 1
    %s17 = ssub.s32 %s11, 2
    %s27 = sadd.s32 1, %s20
    %p28 = scmp.ge.s32.totalorder %s27, 1
    %s29 = scalar_select %p28, 0, %s27
    %s30 = sadd.s32 1, %s19
    %s31 = scalar_select %p28, %s30, %s19
    %p32 = scmp.ge.s32.totalorder %s31, 4
    %s33 = scalar_select %p32, 0, %s31
    %s34 = sadd.s32 1, %s18
    %s35 = scalar_select %p32, %s34, %s18
    %p36 = scmp.ge.s32.totalorder %s35, 1
    %s37 = scalar_select %p36, 0, %s35
    %s38 = ssub.s32 %s19, %s33
    %s39 = ssub.s32 %s20, %s29
    %s40 = sor.u32 %s38, %s39
    %p41 = scmp.eq.s32.totalorder %s40, 0
    %s43 = sadd.s32 %s42, 1
    %s44 = scalar_select %p41, %s42, %s43
    %p47 = pneg %p41
    %p48 = scmp.eq.s32.totalorder %s11, 3
    %p49 = por %p47, %p48
    %p50 = scmp.ne.s32.totalorder %s42, %s45
    %p51 = scmp.eq.s32.totalorder %s11, 0
    %p52 = por %p50, %p51
    %p53 = scmp.ne.s32.totalorder %s42, %s45
    %p54 = scmp.eq.s32.totalorder %s16, 3
    %p55 = por %p53, %p54
    %p56 = scmp.ne.s32.totalorder %s45, %s46
    %p57 = scmp.eq.s32.totalorder %s16, 0
    %p58 = por %p56, %p57
    %p59 = scmp.ne.s32.totalorder %s45, %s46
    %p60 = scmp.eq.s32.totalorder %s17, 3
    %p61 = por %p59, %p60
    %p63 = scmp.ne.s32.totalorder %s46, %s62
    %p64 = scmp.eq.s32.totalorder %s17, 0
    %p65 = por %p63, %p64
    %s66 = ssub.s32 %s19, %s33
    %s67 = ssub.s32 %s18, %s37
    %s68 = sor.u32 %s66, %s67
    %p69 = scmp.eq.s32.totalorder %s68, 0
    %s71 = sadd.s32 %s70, 1
    %s72 = scalar_select %p69, %s70, %s71
    %p75 = pneg %p69
    %p76 = scmp.eq.s32.totalorder %s11, 3
    %p77 = por %p75, %p76
    %p78 = scmp.ne.s32.totalorder %s70, %s73
    %p79 = scmp.eq.s32.totalorder %s11, 0
    %p80 = por %p78, %p79
    %p81 = scmp.ne.s32.totalorder %s70, %s73
    %p82 = scmp.eq.s32.totalorder %s16, 3
    %p83 = por %p81, %p82
    %p84 = scmp.ne.s32.totalorder %s73, %s74
    %p85 = scmp.eq.s32.totalorder %s16, 0
    %p86 = por %p84, %p85
    %p87 = scmp.ne.s32.totalorder %s73, %s74
    %p88 = scmp.eq.s32.totalorder %s17, 3
    %p89 = por %p87, %p88
    %p91 = scmp.ne.s32.totalorder %s74, %s90
    %p92 = scmp.eq.s32.totalorder %s17, 0
    %p93 = por %p91, %p92
    %s94 = ssub.s32 %s19, %s33
    %s95 = ssub.s32 %s20, %s29
    %s96 = sor.u32 %s94, %s95
    %s97 = ssub.s32 %s18, %s37
    %s98 = sor.u32 %s96, %s97
    %p99 = scmp.eq.s32.totalorder %s98, 0
    %s101 = sadd.s32 %s100, 1
    %s102 = scalar_select %p99, %s100, %s101
    %p105 = pneg %p99
    %p106 = scmp.eq.s32.totalorder %s11, 3
    %p107 = por %p105, %p106
    %p108 = scmp.ne.s32.totalorder %s100, %s103
    %p109 = scmp.eq.s32.totalorder %s11, 0
    %p110 = por %p108, %p109
    %p111 = scmp.ne.s32.totalorder %s100, %s103
    %p112 = scmp.eq.s32.totalorder %s16, 3
    %p113 = por %p111, %p112
    %p114 = scmp.ne.s32.totalorder %s103, %s104
    %p115 = scmp.eq.s32.totalorder %s16, 0
    %p116 = por %p114, %p115
    %p117 = scmp.ne.s32.totalorder %s103, %s104
    %p118 = scmp.eq.s32.totalorder %s17, 3
    %p119 = por %p117, %p118
    %p121 = scmp.ne.s32.totalorder %s104, %s120
    %p122 = scmp.eq.s32.totalorder %s17, 0
    %p123 = por %p121, %p122
    %s124 = ssub.s32 %s19, %s33
    %s125 = ssub.s32 %s18, %s37
    %s126 = sor.u32 %s124, %s125
    %p127 = scmp.eq.s32.totalorder %s126, 0
    %s129 = sadd.s32 %s128, 1
    %s130 = scalar_select %p127, %s128, %s129
    %p133 = pneg %p127
    %p134 = scmp.eq.s32.totalorder %s11, 3
    %p135 = por %p133, %p134
    %p136 = scmp.ne.s32.totalorder %s128, %s131
    %p137 = scmp.eq.s32.totalorder %s11, 0
    %p138 = por %p136, %p137
    %p139 = scmp.ne.s32.totalorder %s128, %s131
    %p140 = scmp.eq.s32.totalorder %s16, 3
    %p141 = por %p139, %p140
    %p142 = scmp.ne.s32.totalorder %s131, %s132
    %p143 = scmp.eq.s32.totalorder %s16, 0
    %p144 = por %p142, %p143
    %p145 = scmp.ne.s32.totalorder %s131, %s132
    %p146 = scmp.eq.s32.totalorder %s17, 3
    %p147 = por %p145, %p146
    %p149 = scmp.ne.s32.totalorder %s132, %s148
    %p150 = scmp.eq.s32.totalorder %s17, 0
    %p151 = por %p149, %p150
    %s152 = ssub.s32 %s19, %s33
    %s153 = ssub.s32 %s18, %s37
    %s154 = sor.u32 %s152, %s153
    %p155 = scmp.eq.s32.totalorder %s154, 0
    %s157 = sadd.s32 %s156, 1
    %s158 = scalar_select %p155, %s156, %s157
    %p161 = pneg %p155
    %p162 = scmp.eq.s32.totalorder %s11, 3
    %p163 = por %p161, %p162
    %p164 = scmp.ne.s32.totalorder %s156, %s159
    %p165 = scmp.eq.s32.totalorder %s11, 0
    %p166 = por %p164, %p165
    %p167 = scmp.ne.s32.totalorder %s156, %s159
    %p168 = scmp.eq.s32.totalorder %s16, 3
    %p169 = por %p167, %p168
    %p170 = scmp.ne.s32.totalorder %s159, %s160
    %p171 = scmp.eq.s32.totalorder %s16, 0
    %p172 = por %p170, %p171
    %p173 = scmp.ne.s32.totalorder %s159, %s160
    %p174 = scmp.eq.s32.totalorder %s17, 3
    %p175 = por %p173, %p174
    %p177 = scmp.ne.s32.totalorder %s160, %s176
    %p178 = scmp.eq.s32.totalorder %s17, 0
    %p179 = por %p177, %p178
    %p180 = scmp.le.s32.totalorder 1, %s11
    %p181 = scmp.lt.s32.totalorder %s11, 5
    %p182 = pnand %p180, %p181
    %p183 = pneg %p182
    // Predicated region
    $region9: #{generator_forward.15} parent=5 // pred_check
      _
    $region10: #{generator_forward.15} parent=5 // pred_check_branch
      %185 = sbr.rel (%p182) target = $region12
    $region11: #{generator_forward.15} parent=5 // pred_region
      %s186 = ssub.s32 %s11, 1
    $region12: #{generator_forward.15} parent=5 // pred_fallthru
      _
    %p187 = scmp.lt.s32.totalorder %s11, 4
    // Predicated region
    $region13: #{generator_forward.15} parent=5 // pred_check
      %p188 = pneg %p187
    $region14: #{generator_forward.15} parent=5 // pred_check_branch
      %190 = sbr.rel (%p188) target = $region16
    $region15: #{generator_forward.15} parent=5 // pred_region
      // Predicated region
      $region17: #{generator_forward.15} parent=15 // pred_check
        %p191 = pneg %p52
      $region18: #{generator_forward.15} parent=15 // pred_check_branch
        %193 = sbr.rel (%p191) target = $region20
      $region19: #{generator_forward.15} parent=15 // pred_region
        %s194 = smul.u32 64, %s20
        %p195 = scmp.lt.s32.totalorder %s19, 3
        %s196 = scalar_select %p195, %s19, 3
        %p197 = scmp.lt.s32.totalorder %s194, 63
        %s198 = scalar_select %p197, %s194, 63
        %s199 = smul.addr %s196, 64
        %s200 = sadd.s32 %s198, %s199
        %s201 = smul.addr %s200, 4
        %s202 = scalar_lea.vmem %s0, %s201
        %s203 = smul.u32 64, %s20
      $region20: #{generator_forward.15} parent=15 // pred_fallthru
        _
      // Predicated region
      $region21: #{generator_forward.15} parent=15 // pred_check
        %p204 = pneg %p80
      $region22: #{generator_forward.15} parent=15 // pred_check_branch
        %206 = sbr.rel (%p204) target = $region24
      $region23: #{generator_forward.15} parent=15 // pred_region
        %p207 = scmp.lt.s32.totalorder %s19, 3
        %s208 = scalar_select %p207, %s19, 3
        %p209 = scmp.lt.s32.totalorder %s18, 0
        %s210 = scalar_select %p209, %s18, 0
        %s211 = smul.addr %s208, 16
        %s212 = sadd.s32 %s210, %s211
        %s213 = smul.addr %s212, 4
        %s214 = scalar_lea.vmem %s1, %s213
      $region24: #{generator_forward.15} parent=15 // pred_fallthru
        _
    $region16: #{generator_forward.15} parent=5 // pred_fallthru
      _
    %p215 = scmp.le.s32.totalorder 1, %s11
    %p216 = scmp.lt.s32.totalorder %s11, 5
    %p217 = pnand %p215, %p216
    %p218 = pneg %p217
    // Predicated region
    $region25: #{generator_forward.15} parent=5 // pred_check
      _
    $region26: #{generator_forward.15} parent=5 // pred_check_branch
      %220 = sbr.rel (%p217) target = $region28
    $region27: #{generator_forward.15} parent=5 // pred_region
      %s221 = ssub.s32 %s11, 1
      %s222 = smul.u32 64, %s23
      %p223 = scmp.lt.s32.totalorder %s22, 3
      %s224 = scalar_select %p223, %s22, 3
      %p225 = scmp.lt.s32.totalorder %s222, 63
      %s226 = scalar_select %p225, %s222, 63
      %s227 = smul.addr %s224, 64
      %s228 = sadd.s32 %s226, %s227
      %s229 = smul.addr %s228, 4
      %s230 = scalar_lea.vmem %s0, %s229
      %p231 = pneg %p58
      %p232 = pneg %p55
      %p233 = scmp.lt.s32.totalorder %s22, 3
      %s234 = scalar_select %p233, %s22, 3
      %p235 = scmp.lt.s32.totalorder %s21, 0
      %s236 = scalar_select %p235, %s21, 0
      %s237 = smul.addr %s234, 16
      %s238 = sadd.s32 %s236, %s237
      %s239 = smul.addr %s238, 4
      %s240 = scalar_lea.vmem %s1, %s239
      %p241 = pneg %p86
      %p242 = pneg %p83
      %p243 = pneg %p116
      %p244 = pneg %p113
      %s245 = smul.u32 64, %s23
      %p246 = scmp.lt.s32.totalorder %s22, 3
      %s247 = scalar_select %p246, %s22, 3
      %p248 = scmp.lt.s32.totalorder %s245, 63
      %s249 = scalar_select %p248, %s245, 63
      %p250 = scmp.lt.s32.totalorder %s21, 0
      %s251 = scalar_select %p250, %s21, 0
      %s252 = sadd.s32 %s251, %s249
      %s253 = smul.addr %s247, 64
      %s254 = sadd.s32 %s252, %s253
      %s255 = smul.addr %s254, 4
      %s256 = scalar_lea.vmem %s2, %s255
      %p257 = pneg %p144
      %p258 = pneg %p141
      %p259 = scmp.lt.s32.totalorder %s22, 3
      %s260 = scalar_select %p259, %s22, 3
      %p261 = scmp.lt.s32.totalorder %s21, 0
      %s262 = scalar_select %p261, %s21, 0
      %s263 = sadd.s32 %s262, %s260
      %s264 = scalar_lea.vmem %s3, %s263
      %p265 = pneg %p172
      %p266 = pneg %p169
      %p267 = scmp.lt.s32.totalorder %s22, 3
      %s268 = scalar_select %p267, %s22, 3
      %p269 = scmp.lt.s32.totalorder %s21, 0
      %s270 = scalar_select %p269, %s21, 0
      %s271 = sadd.s32 %s270, %s268
      %s272 = scalar_lea.vmem %s4, %s271
      %s273 = smul.u32 64, %s23
      %p274 = scmp.lt.s32.totalorder %s22, 3
      %s275 = scalar_select %p274, %s22, 3
      %p276 = scmp.lt.s32.totalorder %s273, 63
      %s277 = scalar_select %p276, %s273, 63
      %s278 = smul.addr %s275, 64
      %s279 = sadd.s32 %s277, %s278
      %s280 = smul.addr %s279, 4
      %s281 = scalar_lea.vmem %s0, %s280
      %s282 = smul.u32 64, %s23
      %p283 = scmp.lt.s32.totalorder %s22, 3
      %s284 = scalar_select %p283, %s22, 3
      %p285 = scmp.lt.s32.totalorder %s21, 0
      %s286 = scalar_select %p285, %s21, 0
      %s287 = smul.addr %s284, 16
      %s288 = sadd.s32 %s286, %s287
      %s289 = smul.addr %s288, 4
      %s290 = scalar_lea.vmem %s1, %s289
      %s291 = smul.u32 64, %s23
      %p292 = scmp.lt.s32.totalorder %s22, 3
      %s293 = scalar_select %p292, %s22, 3
      %p294 = scmp.lt.s32.totalorder %s291, 63
      %s295 = scalar_select %p294, %s291, 63
      %p296 = scmp.lt.s32.totalorder %s21, 0
      %s297 = scalar_select %p296, %s21, 0
      %s298 = sadd.s32 %s297, %s295
      %s299 = smul.addr %s293, 64
      %s300 = sadd.s32 %s298, %s299
      %s301 = smul.addr %s300, 4
      %s302 = scalar_lea.vmem %s2, %s301
      %s303 = smul.u32 64, %s23
      %p304 = scmp.lt.s32.totalorder %s22, 3
      %s305 = scalar_select %p304, %s22, 3
      %p306 = scmp.lt.s32.totalorder %s21, 0
      %s307 = scalar_select %p306, %s21, 0
      %s308 = sadd.s32 %s307, %s305
      %s309 = scalar_lea.vmem %s3, %s308
      %p310 = scmp.lt.s32.totalorder %s22, 3
      %s311 = scalar_select %p310, %s22, 3
      %p312 = scmp.lt.s32.totalorder %s21, 0
      %s313 = scalar_select %p312, %s21, 0
      %s314 = sadd.s32 %s313, %s311
      %s315 = scalar_lea.vmem %s4, %s314
      %p317 = scmp.eq.s32.totalorder %s23, 0
      // Predicated region
      $region29: #{generator_forward.15} parent=27 // pred_check
        %p318 = pneg %p317
      $region30: #{generator_forward.15} parent=27 // pred_check_branch
        %320 = sbr.rel (%p318) target = $region32
      $region31: #{generator_forward.15} parent=27 // pred_region
        %321 = vst [vmem:[%s309] sm:$0x1] 0.0
        %322 = vst [vmem:[%s315] sm:$0x1] 0.0
      $region32: #{generator_forward.15} parent=27 // pred_fallthru
        _
      %v323 = vld [vmem:[%s281] sm:$0xf]
      %v324 = vld [vmem:[%s281 + $0x4] sm:$0xf]
      %v325 = vld [vmem:[%s281 + $0x8] sm:$0xf]
      %v326 = vld [vmem:[%s281 + $0xc] sm:$0xf]
      %v327 = vld [vmem:[%s281 + $0x10] sm:$0xf]
      %v328 = vld [vmem:[%s281 + $0x14] sm:$0xf]
      %v329 = vld [vmem:[%s281 + $0x18] sm:$0xf]
      %v330 = vld [vmem:[%s281 + $0x1c] sm:$0xf]
      %v331 = vld [vmem:[%s281 + $0x20] sm:$0xf]
      %v332 = vld [vmem:[%s281 + $0x24] sm:$0xf]
      %v333 = vld [vmem:[%s281 + $0x28] sm:$0xf]
      %v334 = vld [vmem:[%s281 + $0x2c] sm:$0xf]
      %v335 = vld [vmem:[%s281 + $0x30] sm:$0xf]
      %v336 = vld [vmem:[%s281 + $0x34] sm:$0xf]
      %v337 = vld [vmem:[%s281 + $0x38] sm:$0xf]
      %v338 = vld [vmem:[%s281 + $0x3c] sm:$0xf]
      %v339 = vld [vmem:[%s281 + $0x40] sm:$0xf]
      %v340 = vld [vmem:[%s281 + $0x44] sm:$0xf]
      %v341 = vld [vmem:[%s281 + $0x48] sm:$0xf]
      %v342 = vld [vmem:[%s281 + $0x4c] sm:$0xf]
      %v343 = vld [vmem:[%s281 + $0x50] sm:$0xf]
      %v344 = vld [vmem:[%s281 + $0x54] sm:$0xf]
      %v345 = vld [vmem:[%s281 + $0x58] sm:$0xf]
      %v346 = vld [vmem:[%s281 + $0x5c] sm:$0xf]
      %v347 = vld [vmem:[%s281 + $0x60] sm:$0xf]
      %v348 = vld [vmem:[%s281 + $0x64] sm:$0xf]
      %v349 = vld [vmem:[%s281 + $0x68] sm:$0xf]
      %v350 = vld [vmem:[%s281 + $0x6c] sm:$0xf]
      %v351 = vld [vmem:[%s281 + $0x70] sm:$0xf]
      %v352 = vld [vmem:[%s281 + $0x74] sm:$0xf]
      %v353 = vld [vmem:[%s281 + $0x78] sm:$0xf]
      %v354 = vld [vmem:[%s281 + $0x7c] sm:$0xf]
      %v355 = vld [vmem:[%s281 + $0x80] sm:$0xf]
      %v356 = vld [vmem:[%s281 + $0x84] sm:$0xf]
      %v357 = vld [vmem:[%s281 + $0x88] sm:$0xf]
      %v358 = vld [vmem:[%s281 + $0x8c] sm:$0xf]
      %v359 = vld [vmem:[%s281 + $0x90] sm:$0xf]
      %v360 = vld [vmem:[%s281 + $0x94] sm:$0xf]
      %v361 = vld [vmem:[%s281 + $0x98] sm:$0xf]
      %v362 = vld [vmem:[%s281 + $0x9c] sm:$0xf]
      %v363 = vld [vmem:[%s281 + $0xa0] sm:$0xf]
      %v364 = vld [vmem:[%s281 + $0xa4] sm:$0xf]
      %v365 = vld [vmem:[%s281 + $0xa8] sm:$0xf]
      %v366 = vld [vmem:[%s281 + $0xac] sm:$0xf]
      %v367 = vld [vmem:[%s281 + $0xb0] sm:$0xf]
      %v368 = vld [vmem:[%s281 + $0xb4] sm:$0xf]
      %v369 = vld [vmem:[%s281 + $0xb8] sm:$0xf]
      %v370 = vld [vmem:[%s281 + $0xbc] sm:$0xf]
      %v371 = vld [vmem:[%s281 + $0xc0] sm:$0xf]
      %v372 = vld [vmem:[%s281 + $0xc4] sm:$0xf]
      %v373 = vld [vmem:[%s281 + $0xc8] sm:$0xf]
      %v374 = vld [vmem:[%s281 + $0xcc] sm:$0xf]
      %v375 = vld [vmem:[%s281 + $0xd0] sm:$0xf]
      %v376 = vld [vmem:[%s281 + $0xd4] sm:$0xf]
      %v377 = vld [vmem:[%s281 + $0xd8] sm:$0xf]
      %v378 = vld [vmem:[%s281 + $0xdc] sm:$0xf]
      %v379 = vld [vmem:[%s281 + $0xe0] sm:$0xf]
      %v380 = vld [vmem:[%s281 + $0xe4] sm:$0xf]
      %v381 = vld [vmem:[%s281 + $0xe8] sm:$0xf]
      %v382 = vld [vmem:[%s281 + $0xec] sm:$0xf]
      %v383 = vld [vmem:[%s281 + $0xf0] sm:$0xf]
      %v384 = vld [vmem:[%s281 + $0xf4] sm:$0xf]
      %v385 = vld [vmem:[%s281 + $0xf8] sm:$0xf]
      %v386 = vld [vmem:[%s281 + $0xfc] sm:$0xf]
      %v387 = vld [vmem:[%s290] sm:$0xf]
      %v388 = vld [vmem:[%s290 + $0x4] sm:$0xf]
      %v389 = vld [vmem:[%s290 + $0x8] sm:$0xf]
      %v390 = vld [vmem:[%s290 + $0xc] sm:$0xf]
      %v391 = vld [vmem:[%s290 + $0x10] sm:$0xf]
      %v392 = vld [vmem:[%s290 + $0x14] sm:$0xf]
      %v393 = vld [vmem:[%s290 + $0x18] sm:$0xf]
      %v394 = vld [vmem:[%s290 + $0x1c] sm:$0xf]
      %v395 = vld [vmem:[%s290 + $0x20] sm:$0xf]
      %v396 = vld [vmem:[%s290 + $0x24] sm:$0xf]
      %v397 = vld [vmem:[%s290 + $0x28] sm:$0xf]
      %v398 = vld [vmem:[%s290 + $0x2c] sm:$0xf]
      %v399 = vld [vmem:[%s290 + $0x30] sm:$0xf]
      %v400 = vld [vmem:[%s290 + $0x34] sm:$0xf]
      %v401 = vld [vmem:[%s290 + $0x38] sm:$0xf]
      %v402 = vld [vmem:[%s290 + $0x3c] sm:$0xf]
      %v467 = vunpack.c.l.b16 %v323
      %v468 = vunpack.c.l.b16 %v324
      %v469 = vunpack.c.l.b16 %v325
      %v470 = vunpack.c.l.b16 %v326
      %v471 = vunpack.c.l.b16 %v327
      %v472 = vunpack.c.l.b16 %v328
      %v473 = vunpack.c.l.b16 %v329
      %v474 = vunpack.c.l.b16 %v330
      %v475 = vunpack.c.l.b16 %v331
      %v476 = vunpack.c.l.b16 %v332
      %v477 = vunpack.c.l.b16 %v333
      %v478 = vunpack.c.l.b16 %v334
      %v479 = vunpack.c.l.b16 %v335
      %v480 = vunpack.c.l.b16 %v336
      %v481 = vunpack.c.l.b16 %v337
      %v482 = vunpack.c.l.b16 %v338
      %v483 = vunpack.c.l.b16 %v339
      %v484 = vunpack.c.l.b16 %v340
      %v485 = vunpack.c.l.b16 %v341
      %v486 = vunpack.c.l.b16 %v342
      %v487 = vunpack.c.l.b16 %v343
      %v488 = vunpack.c.l.b16 %v344
      %v489 = vunpack.c.l.b16 %v345
      %v490 = vunpack.c.l.b16 %v346
      %v491 = vunpack.c.l.b16 %v347
      %v492 = vunpack.c.l.b16 %v348
      %v493 = vunpack.c.l.b16 %v349
      %v494 = vunpack.c.l.b16 %v350
      %v495 = vunpack.c.l.b16 %v351
      %v496 = vunpack.c.l.b16 %v352
      %v497 = vunpack.c.l.b16 %v353
      %v498 = vunpack.c.l.b16 %v354
      %v499 = vunpack.c.l.b16 %v355
      %v500 = vunpack.c.l.b16 %v356
      %v501 = vunpack.c.l.b16 %v357
      %v502 = vunpack.c.l.b16 %v358
      %v503 = vunpack.c.l.b16 %v359
      %v504 = vunpack.c.l.b16 %v360
      %v505 = vunpack.c.l.b16 %v361
      %v506 = vunpack.c.l.b16 %v362
      %v507 = vunpack.c.l.b16 %v363
      %v508 = vunpack.c.l.b16 %v364
      %v509 = vunpack.c.l.b16 %v365
      %v510 = vunpack.c.l.b16 %v366
      %v511 = vunpack.c.l.b16 %v367
      %v512 = vunpack.c.l.b16 %v368
      %v513 = vunpack.c.l.b16 %v369
      %v514 = vunpack.c.l.b16 %v370
      %v515 = vunpack.c.l.b16 %v371
      %v516 = vunpack.c.l.b16 %v372
      %v517 = vunpack.c.l.b16 %v373
      %v518 = vunpack.c.l.b16 %v374
      %v519 = vunpack.c.l.b16 %v375
      %v520 = vunpack.c.l.b16 %v376
      %v521 = vunpack.c.l.b16 %v377
      %v522 = vunpack.c.l.b16 %v378
      %v523 = vunpack.c.l.b16 %v379
      %v524 = vunpack.c.l.b16 %v380
      %v525 = vunpack.c.l.b16 %v381
      %v526 = vunpack.c.l.b16 %v382
      %v527 = vunpack.c.l.b16 %v383
      %v528 = vunpack.c.l.b16 %v384
      %v529 = vunpack.c.l.b16 %v385
      %v530 = vunpack.c.l.b16 %v386
      %v531 = vpack.c.b16 %v468, %v467
      %v532 = vpack.c.b16 %v470, %v469
      %v533 = vpack.c.b16 %v472, %v471
      %v534 = vpack.c.b16 %v474, %v473
      %v535 = vpack.c.b16 %v476, %v475
      %v536 = vpack.c.b16 %v478, %v477
      %v537 = vpack.c.b16 %v480, %v479
      %v538 = vpack.c.b16 %v482, %v481
      %v539 = vpack.c.b16 %v484, %v483
      %v540 = vpack.c.b16 %v486, %v485
      %v541 = vpack.c.b16 %v488, %v487
      %v542 = vpack.c.b16 %v490, %v489
      %v543 = vpack.c.b16 %v492, %v491
      %v544 = vpack.c.b16 %v494, %v493
      %v545 = vpack.c.b16 %v496, %v495
      %v546 = vpack.c.b16 %v498, %v497
      %v547 = vpack.c.b16 %v500, %v499
      %v548 = vpack.c.b16 %v502, %v501
      %v549 = vpack.c.b16 %v504, %v503
      %v550 = vpack.c.b16 %v506, %v505
      %v551 = vpack.c.b16 %v508, %v507
      %v552 = vpack.c.b16 %v510, %v509
      %v553 = vpack.c.b16 %v512, %v511
      %v554 = vpack.c.b16 %v514, %v513
      %v555 = vpack.c.b16 %v516, %v515
      %v556 = vpack.c.b16 %v518, %v517
      %v557 = vpack.c.b16 %v520, %v519
      %v558 = vpack.c.b16 %v522, %v521
      %v559 = vpack.c.b16 %v524, %v523
      %v560 = vpack.c.b16 %v526, %v525
      %v561 = vpack.c.b16 %v528, %v527
      %v562 = vpack.c.b16 %v530, %v529
      %v611 = vunpack.c.l.b16 %v387
      %v612 = vunpack.c.l.b16 %v388
      %v613 = vunpack.c.l.b16 %v389
      %v614 = vunpack.c.l.b16 %v390
      %v615 = vunpack.c.l.b16 %v391
      %v616 = vunpack.c.l.b16 %v392
      %v617 = vunpack.c.l.b16 %v393
      %v618 = vunpack.c.l.b16 %v394
      %v619 = vunpack.c.l.b16 %v395
      %v620 = vunpack.c.l.b16 %v396
      %v621 = vunpack.c.l.b16 %v397
      %v622 = vunpack.c.l.b16 %v398
      %v623 = vunpack.c.l.b16 %v399
      %v624 = vunpack.c.l.b16 %v400
      %v625 = vunpack.c.l.b16 %v401
      %v626 = vunpack.c.l.b16 %v402
      %v627 = vpack.c.b16 %v612, %v611
      %v628 = vpack.c.b16 %v614, %v613
      %v629 = vpack.c.b16 %v616, %v615
      %v630 = vpack.c.b16 %v618, %v617
      %v631 = vpack.c.b16 %v620, %v619
      %v632 = vpack.c.b16 %v622, %v621
      %v633 = vpack.c.b16 %v624, %v623
      %v634 = vpack.c.b16 %v626, %v625
      %643 = vmatprep.subr.bf16.mxu0 0
      %644 = vmatpush1.bf16.msra.mxu0 %v634
      %645 = vmatprep.subr.bf16.mxu0 0
      %646 = vmatpush1.bf16.msra.mxu0 %v633
      %647 = vmatprep.subr.bf16.mxu0 0
      %648 = vmatpush1.bf16.msra.mxu0 %v632
      %649 = vmatprep.subr.bf16.mxu0 0
      %650 = vmatpush1.bf16.msra.mxu0 %v631
      %651 = vmatprep.subr.bf16.mxu0 0
      %652 = vmatpush1.bf16.msra.mxu0 %v630
      %653 = vmatprep.subr.bf16.mxu0 0
      %654 = vmatpush1.bf16.msra.mxu0 %v629
      %655 = vmatprep.subr.bf16.mxu0 0
      %656 = vmatpush1.bf16.msra.mxu0 %v628
      %657 = vmatprep.subr.bf16.mxu0 0
      %658 = vmatpush1.bf16.msra.mxu0 %v627
      %659 = vmatprep.subr.bf16.mxu0 0
      %660 = vmatpush2.bf16.msra.mxu0 0
      %661 = vmatprep.subr.bf16.mxu0 0
      %662 = vmatpush2.bf16.msra.mxu0 0
      %663 = vmatprep.subr.bf16.mxu0 0
      %664 = vmatpush2.bf16.msra.mxu0 0
      %665 = vmatprep.subr.bf16.mxu0 0
      %666 = vmatpush2.bf16.msra.mxu0 0
      %667 = vmatprep.subr.bf16.mxu0 0
      %668 = vmatpush2.bf16.msra.mxu0 0
      %669 = vmatprep.subr.bf16.mxu0 0
      %670 = vmatpush2.bf16.msra.mxu0 0
      %671 = vmatprep.subr.bf16.mxu0 0
      %672 = vmatpush2.bf16.msra.mxu0 0
      %673 = vmatprep.subr.bf16.mxu0 0
      %674 = vmatpush2.bf16.msra.mxu0 0
      %675 = vmatprep.mubr.bf16.mxu0 0
      %676 = vmatmul.mubr.bf16.gmra.mxu0 %v531
      %v677 = vpop.f32.mrf.mxu0
      %v678 = vadd.f32 0.0, %v677
      %v679 = vpop.f32.mrf.mxu0
      %v680 = vpop.f32.mrf.mxu0
      %v681 = vadd.f32 0.0, %v680
      %v682 = vpop.f32.mrf.mxu0
      %683 = vmatprep.mubr.bf16.mxu0 0
      %684 = vmatmul.mubr.bf16.gmra.mxu0 %v532
      %v685 = vpop.f32.mrf.mxu0
      %v686 = vadd.f32 0.0, %v685
      %v687 = vpop.f32.mrf.mxu0
      %v688 = vpop.f32.mrf.mxu0
      %v689 = vadd.f32 0.0, %v688
      %v690 = vpop.f32.mrf.mxu0
      %691 = vmatprep.mubr.bf16.mxu0 0
      %692 = vmatmul.mubr.bf16.gmra.mxu0 %v533
      %v693 = vpop.f32.mrf.mxu0
      %v694 = vadd.f32 0.0, %v693
      %v695 = vpop.f32.mrf.mxu0
      %v696 = vpop.f32.mrf.mxu0
      %v697 = vadd.f32 0.0, %v696
      %v698 = vpop.f32.mrf.mxu0
      %699 = vmatprep.mubr.bf16.mxu0 0
      %700 = vmatmul.mubr.bf16.gmra.mxu0 %v534
      %v701 = vpop.f32.mrf.mxu0
      %v702 = vadd.f32 0.0, %v701
      %v703 = vpop.f32.mrf.mxu0
      %v704 = vpop.f32.mrf.mxu0
      %v705 = vadd.f32 0.0, %v704
      %v706 = vpop.f32.mrf.mxu0
      %707 = vmatprep.mubr.bf16.mxu0 0
      %708 = vmatmul.mubr.bf16.gmra.mxu0 %v535
      %v709 = vpop.f32.mrf.mxu0
      %v710 = vadd.f32 0.0, %v709
      %v711 = vpop.f32.mrf.mxu0
      %v712 = vpop.f32.mrf.mxu0
      %v713 = vadd.f32 0.0, %v712
      %v714 = vpop.f32.mrf.mxu0
      %715 = vmatprep.mubr.bf16.mxu0 0
      %716 = vmatmul.mubr.bf16.gmra.mxu0 %v536
      %v717 = vpop.f32.mrf.mxu0
      %v718 = vadd.f32 0.0, %v717
      %v719 = vpop.f32.mrf.mxu0
      %v720 = vpop.f32.mrf.mxu0
      %v721 = vadd.f32 0.0, %v720
      %v722 = vpop.f32.mrf.mxu0
      %723 = vmatprep.mubr.bf16.mxu0 0
      %724 = vmatmul.mubr.bf16.gmra.mxu0 %v537
      %v725 = vpop.f32.mrf.mxu0
      %v726 = vadd.f32 0.0, %v725
      %v727 = vpop.f32.mrf.mxu0
      %v728 = vpop.f32.mrf.mxu0
      %v729 = vadd.f32 0.0, %v728
      %v730 = vpop.f32.mrf.mxu0
      %731 = vmatprep.mubr.bf16.mxu0 0
      %732 = vmatmul.mubr.bf16.gmra.mxu0 %v538
      %v733 = vpop.f32.mrf.mxu0
      %v734 = vadd.f32 0.0, %v733
      %v735 = vpop.f32.mrf.mxu0
      %v736 = vpop.f32.mrf.mxu0
      %v737 = vadd.f32 0.0, %v736
      %v738 = vpop.f32.mrf.mxu0
      %739 = vmatprep.mubr.bf16.mxu0 0
      %740 = vmatmul.mubr.bf16.gmra.mxu0 %v539
      %v741 = vpop.f32.mrf.mxu0
      %v742 = vadd.f32 0.0, %v741
      %v743 = vpop.f32.mrf.mxu0
      %v744 = vpop.f32.mrf.mxu0
      %v745 = vadd.f32 0.0, %v744
      %v746 = vpop.f32.mrf.mxu0
      %747 = vmatprep.mubr.bf16.mxu0 0
      %748 = vmatmul.mubr.bf16.gmra.mxu0 %v540
      %v749 = vpop.f32.mrf.mxu0
      %v750 = vadd.f32 0.0, %v749
      %v751 = vpop.f32.mrf.mxu0
      %v752 = vpop.f32.mrf.mxu0
      %v753 = vadd.f32 0.0, %v752
      %v754 = vpop.f32.mrf.mxu0
      %755 = vmatprep.mubr.bf16.mxu0 0
      %756 = vmatmul.mubr.bf16.gmra.mxu0 %v541
      %v757 = vpop.f32.mrf.mxu0
      %v758 = vadd.f32 0.0, %v757
      %v759 = vpop.f32.mrf.mxu0
      %v760 = vpop.f32.mrf.mxu0
      %v761 = vadd.f32 0.0, %v760
      %v762 = vpop.f32.mrf.mxu0
      %763 = vmatprep.mubr.bf16.mxu0 0
      %764 = vmatmul.mubr.bf16.gmra.mxu0 %v542
      %v765 = vpop.f32.mrf.mxu0
      %v766 = vadd.f32 0.0, %v765
      %v767 = vpop.f32.mrf.mxu0
      %v768 = vpop.f32.mrf.mxu0
      %v769 = vadd.f32 0.0, %v768
      %v770 = vpop.f32.mrf.mxu0
      %771 = vmatprep.mubr.bf16.mxu0 0
      %772 = vmatmul.mubr.bf16.gmra.mxu0 %v543
      %v773 = vpop.f32.mrf.mxu0
      %v774 = vadd.f32 0.0, %v773
      %v775 = vpop.f32.mrf.mxu0
      %v776 = vpop.f32.mrf.mxu0
      %v777 = vadd.f32 0.0, %v776
      %v778 = vpop.f32.mrf.mxu0
      %779 = vmatprep.mubr.bf16.mxu0 0
      %780 = vmatmul.mubr.bf16.gmra.mxu0 %v544
      %v781 = vpop.f32.mrf.mxu0
      %v782 = vadd.f32 0.0, %v781
      %v783 = vpop.f32.mrf.mxu0
      %v784 = vpop.f32.mrf.mxu0
      %v785 = vadd.f32 0.0, %v784
      %v786 = vpop.f32.mrf.mxu0
      %787 = vmatprep.mubr.bf16.mxu0 0
      %788 = vmatmul.mubr.bf16.gmra.mxu0 %v545
      %v789 = vpop.f32.mrf.mxu0
      %v790 = vadd.f32 0.0, %v789
      %v791 = vpop.f32.mrf.mxu0
      %v792 = vpop.f32.mrf.mxu0
      %v793 = vadd.f32 0.0, %v792
      %v794 = vpop.f32.mrf.mxu0
      %795 = vmatprep.mubr.bf16.mxu0 0
      %796 = vmatmul.mubr.bf16.gmra.mxu0 %v546
      %v797 = vpop.f32.mrf.mxu0
      %v798 = vadd.f32 0.0, %v797
      %v799 = vpop.f32.mrf.mxu0
      %v800 = vpop.f32.mrf.mxu0
      %v801 = vadd.f32 0.0, %v800
      %v802 = vpop.f32.mrf.mxu0
      %803 = vmatprep.mubr.bf16.mxu0 0
      %804 = vmatmul.mubr.bf16.gmra.mxu0 %v547
      %v805 = vpop.f32.mrf.mxu0
      %v806 = vadd.f32 0.0, %v805
      %v807 = vpop.f32.mrf.mxu0
      %v808 = vpop.f32.mrf.mxu0
      %v809 = vadd.f32 0.0, %v808
      %v810 = vpop.f32.mrf.mxu0
      %811 = vmatprep.mubr.bf16.mxu0 0
      %812 = vmatmul.mubr.bf16.gmra.mxu0 %v548
      %v813 = vpop.f32.mrf.mxu0
      %v814 = vadd.f32 0.0, %v813
      %v815 = vpop.f32.mrf.mxu0
      %v816 = vpop.f32.mrf.mxu0
      %v817 = vadd.f32 0.0, %v816
      %v818 = vpop.f32.mrf.mxu0
      %819 = vmatprep.mubr.bf16.mxu0 0
      %820 = vmatmul.mubr.bf16.gmra.mxu0 %v549
      %v821 = vpop.f32.mrf.mxu0
      %v822 = vadd.f32 0.0, %v821
      %v823 = vpop.f32.mrf.mxu0
      %v824 = vpop.f32.mrf.mxu0
      %v825 = vadd.f32 0.0, %v824
      %v826 = vpop.f32.mrf.mxu0
      %827 = vmatprep.mubr.bf16.mxu0 0
      %828 = vmatmul.mubr.bf16.gmra.mxu0 %v550
      %v829 = vpop.f32.mrf.mxu0
      %v830 = vadd.f32 0.0, %v829
      %v831 = vpop.f32.mrf.mxu0
      %v832 = vpop.f32.mrf.mxu0
      %v833 = vadd.f32 0.0, %v832
      %v834 = vpop.f32.mrf.mxu0
      %835 = vmatprep.mubr.bf16.mxu0 0
      %836 = vmatmul.mubr.bf16.gmra.mxu0 %v551
      %v837 = vpop.f32.mrf.mxu0
      %v838 = vadd.f32 0.0, %v837
      %v839 = vpop.f32.mrf.mxu0
      %v840 = vpop.f32.mrf.mxu0
      %v841 = vadd.f32 0.0, %v840
      %v842 = vpop.f32.mrf.mxu0
      %843 = vmatprep.mubr.bf16.mxu0 0
      %844 = vmatmul.mubr.bf16.gmra.mxu0 %v552
      %v845 = vpop.f32.mrf.mxu0
      %v846 = vadd.f32 0.0, %v845
      %v847 = vpop.f32.mrf.mxu0
      %v848 = vpop.f32.mrf.mxu0
      %v849 = vadd.f32 0.0, %v848
      %v850 = vpop.f32.mrf.mxu0
      %851 = vmatprep.mubr.bf16.mxu0 0
      %852 = vmatmul.mubr.bf16.gmra.mxu0 %v553
      %v853 = vpop.f32.mrf.mxu0
      %v854 = vadd.f32 0.0, %v853
      %v855 = vpop.f32.mrf.mxu0
      %v856 = vpop.f32.mrf.mxu0
      %v857 = vadd.f32 0.0, %v856
      %v858 = vpop.f32.mrf.mxu0
      %859 = vmatprep.mubr.bf16.mxu0 0
      %860 = vmatmul.mubr.bf16.gmra.mxu0 %v554
      %v861 = vpop.f32.mrf.mxu0
      %v862 = vadd.f32 0.0, %v861
      %v863 = vpop.f32.mrf.mxu0
      %v864 = vpop.f32.mrf.mxu0
      %v865 = vadd.f32 0.0, %v864
      %v866 = vpop.f32.mrf.mxu0
      %867 = vmatprep.mubr.bf16.mxu0 0
      %868 = vmatmul.mubr.bf16.gmra.mxu0 %v555
      %v869 = vpop.f32.mrf.mxu0
      %v870 = vadd.f32 0.0, %v869
      %v871 = vpop.f32.mrf.mxu0
      %v872 = vpop.f32.mrf.mxu0
      %v873 = vadd.f32 0.0, %v872
      %v874 = vpop.f32.mrf.mxu0
      %875 = vmatprep.mubr.bf16.mxu0 0
      %876 = vmatmul.mubr.bf16.gmra.mxu0 %v556
      %v877 = vpop.f32.mrf.mxu0
      %v878 = vadd.f32 0.0, %v877
      %v879 = vpop.f32.mrf.mxu0
      %v880 = vpop.f32.mrf.mxu0
      %v881 = vadd.f32 0.0, %v880
      %v882 = vpop.f32.mrf.mxu0
      %883 = vmatprep.mubr.bf16.mxu0 0
      %884 = vmatmul.mubr.bf16.gmra.mxu0 %v557
      %v885 = vpop.f32.mrf.mxu0
      %v886 = vadd.f32 0.0, %v885
      %v887 = vpop.f32.mrf.mxu0
      %v888 = vpop.f32.mrf.mxu0
      %v889 = vadd.f32 0.0, %v888
      %v890 = vpop.f32.mrf.mxu0
      %891 = vmatprep.mubr.bf16.mxu0 0
      %892 = vmatmul.mubr.bf16.gmra.mxu0 %v558
      %v893 = vpop.f32.mrf.mxu0
      %v894 = vadd.f32 0.0, %v893
      %v895 = vpop.f32.mrf.mxu0
      %v896 = vpop.f32.mrf.mxu0
      %v897 = vadd.f32 0.0, %v896
      %v898 = vpop.f32.mrf.mxu0
      %899 = vmatprep.mubr.bf16.mxu0 0
      %900 = vmatmul.mubr.bf16.gmra.mxu0 %v559
      %v901 = vpop.f32.mrf.mxu0
      %v902 = vadd.f32 0.0, %v901
      %v903 = vpop.f32.mrf.mxu0
      %v904 = vpop.f32.mrf.mxu0
      %v905 = vadd.f32 0.0, %v904
      %v906 = vpop.f32.mrf.mxu0
      %907 = vmatprep.mubr.bf16.mxu0 0
      %908 = vmatmul.mubr.bf16.gmra.mxu0 %v560
      %v909 = vpop.f32.mrf.mxu0
      %v910 = vadd.f32 0.0, %v909
      %v911 = vpop.f32.mrf.mxu0
      %v912 = vpop.f32.mrf.mxu0
      %v913 = vadd.f32 0.0, %v912
      %v914 = vpop.f32.mrf.mxu0
      %915 = vmatprep.mubr.bf16.mxu0 0
      %916 = vmatmul.mubr.bf16.gmra.mxu0 %v561
      %v917 = vpop.f32.mrf.mxu0
      %v918 = vadd.f32 0.0, %v917
      %v919 = vpop.f32.mrf.mxu0
      %v920 = vpop.f32.mrf.mxu0
      %v921 = vadd.f32 0.0, %v920
      %v922 = vpop.f32.mrf.mxu0
      %923 = vmatprep.mubr.bf16.mxu0 0
      %924 = vmatmul.mubr.bf16.gmra.mxu0 %v562
      %v925 = vpop.f32.mrf.mxu0
      %v926 = vadd.f32 0.0, %v925
      %v927 = vpop.f32.mrf.mxu0
      %v928 = vpop.f32.mrf.mxu0
      %v929 = vadd.f32 0.0, %v928
      %v930 = vpop.f32.mrf.mxu0
      %931 = vdwg.mxu0
      %v932 = vpack.c.bf16 %v681, %v678
      %v933 = vpack.c.bf16 %v689, %v686
      %v934 = vpack.c.bf16 %v697, %v694
      %v935 = vpack.c.bf16 %v705, %v702
      %v936 = vpack.c.bf16 %v713, %v710
      %v937 = vpack.c.bf16 %v721, %v718
      %v938 = vpack.c.bf16 %v729, %v726
      %v939 = vpack.c.bf16 %v737, %v734
      %v940 = vpack.c.bf16 %v745, %v742
      %v941 = vpack.c.bf16 %v753, %v750
      %v942 = vpack.c.bf16 %v761, %v758
      %v943 = vpack.c.bf16 %v769, %v766
      %v944 = vpack.c.bf16 %v777, %v774
      %v945 = vpack.c.bf16 %v785, %v782
      %v946 = vpack.c.bf16 %v793, %v790
      %v947 = vpack.c.bf16 %v801, %v798
      %v948 = vpack.c.bf16 %v809, %v806
      %v949 = vpack.c.bf16 %v817, %v814
      %v950 = vpack.c.bf16 %v825, %v822
      %v951 = vpack.c.bf16 %v833, %v830
      %v952 = vpack.c.bf16 %v841, %v838
      %v953 = vpack.c.bf16 %v849, %v846
      %v954 = vpack.c.bf16 %v857, %v854
      %v955 = vpack.c.bf16 %v865, %v862
      %v956 = vpack.c.bf16 %v873, %v870
      %v957 = vpack.c.bf16 %v881, %v878
      %v958 = vpack.c.bf16 %v889, %v886
      %v959 = vpack.c.bf16 %v897, %v894
      %v960 = vpack.c.bf16 %v905, %v902
      %v961 = vpack.c.bf16 %v913, %v910
      %v962 = vpack.c.bf16 %v921, %v918
      %v963 = vpack.c.bf16 %v929, %v926
      %v996 = vunpack.c.l.b16 %v932
      %v997 = vunpack.c.h.b16 %v932
      %v998 = vunpack.c.l.b16 %v933
      %v999 = vunpack.c.h.b16 %v933
      %v1000 = vunpack.c.l.b16 %v934
      %v1001 = vunpack.c.h.b16 %v934
      %v1002 = vunpack.c.l.b16 %v935
      %v1003 = vunpack.c.h.b16 %v935
      %v1004 = vunpack.c.l.b16 %v936
      %v1005 = vunpack.c.h.b16 %v936
      %v1006 = vunpack.c.l.b16 %v937
      %v1007 = vunpack.c.h.b16 %v937
      %v1008 = vunpack.c.l.b16 %v938
      %v1009 = vunpack.c.h.b16 %v938
      %v1010 = vunpack.c.l.b16 %v939
      %v1011 = vunpack.c.h.b16 %v939
      %v1012 = vunpack.c.l.b16 %v940
      %v1013 = vunpack.c.h.b16 %v940
      %v1014 = vunpack.c.l.b16 %v941
      %v1015 = vunpack.c.h.b16 %v941
      %v1016 = vunpack.c.l.b16 %v942
      %v1017 = vunpack.c.h.b16 %v942
      %v1018 = vunpack.c.l.b16 %v943
      %v1019 = vunpack.c.h.b16 %v943
      %v1020 = vunpack.c.l.b16 %v944
      %v1021 = vunpack.c.h.b16 %v944
      %v1022 = vunpack.c.l.b16 %v945
      %v1023 = vunpack.c.h.b16 %v945
      %v1024 = vunpack.c.l.b16 %v946
      %v1025 = vunpack.c.h.b16 %v946
      %v1026 = vunpack.c.l.b16 %v947
      %v1027 = vunpack.c.h.b16 %v947
      %v1028 = vunpack.c.l.b16 %v948
      %v1029 = vunpack.c.h.b16 %v948
      %v1030 = vunpack.c.l.b16 %v949
      %v1031 = vunpack.c.h.b16 %v949
      %v1032 = vunpack.c.l.b16 %v950
      %v1033 = vunpack.c.h.b16 %v950
      %v1034 = vunpack.c.l.b16 %v951
      %v1035 = vunpack.c.h.b16 %v951
      %v1036 = vunpack.c.l.b16 %v952
      %v1037 = vunpack.c.h.b16 %v952
      %v1038 = vunpack.c.l.b16 %v953
      %v1039 = vunpack.c.h.b16 %v953
      %v1040 = vunpack.c.l.b16 %v954
      %v1041 = vunpack.c.h.b16 %v954
      %v1042 = vunpack.c.l.b16 %v955
      %v1043 = vunpack.c.h.b16 %v955
      %v1044 = vunpack.c.l.b16 %v956
      %v1045 = vunpack.c.h.b16 %v956
      %v1046 = vunpack.c.l.b16 %v957
      %v1047 = vunpack.c.h.b16 %v957
      %v1048 = vunpack.c.l.b16 %v958
      %v1049 = vunpack.c.h.b16 %v958
      %v1050 = vunpack.c.l.b16 %v959
      %v1051 = vunpack.c.h.b16 %v959
      %v1052 = vunpack.c.l.b16 %v960
      %v1053 = vunpack.c.h.b16 %v960
      %v1054 = vunpack.c.l.b16 %v961
      %v1055 = vunpack.c.h.b16 %v961
      %v1056 = vunpack.c.l.b16 %v962
      %v1057 = vunpack.c.h.b16 %v962
      %v1058 = vunpack.c.l.b16 %v963
      %v1059 = vunpack.c.h.b16 %v963
      %v1060 = vpack.c.b16 %v996, %v996
      %v1061 = vpack.c.b16 %v997, %v997
      %v1062 = vpack.c.b16 %v998, %v998
      %v1063 = vpack.c.b16 %v999, %v999
      %v1064 = vpack.c.b16 %v1000, %v1000
      %v1065 = vpack.c.b16 %v1001, %v1001
      %v1066 = vpack.c.b16 %v1002, %v1002
      %v1067 = vpack.c.b16 %v1003, %v1003
      %v1068 = vpack.c.b16 %v1004, %v1004
      %v1069 = vpack.c.b16 %v1005, %v1005
      %v1070 = vpack.c.b16 %v1006, %v1006
      %v1071 = vpack.c.b16 %v1007, %v1007
      %v1072 = vpack.c.b16 %v1008, %v1008
      %v1073 = vpack.c.b16 %v1009, %v1009
      %v1074 = vpack.c.b16 %v1010, %v1010
      %v1075 = vpack.c.b16 %v1011, %v1011
      %v1076 = vpack.c.b16 %v1012, %v1012
      %v1077 = vpack.c.b16 %v1013, %v1013
      %v1078 = vpack.c.b16 %v1014, %v1014
      %v1079 = vpack.c.b16 %v1015, %v1015
      %v1080 = vpack.c.b16 %v1016, %v1016
      %v1081 = vpack.c.b16 %v1017, %v1017
      %v1082 = vpack.c.b16 %v1018, %v1018
      %v1083 = vpack.c.b16 %v1019, %v1019
      %v1084 = vpack.c.b16 %v1020, %v1020
      %v1085 = vpack.c.b16 %v1021, %v1021
      %v1086 = vpack.c.b16 %v1022, %v1022
      %v1087 = vpack.c.b16 %v1023, %v1023
      %v1088 = vpack.c.b16 %v1024, %v1024
      %v1089 = vpack.c.b16 %v1025, %v1025
      %v1090 = vpack.c.b16 %v1026, %v1026
      %v1091 = vpack.c.b16 %v1027, %v1027
      %v1092 = vpack.c.b16 %v1028, %v1028
      %v1093 = vpack.c.b16 %v1029, %v1029
      %v1094 = vpack.c.b16 %v1030, %v1030
      %v1095 = vpack.c.b16 %v1031, %v1031
      %v1096 = vpack.c.b16 %v1032, %v1032
      %v1097 = vpack.c.b16 %v1033, %v1033
      %v1098 = vpack.c.b16 %v1034, %v1034
      %v1099 = vpack.c.b16 %v1035, %v1035
      %v1100 = vpack.c.b16 %v1036, %v1036
      %v1101 = vpack.c.b16 %v1037, %v1037
      %v1102 = vpack.c.b16 %v1038, %v1038
      %v1103 = vpack.c.b16 %v1039, %v1039
      %v1104 = vpack.c.b16 %v1040, %v1040
      %v1105 = vpack.c.b16 %v1041, %v1041
      %v1106 = vpack.c.b16 %v1042, %v1042
      %v1107 = vpack.c.b16 %v1043, %v1043
      %v1108 = vpack.c.b16 %v1044, %v1044
      %v1109 = vpack.c.b16 %v1045, %v1045
      %v1110 = vpack.c.b16 %v1046, %v1046
      %v1111 = vpack.c.b16 %v1047, %v1047
      %v1112 = vpack.c.b16 %v1048, %v1048
      %v1113 = vpack.c.b16 %v1049, %v1049
      %v1114 = vpack.c.b16 %v1050, %v1050
      %v1115 = vpack.c.b16 %v1051, %v1051
      %v1116 = vpack.c.b16 %v1052, %v1052
      %v1117 = vpack.c.b16 %v1053, %v1053
      %v1118 = vpack.c.b16 %v1054, %v1054
      %v1119 = vpack.c.b16 %v1055, %v1055
      %v1120 = vpack.c.b16 %v1056, %v1056
      %v1121 = vpack.c.b16 %v1057, %v1057
      %v1122 = vpack.c.b16 %v1058, %v1058
      %v1123 = vpack.c.b16 %v1059, %v1059
      %1188 = vst [vmem:[%s302] sm:$0xf] %v1060
      %1189 = vst [vmem:[%s302 + $0x4] sm:$0xf] %v1061
      %1190 = vst [vmem:[%s302 + $0x8] sm:$0xf] %v1062
      %1191 = vst [vmem:[%s302 + $0xc] sm:$0xf] %v1063
      %1192 = vst [vmem:[%s302 + $0x10] sm:$0xf] %v1064
      %1193 = vst [vmem:[%s302 + $0x14] sm:$0xf] %v1065
      %1194 = vst [vmem:[%s302 + $0x18] sm:$0xf] %v1066
      %1195 = vst [vmem:[%s302 + $0x1c] sm:$0xf] %v1067
      %1196 = vst [vmem:[%s302 + $0x20] sm:$0xf] %v1068
      %1197 = vst [vmem:[%s302 + $0x24] sm:$0xf] %v1069
      %1198 = vst [vmem:[%s302 + $0x28] sm:$0xf] %v1070
      %1199 = vst [vmem:[%s302 + $0x2c] sm:$0xf] %v1071
      %1200 = vst [vmem:[%s302 + $0x30] sm:$0xf] %v1072
      %1201 = vst [vmem:[%s302 + $0x34] sm:$0xf] %v1073
      %1202 = vst [vmem:[%s302 + $0x38] sm:$0xf] %v1074
      %1203 = vst [vmem:[%s302 + $0x3c] sm:$0xf] %v1075
      %1204 = vst [vmem:[%s302 + $0x40] sm:$0xf] %v1076
      %1205 = vst [vmem:[%s302 + $0x44] sm:$0xf] %v1077
      %1206 = vst [vmem:[%s302 + $0x48] sm:$0xf] %v1078
      %1207 = vst [vmem:[%s302 + $0x4c] sm:$0xf] %v1079
      %1208 = vst [vmem:[%s302 + $0x50] sm:$0xf] %v1080
      %1209 = vst [vmem:[%s302 + $0x54] sm:$0xf] %v1081
      %1210 = vst [vmem:[%s302 + $0x58] sm:$0xf] %v1082
      %1211 = vst [vmem:[%s302 + $0x5c] sm:$0xf] %v1083
      %1212 = vst [vmem:[%s302 + $0x60] sm:$0xf] %v1084
      %1213 = vst [vmem:[%s302 + $0x64] sm:$0xf] %v1085
      %1214 = vst [vmem:[%s302 + $0x68] sm:$0xf] %v1086
      %1215 = vst [vmem:[%s302 + $0x6c] sm:$0xf] %v1087
      %1216 = vst [vmem:[%s302 + $0x70] sm:$0xf] %v1088
      %1217 = vst [vmem:[%s302 + $0x74] sm:$0xf] %v1089
      %1218 = vst [vmem:[%s302 + $0x78] sm:$0xf] %v1090
      %1219 = vst [vmem:[%s302 + $0x7c] sm:$0xf] %v1091
      %1220 = vst [vmem:[%s302 + $0x80] sm:$0xf] %v1092
      %1221 = vst [vmem:[%s302 + $0x84] sm:$0xf] %v1093
      %1222 = vst [vmem:[%s302 + $0x88] sm:$0xf] %v1094
      %1223 = vst [vmem:[%s302 + $0x8c] sm:$0xf] %v1095
      %1224 = vst [vmem:[%s302 + $0x90] sm:$0xf] %v1096
      %1225 = vst [vmem:[%s302 + $0x94] sm:$0xf] %v1097
      %1226 = vst [vmem:[%s302 + $0x98] sm:$0xf] %v1098
      %1227 = vst [vmem:[%s302 + $0x9c] sm:$0xf] %v1099
      %1228 = vst [vmem:[%s302 + $0xa0] sm:$0xf] %v1100
      %1229 = vst [vmem:[%s302 + $0xa4] sm:$0xf] %v1101
      %1230 = vst [vmem:[%s302 + $0xa8] sm:$0xf] %v1102
      %1231 = vst [vmem:[%s302 + $0xac] sm:$0xf] %v1103
      %1232 = vst [vmem:[%s302 + $0xb0] sm:$0xf] %v1104
      %1233 = vst [vmem:[%s302 + $0xb4] sm:$0xf] %v1105
      %1234 = vst [vmem:[%s302 + $0xb8] sm:$0xf] %v1106
      %1235 = vst [vmem:[%s302 + $0xbc] sm:$0xf] %v1107
      %1236 = vst [vmem:[%s302 + $0xc0] sm:$0xf] %v1108
      %1237 = vst [vmem:[%s302 + $0xc4] sm:$0xf] %v1109
      %1238 = vst [vmem:[%s302 + $0xc8] sm:$0xf] %v1110
      %1239 = vst [vmem:[%s302 + $0xcc] sm:$0xf] %v1111
      %1240 = vst [vmem:[%s302 + $0xd0] sm:$0xf] %v1112
      %1241 = vst [vmem:[%s302 + $0xd4] sm:$0xf] %v1113
      %1242 = vst [vmem:[%s302 + $0xd8] sm:$0xf] %v1114
      %1243 = vst [vmem:[%s302 + $0xdc] sm:$0xf] %v1115
      %1244 = vst [vmem:[%s302 + $0xe0] sm:$0xf] %v1116
      %1245 = vst [vmem:[%s302 + $0xe4] sm:$0xf] %v1117
      %1246 = vst [vmem:[%s302 + $0xe8] sm:$0xf] %v1118
      %1247 = vst [vmem:[%s302 + $0xec] sm:$0xf] %v1119
      %1248 = vst [vmem:[%s302 + $0xf0] sm:$0xf] %v1120
      %1249 = vst [vmem:[%s302 + $0xf4] sm:$0xf] %v1121
      %1250 = vst [vmem:[%s302 + $0xf8] sm:$0xf] %v1122
      %1251 = vst [vmem:[%s302 + $0xfc] sm:$0xf] %v1123
      %v1252 = vld [vmem:[%s309] sm:$0x1]
      %v1253 = vadd.f32 %v678, %v681
      %v1254 = vadd.f32 %v1253, %v686
      %v1255 = vadd.f32 %v1254, %v689
      %v1256 = vadd.f32 %v1255, %v694
      %v1257 = vadd.f32 %v1256, %v697
      %v1258 = vadd.f32 %v1257, %v702
      %v1259 = vadd.f32 %v1258, %v705
      %v1260 = vadd.f32 %v1259, %v710
      %v1261 = vadd.f32 %v1260, %v713
      %v1262 = vadd.f32 %v1261, %v718
      %v1263 = vadd.f32 %v1262, %v721
      %v1264 = vadd.f32 %v1263, %v726
      %v1265 = vadd.f32 %v1264, %v729
      %v1266 = vadd.f32 %v1265, %v734
      %v1267 = vadd.f32 %v1266, %v737
      %v1268 = vadd.f32 %v1267, %v742
      %v1269 = vadd.f32 %v1268, %v745
      %v1270 = vadd.f32 %v1269, %v750
      %v1271 = vadd.f32 %v1270, %v753
      %v1272 = vadd.f32 %v1271, %v758
      %v1273 = vadd.f32 %v1272, %v761
      %v1274 = vadd.f32 %v1273, %v766
      %v1275 = vadd.f32 %v1274, %v769
      %v1276 = vadd.f32 %v1275, %v774
      %v1277 = vadd.f32 %v1276, %v777
      %v1278 = vadd.f32 %v1277, %v782
      %v1279 = vadd.f32 %v1278, %v785
      %v1280 = vadd.f32 %v1279, %v790
      %v1281 = vadd.f32 %v1280, %v793
      %v1282 = vadd.f32 %v1281, %v798
      %v1283 = vadd.f32 %v1282, %v801
      %v1284 = vadd.f32 %v1283, %v806
      %v1285 = vadd.f32 %v1284, %v809
      %v1286 = vadd.f32 %v1285, %v814
      %v1287 = vadd.f32 %v1286, %v817
      %v1288 = vadd.f32 %v1287, %v822
      %v1289 = vadd.f32 %v1288, %v825
      %v1290 = vadd.f32 %v1289, %v830
      %v1291 = vadd.f32 %v1290, %v833
      %v1292 = vadd.f32 %v1291, %v838
      %v1293 = vadd.f32 %v1292, %v841
      %v1294 = vadd.f32 %v1293, %v846
      %v1295 = vadd.f32 %v1294, %v849
      %v1296 = vadd.f32 %v1295, %v854
      %v1297 = vadd.f32 %v1296, %v857
      %v1298 = vadd.f32 %v1297, %v862
      %v1299 = vadd.f32 %v1298, %v865
      %v1300 = vadd.f32 %v1299, %v870
      %v1301 = vadd.f32 %v1300, %v873
      %v1302 = vadd.f32 %v1301, %v878
      %v1303 = vadd.f32 %v1302, %v881
      %v1304 = vadd.f32 %v1303, %v886
      %v1305 = vadd.f32 %v1304, %v889
      %v1306 = vadd.f32 %v1305, %v894
      %v1307 = vadd.f32 %v1306, %v897
      %v1308 = vadd.f32 %v1307, %v902
      %v1309 = vadd.f32 %v1308, %v905
      %v1310 = vadd.f32 %v1309, %v910
      %v1311 = vadd.f32 %v1310, %v913
      %v1312 = vadd.f32 %v1311, %v918
      %v1313 = vadd.f32 %v1312, %v921
      %v1314 = vadd.f32 %v1313, %v926
      %v1315 = vadd.f32 %v1314, %v929
      %v1316 = vrot.slane %v1315, 4
      %v1317 = vadd.f32 %v1315, %v1316
      %v1318 = vrot.slane %v1317, 2
      %v1319 = vadd.f32 %v1317, %v1318
      %v1320 = vrot.slane %v1319, 1
      %v1321 = vadd.f32 %v1319, %v1320
      %v1322 = vadd.f32 %v1252, %v1321
      %1323 = vst [vmem:[%s309] sm:$0x1] %v1322
      %v1324 = vld [vmem:[%s315] sm:$0x1]
      %v1325 = vmul.f32 %v678, %v678
      %v1326 = vmul.f32 %v681, %v681
      %v1327 = vmul.f32 %v686, %v686
      %v1328 = vmul.f32 %v689, %v689
      %v1329 = vmul.f32 %v694, %v694
      %v1330 = vmul.f32 %v697, %v697
      %v1331 = vmul.f32 %v702, %v702
      %v1332 = vmul.f32 %v705, %v705
      %v1333 = vmul.f32 %v710, %v710
      %v1334 = vmul.f32 %v713, %v713
      %v1335 = vmul.f32 %v718, %v718
      %v1336 = vmul.f32 %v721, %v721
      %v1337 = vmul.f32 %v726, %v726
      %v1338 = vmul.f32 %v729, %v729
      %v1339 = vmul.f32 %v734, %v734
      %v1340 = vmul.f32 %v737, %v737
      %v1341 = vmul.f32 %v742, %v742
      %v1342 = vmul.f32 %v745, %v745
      %v1343 = vmul.f32 %v750, %v750
      %v1344 = vmul.f32 %v753, %v753
      %v1345 = vmul.f32 %v758, %v758
      %v1346 = vmul.f32 %v761, %v761
      %v1347 = vmul.f32 %v766, %v766
      %v1348 = vmul.f32 %v769, %v769
      %v1349 = vmul.f32 %v774, %v774
      %v1350 = vmul.f32 %v777, %v777
      %v1351 = vmul.f32 %v782, %v782
      %v1352 = vmul.f32 %v785, %v785
      %v1353 = vmul.f32 %v790, %v790
      %v1354 = vmul.f32 %v793, %v793
      %v1355 = vmul.f32 %v798, %v798
      %v1356 = vmul.f32 %v801, %v801
      %v1357 = vmul.f32 %v806, %v806
      %v1358 = vmul.f32 %v809, %v809
      %v1359 = vmul.f32 %v814, %v814
      %v1360 = vmul.f32 %v817, %v817
      %v1361 = vmul.f32 %v822, %v822
      %v1362 = vmul.f32 %v825, %v825
      %v1363 = vmul.f32 %v830, %v830
      %v1364 = vmul.f32 %v833, %v833
      %v1365 = vmul.f32 %v838, %v838
      %v1366 = vmul.f32 %v841, %v841
      %v1367 = vmul.f32 %v846, %v846
      %v1368 = vmul.f32 %v849, %v849
      %v1369 = vmul.f32 %v854, %v854
      %v1370 = vmul.f32 %v857, %v857
      %v1371 = vmul.f32 %v862, %v862
      %v1372 = vmul.f32 %v865, %v865
      %v1373 = vmul.f32 %v870, %v870
      %v1374 = vmul.f32 %v873, %v873
      %v1375 = vmul.f32 %v878, %v878
      %v1376 = vmul.f32 %v881, %v881
      %v1377 = vmul.f32 %v886, %v886
      %v1378 = vmul.f32 %v889, %v889
      %v1379 = vmul.f32 %v894, %v894
      %v1380 = vmul.f32 %v897, %v897
      %v1381 = vmul.f32 %v902, %v902
      %v1382 = vmul.f32 %v905, %v905
      %v1383 = vmul.f32 %v910, %v910
      %v1384 = vmul.f32 %v913, %v913
      %v1385 = vmul.f32 %v918, %v918
      %v1386 = vmul.f32 %v921, %v921
      %v1387 = vmul.f32 %v926, %v926
      %v1388 = vmul.f32 %v929, %v929
      %v1389 = vadd.f32 %v1325, %v1326
      %v1390 = vadd.f32 %v1389, %v1327
      %v1391 = vadd.f32 %v1390, %v1328
      %v1392 = vadd.f32 %v1391, %v1329
      %v1393 = vadd.f32 %v1392, %v1330
      %v1394 = vadd.f32 %v1393, %v1331
      %v1395 = vadd.f32 %v1394, %v1332
      %v1396 = vadd.f32 %v1395, %v1333
      %v1397 = vadd.f32 %v1396, %v1334
      %v1398 = vadd.f32 %v1397, %v1335
      %v1399 = vadd.f32 %v1398, %v1336
      %v1400 = vadd.f32 %v1399, %v1337
      %v1401 = vadd.f32 %v1400, %v1338
      %v1402 = vadd.f32 %v1401, %v1339
      %v1403 = vadd.f32 %v1402, %v1340
      %v1404 = vadd.f32 %v1403, %v1341
      %v1405 = vadd.f32 %v1404, %v1342
      %v1406 = vadd.f32 %v1405, %v1343
      %v1407 = vadd.f32 %v1406, %v1344
      %v1408 = vadd.f32 %v1407, %v1345
      %v1409 = vadd.f32 %v1408, %v1346
      %v1410 = vadd.f32 %v1409, %v1347
      %v1411 = vadd.f32 %v1410, %v1348
      %v1412 = vadd.f32 %v1411, %v1349
      %v1413 = vadd.f32 %v1412, %v1350
      %v1414 = vadd.f32 %v1413, %v1351
      %v1415 = vadd.f32 %v1414, %v1352
      %v1416 = vadd.f32 %v1415, %v1353
      %v1417 = vadd.f32 %v1416, %v1354
      %v1418 = vadd.f32 %v1417, %v1355
      %v1419 = vadd.f32 %v1418, %v1356
      %v1420 = vadd.f32 %v1419, %v1357
      %v1421 = vadd.f32 %v1420, %v1358
      %v1422 = vadd.f32 %v1421, %v1359
      %v1423 = vadd.f32 %v1422, %v1360
      %v1424 = vadd.f32 %v1423, %v1361
      %v1425 = vadd.f32 %v1424, %v1362
      %v1426 = vadd.f32 %v1425, %v1363
      %v1427 = vadd.f32 %v1426, %v1364
      %v1428 = vadd.f32 %v1427, %v1365
      %v1429 = vadd.f32 %v1428, %v1366
      %v1430 = vadd.f32 %v1429, %v1367
      %v1431 = vadd.f32 %v1430, %v1368
      %v1432 = vadd.f32 %v1431, %v1369
      %v1433 = vadd.f32 %v1432, %v1370
      %v1434 = vadd.f32 %v1433, %v1371
      %v1435 = vadd.f32 %v1434, %v1372
      %v1436 = vadd.f32 %v1435, %v1373
      %v1437 = vadd.f32 %v1436, %v1374
      %v1438 = vadd.f32 %v1437, %v1375
      %v1439 = vadd.f32 %v1438, %v1376
      %v1440 = vadd.f32 %v1439, %v1377
      %v1441 = vadd.f32 %v1440, %v1378
      %v1442 = vadd.f32 %v1441, %v1379
      %v1443 = vadd.f32 %v1442, %v1380
      %v1444 = vadd.f32 %v1443, %v1381
      %v1445 = vadd.f32 %v1444, %v1382
      %v1446 = vadd.f32 %v1445, %v1383
      %v1447 = vadd.f32 %v1446, %v1384
      %v1448 = vadd.f32 %v1447, %v1385
      %v1449 = vadd.f32 %v1448, %v1386
      %v1450 = vadd.f32 %v1449, %v1387
      %v1451 = vadd.f32 %v1450, %v1388
      %v1452 = vrot.slane %v1451, 4
      %v1453 = vadd.f32 %v1451, %v1452
      %v1454 = vrot.slane %v1453, 2
      %v1455 = vadd.f32 %v1453, %v1454
      %v1456 = vrot.slane %v1455, 1
      %v1457 = vadd.f32 %v1455, %v1456
      %v1458 = vadd.f32 %v1324, %v1457
      %1459 = vst [vmem:[%s315] sm:$0x1] %v1458
      %s1460 = smul.u32 64, %s23
      %p1461 = scmp.lt.s32.totalorder %s22, 3
      %s1462 = scalar_select %p1461, %s22, 3
      %p1463 = scmp.lt.s32.totalorder %s1460, 63
      %s1464 = scalar_select %p1463, %s1460, 63
      %p1465 = scmp.lt.s32.totalorder %s21, 0
      %s1466 = scalar_select %p1465, %s21, 0
      %s1467 = sadd.s32 %s1466, %s1464
      %s1468 = smul.addr %s1462, 64
      %s1469 = sadd.s32 %s1467, %s1468
      %s1470 = smul.addr %s1469, 4
      %s1471 = scalar_lea.vmem %s2, %s1470
      %p1472 = scmp.lt.s32.totalorder %s22, 3
      %s1473 = scalar_select %p1472, %s22, 3
      %p1474 = scmp.lt.s32.totalorder %s21, 0
      %s1475 = scalar_select %p1474, %s21, 0
      %s1476 = sadd.s32 %s1475, %s1473
      %s1477 = scalar_lea.vmem %s3, %s1476
      %p1478 = scmp.lt.s32.totalorder %s22, 3
      %s1479 = scalar_select %p1478, %s22, 3
      %p1480 = scmp.lt.s32.totalorder %s21, 0
      %s1481 = scalar_select %p1480, %s21, 0
      %s1482 = sadd.s32 %s1481, %s1479
      %s1483 = scalar_lea.vmem %s4, %s1482
      // Predicated region
      $region33: #{generator_forward.15} parent=27 // pred_check
        %p1484 = pneg %p113
      $region34: #{generator_forward.15} parent=27 // pred_check_branch
        %1486 = sbr.rel (%p1484) target = $region36
      $region35: #{generator_forward.15} parent=27 // pred_region
        %s1487 = smul.u32 64, %s23
      $region36: #{generator_forward.15} parent=27 // pred_fallthru
        _
      // Predicated region
      $region37: #{generator_forward.15} parent=27 // pred_check
        %p1488 = pneg %p141
      $region38: #{generator_forward.15} parent=27 // pred_check_branch
        %1490 = sbr.rel (%p1488) target = $region40
      $region39: #{generator_forward.15} parent=27 // pred_region
        _
      $region40: #{generator_forward.15} parent=27 // pred_fallthru
        _
      // Predicated region
      $region41: #{generator_forward.15} parent=27 // pred_check
        %p1491 = pneg %p169
      $region42: #{generator_forward.15} parent=27 // pred_check_branch
        %1493 = sbr.rel (%p1491) target = $region44
      $region43: #{generator_forward.15} parent=27 // pred_region
        _
      $region44: #{generator_forward.15} parent=27 // pred_fallthru
        _
    $region28: #{generator_forward.15} parent=5 // pred_fallthru
      _
    %p1494 = scmp.le.s32.totalorder 2, %s11
    // Predicated region
    $region45: #{generator_forward.15} parent=5 // pred_check
      %p1495 = pneg %p1494
    $region46: #{generator_forward.15} parent=5 // pred_check_branch
      %1497 = sbr.rel (%p1495) target = $region48
    $region47: #{generator_forward.15} parent=5 // pred_region
      %s1498 = ssub.s32 %s11, 2
      // Predicated region
      $region49: #{generator_forward.15} parent=47 // pred_check
        %p1499 = pneg %p119
      $region50: #{generator_forward.15} parent=47 // pred_check_branch
        %1501 = sbr.rel (%p1499) target = $region52
      $region51: #{generator_forward.15} parent=47 // pred_region
        %s1502 = smul.u32 64, %s26
        %p1503 = scmp.lt.s32.totalorder %s25, 3
        %s1504 = scalar_select %p1503, %s25, 3
        %p1505 = scmp.lt.s32.totalorder %s1502, 63
        %s1506 = scalar_select %p1505, %s1502, 63
        %p1507 = scmp.lt.s32.totalorder %s24, 0
        %s1508 = scalar_select %p1507, %s24, 0
        %s1509 = sadd.s32 %s1508, %s1506
        %s1510 = smul.addr %s1504, 64
        %s1511 = sadd.s32 %s1509, %s1510
        %s1512 = smul.addr %s1511, 4
        %s1513 = scalar_lea.vmem %s2, %s1512
      $region52: #{generator_forward.15} parent=47 // pred_fallthru
        _
      // Predicated region
      $region53: #{generator_forward.15} parent=47 // pred_check
        %p1514 = pneg %p147
      $region54: #{generator_forward.15} parent=47 // pred_check_branch
        %1516 = sbr.rel (%p1514) target = $region56
      $region55: #{generator_forward.15} parent=47 // pred_region
        %p1517 = scmp.lt.s32.totalorder %s25, 3
        %s1518 = scalar_select %p1517, %s25, 3
        %p1519 = scmp.lt.s32.totalorder %s24, 0
        %s1520 = scalar_select %p1519, %s24, 0
        %s1521 = sadd.s32 %s1520, %s1518
        %s1522 = scalar_lea.vmem %s3, %s1521
      $region56: #{generator_forward.15} parent=47 // pred_fallthru
        _
      // Predicated region
      $region57: #{generator_forward.15} parent=47 // pred_check
        %p1523 = pneg %p175
      $region58: #{generator_forward.15} parent=47 // pred_check_branch
        %1525 = sbr.rel (%p1523) target = $region60
      $region59: #{generator_forward.15} parent=47 // pred_region
        %p1526 = scmp.lt.s32.totalorder %s25, 3
        %s1527 = scalar_select %p1526, %s25, 3
        %p1528 = scmp.lt.s32.totalorder %s24, 0
        %s1529 = scalar_select %p1528, %s24, 0
        %s1530 = sadd.s32 %s1529, %s1527
        %s1531 = scalar_lea.vmem %s4, %s1530
      $region60: #{generator_forward.15} parent=47 // pred_fallthru
        _
    $region48: #{generator_forward.15} parent=5 // pred_fallthru
      _
  $region6: #{generator_forward.15} parent=0 // loop_footer
    %s15 = sadd.s32 1, %s11
  $region7: #{generator_forward.15} parent=0 // loop_footer_branch
    %10 = sbr.rel target = $region3
  $region8: #{generator_forward.15} parent=0 // loop_exit
    _

// kernel: generator_forward.16
$region0: #{generator_forward.16}
  #allocation0 [shape = 'u32[]', space=smem, size = 0x4, offset = 0x4, fixed_abs, tag = 'smem constant byte address 0x4 - core index']
  #allocation1 [shape = 'u32[144,128]{1,0:T(1,128)}', space=vmem, size = 0x12000, scoped, tag = 'internal scratch']
  %s0 = inlined_call_operand.vmem [shape: bf16[4,512,128], index: 0, kind: input, shape index: {}]
  %s1 = inlined_call_operand.vmem [shape: f32[1,1,128], index: 1, kind: input, shape index: {}]
  %s2 = inlined_call_operand.vmem [shape: f32[1,1,128], index: 2, kind: input, shape index: {}]
  %s3 = inlined_call_operand.vmem [shape: bf16[4,512,128], index: 3, kind: output, shape index: {}]
  %s4 = sld [smem:[#allocation0]]
  $region22: #{generator_forward.16} parent=0
    _
  %s6 = ssub.s32 1, %s4
  %s7 = scalar_select 0, %s6, %s4
  // Predicated region
  $region2: #{generator_forward.16} parent=0 // pred_check
    _
  $region3: #{generator_forward.16} parent=0 // pred_check_branch
    %9 = sbr.rel (0) target = $region5
  $region4: #{generator_forward.16} parent=0 // pred_region
    _
  $region5: #{generator_forward.16} parent=0 // pred_fallthru
    _
  // Predicated region
  $region6: #{generator_forward.16} parent=0 // pred_check
    _
  $region7: #{generator_forward.16} parent=0 // pred_check_branch
    %11 = sbr.rel (0) target = $region9
  $region8: #{generator_forward.16} parent=0 // pred_region
    _
  $region9: #{generator_forward.16} parent=0 // pred_fallthru
    _
  // Predicated region
  $region10: #{generator_forward.16} parent=0 // pred_check
    _
  $region11: #{generator_forward.16} parent=0 // pred_check_branch
    %13 = sbr.rel (0) target = $region13
  $region12: #{generator_forward.16} parent=0 // pred_region
    _
  $region13: #{generator_forward.16} parent=0 // pred_fallthru
    _
  %v14 = vld [vmem:[%s0] sm:$0xf]
  %v15 = vld [vmem:[%s0 + $0x4] sm:$0xf]
  %v16 = vld [vmem:[%s0 + $0x8] sm:$0xf]
  %v17 = vld [vmem:[%s0 + $0xc] sm:$0xf]
  %v18 = vld [vmem:[%s0 + $0x10] sm:$0xf]
  %v19 = vld [vmem:[%s0 + $0x14] sm:$0xf]
  %v20 = vld [vmem:[%s0 + $0x18] sm:$0xf]
  %v21 = vld [vmem:[%s0 + $0x1c] sm:$0xf]
  %v22 = vld [vmem:[%s0 + $0x20] sm:$0xf]
  %v23 = vld [vmem:[%s0 + $0x24] sm:$0xf]
  %v24 = vld [vmem:[%s0 + $0x28] sm:$0xf]
  %v25 = vld [vmem:[%s0 + $0x2c] sm:$0xf]
  %v26 = vld [vmem:[%s0 + $0x30] sm:$0xf]
  %v27 = vld [vmem:[%s0 + $0x34] sm:$0xf]
  %v28 = vld [vmem:[%s0 + $0x38] sm:$0xf]
  %v29 = vld [vmem:[%s0 + $0x3c] sm:$0xf]
  %v30 = vld [vmem:[%s0 + $0x40] sm:$0xf]
  %v31 = vld [vmem:[%s0 + $0x44] sm:$0xf]
  %v32 = vld [vmem:[%s0 + $0x48] sm:$0xf]
  %v33 = vld [vmem:[%s0 + $0x4c] sm:$0xf]
  %v34 = vld [vmem:[%s0 + $0x50] sm:$0xf]
  %v35 = vld [vmem:[%s0 + $0x54] sm:$0xf]
  %v36 = vld [vmem:[%s0 + $0x58] sm:$0xf]
  %v37 = vld [vmem:[%s0 + $0x5c] sm:$0xf]
  %v38 = vld [vmem:[%s0 + $0x60] sm:$0xf]
  %v39 = vld [vmem:[%s0 + $0x64] sm:$0xf]
  %v40 = vld [vmem:[%s0 + $0x68] sm:$0xf]
  %v41 = vld [vmem:[%s0 + $0x6c] sm:$0xf]
  %v42 = vld [vmem:[%s0 + $0x70] sm:$0xf]
  %v43 = vld [vmem:[%s0 + $0x74] sm:$0xf]
  %v44 = vld [vmem:[%s0 + $0x78] sm:$0xf]
  %v45 = vld [vmem:[%s0 + $0x7c] sm:$0xf]
  %v46 = vld [vmem:[%s0 + $0x80] sm:$0xf]
  %v47 = vld [vmem:[%s0 + $0x84] sm:$0xf]
  %v48 = vld [vmem:[%s0 + $0x88] sm:$0xf]
  %v49 = vld [vmem:[%s0 + $0x8c] sm:$0xf]
  %v50 = vld [vmem:[%s0 + $0x90] sm:$0xf]
  %v51 = vld [vmem:[%s0 + $0x94] sm:$0xf]
  %v52 = vld [vmem:[%s0 + $0x98] sm:$0xf]
  %v53 = vld [vmem:[%s0 + $0x9c] sm:$0xf]
  %v54 = vld [vmem:[%s0 + $0xa0] sm:$0xf]
  %v55 = vld [vmem:[%s0 + $0xa4] sm:$0xf]
  %v56 = vld [vmem:[%s0 + $0xa8] sm:$0xf]
  %v57 = vld [vmem:[%s0 + $0xac] sm:$0xf]
  %v58 = vld [vmem:[%s0 + $0xb0] sm:$0xf]
  %v59 = vld [vmem:[%s0 + $0xb4] sm:$0xf]
  %v60 = vld [vmem:[%s0 + $0xb8] sm:$0xf]
  %v61 = vld [vmem:[%s0 + $0xbc] sm:$0xf]
  %v62 = vld [vmem:[%s0 + $0xc0] sm:$0xf]
  %v63 = vld [vmem:[%s0 + $0xc4] sm:$0xf]
  %v64 = vld [vmem:[%s0 + $0xc8] sm:$0xf]
  %v65 = vld [vmem:[%s0 + $0xcc] sm:$0xf]
  %v66 = vld [vmem:[%s0 + $0xd0] sm:$0xf]
  %v67 = vld [vmem:[%s0 + $0xd4] sm:$0xf]
  %v68 = vld [vmem:[%s0 + $0xd8] sm:$0xf]
  %v69 = vld [vmem:[%s0 + $0xdc] sm:$0xf]
  %v70 = vld [vmem:[%s0 + $0xe0] sm:$0xf]
  %v71 = vld [vmem:[%s0 + $0xe4] sm:$0xf]
  %v72 = vld [vmem:[%s0 + $0xe8] sm:$0xf]
  %v73 = vld [vmem:[%s0 + $0xec] sm:$0xf]
  %v74 = vld [vmem:[%s0 + $0xf0] sm:$0xf]
  %v75 = vld [vmem:[%s0 + $0xf4] sm:$0xf]
  %v76 = vld [vmem:[%s0 + $0xf8] sm:$0xf]
  %v77 = vld [vmem:[%s0 + $0xfc] sm:$0xf]
  %v78 = vld [vmem:[%s0 + $0x100] sm:$0xf]
  %v79 = vld [vmem:[%s0 + $0x104] sm:$0xf]
  %v80 = vld [vmem:[%s0 + $0x108] sm:$0xf]
  %v81 = vld [vmem:[%s0 + $0x10c] sm:$0xf]
  %v82 = vld [vmem:[%s0 + $0x110] sm:$0xf]
  %v83 = vld [vmem:[%s0 + $0x114] sm:$0xf]
  %v84 = vld [vmem:[%s0 + $0x118] sm:$0xf]
  %v85 = vld [vmem:[%s0 + $0x11c] sm:$0xf]
  %v86 = vld [vmem:[%s0 + $0x120] sm:$0xf]
  %v87 = vld [vmem:[%s0 + $0x124] sm:$0xf]
  %v88 = vld [vmem:[%s0 + $0x128] sm:$0xf]
  %v89 = vld [vmem:[%s0 + $0x12c] sm:$0xf]
  %v90 = vld [vmem:[%s0 + $0x130] sm:$0xf]
  %v91 = vld [vmem:[%s0 + $0x134] sm:$0xf]
  %v92 = vld [vmem:[%s0 + $0x138] sm:$0xf]
  %v93 = vld [vmem:[%s0 + $0x13c] sm:$0xf]
  %v94 = vld [vmem:[%s0 + $0x140] sm:$0xf]
  %v95 = vld [vmem:[%s0 + $0x144] sm:$0xf]
  %v96 = vld [vmem:[%s0 + $0x148] sm:$0xf]
  %v97 = vld [vmem:[%s0 + $0x14c] sm:$0xf]
  %v98 = vld [vmem:[%s0 + $0x150] sm:$0xf]
  %v99 = vld [vmem:[%s0 + $0x154] sm:$0xf]
  %v100 = vld [vmem:[%s0 + $0x158] sm:$0xf]
  %v101 = vld [vmem:[%s0 + $0x15c] sm:$0xf]
  %v102 = vld [vmem:[%s0 + $0x160] sm:$0xf]
  %v103 = vld [vmem:[%s0 + $0x164] sm:$0xf]
  %v104 = vld [vmem:[%s0 + $0x168] sm:$0xf]
  %v105 = vld [vmem:[%s0 + $0x16c] sm:$0xf]
  %v106 = vld [vmem:[%s0 + $0x170] sm:$0xf]
  %v107 = vld [vmem:[%s0 + $0x174] sm:$0xf]
  %v108 = vld [vmem:[%s0 + $0x178] sm:$0xf]
  %v109 = vld [vmem:[%s0 + $0x17c] sm:$0xf]
  %v110 = vld [vmem:[%s0 + $0x180] sm:$0xf]
  %v111 = vld [vmem:[%s0 + $0x184] sm:$0xf]
  %v112 = vld [vmem:[%s0 + $0x188] sm:$0xf]
  %v113 = vld [vmem:[%s0 + $0x18c] sm:$0xf]
  %v114 = vld [vmem:[%s0 + $0x190] sm:$0xf]
  %v115 = vld [vmem:[%s0 + $0x194] sm:$0xf]
  %v116 = vld [vmem:[%s0 + $0x198] sm:$0xf]
  %v117 = vld [vmem:[%s0 + $0x19c] sm:$0xf]
  %v118 = vld [vmem:[%s0 + $0x1a0] sm:$0xf]
  %v119 = vld [vmem:[%s0 + $0x1a4] sm:$0xf]
  %v120 = vld [vmem:[%s0 + $0x1a8] sm:$0xf]
  %v121 = vld [vmem:[%s0 + $0x1ac] sm:$0xf]
  %v122 = vld [vmem:[%s0 + $0x1b0] sm:$0xf]
  %v123 = vld [vmem:[%s0 + $0x1b4] sm:$0xf]
  %v124 = vld [vmem:[%s0 + $0x1b8] sm:$0xf]
  %v125 = vld [vmem:[%s0 + $0x1bc] sm:$0xf]
  %v126 = vld [vmem:[%s0 + $0x1c0] sm:$0xf]
  %v127 = vld [vmem:[%s0 + $0x1c4] sm:$0xf]
  %v128 = vld [vmem:[%s0 + $0x1c8] sm:$0xf]
  %v129 = vld [vmem:[%s0 + $0x1cc] sm:$0xf]
  %v130 = vld [vmem:[%s0 + $0x1d0] sm:$0xf]
  %v131 = vld [vmem:[%s0 + $0x1d4] sm:$0xf]
  %v132 = vld [vmem:[%s0 + $0x1d8] sm:$0xf]
  %v133 = vld [vmem:[%s0 + $0x1dc] sm:$0xf]
  %v134 = vld [vmem:[%s0 + $0x1e0] sm:$0xf]
  %v135 = vld [vmem:[%s0 + $0x1e4] sm:$0xf]
  %v136 = vld [vmem:[%s0 + $0x1e8] sm:$0xf]
  %v137 = vld [vmem:[%s0 + $0x1ec] sm:$0xf]
  %v138 = vld [vmem:[%s0 + $0x1f0] sm:$0xf]
  %v139 = vld [vmem:[%s0 + $0x1f4] sm:$0xf]
  %v140 = vld [vmem:[%s0 + $0x1f8] sm:$0xf]
  %v141 = vld [vmem:[%s0 + $0x1fc] sm:$0xf]
  %v142 = vld [vmem:[%s0 + $0x200] sm:$0xf]
  %v143 = vld [vmem:[%s0 + $0x204] sm:$0xf]
  %v144 = vld [vmem:[%s0 + $0x208] sm:$0xf]
  %v145 = vld [vmem:[%s0 + $0x20c] sm:$0xf]
  %v146 = vld [vmem:[%s0 + $0x210] sm:$0xf]
  %v147 = vld [vmem:[%s0 + $0x214] sm:$0xf]
  %v148 = vld [vmem:[%s0 + $0x218] sm:$0xf]
  %v149 = vld [vmem:[%s0 + $0x21c] sm:$0xf]
  %v150 = vld [vmem:[%s0 + $0x220] sm:$0xf]
  %v151 = vld [vmem:[%s0 + $0x224] sm:$0xf]
  %v152 = vld [vmem:[%s0 + $0x228] sm:$0xf]
  %v153 = vld [vmem:[%s0 + $0x22c] sm:$0xf]
  %v154 = vld [vmem:[%s0 + $0x230] sm:$0xf]
  %v155 = vld [vmem:[%s0 + $0x234] sm:$0xf]
  %v156 = vld [vmem:[%s0 + $0x238] sm:$0xf]
  %v157 = vld [vmem:[%s0 + $0x23c] sm:$0xf]
  %v158 = vld [vmem:[%s0 + $0x240] sm:$0xf]
  %v159 = vld [vmem:[%s0 + $0x244] sm:$0xf]
  %v160 = vld [vmem:[%s0 + $0x248] sm:$0xf]
  %v161 = vld [vmem:[%s0 + $0x24c] sm:$0xf]
  %v162 = vld [vmem:[%s0 + $0x250] sm:$0xf]
  %v163 = vld [vmem:[%s0 + $0x254] sm:$0xf]
  %v164 = vld [vmem:[%s0 + $0x258] sm:$0xf]
  %v165 = vld [vmem:[%s0 + $0x25c] sm:$0xf]
  %v166 = vld [vmem:[%s0 + $0x260] sm:$0xf]
  %v167 = vld [vmem:[%s0 + $0x264] sm:$0xf]
  %v168 = vld [vmem:[%s0 + $0x268] sm:$0xf]
  %v169 = vld [vmem:[%s0 + $0x26c] sm:$0xf]
  %v170 = vld [vmem:[%s0 + $0x270] sm:$0xf]
  %v171 = vld [vmem:[%s0 + $0x274] sm:$0xf]
  %v172 = vld [vmem:[%s0 + $0x278] sm:$0xf]
  %v173 = vld [vmem:[%s0 + $0x27c] sm:$0xf]
  %v174 = vld [vmem:[%s0 + $0x280] sm:$0xf]
  %v175 = vld [vmem:[%s0 + $0x284] sm:$0xf]
  %v176 = vld [vmem:[%s0 + $0x288] sm:$0xf]
  %v177 = vld [vmem:[%s0 + $0x28c] sm:$0xf]
  %v178 = vld [vmem:[%s0 + $0x290] sm:$0xf]
  %v179 = vld [vmem:[%s0 + $0x294] sm:$0xf]
  %v180 = vld [vmem:[%s0 + $0x298] sm:$0xf]
  %v181 = vld [vmem:[%s0 + $0x29c] sm:$0xf]
  %v182 = vld [vmem:[%s0 + $0x2a0] sm:$0xf]
  %v183 = vld [vmem:[%s0 + $0x2a4] sm:$0xf]
  %v184 = vld [vmem:[%s0 + $0x2a8] sm:$0xf]
  %v185 = vld [vmem:[%s0 + $0x2ac] sm:$0xf]
  %v186 = vld [vmem:[%s0 + $0x2b0] sm:$0xf]
  %v187 = vld [vmem:[%s0 + $0x2b4] sm:$0xf]
  %v188 = vld [vmem:[%s0 + $0x2b8] sm:$0xf]
  %v189 = vld [vmem:[%s0 + $0x2bc] sm:$0xf]
  %v190 = vld [vmem:[%s0 + $0x2c0] sm:$0xf]
  %v191 = vld [vmem:[%s0 + $0x2c4] sm:$0xf]
  %v192 = vld [vmem:[%s0 + $0x2c8] sm:$0xf]
  %v193 = vld [vmem:[%s0 + $0x2cc] sm:$0xf]
  %v194 = vld [vmem:[%s0 + $0x2d0] sm:$0xf]
  %v195 = vld [vmem:[%s0 + $0x2d4] sm:$0xf]
  %v196 = vld [vmem:[%s0 + $0x2d8] sm:$0xf]
  %v197 = vld [vmem:[%s0 + $0x2dc] sm:$0xf]
  %v198 = vld [vmem:[%s0 + $0x2e0] sm:$0xf]
  %v199 = vld [vmem:[%s0 + $0x2e4] sm:$0xf]
  %v200 = vld [vmem:[%s0 + $0x2e8] sm:$0xf]
  %v201 = vld [vmem:[%s0 + $0x2ec] sm:$0xf]
  %v202 = vld [vmem:[%s0 + $0x2f0] sm:$0xf]
  %v203 = vld [vmem:[%s0 + $0x2f4] sm:$0xf]
  %v204 = vld [vmem:[%s0 + $0x2f8] sm:$0xf]
  %v205 = vld [vmem:[%s0 + $0x2fc] sm:$0xf]
  %v206 = vld [vmem:[%s0 + $0x300] sm:$0xf]
  %v207 = vld [vmem:[%s0 + $0x304] sm:$0xf]
  %v208 = vld [vmem:[%s0 + $0x308] sm:$0xf]
  %v209 = vld [vmem:[%s0 + $0x30c] sm:$0xf]
  %v210 = vld [vmem:[%s0 + $0x310] sm:$0xf]
  %v211 = vld [vmem:[%s0 + $0x314] sm:$0xf]
  %v212 = vld [vmem:[%s0 + $0x318] sm:$0xf]
  %v213 = vld [vmem:[%s0 + $0x31c] sm:$0xf]
  %v214 = vld [vmem:[%s0 + $0x320] sm:$0xf]
  %v215 = vld [vmem:[%s0 + $0x324] sm:$0xf]
  %v216 = vld [vmem:[%s0 + $0x328] sm:$0xf]
  %v217 = vld [vmem:[%s0 + $0x32c] sm:$0xf]
  %v218 = vld [vmem:[%s0 + $0x330] sm:$0xf]
  %v219 = vld [vmem:[%s0 + $0x334] sm:$0xf]
  %v220 = vld [vmem:[%s0 + $0x338] sm:$0xf]
  %v221 = vld [vmem:[%s0 + $0x33c] sm:$0xf]
  %v222 = vld [vmem:[%s0 + $0x340] sm:$0xf]
  %v223 = vld [vmem:[%s0 + $0x344] sm:$0xf]
  %v224 = vld [vmem:[%s0 + $0x348] sm:$0xf]
  %v225 = vld [vmem:[%s0 + $0x34c] sm:$0xf]
  %v226 = vld [vmem:[%s0 + $0x350] sm:$0xf]
  %v227 = vld [vmem:[%s0 + $0x354] sm:$0xf]
  %v228 = vld [vmem:[%s0 + $0x358] sm:$0xf]
  %v229 = vld [vmem:[%s0 + $0x35c] sm:$0xf]
  %v230 = vld [vmem:[%s0 + $0x360] sm:$0xf]
  %v231 = vld [vmem:[%s0 + $0x364] sm:$0xf]
  %v232 = vld [vmem:[%s0 + $0x368] sm:$0xf]
  %v233 = vld [vmem:[%s0 + $0x36c] sm:$0xf]
  %v234 = vld [vmem:[%s0 + $0x370] sm:$0xf]
  %v235 = vld [vmem:[%s0 + $0x374] sm:$0xf]
  %v236 = vld [vmem:[%s0 + $0x378] sm:$0xf]
  %v237 = vld [vmem:[%s0 + $0x37c] sm:$0xf]
  %v238 = vld [vmem:[%s0 + $0x380] sm:$0xf]
  %v239 = vld [vmem:[%s0 + $0x384] sm:$0xf]
  %v240 = vld [vmem:[%s0 + $0x388] sm:$0xf]
  %v241 = vld [vmem:[%s0 + $0x38c] sm:$0xf]
  %v242 = vld [vmem:[%s0 + $0x390] sm:$0xf]
  %v243 = vld [vmem:[%s0 + $0x394] sm:$0xf]
  %v244 = vld [vmem:[%s0 + $0x398] sm:$0xf]
  %v245 = vld [vmem:[%s0 + $0x39c] sm:$0xf]
  %v246 = vld [vmem:[%s0 + $0x3a0] sm:$0xf]
  %v247 = vld [vmem:[%s0 + $0x3a4] sm:$0xf]
  %v248 = vld [vmem:[%s0 + $0x3a8] sm:$0xf]
  %v249 = vld [vmem:[%s0 + $0x3ac] sm:$0xf]
  %v250 = vld [vmem:[%s0 + $0x3b0] sm:$0xf]
  %v251 = vld [vmem:[%s0 + $0x3b4] sm:$0xf]
  %v252 = vld [vmem:[%s0 + $0x3b8] sm:$0xf]
  %v253 = vld [vmem:[%s0 + $0x3bc] sm:$0xf]
  %v254 = vld [vmem:[%s0 + $0x3c0] sm:$0xf]
  %v255 = vld [vmem:[%s0 + $0x3c4] sm:$0xf]
  %v256 = vld [vmem:[%s0 + $0x3c8] sm:$0xf]
  %v257 = vld [vmem:[%s0 + $0x3cc] sm:$0xf]
  %v258 = vld [vmem:[%s0 + $0x3d0] sm:$0xf]
  %v259 = vld [vmem:[%s0 + $0x3d4] sm:$0xf]
  %v260 = vld [vmem:[%s0 + $0x3d8] sm:$0xf]
  %v261 = vld [vmem:[%s0 + $0x3dc] sm:$0xf]
  %v262 = vld [vmem:[%s0 + $0x3e0] sm:$0xf]
  %v263 = vld [vmem:[%s0 + $0x3e4] sm:$0xf]
  %v264 = vld [vmem:[%s0 + $0x3e8] sm:$0xf]
  %v265 = vld [vmem:[%s0 + $0x3ec] sm:$0xf]
  %v266 = vld [vmem:[%s0 + $0x3f0] sm:$0xf]
  %v267 = vld [vmem:[%s0 + $0x3f4] sm:$0xf]
  %v268 = vld [vmem:[%s0 + $0x3f8] sm:$0xf]
  %v269 = vld [vmem:[%s0 + $0x3fc] sm:$0xf]
  %v270 = vunpack.c.l.bf16 %v14
  %v271 = vunpack.c.l.bf16 %v15
  %v272 = vunpack.c.l.bf16 %v16
  %v273 = vunpack.c.l.bf16 %v17
  %v274 = vunpack.c.l.bf16 %v18
  %v275 = vunpack.c.l.bf16 %v19
  %v276 = vunpack.c.l.bf16 %v20
  %v277 = vunpack.c.l.bf16 %v21
  %v278 = vunpack.c.l.bf16 %v22
  %v279 = vunpack.c.l.bf16 %v23
  %v280 = vunpack.c.l.bf16 %v24
  %v281 = vunpack.c.l.bf16 %v25
  %v282 = vunpack.c.l.bf16 %v26
  %v283 = vunpack.c.l.bf16 %v27
  %v284 = vunpack.c.l.bf16 %v28
  %v285 = vunpack.c.l.bf16 %v29
  %v286 = vunpack.c.l.bf16 %v30
  %v287 = vunpack.c.l.bf16 %v31
  %v288 = vunpack.c.l.bf16 %v32
  %v289 = vunpack.c.l.bf16 %v33
  %v290 = vunpack.c.l.bf16 %v34
  %v291 = vunpack.c.l.bf16 %v35
  %v292 = vunpack.c.l.bf16 %v36
  %v293 = vunpack.c.l.bf16 %v37
  %v294 = vunpack.c.l.bf16 %v38
  %v295 = vunpack.c.l.bf16 %v39
  %v296 = vunpack.c.l.bf16 %v40
  %v297 = vunpack.c.l.bf16 %v41
  %v298 = vunpack.c.l.bf16 %v42
  %v299 = vunpack.c.l.bf16 %v43
  %v300 = vunpack.c.l.bf16 %v44
  %v301 = vunpack.c.l.bf16 %v45
  %v302 = vunpack.c.l.bf16 %v46
  %v303 = vunpack.c.l.bf16 %v47
  %v304 = vunpack.c.l.bf16 %v48
  %v305 = vunpack.c.l.bf16 %v49
  %v306 = vunpack.c.l.bf16 %v50
  %v307 = vunpack.c.l.bf16 %v51
  %v308 = vunpack.c.l.bf16 %v52
  %v309 = vunpack.c.l.bf16 %v53
  %v310 = vunpack.c.l.bf16 %v54
  %v311 = vunpack.c.l.bf16 %v55
  %v312 = vunpack.c.l.bf16 %v56
  %v313 = vunpack.c.l.bf16 %v57
  %v314 = vunpack.c.l.bf16 %v58
  %v315 = vunpack.c.l.bf16 %v59
  %v316 = vunpack.c.l.bf16 %v60
  %v317 = vunpack.c.l.bf16 %v61
  %v318 = vunpack.c.l.bf16 %v62
  %v319 = vunpack.c.l.bf16 %v63
  %v320 = vunpack.c.l.bf16 %v64
  %v321 = vunpack.c.l.bf16 %v65
  %v322 = vunpack.c.l.bf16 %v66
  %v323 = vunpack.c.l.bf16 %v67
  %v324 = vunpack.c.l.bf16 %v68
  %v325 = vunpack.c.l.bf16 %v69
  %v326 = vunpack.c.l.bf16 %v70
  %v327 = vunpack.c.l.bf16 %v71
  %v328 = vunpack.c.l.bf16 %v72
  %v329 = vunpack.c.l.bf16 %v73
  %v330 = vunpack.c.l.bf16 %v74
  %v331 = vunpack.c.l.bf16 %v75
  %v332 = vunpack.c.l.bf16 %v76
  %v333 = vunpack.c.l.bf16 %v77
  %v334 = vunpack.c.l.bf16 %v78
  %v335 = vunpack.c.l.bf16 %v79
  %v336 = vunpack.c.l.bf16 %v80
  %v337 = vunpack.c.l.bf16 %v81
  %v338 = vunpack.c.l.bf16 %v82
  %v339 = vunpack.c.l.bf16 %v83
  %v340 = vunpack.c.l.bf16 %v84
  %v341 = vunpack.c.l.bf16 %v85
  %v342 = vunpack.c.l.bf16 %v86
  %v343 = vunpack.c.l.bf16 %v87
  %v344 = vunpack.c.l.bf16 %v88
  %v345 = vunpack.c.l.bf16 %v89
  %v346 = vunpack.c.l.bf16 %v90
  %v347 = vunpack.c.l.bf16 %v91
  %v348 = vunpack.c.l.bf16 %v92
  %v349 = vunpack.c.l.bf16 %v93
  %v350 = vunpack.c.l.bf16 %v94
  %v351 = vunpack.c.l.bf16 %v95
  %v352 = vunpack.c.l.bf16 %v96
  %v353 = vunpack.c.l.bf16 %v97
  %v354 = vunpack.c.l.bf16 %v98
  %v355 = vunpack.c.l.bf16 %v99
  %v356 = vunpack.c.l.bf16 %v100
  %v357 = vunpack.c.l.bf16 %v101
  %v358 = vunpack.c.l.bf16 %v102
  %v359 = vunpack.c.l.bf16 %v103
  %v360 = vunpack.c.l.bf16 %v104
  %v361 = vunpack.c.l.bf16 %v105
  %v362 = vunpack.c.l.bf16 %v106
  %v363 = vunpack.c.l.bf16 %v107
  %v364 = vunpack.c.l.bf16 %v108
  %v365 = vunpack.c.l.bf16 %v109
  %v366 = vunpack.c.l.bf16 %v110
  %v367 = vunpack.c.l.bf16 %v111
  %v368 = vunpack.c.l.bf16 %v112
  %v369 = vunpack.c.l.bf16 %v113
  %v370 = vunpack.c.l.bf16 %v114
  %v371 = vunpack.c.l.bf16 %v115
  %v372 = vunpack.c.l.bf16 %v116
  %v373 = vunpack.c.l.bf16 %v117
  %v374 = vunpack.c.l.bf16 %v118
  %v375 = vunpack.c.l.bf16 %v119
  %v376 = vunpack.c.l.bf16 %v120
  %v377 = vunpack.c.l.bf16 %v121
  %v378 = vunpack.c.l.bf16 %v122
  %v379 = vunpack.c.l.bf16 %v123
  %v380 = vunpack.c.l.bf16 %v124
  %v381 = vunpack.c.l.bf16 %v125
  %v382 = vunpack.c.l.bf16 %v126
  %v383 = vunpack.c.l.bf16 %v127
  %v384 = vunpack.c.l.bf16 %v128
  %v385 = vunpack.c.l.bf16 %v129
  %v386 = vunpack.c.l.bf16 %v130
  %v387 = vunpack.c.l.bf16 %v131
  %v388 = vunpack.c.l.bf16 %v132
  %v389 = vunpack.c.l.bf16 %v133
  %v390 = vunpack.c.l.bf16 %v134
  %v391 = vunpack.c.l.bf16 %v135
  %v392 = vunpack.c.l.bf16 %v136
  %v393 = vunpack.c.l.bf16 %v137
  %v394 = vunpack.c.l.bf16 %v138
  %v395 = vunpack.c.l.bf16 %v139
  %v396 = vunpack.c.l.bf16 %v140
  %v397 = vunpack.c.l.bf16 %v141
  %v398 = vunpack.c.l.bf16 %v142
  %v399 = vunpack.c.l.bf16 %v143
  %v400 = vunpack.c.l.bf16 %v144
  %v401 = vunpack.c.l.bf16 %v145
  %v402 = vunpack.c.l.bf16 %v146
  %v403 = vunpack.c.l.bf16 %v147
  %v404 = vunpack.c.l.bf16 %v148
  %v405 = vunpack.c.l.bf16 %v149
  %v406 = vunpack.c.l.bf16 %v150
  %v407 = vunpack.c.l.bf16 %v151
  %v408 = vunpack.c.l.bf16 %v152
  %v409 = vunpack.c.l.bf16 %v153
  %v410 = vunpack.c.l.bf16 %v154
  %v411 = vunpack.c.l.bf16 %v155
  %v412 = vunpack.c.l.bf16 %v156
  %v413 = vunpack.c.l.bf16 %v157
  %v414 = vunpack.c.l.bf16 %v158
  %v415 = vunpack.c.l.bf16 %v159
  %v416 = vunpack.c.l.bf16 %v160
  %v417 = vunpack.c.l.bf16 %v161
  %v418 = vunpack.c.l.bf16 %v162
  %v419 = vunpack.c.l.bf16 %v163
  %v420 = vunpack.c.l.bf16 %v164
  %v421 = vunpack.c.l.bf16 %v165
  %v422 = vunpack.c.l.bf16 %v166
  %v423 = vunpack.c.l.bf16 %v167
  %v424 = vunpack.c.l.bf16 %v168
  %v425 = vunpack.c.l.bf16 %v169
  %v426 = vunpack.c.l.bf16 %v170
  %v427 = vunpack.c.l.bf16 %v171
  %v428 = vunpack.c.l.bf16 %v172
  %v429 = vunpack.c.l.bf16 %v173
  %v430 = vunpack.c.l.bf16 %v174
  %v431 = vunpack.c.l.bf16 %v175
  %v432 = vunpack.c.l.bf16 %v176
  %v433 = vunpack.c.l.bf16 %v177
  %v434 = vunpack.c.l.bf16 %v178
  %v435 = vunpack.c.l.bf16 %v179
  %v436 = vunpack.c.l.bf16 %v180
  %v437 = vunpack.c.l.bf16 %v181
  %v438 = vunpack.c.l.bf16 %v182
  %v439 = vunpack.c.l.bf16 %v183
  %v440 = vunpack.c.l.bf16 %v184
  %v441 = vunpack.c.l.bf16 %v185
  %v442 = vunpack.c.l.bf16 %v186
  %v443 = vunpack.c.l.bf16 %v187
  %v444 = vunpack.c.l.bf16 %v188
  %v445 = vunpack.c.l.bf16 %v189
  %v446 = vunpack.c.l.bf16 %v190
  %v447 = vunpack.c.l.bf16 %v191
  %v448 = vunpack.c.l.bf16 %v192
  %v449 = vunpack.c.l.bf16 %v193
  %v450 = vunpack.c.l.bf16 %v194
  %v451 = vunpack.c.l.bf16 %v195
  %v452 = vunpack.c.l.bf16 %v196
  %v453 = vunpack.c.l.bf16 %v197
  %v454 = vunpack.c.l.bf16 %v198
  %v455 = vunpack.c.l.bf16 %v199
  %v456 = vunpack.c.l.bf16 %v200
  %v457 = vunpack.c.l.bf16 %v201
  %v458 = vunpack.c.l.bf16 %v202
  %v459 = vunpack.c.l.bf16 %v203
  %v460 = vunpack.c.l.bf16 %v204
  %v461 = vunpack.c.l.bf16 %v205
  %v462 = vunpack.c.l.bf16 %v206
  %v463 = vunpack.c.l.bf16 %v207
  %v464 = vunpack.c.l.bf16 %v208
  %v465 = vunpack.c.l.bf16 %v209
  %v466 = vunpack.c.l.bf16 %v210
  %v467 = vunpack.c.l.bf16 %v211
  %v468 = vunpack.c.l.bf16 %v212
  %v469 = vunpack.c.l.bf16 %v213
  %v470 = vunpack.c.l.bf16 %v214
  %v471 = vunpack.c.l.bf16 %v215
  %v472 = vunpack.c.l.bf16 %v216
  %v473 = vunpack.c.l.bf16 %v217
  %v474 = vunpack.c.l.bf16 %v218
  %v475 = vunpack.c.l.bf16 %v219
  %v476 = vunpack.c.l.bf16 %v220
  %v477 = vunpack.c.l.bf16 %v221
  %v478 = vunpack.c.l.bf16 %v222
  %v479 = vunpack.c.l.bf16 %v223
  %v480 = vunpack.c.l.bf16 %v224
  %v481 = vunpack.c.l.bf16 %v225
  %v482 = vunpack.c.l.bf16 %v226
  %v483 = vunpack.c.l.bf16 %v227
  %v484 = vunpack.c.l.bf16 %v228
  %v485 = vunpack.c.l.bf16 %v229
  %v486 = vunpack.c.l.bf16 %v230
  %v487 = vunpack.c.l.bf16 %v231
  %v488 = vunpack.c.l.bf16 %v232
  %v489 = vunpack.c.l.bf16 %v233
  %v490 = vunpack.c.l.bf16 %v234
  %v491 = vunpack.c.l.bf16 %v235
  %v492 = vunpack.c.l.bf16 %v236
  %v493 = vunpack.c.l.bf16 %v237
  %v494 = vunpack.c.l.bf16 %v238
  %v495 = vunpack.c.l.bf16 %v239
  %v496 = vunpack.c.l.bf16 %v240
  %v497 = vunpack.c.l.bf16 %v241
  %v498 = vunpack.c.l.bf16 %v242
  %v499 = vunpack.c.l.bf16 %v243
  %v500 = vunpack.c.l.bf16 %v244
  %v501 = vunpack.c.l.bf16 %v245
  %v502 = vunpack.c.l.bf16 %v246
  %v503 = vunpack.c.l.bf16 %v247
  %v504 = vunpack.c.l.bf16 %v248
  %v505 = vunpack.c.l.bf16 %v249
  %v506 = vunpack.c.l.bf16 %v250
  %v507 = vunpack.c.l.bf16 %v251
  %v508 = vunpack.c.l.bf16 %v252
  %v509 = vunpack.c.l.bf16 %v253
  %v510 = vunpack.c.l.bf16 %v254
  %v511 = vunpack.c.l.bf16 %v255
  %v512 = vunpack.c.l.bf16 %v256
  %v513 = vunpack.c.l.bf16 %v257
  %v514 = vunpack.c.l.bf16 %v258
  %v515 = vunpack.c.l.bf16 %v259
  %v516 = vunpack.c.l.bf16 %v260
  %v517 = vunpack.c.l.bf16 %v261
  %v518 = vunpack.c.l.bf16 %v262
  %v519 = vunpack.c.l.bf16 %v263
  %v520 = vunpack.c.l.bf16 %v264
  %v521 = vunpack.c.l.bf16 %v265
  %v522 = vunpack.c.l.bf16 %v266
  %v523 = vunpack.c.l.bf16 %v267
  %v524 = vunpack.c.l.bf16 %v268
  %v525 = vunpack.c.l.bf16 %v269
  %v526 = vld [vmem:[%s1] sm:$0x1]
  %v528 = vlaneseq
  %v529 = vshrl.u32 %v528, 7
  %v530 = vsub.s32 0, %v529
  %v531 = vrot.slane %v526, %v530
  %v533 = vmul.f32 %v270, %v531
  %v534 = vmul.f32 %v271, %v531
  %v535 = vmul.f32 %v272, %v531
  %v536 = vmul.f32 %v273, %v531
  %v537 = vmul.f32 %v274, %v531
  %v538 = vmul.f32 %v275, %v531
  %v539 = vmul.f32 %v276, %v531
  %v540 = vmul.f32 %v277, %v531
  %v541 = vmul.f32 %v278, %v531
  %v542 = vmul.f32 %v279, %v531
  %v543 = vmul.f32 %v280, %v531
  %v544 = vmul.f32 %v281, %v531
  %v545 = vmul.f32 %v282, %v531
  %v546 = vmul.f32 %v283, %v531
  %v547 = vmul.f32 %v284, %v531
  %v548 = vmul.f32 %v285, %v531
  %v549 = vmul.f32 %v286, %v531
  %v550 = vmul.f32 %v287, %v531
  %v551 = vmul.f32 %v288, %v531
  %v552 = vmul.f32 %v289, %v531
  %v553 = vmul.f32 %v290, %v531
  %v554 = vmul.f32 %v291, %v531
  %v555 = vmul.f32 %v292, %v531
  %v556 = vmul.f32 %v293, %v531
  %v557 = vmul.f32 %v294, %v531
  %v558 = vmul.f32 %v295, %v531
  %v559 = vmul.f32 %v296, %v531
  %v560 = vmul.f32 %v297, %v531
  %v561 = vmul.f32 %v298, %v531
  %v562 = vmul.f32 %v299, %v531
  %v563 = vmul.f32 %v300, %v531
  %v564 = vmul.f32 %v301, %v531
  %v565 = vmul.f32 %v302, %v531
  %v566 = vmul.f32 %v303, %v531
  %v567 = vmul.f32 %v304, %v531
  %v568 = vmul.f32 %v305, %v531
  %v569 = vmul.f32 %v306, %v531
  %v570 = vmul.f32 %v307, %v531
  %v571 = vmul.f32 %v308, %v531
  %v572 = vmul.f32 %v309, %v531
  %v573 = vmul.f32 %v310, %v531
  %v574 = vmul.f32 %v311, %v531
  %v575 = vmul.f32 %v312, %v531
  %v576 = vmul.f32 %v313, %v531
  %v577 = vmul.f32 %v314, %v531
  %v578 = vmul.f32 %v315, %v531
  %v579 = vmul.f32 %v316, %v531
  %v580 = vmul.f32 %v317, %v531
  %v581 = vmul.f32 %v318, %v531
  %v582 = vmul.f32 %v319, %v531
  %v583 = vmul.f32 %v320, %v531
  %v584 = vmul.f32 %v321, %v531
  %v585 = vmul.f32 %v322, %v531
  %v586 = vmul.f32 %v323, %v531
  %v587 = vmul.f32 %v324, %v531
  %v588 = vmul.f32 %v325, %v531
  %v589 = vmul.f32 %v326, %v531
  %v590 = vmul.f32 %v327, %v531
  %v591 = vmul.f32 %v328, %v531
  %v592 = vmul.f32 %v329, %v531
  %v593 = vmul.f32 %v330, %v531
  %v594 = vmul.f32 %v331, %v531
  %v595 = vmul.f32 %v332, %v531
  %v596 = vmul.f32 %v333, %v531
  %v597 = vmul.f32 %v334, %v531
  %v598 = vmul.f32 %v335, %v531
  %v599 = vmul.f32 %v336, %v531
  %v600 = vmul.f32 %v337, %v531
  %v601 = vmul.f32 %v338, %v531
  %v602 = vmul.f32 %v339, %v531
  %v603 = vmul.f32 %v340, %v531
  %v604 = vmul.f32 %v341, %v531
  %v605 = vmul.f32 %v342, %v531
  %v606 = vmul.f32 %v343, %v531
  %v607 = vmul.f32 %v344, %v531
  %v608 = vmul.f32 %v345, %v531
  %v609 = vmul.f32 %v346, %v531
  %v610 = vmul.f32 %v347, %v531
  %v611 = vmul.f32 %v348, %v531
  %v612 = vmul.f32 %v349, %v531
  %v613 = vmul.f32 %v350, %v531
  %v614 = vmul.f32 %v351, %v531
  %v615 = vmul.f32 %v352, %v531
  %v616 = vmul.f32 %v353, %v531
  %v617 = vmul.f32 %v354, %v531
  %v618 = vmul.f32 %v355, %v531
  %v619 = vmul.f32 %v356, %v531
  %v620 = vmul.f32 %v357, %v531
  %v621 = vmul.f32 %v358, %v531
  %v622 = vmul.f32 %v359, %v531
  %v623 = vmul.f32 %v360, %v531
  %v624 = vmul.f32 %v361, %v531
  %v625 = vmul.f32 %v362, %v531
  %v626 = vmul.f32 %v363, %v531
  %v627 = vmul.f32 %v364, %v531
  %v628 = vmul.f32 %v365, %v531
  %v629 = vmul.f32 %v366, %v531
  %v630 = vmul.f32 %v367, %v531
  %v631 = vmul.f32 %v368, %v531
  %v632 = vmul.f32 %v369, %v531
  %v633 = vmul.f32 %v370, %v531
  %v634 = vmul.f32 %v371, %v531
  %v635 = vmul.f32 %v372, %v531
  %v636 = vmul.f32 %v373, %v531
  %v637 = vmul.f32 %v374, %v531
  %v638 = vmul.f32 %v375, %v531
  %v639 = vmul.f32 %v376, %v531
  %v640 = vmul.f32 %v377, %v531
  %v641 = vmul.f32 %v378, %v531
  %v642 = vmul.f32 %v379, %v531
  %v643 = vmul.f32 %v380, %v531
  %v644 = vmul.f32 %v381, %v531
  %v645 = vmul.f32 %v382, %v531
  %v646 = vmul.f32 %v383, %v531
  %v647 = vmul.f32 %v384, %v531
  %v648 = vmul.f32 %v385, %v531
  %v649 = vmul.f32 %v386, %v531
  %v650 = vmul.f32 %v387, %v531
  %v651 = vmul.f32 %v388, %v531
  %v652 = vmul.f32 %v389, %v531
  %v653 = vmul.f32 %v390, %v531
  %v654 = vmul.f32 %v391, %v531
  %v655 = vmul.f32 %v392, %v531
  %v656 = vmul.f32 %v393, %v531
  %v657 = vmul.f32 %v394, %v531
  %v658 = vmul.f32 %v395, %v531
  %v659 = vmul.f32 %v396, %v531
  %v660 = vmul.f32 %v397, %v531
  %v661 = vmul.f32 %v398, %v531
  %v662 = vmul.f32 %v399, %v531
  %v663 = vmul.f32 %v400, %v531
  %v664 = vmul.f32 %v401, %v531
  %v665 = vmul.f32 %v402, %v531
  %v666 = vmul.f32 %v403, %v531
  %v667 = vmul.f32 %v404, %v531
  %v668 = vmul.f32 %v405, %v531
  %v669 = vmul.f32 %v406, %v531
  %v670 = vmul.f32 %v407, %v531
  %v671 = vmul.f32 %v408, %v531
  %v672 = vmul.f32 %v409, %v531
  %v673 = vmul.f32 %v410, %v531
  %v674 = vmul.f32 %v411, %v531
  %v675 = vmul.f32 %v412, %v531
  %v676 = vmul.f32 %v413, %v531
  %v677 = vmul.f32 %v414, %v531
  %v678 = vmul.f32 %v415, %v531
  %v679 = vmul.f32 %v416, %v531
  %v680 = vmul.f32 %v417, %v531
  %v681 = vmul.f32 %v418, %v531
  %v682 = vmul.f32 %v419, %v531
  %v683 = vmul.f32 %v420, %v531
  %v684 = vmul.f32 %v421, %v531
  %v685 = vmul.f32 %v422, %v531
  %v686 = vmul.f32 %v423, %v531
  %v687 = vmul.f32 %v424, %v531
  %v688 = vmul.f32 %v425, %v531
  %v689 = vmul.f32 %v426, %v531
  %v690 = vmul.f32 %v427, %v531
  %v691 = vmul.f32 %v428, %v531
  %v692 = vmul.f32 %v429, %v531
  %v693 = vmul.f32 %v430, %v531
  %v694 = vmul.f32 %v431, %v531
  %v695 = vmul.f32 %v432, %v531
  %v696 = vmul.f32 %v433, %v531
  %v697 = vmul.f32 %v434, %v531
  %v698 = vmul.f32 %v435, %v531
  %v699 = vmul.f32 %v436, %v531
  %v700 = vmul.f32 %v437, %v531
  %v701 = vmul.f32 %v438, %v531
  %v702 = vmul.f32 %v439, %v531
  %v703 = vmul.f32 %v440, %v531
  %v704 = vmul.f32 %v441, %v531
  %v705 = vmul.f32 %v442, %v531
  %v706 = vmul.f32 %v443, %v531
  %v707 = vmul.f32 %v444, %v531
  %v708 = vmul.f32 %v445, %v531
  %v709 = vmul.f32 %v446, %v531
  %v710 = vmul.f32 %v447, %v531
  %v711 = vmul.f32 %v448, %v531
  %v712 = vmul.f32 %v449, %v531
  %v713 = vmul.f32 %v450, %v531
  %v714 = vmul.f32 %v451, %v531
  %v715 = vmul.f32 %v452, %v531
  %v716 = vmul.f32 %v453, %v531
  %v717 = vmul.f32 %v454, %v531
  %v718 = vmul.f32 %v455, %v531
  %v719 = vmul.f32 %v456, %v531
  %v720 = vmul.f32 %v457, %v531
  %v721 = vmul.f32 %v458, %v531
  %v722 = vmul.f32 %v459, %v531
  %v723 = vmul.f32 %v460, %v531
  %v724 = vmul.f32 %v461, %v531
  %v725 = vmul.f32 %v462, %v531
  %v726 = vmul.f32 %v463, %v531
  %v727 = vmul.f32 %v464, %v531
  %v728 = vmul.f32 %v465, %v531
  %v729 = vmul.f32 %v466, %v531
  %v730 = vmul.f32 %v467, %v531
  %v731 = vmul.f32 %v468, %v531
  %v732 = vmul.f32 %v469, %v531
  %v733 = vmul.f32 %v470, %v531
  %v734 = vmul.f32 %v471, %v531
  %v735 = vmul.f32 %v472, %v531
  %v736 = vmul.f32 %v473, %v531
  %v737 = vmul.f32 %v474, %v531
  %v738 = vmul.f32 %v475, %v531
  %v739 = vmul.f32 %v476, %v531
  %v740 = vmul.f32 %v477, %v531
  %v741 = vmul.f32 %v478, %v531
  %v742 = vmul.f32 %v479, %v531
  %v743 = vmul.f32 %v480, %v531
  %v744 = vmul.f32 %v481, %v531
  %v745 = vmul.f32 %v482, %v531
  %v746 = vmul.f32 %v483, %v531
  %v747 = vmul.f32 %v484, %v531
  %v748 = vmul.f32 %v485, %v531
  %v749 = vmul.f32 %v486, %v531
  %v750 = vmul.f32 %v487, %v531
  %v751 = vmul.f32 %v488, %v531
  %v752 = vmul.f32 %v489, %v531
  %v753 = vmul.f32 %v490, %v531
  %v754 = vmul.f32 %v491, %v531
  %v755 = vmul.f32 %v492, %v531
  %v756 = vmul.f32 %v493, %v531
  %v757 = vmul.f32 %v494, %v531
  %v758 = vmul.f32 %v495, %v531
  %v759 = vmul.f32 %v496, %v531
  %v760 = vmul.f32 %v497, %v531
  %v761 = vmul.f32 %v498, %v531
  %v762 = vmul.f32 %v499, %v531
  %v763 = vmul.f32 %v500, %v531
  %v764 = vmul.f32 %v501, %v531
  %v765 = vmul.f32 %v502, %v531
  %v766 = vmul.f32 %v503, %v531
  %v767 = vmul.f32 %v504, %v531
  %v768 = vmul.f32 %v505, %v531
  %v769 = vmul.f32 %v506, %v531
  %v770 = vmul.f32 %v507, %v531
  %v771 = vmul.f32 %v508, %v531
  %v772 = vmul.f32 %v509, %v531
  %v773 = vmul.f32 %v510, %v531
  %v774 = vmul.f32 %v511, %v531
  %v775 = vmul.f32 %v512, %v531
  %v776 = vmul.f32 %v513, %v531
  %v777 = vmul.f32 %v514, %v531
  %v778 = vmul.f32 %v515, %v531
  %v779 = vmul.f32 %v516, %v531
  %v780 = vmul.f32 %v517, %v531
  %v781 = vmul.f32 %v518, %v531
  %v782 = vmul.f32 %v519, %v531
  %v783 = vmul.f32 %v520, %v531
  %v784 = vmul.f32 %v521, %v531
  %v785 = vmul.f32 %v522, %v531
  %v786 = vmul.f32 %v523, %v531
  %v787 = vmul.f32 %v524, %v531
  %v788 = vmul.f32 %v525, %v531
  %v789 = vld [vmem:[%s2] sm:$0x1]
  %v791 = vlaneseq
  %v792 = vshrl.u32 %v791, 7
  %v793 = vsub.s32 0, %v792
  %v794 = vrot.slane %v789, %v793
  %v796 = vadd.f32 %v533, %v794
  %v797 = vadd.f32 %v534, %v794
  %v798 = vadd.f32 %v535, %v794
  %v799 = vadd.f32 %v536, %v794
  %v800 = vadd.f32 %v537, %v794
  %v801 = vadd.f32 %v538, %v794
  %v802 = vadd.f32 %v539, %v794
  %v803 = vadd.f32 %v540, %v794
  %v804 = vadd.f32 %v541, %v794
  %v805 = vadd.f32 %v542, %v794
  %v806 = vadd.f32 %v543, %v794
  %v807 = vadd.f32 %v544, %v794
  %v808 = vadd.f32 %v545, %v794
  %v809 = vadd.f32 %v546, %v794
  %v810 = vadd.f32 %v547, %v794
  %v811 = vadd.f32 %v548, %v794
  %v812 = vadd.f32 %v549, %v794
  %v813 = vadd.f32 %v550, %v794
  %v814 = vadd.f32 %v551, %v794
  %v815 = vadd.f32 %v552, %v794
  %v816 = vadd.f32 %v553, %v794
  %v817 = vadd.f32 %v554, %v794
  %v818 = vadd.f32 %v555, %v794
  %v819 = vadd.f32 %v556, %v794
  %v820 = vadd.f32 %v557, %v794
  %v821 = vadd.f32 %v558, %v794
  %v822 = vadd.f32 %v559, %v794
  %v823 = vadd.f32 %v560, %v794
  %v824 = vadd.f32 %v561, %v794
  %v825 = vadd.f32 %v562, %v794
  %v826 = vadd.f32 %v563, %v794
  %v827 = vadd.f32 %v564, %v794
  %v828 = vadd.f32 %v565, %v794
  %v829 = vadd.f32 %v566, %v794
  %v830 = vadd.f32 %v567, %v794
  %v831 = vadd.f32 %v568, %v794
  %v832 = vadd.f32 %v569, %v794
  %v833 = vadd.f32 %v570, %v794
  %v834 = vadd.f32 %v571, %v794
  %v835 = vadd.f32 %v572, %v794
  %v836 = vadd.f32 %v573, %v794
  %v837 = vadd.f32 %v574, %v794
  %v838 = vadd.f32 %v575, %v794
  %v839 = vadd.f32 %v576, %v794
  %v840 = vadd.f32 %v577, %v794
  %v841 = vadd.f32 %v578, %v794
  %v842 = vadd.f32 %v579, %v794
  %v843 = vadd.f32 %v580, %v794
  %v844 = vadd.f32 %v581, %v794
  %v845 = vadd.f32 %v582, %v794
  %v846 = vadd.f32 %v583, %v794
  %v847 = vadd.f32 %v584, %v794
  %v848 = vadd.f32 %v585, %v794
  %v849 = vadd.f32 %v586, %v794
  %v850 = vadd.f32 %v587, %v794
  %v851 = vadd.f32 %v588, %v794
  %v852 = vadd.f32 %v589, %v794
  %v853 = vadd.f32 %v590, %v794
  %v854 = vadd.f32 %v591, %v794
  %v855 = vadd.f32 %v592, %v794
  %v856 = vadd.f32 %v593, %v794
  %v857 = vadd.f32 %v594, %v794
  %v858 = vadd.f32 %v595, %v794
  %v859 = vadd.f32 %v596, %v794
  %v860 = vadd.f32 %v597, %v794
  %v861 = vadd.f32 %v598, %v794
  %v862 = vadd.f32 %v599, %v794
  %v863 = vadd.f32 %v600, %v794
  %v864 = vadd.f32 %v601, %v794
  %v865 = vadd.f32 %v602, %v794
  %v866 = vadd.f32 %v603, %v794
  %v867 = vadd.f32 %v604, %v794
  %v868 = vadd.f32 %v605, %v794
  %v869 = vadd.f32 %v606, %v794
  %v870 = vadd.f32 %v607, %v794
  %v871 = vadd.f32 %v608, %v794
  %v872 = vadd.f32 %v609, %v794
  %v873 = vadd.f32 %v610, %v794
  %v874 = vadd.f32 %v611, %v794
  %v875 = vadd.f32 %v612, %v794
  %v876 = vadd.f32 %v613, %v794
  %v877 = vadd.f32 %v614, %v794
  %v878 = vadd.f32 %v615, %v794
  %v879 = vadd.f32 %v616, %v794
  %v880 = vadd.f32 %v617, %v794
  %v881 = vadd.f32 %v618, %v794
  %v882 = vadd.f32 %v619, %v794
  %v883 = vadd.f32 %v620, %v794
  %v884 = vadd.f32 %v621, %v794
  %v885 = vadd.f32 %v622, %v794
  %v886 = vadd.f32 %v623, %v794
  %v887 = vadd.f32 %v624, %v794
  %v888 = vadd.f32 %v625, %v794
  %v889 = vadd.f32 %v626, %v794
  %v890 = vadd.f32 %v627, %v794
  %v891 = vadd.f32 %v628, %v794
  %v892 = vadd.f32 %v629, %v794
  %v893 = vadd.f32 %v630, %v794
  %v894 = vadd.f32 %v631, %v794
  %v895 = vadd.f32 %v632, %v794
  %v896 = vadd.f32 %v633, %v794
  %v897 = vadd.f32 %v634, %v794
  %v898 = vadd.f32 %v635, %v794
  %v899 = vadd.f32 %v636, %v794
  %v900 = vadd.f32 %v637, %v794
  %v901 = vadd.f32 %v638, %v794
  %v902 = vadd.f32 %v639, %v794
  %v903 = vadd.f32 %v640, %v794
  %v904 = vadd.f32 %v641, %v794
  %v905 = vadd.f32 %v642, %v794
  %v906 = vadd.f32 %v643, %v794
  %v907 = vadd.f32 %v644, %v794
  %v908 = vadd.f32 %v645, %v794
  %v909 = vadd.f32 %v646, %v794
  %v910 = vadd.f32 %v647, %v794
  %v911 = vadd.f32 %v648, %v794
  %v912 = vadd.f32 %v649, %v794
  %v913 = vadd.f32 %v650, %v794
  %v914 = vadd.f32 %v651, %v794
  %v915 = vadd.f32 %v652, %v794
  %v916 = vadd.f32 %v653, %v794
  %v917 = vadd.f32 %v654, %v794
  %v918 = vadd.f32 %v655, %v794
  %v919 = vadd.f32 %v656, %v794
  %v920 = vadd.f32 %v657, %v794
  %v921 = vadd.f32 %v658, %v794
  %v922 = vadd.f32 %v659, %v794
  %v923 = vadd.f32 %v660, %v794
  %v924 = vadd.f32 %v661, %v794
  %v925 = vadd.f32 %v662, %v794
  %v926 = vadd.f32 %v663, %v794
  %v927 = vadd.f32 %v664, %v794
  %v928 = vadd.f32 %v665, %v794
  %v929 = vadd.f32 %v666, %v794
  %v930 = vadd.f32 %v667, %v794
  %v931 = vadd.f32 %v668, %v794
  %v932 = vadd.f32 %v669, %v794
  %v933 = vadd.f32 %v670, %v794
  %v934 = vadd.f32 %v671, %v794
  %v935 = vadd.f32 %v672, %v794
  %v936 = vadd.f32 %v673, %v794
  %v937 = vadd.f32 %v674, %v794
  %v938 = vadd.f32 %v675, %v794
  %v939 = vadd.f32 %v676, %v794
  %v940 = vadd.f32 %v677, %v794
  %v941 = vadd.f32 %v678, %v794
  %v942 = vadd.f32 %v679, %v794
  %v943 = vadd.f32 %v680, %v794
  %v944 = vadd.f32 %v681, %v794
  %v945 = vadd.f32 %v682, %v794
  %v946 = vadd.f32 %v683, %v794
  %v947 = vadd.f32 %v684, %v794
  %v948 = vadd.f32 %v685, %v794
  %v949 = vadd.f32 %v686, %v794
  %v950 = vadd.f32 %v687, %v794
  %v951 = vadd.f32 %v688, %v794
  %v952 = vadd.f32 %v689, %v794
  %v953 = vadd.f32 %v690, %v794
  %v954 = vadd.f32 %v691, %v794
  %v955 = vadd.f32 %v692, %v794
  %v956 = vadd.f32 %v693, %v794
  %v957 = vadd.f32 %v694, %v794
  %v958 = vadd.f32 %v695, %v794
  %v959 = vadd.f32 %v696, %v794
  %v960 = vadd.f32 %v697, %v794
  %v961 = vadd.f32 %v698, %v794
  %v962 = vadd.f32 %v699, %v794
  %v963 = vadd.f32 %v700, %v794
  %v964 = vadd.f32 %v701, %v794
  %v965 = vadd.f32 %v702, %v794
  %v966 = vadd.f32 %v703, %v794
  %v967 = vadd.f32 %v704, %v794
  %v968 = vadd.f32 %v705, %v794
  %v969 = vadd.f32 %v706, %v794
  %v970 = vadd.f32 %v707, %v794
  %v971 = vadd.f32 %v708, %v794
  %v972 = vadd.f32 %v709, %v794
  %v973 = vadd.f32 %v710, %v794
  %v974 = vadd.f32 %v711, %v794
  %v975 = vadd.f32 %v712, %v794
  %v976 = vadd.f32 %v713, %v794
  %v977 = vadd.f32 %v714, %v794
  %v978 = vadd.f32 %v715, %v794
  %v979 = vadd.f32 %v716, %v794
  %v980 = vadd.f32 %v717, %v794
  %v981 = vadd.f32 %v718, %v794
  %v982 = vadd.f32 %v719, %v794
  %v983 = vadd.f32 %v720, %v794
  %v984 = vadd.f32 %v721, %v794
  %v985 = vadd.f32 %v722, %v794
  %v986 = vadd.f32 %v723, %v794
  %v987 = vadd.f32 %v724, %v794
  %v988 = vadd.f32 %v725, %v794
  %v989 = vadd.f32 %v726, %v794
  %v990 = vadd.f32 %v727, %v794
  %v991 = vadd.f32 %v728, %v794
  %v992 = vadd.f32 %v729, %v794
  %v993 = vadd.f32 %v730, %v794
  %v994 = vadd.f32 %v731, %v794
  %v995 = vadd.f32 %v732, %v794
  %v996 = vadd.f32 %v733, %v794
  %v997 = vadd.f32 %v734, %v794
  %v998 = vadd.f32 %v735, %v794
  %v999 = vadd.f32 %v736, %v794
  %v1000 = vadd.f32 %v737, %v794
  %v1001 = vadd.f32 %v738, %v794
  %v1002 = vadd.f32 %v739, %v794
  %v1003 = vadd.f32 %v740, %v794
  %v1004 = vadd.f32 %v741, %v794
  %v1005 = vadd.f32 %v742, %v794
  %v1006 = vadd.f32 %v743, %v794
  %v1007 = vadd.f32 %v744, %v794
  %v1008 = vadd.f32 %v745, %v794
  %v1009 = vadd.f32 %v746, %v794
  %v1010 = vadd.f32 %v747, %v794
  %v1011 = vadd.f32 %v748, %v794
  %v1012 = vadd.f32 %v749, %v794
  %v1013 = vadd.f32 %v750, %v794
  %v1014 = vadd.f32 %v751, %v794
  %v1015 = vadd.f32 %v752, %v794
  %v1016 = vadd.f32 %v753, %v794
  %v1017 = vadd.f32 %v754, %v794
  %v1018 = vadd.f32 %v755, %v794
  %v1019 = vadd.f32 %v756, %v794
  %v1020 = vadd.f32 %v757, %v794
  %v1021 = vadd.f32 %v758, %v794
  %v1022 = vadd.f32 %v759, %v794
  %v1023 = vadd.f32 %v760, %v794
  %v1024 = vadd.f32 %v761, %v794
  %v1025 = vadd.f32 %v762, %v794
  %v1026 = vadd.f32 %v763, %v794
  %v1027 = vadd.f32 %v764, %v794
  %v1028 = vadd.f32 %v765, %v794
  %v1029 = vadd.f32 %v766, %v794
  %v1030 = vadd.f32 %v767, %v794
  %v1031 = vadd.f32 %v768, %v794
  %v1032 = vadd.f32 %v769, %v794
  %v1033 = vadd.f32 %v770, %v794
  %v1034 = vadd.f32 %v771, %v794
  %v1035 = vadd.f32 %v772, %v794
  %v1036 = vadd.f32 %v773, %v794
  %v1037 = vadd.f32 %v774, %v794
  %v1038 = vadd.f32 %v775, %v794
  %v1039 = vadd.f32 %v776, %v794
  %v1040 = vadd.f32 %v777, %v794
  %v1041 = vadd.f32 %v778, %v794
  %v1042 = vadd.f32 %v779, %v794
  %v1043 = vadd.f32 %v780, %v794
  %v1044 = vadd.f32 %v781, %v794
  %v1045 = vadd.f32 %v782, %v794
  %v1046 = vadd.f32 %v783, %v794
  %v1047 = vadd.f32 %v784, %v794
  %v1048 = vadd.f32 %v785, %v794
  %v1049 = vadd.f32 %v786, %v794
  %v1050 = vadd.f32 %v787, %v794
  %v1051 = vadd.f32 %v788, %v794
  %v1052 = vmax.f32 %v796, 0.0
  %v1053 = vmax.f32 %v797, 0.0
  %v1054 = vmax.f32 %v798, 0.0
  %v1055 = vmax.f32 %v799, 0.0
  %v1056 = vmax.f32 %v800, 0.0
  %v1057 = vmax.f32 %v801, 0.0
  %v1058 = vmax.f32 %v802, 0.0
  %v1059 = vmax.f32 %v803, 0.0
  %v1060 = vmax.f32 %v804, 0.0
  %v1061 = vmax.f32 %v805, 0.0
  %v1062 = vmax.f32 %v806, 0.0
  %v1063 = vmax.f32 %v807, 0.0
  %v1064 = vmax.f32 %v808, 0.0
  %v1065 = vmax.f32 %v809, 0.0
  %v1066 = vmax.f32 %v810, 0.0
  %v1067 = vmax.f32 %v811, 0.0
  %v1068 = vmax.f32 %v812, 0.0
  %v1069 = vmax.f32 %v813, 0.0
  %v1070 = vmax.f32 %v814, 0.0
  %v1071 = vmax.f32 %v815, 0.0
  %v1072 = vmax.f32 %v816, 0.0
  %v1073 = vmax.f32 %v817, 0.0
  %v1074 = vmax.f32 %v818, 0.0
  %v1075 = vmax.f32 %v819, 0.0
  %v1076 = vmax.f32 %v820, 0.0
  %v1077 = vmax.f32 %v821, 0.0
  %v1078 = vmax.f32 %v822, 0.0
  %v1079 = vmax.f32 %v823, 0.0
  %v1080 = vmax.f32 %v824, 0.0
  %v1081 = vmax.f32 %v825, 0.0
  %v1082 = vmax.f32 %v826, 0.0
  %v1083 = vmax.f32 %v827, 0.0
  %v1084 = vmax.f32 %v828, 0.0
  %v1085 = vmax.f32 %v829, 0.0
  %v1086 = vmax.f32 %v830, 0.0
  %v1087 = vmax.f32 %v831, 0.0
  %v1088 = vmax.f32 %v832, 0.0
  %v1089 = vmax.f32 %v833, 0.0
  %v1090 = vmax.f32 %v834, 0.0
  %v1091 = vmax.f32 %v835, 0.0
  %v1092 = vmax.f32 %v836, 0.0
  %v1093 = vmax.f32 %v837, 0.0
  %v1094 = vmax.f32 %v838, 0.0
  %v1095 = vmax.f32 %v839, 0.0
  %v1096 = vmax.f32 %v840, 0.0
  %v1097 = vmax.f32 %v841, 0.0
  %v1098 = vmax.f32 %v842, 0.0
  %v1099 = vmax.f32 %v843, 0.0
  %v1100 = vmax.f32 %v844, 0.0
  %v1101 = vmax.f32 %v845, 0.0
  %v1102 = vmax.f32 %v846, 0.0
  %v1103 = vmax.f32 %v847, 0.0
  %v1104 = vmax.f32 %v848, 0.0
  %v1105 = vmax.f32 %v849, 0.0
  %v1106 = vmax.f32 %v850, 0.0
  %v1107 = vmax.f32 %v851, 0.0
  %v1108 = vmax.f32 %v852, 0.0
  %v1109 = vmax.f32 %v853, 0.0
  %v1110 = vmax.f32 %v854, 0.0
  %v1111 = vmax.f32 %v855, 0.0
  %v1112 = vmax.f32 %v856, 0.0
  %v1113 = vmax.f32 %v857, 0.0
  %v1114 = vmax.f32 %v858, 0.0
  %v1115 = vmax.f32 %v859, 0.0
  %v1116 = vmax.f32 %v860, 0.0
  %v1117 = vmax.f32 %v861, 0.0
  %v1118 = vmax.f32 %v862, 0.0
  %v1119 = vmax.f32 %v863, 0.0
  %v1120 = vmax.f32 %v864, 0.0
  %v1121 = vmax.f32 %v865, 0.0
  %v1122 = vmax.f32 %v866, 0.0
  %v1123 = vmax.f32 %v867, 0.0
  %v1124 = vmax.f32 %v868, 0.0
  %v1125 = vmax.f32 %v869, 0.0
  %v1126 = vmax.f32 %v870, 0.0
  %v1127 = vmax.f32 %v871, 0.0
  %v1128 = vmax.f32 %v872, 0.0
  %v1129 = vmax.f32 %v873, 0.0
  %v1130 = vmax.f32 %v874, 0.0
  %v1131 = vmax.f32 %v875, 0.0
  %v1132 = vmax.f32 %v876, 0.0
  %v1133 = vmax.f32 %v877, 0.0
  %v1134 = vmax.f32 %v878, 0.0
  %v1135 = vmax.f32 %v879, 0.0
  %v1136 = vmax.f32 %v880, 0.0
  %v1137 = vmax.f32 %v881, 0.0
  %v1138 = vmax.f32 %v882, 0.0
  %v1139 = vmax.f32 %v883, 0.0
  %v1140 = vmax.f32 %v884, 0.0
  %v1141 = vmax.f32 %v885, 0.0
  %v1142 = vmax.f32 %v886, 0.0
  %v1143 = vmax.f32 %v887, 0.0
  %v1144 = vmax.f32 %v888, 0.0
  %v1145 = vmax.f32 %v889, 0.0
  %v1146 = vmax.f32 %v890, 0.0
  %v1147 = vmax.f32 %v891, 0.0
  %v1148 = vmax.f32 %v892, 0.0
  %v1149 = vmax.f32 %v893, 0.0
  %v1150 = vmax.f32 %v894, 0.0
  %v1151 = vmax.f32 %v895, 0.0
  %v1152 = vmax.f32 %v896, 0.0
  %v1153 = vmax.f32 %v897, 0.0
  %v1154 = vmax.f32 %v898, 0.0
  %v1155 = vmax.f32 %v899, 0.0
  %v1156 = vmax.f32 %v900, 0.0
  %v1157 = vmax.f32 %v901, 0.0
  %v1158 = vmax.f32 %v902, 0.0
  %v1159 = vmax.f32 %v903, 0.0
  %v1160 = vmax.f32 %v904, 0.0
  %v1161 = vmax.f32 %v905, 0.0
  %v1162 = vmax.f32 %v906, 0.0
  %v1163 = vmax.f32 %v907, 0.0
  %v1164 = vmax.f32 %v908, 0.0
  %v1165 = vmax.f32 %v909, 0.0
  %v1166 = vmax.f32 %v910, 0.0
  %v1167 = vmax.f32 %v911, 0.0
  %v1168 = vmax.f32 %v912, 0.0
  %v1169 = vmax.f32 %v913, 0.0
  %v1170 = vmax.f32 %v914, 0.0
  %v1171 = vmax.f32 %v915, 0.0
  %v1172 = vmax.f32 %v916, 0.0
  %v1173 = vmax.f32 %v917, 0.0
  %v1174 = vmax.f32 %v918, 0.0
  %v1175 = vmax.f32 %v919, 0.0
  %v1176 = vmax.f32 %v920, 0.0
  %v1177 = vmax.f32 %v921, 0.0
  %v1178 = vmax.f32 %v922, 0.0
  %v1179 = vmax.f32 %v923, 0.0
  %v1180 = vmax.f32 %v924, 0.0
  %v1181 = vmax.f32 %v925, 0.0
  %v1182 = vmax.f32 %v926, 0.0
  %v1183 = vmax.f32 %v927, 0.0
  %v1184 = vmax.f32 %v928, 0.0
  %v1185 = vmax.f32 %v929, 0.0
  %v1186 = vmax.f32 %v930, 0.0
  %v1187 = vmax.f32 %v931, 0.0
  %v1188 = vmax.f32 %v932, 0.0
  %v1189 = vmax.f32 %v933, 0.0
  %v1190 = vmax.f32 %v934, 0.0
  %v1191 = vmax.f32 %v935, 0.0
  %v1192 = vmax.f32 %v936, 0.0
  %v1193 = vmax.f32 %v937, 0.0
  %v1194 = vmax.f32 %v938, 0.0
  %v1195 = vmax.f32 %v939, 0.0
  %v1196 = vmax.f32 %v940, 0.0
  %v1197 = vmax.f32 %v941, 0.0
  %v1198 = vmax.f32 %v942, 0.0
  %v1199 = vmax.f32 %v943, 0.0
  %v1200 = vmax.f32 %v944, 0.0
  %v1201 = vmax.f32 %v945, 0.0
  %v1202 = vmax.f32 %v946, 0.0
  %v1203 = vmax.f32 %v947, 0.0
  %v1204 = vmax.f32 %v948, 0.0
  %v1205 = vmax.f32 %v949, 0.0
  %v1206 = vmax.f32 %v950, 0.0
  %v1207 = vmax.f32 %v951, 0.0
  %v1208 = vmax.f32 %v952, 0.0
  %v1209 = vmax.f32 %v953, 0.0
  %v1210 = vmax.f32 %v954, 0.0
  %v1211 = vmax.f32 %v955, 0.0
  %v1212 = vmax.f32 %v956, 0.0
  %v1213 = vmax.f32 %v957, 0.0
  %v1214 = vmax.f32 %v958, 0.0
  %v1215 = vmax.f32 %v959, 0.0
  %v1216 = vmax.f32 %v960, 0.0
  %v1217 = vmax.f32 %v961, 0.0
  %v1218 = vmax.f32 %v962, 0.0
  %v1219 = vmax.f32 %v963, 0.0
  %v1220 = vmax.f32 %v964, 0.0
  %v1221 = vmax.f32 %v965, 0.0
  %v1222 = vmax.f32 %v966, 0.0
  %v1223 = vmax.f32 %v967, 0.0
  %v1224 = vmax.f32 %v968, 0.0
  %v1225 = vmax.f32 %v969, 0.0
  %v1226 = vmax.f32 %v970, 0.0
  %v1227 = vmax.f32 %v971, 0.0
  %v1228 = vmax.f32 %v972, 0.0
  %v1229 = vmax.f32 %v973, 0.0
  %v1230 = vmax.f32 %v974, 0.0
  %v1231 = vmax.f32 %v975, 0.0
  %v1232 = vmax.f32 %v976, 0.0
  %v1233 = vmax.f32 %v977, 0.0
  %v1234 = vmax.f32 %v978, 0.0
  %v1235 = vmax.f32 %v979, 0.0
  %v1236 = vmax.f32 %v980, 0.0
  %v1237 = vmax.f32 %v981, 0.0
  %v1238 = vmax.f32 %v982, 0.0
  %v1239 = vmax.f32 %v983, 0.0
  %v1240 = vmax.f32 %v984, 0.0
  %v1241 = vmax.f32 %v985, 0.0
  %v1242 = vmax.f32 %v986, 0.0
  %v1243 = vmax.f32 %v987, 0.0
  %v1244 = vmax.f32 %v988, 0.0
  %v1245 = vmax.f32 %v989, 0.0
  %v1246 = vmax.f32 %v990, 0.0
  %v1247 = vmax.f32 %v991, 0.0
  %v1248 = vmax.f32 %v992, 0.0
  %v1249 = vmax.f32 %v993, 0.0
  %v1250 = vmax.f32 %v994, 0.0
  %v1251 = vmax.f32 %v995, 0.0
  %v1252 = vmax.f32 %v996, 0.0
  %v1253 = vmax.f32 %v997, 0.0
  %v1254 = vmax.f32 %v998, 0.0
  %v1255 = vmax.f32 %v999, 0.0
  %v1256 = vmax.f32 %v1000, 0.0
  %v1257 = vmax.f32 %v1001, 0.0
  %v1258 = vmax.f32 %v1002, 0.0
  %v1259 = vmax.f32 %v1003, 0.0
  %v1260 = vmax.f32 %v1004, 0.0
  %v1261 = vmax.f32 %v1005, 0.0
  %v1262 = vmax.f32 %v1006, 0.0
  %v1263 = vmax.f32 %v1007, 0.0
  %v1264 = vmax.f32 %v1008, 0.0
  %v1265 = vmax.f32 %v1009, 0.0
  %v1266 = vmax.f32 %v1010, 0.0
  %v1267 = vmax.f32 %v1011, 0.0
  %v1268 = vmax.f32 %v1012, 0.0
  %v1269 = vmax.f32 %v1013, 0.0
  %v1270 = vmax.f32 %v1014, 0.0
  %v1271 = vmax.f32 %v1015, 0.0
  %v1272 = vmax.f32 %v1016, 0.0
  %v1273 = vmax.f32 %v1017, 0.0
  %v1274 = vmax.f32 %v1018, 0.0
  %v1275 = vmax.f32 %v1019, 0.0
  %v1276 = vmax.f32 %v1020, 0.0
  %v1277 = vmax.f32 %v1021, 0.0
  %v1278 = vmax.f32 %v1022, 0.0
  %v1279 = vmax.f32 %v1023, 0.0
  %v1280 = vmax.f32 %v1024, 0.0
  %v1281 = vmax.f32 %v1025, 0.0
  %v1282 = vmax.f32 %v1026, 0.0
  %v1283 = vmax.f32 %v1027, 0.0
  %v1284 = vmax.f32 %v1028, 0.0
  %v1285 = vmax.f32 %v1029, 0.0
  %v1286 = vmax.f32 %v1030, 0.0
  %v1287 = vmax.f32 %v1031, 0.0
  %v1288 = vmax.f32 %v1032, 0.0
  %v1289 = vmax.f32 %v1033, 0.0
  %v1290 = vmax.f32 %v1034, 0.0
  %v1291 = vmax.f32 %v1035, 0.0
  %v1292 = vmax.f32 %v1036, 0.0
  %v1293 = vmax.f32 %v1037, 0.0
  %v1294 = vmax.f32 %v1038, 0.0
  %v1295 = vmax.f32 %v1039, 0.0
  %v1296 = vmax.f32 %v1040, 0.0
  %v1297 = vmax.f32 %v1041, 0.0
  %v1298 = vmax.f32 %v1042, 0.0
  %v1299 = vmax.f32 %v1043, 0.0
  %v1300 = vmax.f32 %v1044, 0.0
  %v1301 = vmax.f32 %v1045, 0.0
  %v1302 = vmax.f32 %v1046, 0.0
  %v1303 = vmax.f32 %v1047, 0.0
  %v1304 = vmax.f32 %v1048, 0.0
  %v1305 = vmax.f32 %v1049, 0.0
  %v1306 = vmax.f32 %v1050, 0.0
  %v1307 = vmax.f32 %v1051, 0.0
  %v1308 = vpack.c.bf16 %v1053, %v1052
  %v1309 = vpack.c.bf16 %v1055, %v1054
  %v1310 = vpack.c.bf16 %v1057, %v1056
  %v1311 = vpack.c.bf16 %v1059, %v1058
  %v1312 = vpack.c.bf16 %v1061, %v1060
  %v1313 = vpack.c.bf16 %v1063, %v1062
  %v1314 = vpack.c.bf16 %v1065, %v1064
  %v1315 = vpack.c.bf16 %v1067, %v1066
  %v1316 = vpack.c.bf16 %v1069, %v1068
  %v1317 = vpack.c.bf16 %v1071, %v1070
  %v1318 = vpack.c.bf16 %v1073, %v1072
  %v1319 = vpack.c.bf16 %v1075, %v1074
  %v1320 = vpack.c.bf16 %v1077, %v1076
  %v1321 = vpack.c.bf16 %v1079, %v1078
  %v1322 = vpack.c.bf16 %v1081, %v1080
  %v1323 = vpack.c.bf16 %v1083, %v1082
  %v1324 = vpack.c.bf16 %v1085, %v1084
  %v1325 = vpack.c.bf16 %v1087, %v1086
  %v1326 = vpack.c.bf16 %v1089, %v1088
  %v1327 = vpack.c.bf16 %v1091, %v1090
  %v1328 = vpack.c.bf16 %v1093, %v1092
  %v1329 = vpack.c.bf16 %v1095, %v1094
  %v1330 = vpack.c.bf16 %v1097, %v1096
  %v1331 = vpack.c.bf16 %v1099, %v1098
  %v1332 = vpack.c.bf16 %v1101, %v1100
  %v1333 = vpack.c.bf16 %v1103, %v1102
  %v1334 = vpack.c.bf16 %v1105, %v1104
  %v1335 = vpack.c.bf16 %v1107, %v1106
  %v1336 = vpack.c.bf16 %v1109, %v1108
  %v1337 = vpack.c.bf16 %v1111, %v1110
  %v1338 = vpack.c.bf16 %v1113, %v1112
  %v1339 = vpack.c.bf16 %v1115, %v1114
  %v1340 = vpack.c.bf16 %v1117, %v1116
  %v1341 = vpack.c.bf16 %v1119, %v1118
  %v1342 = vpack.c.bf16 %v1121, %v1120
  %v1343 = vpack.c.bf16 %v1123, %v1122
  %v1344 = vpack.c.bf16 %v1125, %v1124
  %v1345 = vpack.c.bf16 %v1127, %v1126
  %v1346 = vpack.c.bf16 %v1129, %v1128
  %v1347 = vpack.c.bf16 %v1131, %v1130
  %v1348 = vpack.c.bf16 %v1133, %v1132
  %v1349 = vpack.c.bf16 %v1135, %v1134
  %v1350 = vpack.c.bf16 %v1137, %v1136
  %v1351 = vpack.c.bf16 %v1139, %v1138
  %v1352 = vpack.c.bf16 %v1141, %v1140
  %v1353 = vpack.c.bf16 %v1143, %v1142
  %v1354 = vpack.c.bf16 %v1145, %v1144
  %v1355 = vpack.c.bf16 %v1147, %v1146
  %v1356 = vpack.c.bf16 %v1149, %v1148
  %v1357 = vpack.c.bf16 %v1151, %v1150
  %v1358 = vpack.c.bf16 %v1153, %v1152
  %v1359 = vpack.c.bf16 %v1155, %v1154
  %v1360 = vpack.c.bf16 %v1157, %v1156
  %v1361 = vpack.c.bf16 %v1159, %v1158
  %v1362 = vpack.c.bf16 %v1161, %v1160
  %v1363 = vpack.c.bf16 %v1163, %v1162
  %v1364 = vpack.c.bf16 %v1165, %v1164
  %v1365 = vpack.c.bf16 %v1167, %v1166
  %v1366 = vpack.c.bf16 %v1169, %v1168
  %v1367 = vpack.c.bf16 %v1171, %v1170
  %v1368 = vpack.c.bf16 %v1173, %v1172
  %v1369 = vpack.c.bf16 %v1175, %v1174
  %v1370 = vpack.c.bf16 %v1177, %v1176
  %v1371 = vpack.c.bf16 %v1179, %v1178
  %v1372 = vpack.c.bf16 %v1181, %v1180
  %v1373 = vpack.c.bf16 %v1183, %v1182
  %v1374 = vpack.c.bf16 %v1185, %v1184
  %v1375 = vpack.c.bf16 %v1187, %v1186
  %v1376 = vpack.c.bf16 %v1189, %v1188
  %v1377 = vpack.c.bf16 %v1191, %v1190
  %v1378 = vpack.c.bf16 %v1193, %v1192
  %v1379 = vpack.c.bf16 %v1195, %v1194
  %v1380 = vpack.c.bf16 %v1197, %v1196
  %v1381 = vpack.c.bf16 %v1199, %v1198
  %v1382 = vpack.c.bf16 %v1201, %v1200
  %v1383 = vpack.c.bf16 %v1203, %v1202
  %v1384 = vpack.c.bf16 %v1205, %v1204
  %v1385 = vpack.c.bf16 %v1207, %v1206
  %v1386 = vpack.c.bf16 %v1209, %v1208
  %v1387 = vpack.c.bf16 %v1211, %v1210
  %v1388 = vpack.c.bf16 %v1213, %v1212
  %v1389 = vpack.c.bf16 %v1215, %v1214
  %v1390 = vpack.c.bf16 %v1217, %v1216
  %v1391 = vpack.c.bf16 %v1219, %v1218
  %v1392 = vpack.c.bf16 %v1221, %v1220
  %v1393 = vpack.c.bf16 %v1223, %v1222
  %v1394 = vpack.c.bf16 %v1225, %v1224
  %v1395 = vpack.c.bf16 %v1227, %v1226
  %v1396 = vpack.c.bf16 %v1229, %v1228
  %v1397 = vpack.c.bf16 %v1231, %v1230
  %v1398 = vpack.c.bf16 %v1233, %v1232
  %v1399 = vpack.c.bf16 %v1235, %v1234
  %v1400 = vpack.c.bf16 %v1237, %v1236
  %v1401 = vpack.c.bf16 %v1239, %v1238
  %v1402 = vpack.c.bf16 %v1241, %v1240
  %v1403 = vpack.c.bf16 %v1243, %v1242
  %v1404 = vpack.c.bf16 %v1245, %v1244
  %v1405 = vpack.c.bf16 %v1247, %v1246
  %v1406 = vpack.c.bf16 %v1249, %v1248
  %v1407 = vpack.c.bf16 %v1251, %v1250
  %v1408 = vpack.c.bf16 %v1253, %v1252
  %v1409 = vpack.c.bf16 %v1255, %v1254
  %v1410 = vpack.c.bf16 %v1257, %v1256
  %v1411 = vpack.c.bf16 %v1259, %v1258
  %v1412 = vpack.c.bf16 %v1261, %v1260
  %v1413 = vpack.c.bf16 %v1263, %v1262
  %v1414 = vpack.c.bf16 %v1265, %v1264
  %v1415 = vpack.c.bf16 %v1267, %v1266
  %v1416 = vpack.c.bf16 %v1269, %v1268
  %v1417 = vpack.c.bf16 %v1271, %v1270
  %v1418 = vpack.c.bf16 %v1273, %v1272
  %v1419 = vpack.c.bf16 %v1275, %v1274
  %v1420 = vpack.c.bf16 %v1277, %v1276
  %v1421 = vpack.c.bf16 %v1279, %v1278
  %v1422 = vpack.c.bf16 %v1281, %v1280
  %v1423 = vpack.c.bf16 %v1283, %v1282
  %v1424 = vpack.c.bf16 %v1285, %v1284
  %v1425 = vpack.c.bf16 %v1287, %v1286
  %v1426 = vpack.c.bf16 %v1289, %v1288
  %v1427 = vpack.c.bf16 %v1291, %v1290
  %v1428 = vpack.c.bf16 %v1293, %v1292
  %v1429 = vpack.c.bf16 %v1295, %v1294
  %v1430 = vpack.c.bf16 %v1297, %v1296
  %v1431 = vpack.c.bf16 %v1299, %v1298
  %v1432 = vpack.c.bf16 %v1301, %v1300
  %v1433 = vpack.c.bf16 %v1303, %v1302
  %v1434 = vpack.c.bf16 %v1305, %v1304
  %v1435 = vpack.c.bf16 %v1307, %v1306
  %v1564 = vunpack.c.l.b16 %v1308
  %v1565 = vunpack.c.h.b16 %v1308
  %v1566 = vunpack.c.l.b16 %v1309
  %v1567 = vunpack.c.h.b16 %v1309
  %v1568 = vunpack.c.l.b16 %v1310
  %v1569 = vunpack.c.h.b16 %v1310
  %v1570 = vunpack.c.l.b16 %v1311
  %v1571 = vunpack.c.h.b16 %v1311
  %v1572 = vunpack.c.l.b16 %v1312
  %v1573 = vunpack.c.h.b16 %v1312
  %v1574 = vunpack.c.l.b16 %v1313
  %v1575 = vunpack.c.h.b16 %v1313
  %v1576 = vunpack.c.l.b16 %v1314
  %v1577 = vunpack.c.h.b16 %v1314
  %v1578 = vunpack.c.l.b16 %v1315
  %v1579 = vunpack.c.h.b16 %v1315
  %v1580 = vunpack.c.l.b16 %v1316
  %v1581 = vunpack.c.h.b16 %v1316
  %v1582 = vunpack.c.l.b16 %v1317
  %v1583 = vunpack.c.h.b16 %v1317
  %v1584 = vunpack.c.l.b16 %v1318
  %v1585 = vunpack.c.h.b16 %v1318
  %v1586 = vunpack.c.l.b16 %v1319
  %v1587 = vunpack.c.h.b16 %v1319
  %v1588 = vunpack.c.l.b16 %v1320
  %v1589 = vunpack.c.h.b16 %v1320
  %v1590 = vunpack.c.l.b16 %v1321
  %v1591 = vunpack.c.h.b16 %v1321
  %v1592 = vunpack.c.l.b16 %v1322
  %v1593 = vunpack.c.h.b16 %v1322
  %v1594 = vunpack.c.l.b16 %v1323
  %v1595 = vunpack.c.h.b16 %v1323
  %v1596 = vunpack.c.l.b16 %v1324
  %v1597 = vunpack.c.h.b16 %v1324
  %v1598 = vunpack.c.l.b16 %v1325
  %v1599 = vunpack.c.h.b16 %v1325
  %v1600 = vunpack.c.l.b16 %v1326
  %v1601 = vunpack.c.h.b16 %v1326
  %v1602 = vunpack.c.l.b16 %v1327
  %v1603 = vunpack.c.h.b16 %v1327
  %v1604 = vunpack.c.l.b16 %v1328
  %v1605 = vunpack.c.h.b16 %v1328
  %v1606 = vunpack.c.l.b16 %v1329
  %v1607 = vunpack.c.h.b16 %v1329
  %v1608 = vunpack.c.l.b16 %v1330
  %v1609 = vunpack.c.h.b16 %v1330
  %v1610 = vunpack.c.l.b16 %v1331
  %v1611 = vunpack.c.h.b16 %v1331
  %v1612 = vunpack.c.l.b16 %v1332
  %v1613 = vunpack.c.h.b16 %v1332
  %v1614 = vunpack.c.l.b16 %v1333
  %v1615 = vunpack.c.h.b16 %v1333
  %v1616 = vunpack.c.l.b16 %v1334
  %v1617 = vunpack.c.h.b16 %v1334
  %v1618 = vunpack.c.l.b16 %v1335
  %v1619 = vunpack.c.h.b16 %v1335
  %v1620 = vunpack.c.l.b16 %v1336
  %v1621 = vunpack.c.h.b16 %v1336
  %v1622 = vunpack.c.l.b16 %v1337
  %v1623 = vunpack.c.h.b16 %v1337
  %v1624 = vunpack.c.l.b16 %v1338
  %v1625 = vunpack.c.h.b16 %v1338
  %v1626 = vunpack.c.l.b16 %v1339
  %v1627 = vunpack.c.h.b16 %v1339
  %v1628 = vunpack.c.l.b16 %v1340
  %v1629 = vunpack.c.h.b16 %v1340
  %v1630 = vunpack.c.l.b16 %v1341
  %v1631 = vunpack.c.h.b16 %v1341
  %v1632 = vunpack.c.l.b16 %v1342
  %v1633 = vunpack.c.h.b16 %v1342
  %v1634 = vunpack.c.l.b16 %v1343
  %v1635 = vunpack.c.h.b16 %v1343
  %v1636 = vunpack.c.l.b16 %v1344
  %v1637 = vunpack.c.h.b16 %v1344
  %v1638 = vunpack.c.l.b16 %v1345
  %v1639 = vunpack.c.h.b16 %v1345
  %v1640 = vunpack.c.l.b16 %v1346
  %v1641 = vunpack.c.h.b16 %v1346
  %v1642 = vunpack.c.l.b16 %v1347
  %v1643 = vunpack.c.h.b16 %v1347
  %v1644 = vunpack.c.l.b16 %v1348
  %v1645 = vunpack.c.h.b16 %v1348
  %v1646 = vunpack.c.l.b16 %v1349
  %v1647 = vunpack.c.h.b16 %v1349
  %v1648 = vunpack.c.l.b16 %v1350
  %v1649 = vunpack.c.h.b16 %v1350
  %v1650 = vunpack.c.l.b16 %v1351
  %v1651 = vunpack.c.h.b16 %v1351
  %v1652 = vunpack.c.l.b16 %v1352
  %v1653 = vunpack.c.h.b16 %v1352
  %v1654 = vunpack.c.l.b16 %v1353
  %v1655 = vunpack.c.h.b16 %v1353
  %v1656 = vunpack.c.l.b16 %v1354
  %v1657 = vunpack.c.h.b16 %v1354
  %v1658 = vunpack.c.l.b16 %v1355
  %v1659 = vunpack.c.h.b16 %v1355
  %v1660 = vunpack.c.l.b16 %v1356
  %v1661 = vunpack.c.h.b16 %v1356
  %v1662 = vunpack.c.l.b16 %v1357
  %v1663 = vunpack.c.h.b16 %v1357
  %v1664 = vunpack.c.l.b16 %v1358
  %v1665 = vunpack.c.h.b16 %v1358
  %v1666 = vunpack.c.l.b16 %v1359
  %v1667 = vunpack.c.h.b16 %v1359
  %v1668 = vunpack.c.l.b16 %v1360
  %v1669 = vunpack.c.h.b16 %v1360
  %v1670 = vunpack.c.l.b16 %v1361
  %v1671 = vunpack.c.h.b16 %v1361
  %v1672 = vunpack.c.l.b16 %v1362
  %v1673 = vunpack.c.h.b16 %v1362
  %v1674 = vunpack.c.l.b16 %v1363
  %v1675 = vunpack.c.h.b16 %v1363
  %v1676 = vunpack.c.l.b16 %v1364
  %v1677 = vunpack.c.h.b16 %v1364
  %v1678 = vunpack.c.l.b16 %v1365
  %v1679 = vunpack.c.h.b16 %v1365
  %v1680 = vunpack.c.l.b16 %v1366
  %v1681 = vunpack.c.h.b16 %v1366
  %v1682 = vunpack.c.l.b16 %v1367
  %v1683 = vunpack.c.h.b16 %v1367
  %v1684 = vunpack.c.l.b16 %v1368
  %v1685 = vunpack.c.h.b16 %v1368
  %v1686 = vunpack.c.l.b16 %v1369
  %v1687 = vunpack.c.h.b16 %v1369
  %v1688 = vunpack.c.l.b16 %v1370
  %v1689 = vunpack.c.h.b16 %v1370
  %v1690 = vunpack.c.l.b16 %v1371
  %v1691 = vunpack.c.h.b16 %v1371
  %v1692 = vunpack.c.l.b16 %v1372
  %v1693 = vunpack.c.h.b16 %v1372
  %v1694 = vunpack.c.l.b16 %v1373
  %v1695 = vunpack.c.h.b16 %v1373
  %v1696 = vunpack.c.l.b16 %v1374
  %v1697 = vunpack.c.h.b16 %v1374
  %v1698 = vunpack.c.l.b16 %v1375
  %v1699 = vunpack.c.h.b16 %v1375
  %v1700 = vunpack.c.l.b16 %v1376
  %v1701 = vunpack.c.h.b16 %v1376
  %v1702 = vunpack.c.l.b16 %v1377
  %v1703 = vunpack.c.h.b16 %v1377
  %v1704 = vunpack.c.l.b16 %v1378
  %v1705 = vunpack.c.h.b16 %v1378
  %v1706 = vunpack.c.l.b16 %v1379
  %v1707 = vunpack.c.h.b16 %v1379
  %v1708 = vunpack.c.l.b16 %v1380
  %v1709 = vunpack.c.h.b16 %v1380
  %v1710 = vunpack.c.l.b16 %v1381
  %v1711 = vunpack.c.h.b16 %v1381
  %v1712 = vunpack.c.l.b16 %v1382
  %v1713 = vunpack.c.h.b16 %v1382
  %v1714 = vunpack.c.l.b16 %v1383
  %v1715 = vunpack.c.h.b16 %v1383
  %v1716 = vunpack.c.l.b16 %v1384
  %v1717 = vunpack.c.h.b16 %v1384
  %v1718 = vunpack.c.l.b16 %v1385
  %v1719 = vunpack.c.h.b16 %v1385
  %v1720 = vunpack.c.l.b16 %v1386
  %v1721 = vunpack.c.h.b16 %v1386
  %v1722 = vunpack.c.l.b16 %v1387
  %v1723 = vunpack.c.h.b16 %v1387
  %v1724 = vunpack.c.l.b16 %v1388
  %v1725 = vunpack.c.h.b16 %v1388
  %v1726 = vunpack.c.l.b16 %v1389
  %v1727 = vunpack.c.h.b16 %v1389
  %v1728 = vunpack.c.l.b16 %v1390
  %v1729 = vunpack.c.h.b16 %v1390
  %v1730 = vunpack.c.l.b16 %v1391
  %v1731 = vunpack.c.h.b16 %v1391
  %v1732 = vunpack.c.l.b16 %v1392
  %v1733 = vunpack.c.h.b16 %v1392
  %v1734 = vunpack.c.l.b16 %v1393
  %v1735 = vunpack.c.h.b16 %v1393
  %v1736 = vunpack.c.l.b16 %v1394
  %v1737 = vunpack.c.h.b16 %v1394
  %v1738 = vunpack.c.l.b16 %v1395
  %v1739 = vunpack.c.h.b16 %v1395
  %v1740 = vunpack.c.l.b16 %v1396
  %v1741 = vunpack.c.h.b16 %v1396
  %v1742 = vunpack.c.l.b16 %v1397
  %v1743 = vunpack.c.h.b16 %v1397
  %v1744 = vunpack.c.l.b16 %v1398
  %v1745 = vunpack.c.h.b16 %v1398
  %v1746 = vunpack.c.l.b16 %v1399
  %v1747 = vunpack.c.h.b16 %v1399
  %v1748 = vunpack.c.l.b16 %v1400
  %v1749 = vunpack.c.h.b16 %v1400
  %v1750 = vunpack.c.l.b16 %v1401
  %v1751 = vunpack.c.h.b16 %v1401
  %v1752 = vunpack.c.l.b16 %v1402
  %v1753 = vunpack.c.h.b16 %v1402
  %v1754 = vunpack.c.l.b16 %v1403
  %v1755 = vunpack.c.h.b16 %v1403
  %v1756 = vunpack.c.l.b16 %v1404
  %v1757 = vunpack.c.h.b16 %v1404
  %v1758 = vunpack.c.l.b16 %v1405
  %v1759 = vunpack.c.h.b16 %v1405
  %v1760 = vunpack.c.l.b16 %v1406
  %v1761 = vunpack.c.h.b16 %v1406
  %v1762 = vunpack.c.l.b16 %v1407
  %v1763 = vunpack.c.h.b16 %v1407
  %v1764 = vunpack.c.l.b16 %v1408
  %v1765 = vunpack.c.h.b16 %v1408
  %v1766 = vunpack.c.l.b16 %v1409
  %v1767 = vunpack.c.h.b16 %v1409
  %v1768 = vunpack.c.l.b16 %v1410
  %v1769 = vunpack.c.h.b16 %v1410
  %v1770 = vunpack.c.l.b16 %v1411
  %v1771 = vunpack.c.h.b16 %v1411
  %v1772 = vunpack.c.l.b16 %v1412
  %v1773 = vunpack.c.h.b16 %v1412
  %v1774 = vunpack.c.l.b16 %v1413
  %v1775 = vunpack.c.h.b16 %v1413
  %v1776 = vunpack.c.l.b16 %v1414
  %v1777 = vunpack.c.h.b16 %v1414
  %v1778 = vunpack.c.l.b16 %v1415
  %v1779 = vunpack.c.h.b16 %v1415
  %v1780 = vunpack.c.l.b16 %v1416
  %v1781 = vunpack.c.h.b16 %v1416
  %v1782 = vunpack.c.l.b16 %v1417
  %v1783 = vunpack.c.h.b16 %v1417
  %v1784 = vunpack.c.l.b16 %v1418
  %v1785 = vunpack.c.h.b16 %v1418
  %v1786 = vunpack.c.l.b16 %v1419
  %v1787 = vunpack.c.h.b16 %v1419
  %v1788 = vunpack.c.l.b16 %v1420
  %v1789 = vunpack.c.h.b16 %v1420
  %v1790 = vunpack.c.l.b16 %v1421
  %v1791 = vunpack.c.h.b16 %v1421
  %v1792 = vunpack.c.l.b16 %v1422
  %v1793 = vunpack.c.h.b16 %v1422
  %v1794 = vunpack.c.l.b16 %v1423
  %v1795 = vunpack.c.h.b16 %v1423
  %v1796 = vunpack.c.l.b16 %v1424
  %v1797 = vunpack.c.h.b16 %v1424
  %v1798 = vunpack.c.l.b16 %v1425
  %v1799 = vunpack.c.h.b16 %v1425
  %v1800 = vunpack.c.l.b16 %v1426
  %v1801 = vunpack.c.h.b16 %v1426
  %v1802 = vunpack.c.l.b16 %v1427
  %v1803 = vunpack.c.h.b16 %v1427
  %v1804 = vunpack.c.l.b16 %v1428
  %v1805 = vunpack.c.h.b16 %v1428
  %v1806 = vunpack.c.l.b16 %v1429
  %v1807 = vunpack.c.h.b16 %v1429
  %v1808 = vunpack.c.l.b16 %v1430
  %v1809 = vunpack.c.h.b16 %v1430
  %v1810 = vunpack.c.l.b16 %v1431
  %v1811 = vunpack.c.h.b16 %v1431
  %v1812 = vunpack.c.l.b16 %v1432
  %v1813 = vunpack.c.h.b16 %v1432
  %v1814 = vunpack.c.l.b16 %v1433
  %v1815 = vunpack.c.h.b16 %v1433
  %v1816 = vunpack.c.l.b16 %v1434
  %v1817 = vunpack.c.h.b16 %v1434
  %v1818 = vunpack.c.l.b16 %v1435
  %v1819 = vunpack.c.h.b16 %v1435
  %v1820 = vpack.c.b16 %v1564, %v1564
  %v1821 = vpack.c.b16 %v1565, %v1565
  %v1822 = vpack.c.b16 %v1566, %v1566
  %v1823 = vpack.c.b16 %v1567, %v1567
  %v1824 = vpack.c.b16 %v1568, %v1568
  %v1825 = vpack.c.b16 %v1569, %v1569
  %v1826 = vpack.c.b16 %v1570, %v1570
  %v1827 = vpack.c.b16 %v1571, %v1571
  %v1828 = vpack.c.b16 %v1572, %v1572
  %v1829 = vpack.c.b16 %v1573, %v1573
  %v1830 = vpack.c.b16 %v1574, %v1574
  %v1831 = vpack.c.b16 %v1575, %v1575
  %v1832 = vpack.c.b16 %v1576, %v1576
  %v1833 = vpack.c.b16 %v1577, %v1577
  %v1834 = vpack.c.b16 %v1578, %v1578
  %v1835 = vpack.c.b16 %v1579, %v1579
  %v1836 = vpack.c.b16 %v1580, %v1580
  %v1837 = vpack.c.b16 %v1581, %v1581
  %v1838 = vpack.c.b16 %v1582, %v1582
  %v1839 = vpack.c.b16 %v1583, %v1583
  %v1840 = vpack.c.b16 %v1584, %v1584
  %v1841 = vpack.c.b16 %v1585, %v1585
  %v1842 = vpack.c.b16 %v1586, %v1586
  %v1843 = vpack.c.b16 %v1587, %v1587
  %v1844 = vpack.c.b16 %v1588, %v1588
  %v1845 = vpack.c.b16 %v1589, %v1589
  %v1846 = vpack.c.b16 %v1590, %v1590
  %v1847 = vpack.c.b16 %v1591, %v1591
  %v1848 = vpack.c.b16 %v1592, %v1592
  %v1849 = vpack.c.b16 %v1593, %v1593
  %v1850 = vpack.c.b16 %v1594, %v1594
  %v1851 = vpack.c.b16 %v1595, %v1595
  %v1852 = vpack.c.b16 %v1596, %v1596
  %v1853 = vpack.c.b16 %v1597, %v1597
  %v1854 = vpack.c.b16 %v1598, %v1598
  %v1855 = vpack.c.b16 %v1599, %v1599
  %v1856 = vpack.c.b16 %v1600, %v1600
  %v1857 = vpack.c.b16 %v1601, %v1601
  %v1858 = vpack.c.b16 %v1602, %v1602
  %v1859 = vpack.c.b16 %v1603, %v1603
  %v1860 = vpack.c.b16 %v1604, %v1604
  %v1861 = vpack.c.b16 %v1605, %v1605
  %v1862 = vpack.c.b16 %v1606, %v1606
  %v1863 = vpack.c.b16 %v1607, %v1607
  %v1864 = vpack.c.b16 %v1608, %v1608
  %v1865 = vpack.c.b16 %v1609, %v1609
  %v1866 = vpack.c.b16 %v1610, %v1610
  %v1867 = vpack.c.b16 %v1611, %v1611
  %v1868 = vpack.c.b16 %v1612, %v1612
  %v1869 = vpack.c.b16 %v1613, %v1613
  %v1870 = vpack.c.b16 %v1614, %v1614
  %v1871 = vpack.c.b16 %v1615, %v1615
  %v1872 = vpack.c.b16 %v1616, %v1616
  %v1873 = vpack.c.b16 %v1617, %v1617
  %v1874 = vpack.c.b16 %v1618, %v1618
  %v1875 = vpack.c.b16 %v1619, %v1619
  %v1876 = vpack.c.b16 %v1620, %v1620
  %v1877 = vpack.c.b16 %v1621, %v1621
  %v1878 = vpack.c.b16 %v1622, %v1622
  %v1879 = vpack.c.b16 %v1623, %v1623
  %v1880 = vpack.c.b16 %v1624, %v1624
  %v1881 = vpack.c.b16 %v1625, %v1625
  %v1882 = vpack.c.b16 %v1626, %v1626
  %v1883 = vpack.c.b16 %v1627, %v1627
  %v1884 = vpack.c.b16 %v1628, %v1628
  %v1885 = vpack.c.b16 %v1629, %v1629
  %v1886 = vpack.c.b16 %v1630, %v1630
  %v1887 = vpack.c.b16 %v1631, %v1631
  %v1888 = vpack.c.b16 %v1632, %v1632
  %v1889 = vpack.c.b16 %v1633, %v1633
  %v1890 = vpack.c.b16 %v1634, %v1634
  %v1891 = vpack.c.b16 %v1635, %v1635
  %v1892 = vpack.c.b16 %v1636, %v1636
  %v1893 = vpack.c.b16 %v1637, %v1637
  %v1894 = vpack.c.b16 %v1638, %v1638
  %v1895 = vpack.c.b16 %v1639, %v1639
  %v1896 = vpack.c.b16 %v1640, %v1640
  %v1897 = vpack.c.b16 %v1641, %v1641
  %v1898 = vpack.c.b16 %v1642, %v1642
  %v1899 = vpack.c.b16 %v1643, %v1643
  %v1900 = vpack.c.b16 %v1644, %v1644
  %v1901 = vpack.c.b16 %v1645, %v1645
  %v1902 = vpack.c.b16 %v1646, %v1646
  %v1903 = vpack.c.b16 %v1647, %v1647
  %v1904 = vpack.c.b16 %v1648, %v1648
  %v1905 = vpack.c.b16 %v1649, %v1649
  %v1906 = vpack.c.b16 %v1650, %v1650
  %v1907 = vpack.c.b16 %v1651, %v1651
  %v1908 = vpack.c.b16 %v1652, %v1652
  %v1909 = vpack.c.b16 %v1653, %v1653
  %v1910 = vpack.c.b16 %v1654, %v1654
  %v1911 = vpack.c.b16 %v1655, %v1655
  %v1912 = vpack.c.b16 %v1656, %v1656
  %v1913 = vpack.c.b16 %v1657, %v1657
  %v1914 = vpack.c.b16 %v1658, %v1658
  %v1915 = vpack.c.b16 %v1659, %v1659
  %v1916 = vpack.c.b16 %v1660, %v1660
  %v1917 = vpack.c.b16 %v1661, %v1661
  %v1918 = vpack.c.b16 %v1662, %v1662
  %v1919 = vpack.c.b16 %v1663, %v1663
  %v1920 = vpack.c.b16 %v1664, %v1664
  %v1921 = vpack.c.b16 %v1665, %v1665
  %v1922 = vpack.c.b16 %v1666, %v1666
  %v1923 = vpack.c.b16 %v1667, %v1667
  %v1924 = vpack.c.b16 %v1668, %v1668
  %v1925 = vpack.c.b16 %v1669, %v1669
  %v1926 = vpack.c.b16 %v1670, %v1670
  %v1927 = vpack.c.b16 %v1671, %v1671
  %v1928 = vpack.c.b16 %v1672, %v1672
  %v1929 = vpack.c.b16 %v1673, %v1673
  %v1930 = vpack.c.b16 %v1674, %v1674
  %v1931 = vpack.c.b16 %v1675, %v1675
  %v1932 = vpack.c.b16 %v1676, %v1676
  %v1933 = vpack.c.b16 %v1677, %v1677
  %v1934 = vpack.c.b16 %v1678, %v1678
  %v1935 = vpack.c.b16 %v1679, %v1679
  %v1936 = vpack.c.b16 %v1680, %v1680
  %v1937 = vpack.c.b16 %v1681, %v1681
  %v1938 = vpack.c.b16 %v1682, %v1682
  %v1939 = vpack.c.b16 %v1683, %v1683
  %v1940 = vpack.c.b16 %v1684, %v1684
  %v1941 = vpack.c.b16 %v1685, %v1685
  %v1942 = vpack.c.b16 %v1686, %v1686
  %v1943 = vpack.c.b16 %v1687, %v1687
  %v1944 = vpack.c.b16 %v1688, %v1688
  %v1945 = vpack.c.b16 %v1689, %v1689
  %v1946 = vpack.c.b16 %v1690, %v1690
  %v1947 = vpack.c.b16 %v1691, %v1691
  %v1948 = vpack.c.b16 %v1692, %v1692
  %v1949 = vpack.c.b16 %v1693, %v1693
  %v1950 = vpack.c.b16 %v1694, %v1694
  %v1951 = vpack.c.b16 %v1695, %v1695
  %v1952 = vpack.c.b16 %v1696, %v1696
  %v1953 = vpack.c.b16 %v1697, %v1697
  %v1954 = vpack.c.b16 %v1698, %v1698
  %v1955 = vpack.c.b16 %v1699, %v1699
  %v1956 = vpack.c.b16 %v1700, %v1700
  %v1957 = vpack.c.b16 %v1701, %v1701
  %v1958 = vpack.c.b16 %v1702, %v1702
  %v1959 = vpack.c.b16 %v1703, %v1703
  %v1960 = vpack.c.b16 %v1704, %v1704
  %v1961 = vpack.c.b16 %v1705, %v1705
  %v1962 = vpack.c.b16 %v1706, %v1706
  %v1963 = vpack.c.b16 %v1707, %v1707
  %v1964 = vpack.c.b16 %v1708, %v1708
  %v1965 = vpack.c.b16 %v1709, %v1709
  %v1966 = vpack.c.b16 %v1710, %v1710
  %v1967 = vpack.c.b16 %v1711, %v1711
  %v1968 = vpack.c.b16 %v1712, %v1712
  %v1969 = vpack.c.b16 %v1713, %v1713
  %v1970 = vpack.c.b16 %v1714, %v1714
  %v1971 = vpack.c.b16 %v1715, %v1715
  %v1972 = vpack.c.b16 %v1716, %v1716
  %v1973 = vpack.c.b16 %v1717, %v1717
  %v1974 = vpack.c.b16 %v1718, %v1718
  %v1975 = vpack.c.b16 %v1719, %v1719
  %v1976 = vpack.c.b16 %v1720, %v1720
  %v1977 = vpack.c.b16 %v1721, %v1721
  %v1978 = vpack.c.b16 %v1722, %v1722
  %v1979 = vpack.c.b16 %v1723, %v1723
  %v1980 = vpack.c.b16 %v1724, %v1724
  %v1981 = vpack.c.b16 %v1725, %v1725
  %v1982 = vpack.c.b16 %v1726, %v1726
  %v1983 = vpack.c.b16 %v1727, %v1727
  %v1984 = vpack.c.b16 %v1728, %v1728
  %v1985 = vpack.c.b16 %v1729, %v1729
  %v1986 = vpack.c.b16 %v1730, %v1730
  %v1987 = vpack.c.b16 %v1731, %v1731
  %v1988 = vpack.c.b16 %v1732, %v1732
  %v1989 = vpack.c.b16 %v1733, %v1733
  %v1990 = vpack.c.b16 %v1734, %v1734
  %v1991 = vpack.c.b16 %v1735, %v1735
  %v1992 = vpack.c.b16 %v1736, %v1736
  %v1993 = vpack.c.b16 %v1737, %v1737
  %v1994 = vpack.c.b16 %v1738, %v1738
  %v1995 = vpack.c.b16 %v1739, %v1739
  %v1996 = vpack.c.b16 %v1740, %v1740
  %v1997 = vpack.c.b16 %v1741, %v1741
  %v1998 = vpack.c.b16 %v1742, %v1742
  %v1999 = vpack.c.b16 %v1743, %v1743
  %v2000 = vpack.c.b16 %v1744, %v1744
  %v2001 = vpack.c.b16 %v1745, %v1745
  %v2002 = vpack.c.b16 %v1746, %v1746
  %v2003 = vpack.c.b16 %v1747, %v1747
  %v2004 = vpack.c.b16 %v1748, %v1748
  %v2005 = vpack.c.b16 %v1749, %v1749
  %v2006 = vpack.c.b16 %v1750, %v1750
  %v2007 = vpack.c.b16 %v1751, %v1751
  %v2008 = vpack.c.b16 %v1752, %v1752
  %v2009 = vpack.c.b16 %v1753, %v1753
  %v2010 = vpack.c.b16 %v1754, %v1754
  %v2011 = vpack.c.b16 %v1755, %v1755
  %v2012 = vpack.c.b16 %v1756, %v1756
  %v2013 = vpack.c.b16 %v1757, %v1757
  %v2014 = vpack.c.b16 %v1758, %v1758
  %v2015 = vpack.c.b16 %v1759, %v1759
  %v2016 = vpack.c.b16 %v1760, %v1760
  %v2017 = vpack.c.b16 %v1761, %v1761
  %v2018 = vpack.c.b16 %v1762, %v1762
  %v2019 = vpack.c.b16 %v1763, %v1763
  %v2020 = vpack.c.b16 %v1764, %v1764
  %v2021 = vpack.c.b16 %v1765, %v1765
  %v2022 = vpack.c.b16 %v1766, %v1766
  %v2023 = vpack.c.b16 %v1767, %v1767
  %v2024 = vpack.c.b16 %v1768, %v1768
  %v2025 = vpack.c.b16 %v1769, %v1769
  %v2026 = vpack.c.b16 %v1770, %v1770
  %v2027 = vpack.c.b16 %v1771, %v1771
  %v2028 = vpack.c.b16 %v1772, %v1772
  %v2029 = vpack.c.b16 %v1773, %v1773
  %v2030 = vpack.c.b16 %v1774, %v1774
  %v2031 = vpack.c.b16 %v1775, %v1775
  %v2032 = vpack.c.b16 %v1776, %v1776
  %v2033 = vpack.c.b16 %v1777, %v1777
  %v2034 = vpack.c.b16 %v1778, %v1778
  %v2035 = vpack.c.b16 %v1779, %v1779
  %v2036 = vpack.c.b16 %v1780, %v1780
  %v2037 = vpack.c.b16 %v1781, %v1781
  %v2038 = vpack.c.b16 %v1782, %v1782
  %v2039 = vpack.c.b16 %v1783, %v1783
  %v2040 = vpack.c.b16 %v1784, %v1784
  %v2041 = vpack.c.b16 %v1785, %v1785
  %v2042 = vpack.c.b16 %v1786, %v1786
  %v2043 = vpack.c.b16 %v1787, %v1787
  %v2044 = vpack.c.b16 %v1788, %v1788
  %v2045 = vpack.c.b16 %v1789, %v1789
  %v2046 = vpack.c.b16 %v1790, %v1790
  %v2047 = vpack.c.b16 %v1791, %v1791
  %v2048 = vpack.c.b16 %v1792, %v1792
  %v2049 = vpack.c.b16 %v1793, %v1793
  %v2050 = vpack.c.b16 %v1794, %v1794
  %v2051 = vpack.c.b16 %v1795, %v1795
  %v2052 = vpack.c.b16 %v1796, %v1796
  %v2053 = vpack.c.b16 %v1797, %v1797
  %v2054 = vpack.c.b16 %v1798, %v1798
  %v2055 = vpack.c.b16 %v1799, %v1799
  %v2056 = vpack.c.b16 %v1800, %v1800
  %v2057 = vpack.c.b16 %v1801, %v1801
  %v2058 = vpack.c.b16 %v1802, %v1802
  %v2059 = vpack.c.b16 %v1803, %v1803
  %v2060 = vpack.c.b16 %v1804, %v1804
  %v2061 = vpack.c.b16 %v1805, %v1805
  %v2062 = vpack.c.b16 %v1806, %v1806
  %v2063 = vpack.c.b16 %v1807, %v1807
  %v2064 = vpack.c.b16 %v1808, %v1808
  %v2065 = vpack.c.b16 %v1809, %v1809
  %v2066 = vpack.c.b16 %v1810, %v1810
  %v2067 = vpack.c.b16 %v1811, %v1811
  %v2068 = vpack.c.b16 %v1812, %v1812
  %v2069 = vpack.c.b16 %v1813, %v1813
  %v2070 = vpack.c.b16 %v1814, %v1814
  %v2071 = vpack.c.b16 %v1815, %v1815
  %v2072 = vpack.c.b16 %v1816, %v1816
  %v2073 = vpack.c.b16 %v1817, %v1817
  %v2074 = vpack.c.b16 %v1818, %v1818
  %v2075 = vpack.c.b16 %v1819, %v1819
  %2332 = vst [vmem:[%s3] sm:$0xf] %v1820
  %2333 = vst [vmem:[%s3 + $0x4] sm:$0xf] %v1821
  %2334 = vst [vmem:[%s3 + $0x8] sm:$0xf] %v1822
  %2335 = vst [vmem:[%s3 + $0xc] sm:$0xf] %v1823
  %2336 = vst [vmem:[%s3 + $0x10] sm:$0xf] %v1824
  %2337 = vst [vmem:[%s3 + $0x14] sm:$0xf] %v1825
  %2338 = vst [vmem:[%s3 + $0x18] sm:$0xf] %v1826
  %2339 = vst [vmem:[%s3 + $0x1c] sm:$0xf] %v1827
  %2340 = vst [vmem:[%s3 + $0x20] sm:$0xf] %v1828
  %2341 = vst [vmem:[%s3 + $0x24] sm:$0xf] %v1829
  %2342 = vst [vmem:[%s3 + $0x28] sm:$0xf] %v1830
  %2343 = vst [vmem:[%s3 + $0x2c] sm:$0xf] %v1831
  %2344 = vst [vmem:[%s3 + $0x30] sm:$0xf] %v1832
  %2345 = vst [vmem:[%s3 + $0x34] sm:$0xf] %v1833
  %2346 = vst [vmem:[%s3 + $0x38] sm:$0xf] %v1834
  %2347 = vst [vmem:[%s3 + $0x3c] sm:$0xf] %v1835
  %2348 = vst [vmem:[%s3 + $0x40] sm:$0xf] %v1836
  %2349 = vst [vmem:[%s3 + $0x44] sm:$0xf] %v1837
  %2350 = vst [vmem:[%s3 + $0x48] sm:$0xf] %v1838
  %2351 = vst [vmem:[%s3 + $0x4c] sm:$0xf] %v1839
  %2352 = vst [vmem:[%s3 + $0x50] sm:$0xf] %v1840
  %2353 = vst [vmem:[%s3 + $0x54] sm:$0xf] %v1841
  %2354 = vst [vmem:[%s3 + $0x58] sm:$0xf] %v1842
  %2355 = vst [vmem:[%s3 + $0x5c] sm:$0xf] %v1843
  %2356 = vst [vmem:[%s3 + $0x60] sm:$0xf] %v1844
  %2357 = vst [vmem:[%s3 + $0x64] sm:$0xf] %v1845
  %2358 = vst [vmem:[%s3 + $0x68] sm:$0xf] %v1846
  %2359 = vst [vmem:[%s3 + $0x6c] sm:$0xf] %v1847
  %2360 = vst [vmem:[%s3 + $0x70] sm:$0xf] %v1848
  %2361 = vst [vmem:[%s3 + $0x74] sm:$0xf] %v1849
  %2362 = vst [vmem:[%s3 + $0x78] sm:$0xf] %v1850
  %2363 = vst [vmem:[%s3 + $0x7c] sm:$0xf] %v1851
  %2364 = vst [vmem:[%s3 + $0x80] sm:$0xf] %v1852
  %2365 = vst [vmem:[%s3 + $0x84] sm:$0xf] %v1853
  %2366 = vst [vmem:[%s3 + $0x88] sm:$0xf] %v1854
  %2367 = vst [vmem:[%s3 + $0x8c] sm:$0xf] %v1855
  %2368 = vst [vmem:[%s3 + $0x90] sm:$0xf] %v1856
  %2369 = vst [vmem:[%s3 + $0x94] sm:$0xf] %v1857
  %2370 = vst [vmem:[%s3 + $0x98] sm:$0xf] %v1858
  %2371 = vst [vmem:[%s3 + $0x9c] sm:$0xf] %v1859
  %2372 = vst [vmem:[%s3 + $0xa0] sm:$0xf] %v1860
  %2373 = vst [vmem:[%s3 + $0xa4] sm:$0xf] %v1861
  %2374 = vst [vmem:[%s3 + $0xa8] sm:$0xf] %v1862
  %2375 = vst [vmem:[%s3 + $0xac] sm:$0xf] %v1863
  %2376 = vst [vmem:[%s3 + $0xb0] sm:$0xf] %v1864
  %2377 = vst [vmem:[%s3 + $0xb4] sm:$0xf] %v1865
  %2378 = vst [vmem:[%s3 + $0xb8] sm:$0xf] %v1866
  %2379 = vst [vmem:[%s3 + $0xbc] sm:$0xf] %v1867
  %2380 = vst [vmem:[%s3 + $0xc0] sm:$0xf] %v1868
  %2381 = vst [vmem:[%s3 + $0xc4] sm:$0xf] %v1869
  %2382 = vst [vmem:[%s3 + $0xc8] sm:$0xf] %v1870
  %2383 = vst [vmem:[%s3 + $0xcc] sm:$0xf] %v1871
  %2384 = vst [vmem:[%s3 + $0xd0] sm:$0xf] %v1872
  %2385 = vst [vmem:[%s3 + $0xd4] sm:$0xf] %v1873
  %2386 = vst [vmem:[%s3 + $0xd8] sm:$0xf] %v1874
  %2387 = vst [vmem:[%s3 + $0xdc] sm:$0xf] %v1875
  %2388 = vst [vmem:[%s3 + $0xe0] sm:$0xf] %v1876
  %2389 = vst [vmem:[%s3 + $0xe4] sm:$0xf] %v1877
  %2390 = vst [vmem:[%s3 + $0xe8] sm:$0xf] %v1878
  %2391 = vst [vmem:[%s3 + $0xec] sm:$0xf] %v1879
  %2392 = vst [vmem:[%s3 + $0xf0] sm:$0xf] %v1880
  %2393 = vst [vmem:[%s3 + $0xf4] sm:$0xf] %v1881
  %2394 = vst [vmem:[%s3 + $0xf8] sm:$0xf] %v1882
  %2395 = vst [vmem:[%s3 + $0xfc] sm:$0xf] %v1883
  %2396 = vst [vmem:[%s3 + $0x100] sm:$0xf] %v1884
  %2397 = vst [vmem:[%s3 + $0x104] sm:$0xf] %v1885
  %2398 = vst [vmem:[%s3 + $0x108] sm:$0xf] %v1886
  %2399 = vst [vmem:[%s3 + $0x10c] sm:$0xf] %v1887
  %2400 = vst [vmem:[%s3 + $0x110] sm:$0xf] %v1888
  %2401 = vst [vmem:[%s3 + $0x114] sm:$0xf] %v1889
  %2402 = vst [vmem:[%s3 + $0x118] sm:$0xf] %v1890
  %2403 = vst [vmem:[%s3 + $0x11c] sm:$0xf] %v1891
  %2404 = vst [vmem:[%s3 + $0x120] sm:$0xf] %v1892
  %2405 = vst [vmem:[%s3 + $0x124] sm:$0xf] %v1893
  %2406 = vst [vmem:[%s3 + $0x128] sm:$0xf] %v1894
  %2407 = vst [vmem:[%s3 + $0x12c] sm:$0xf] %v1895
  %2408 = vst [vmem:[%s3 + $0x130] sm:$0xf] %v1896
  %2409 = vst [vmem:[%s3 + $0x134] sm:$0xf] %v1897
  %2410 = vst [vmem:[%s3 + $0x138] sm:$0xf] %v1898
  %2411 = vst [vmem:[%s3 + $0x13c] sm:$0xf] %v1899
  %2412 = vst [vmem:[%s3 + $0x140] sm:$0xf] %v1900
  %2413 = vst [vmem:[%s3 + $0x144] sm:$0xf] %v1901
  %2414 = vst [vmem:[%s3 + $0x148] sm:$0xf] %v1902
  %2415 = vst [vmem:[%s3 + $0x14c] sm:$0xf] %v1903
  %2416 = vst [vmem:[%s3 + $0x150] sm:$0xf] %v1904
  %2417 = vst [vmem:[%s3 + $0x154] sm:$0xf] %v1905
  %2418 = vst [vmem:[%s3 + $0x158] sm:$0xf] %v1906
  %2419 = vst [vmem:[%s3 + $0x15c] sm:$0xf] %v1907
  %2420 = vst [vmem:[%s3 + $0x160] sm:$0xf] %v1908
  %2421 = vst [vmem:[%s3 + $0x164] sm:$0xf] %v1909
  %2422 = vst [vmem:[%s3 + $0x168] sm:$0xf] %v1910
  %2423 = vst [vmem:[%s3 + $0x16c] sm:$0xf] %v1911
  %2424 = vst [vmem:[%s3 + $0x170] sm:$0xf] %v1912
  %2425 = vst [vmem:[%s3 + $0x174] sm:$0xf] %v1913
  %2426 = vst [vmem:[%s3 + $0x178] sm:$0xf] %v1914
  %2427 = vst [vmem:[%s3 + $0x17c] sm:$0xf] %v1915
  %2428 = vst [vmem:[%s3 + $0x180] sm:$0xf] %v1916
  %2429 = vst [vmem:[%s3 + $0x184] sm:$0xf] %v1917
  %2430 = vst [vmem:[%s3 + $0x188] sm:$0xf] %v1918
  %2431 = vst [vmem:[%s3 + $0x18c] sm:$0xf] %v1919
  %2432 = vst [vmem:[%s3 + $0x190] sm:$0xf] %v1920
  %2433 = vst [vmem:[%s3 + $0x194] sm:$0xf] %v1921
  %2434 = vst [vmem:[%s3 + $0x198] sm:$0xf] %v1922
  %2435 = vst [vmem:[%s3 + $0x19c] sm:$0xf] %v1923
  %2436 = vst [vmem:[%s3 + $0x1a0] sm:$0xf] %v1924
  %2437 = vst [vmem:[%s3 + $0x1a4] sm:$0xf] %v1925
  %2438 = vst [vmem:[%s3 + $0x1a8] sm:$0xf] %v1926
  %2439 = vst [vmem:[%s3 + $0x1ac] sm:$0xf] %v1927
  %2440 = vst [vmem:[%s3 + $0x1b0] sm:$0xf] %v1928
  %2441 = vst [vmem:[%s3 + $0x1b4] sm:$0xf] %v1929
  %2442 = vst [vmem:[%s3 + $0x1b8] sm:$0xf] %v1930
  %2443 = vst [vmem:[%s3 + $0x1bc] sm:$0xf] %v1931
  %2444 = vst [vmem:[%s3 + $0x1c0] sm:$0xf] %v1932
  %2445 = vst [vmem:[%s3 + $0x1c4] sm:$0xf] %v1933
  %2446 = vst [vmem:[%s3 + $0x1c8] sm:$0xf] %v1934
  %2447 = vst [vmem:[%s3 + $0x1cc] sm:$0xf] %v1935
  %2448 = vst [vmem:[%s3 + $0x1d0] sm:$0xf] %v1936
  %2449 = vst [vmem:[%s3 + $0x1d4] sm:$0xf] %v1937
  %2450 = vst [vmem:[%s3 + $0x1d8] sm:$0xf] %v1938
  %2451 = vst [vmem:[%s3 + $0x1dc] sm:$0xf] %v1939
  %2452 = vst [vmem:[%s3 + $0x1e0] sm:$0xf] %v1940
  %2453 = vst [vmem:[%s3 + $0x1e4] sm:$0xf] %v1941
  %2454 = vst [vmem:[%s3 + $0x1e8] sm:$0xf] %v1942
  %2455 = vst [vmem:[%s3 + $0x1ec] sm:$0xf] %v1943
  %2456 = vst [vmem:[%s3 + $0x1f0] sm:$0xf] %v1944
  %2457 = vst [vmem:[%s3 + $0x1f4] sm:$0xf] %v1945
  %2458 = vst [vmem:[%s3 + $0x1f8] sm:$0xf] %v1946
  %2459 = vst [vmem:[%s3 + $0x1fc] sm:$0xf] %v1947
  %2460 = vst [vmem:[%s3 + $0x200] sm:$0xf] %v1948
  %2461 = vst [vmem:[%s3 + $0x204] sm:$0xf] %v1949
  %2462 = vst [vmem:[%s3 + $0x208] sm:$0xf] %v1950
  %2463 = vst [vmem:[%s3 + $0x20c] sm:$0xf] %v1951
  %2464 = vst [vmem:[%s3 + $0x210] sm:$0xf] %v1952
  %2465 = vst [vmem:[%s3 + $0x214] sm:$0xf] %v1953
  %2466 = vst [vmem:[%s3 + $0x218] sm:$0xf] %v1954
  %2467 = vst [vmem:[%s3 + $0x21c] sm:$0xf] %v1955
  %2468 = vst [vmem:[%s3 + $0x220] sm:$0xf] %v1956
  %2469 = vst [vmem:[%s3 + $0x224] sm:$0xf] %v1957
  %2470 = vst [vmem:[%s3 + $0x228] sm:$0xf] %v1958
  %2471 = vst [vmem:[%s3 + $0x22c] sm:$0xf] %v1959
  %2472 = vst [vmem:[%s3 + $0x230] sm:$0xf] %v1960
  %2473 = vst [vmem:[%s3 + $0x234] sm:$0xf] %v1961
  %2474 = vst [vmem:[%s3 + $0x238] sm:$0xf] %v1962
  %2475 = vst [vmem:[%s3 + $0x23c] sm:$0xf] %v1963
  %2476 = vst [vmem:[%s3 + $0x240] sm:$0xf] %v1964
  %2477 = vst [vmem:[%s3 + $0x244] sm:$0xf] %v1965
  %2478 = vst [vmem:[%s3 + $0x248] sm:$0xf] %v1966
  %2479 = vst [vmem:[%s3 + $0x24c] sm:$0xf] %v1967
  %2480 = vst [vmem:[%s3 + $0x250] sm:$0xf] %v1968
  %2481 = vst [vmem:[%s3 + $0x254] sm:$0xf] %v1969
  %2482 = vst [vmem:[%s3 + $0x258] sm:$0xf] %v1970
  %2483 = vst [vmem:[%s3 + $0x25c] sm:$0xf] %v1971
  %2484 = vst [vmem:[%s3 + $0x260] sm:$0xf] %v1972
  %2485 = vst [vmem:[%s3 + $0x264] sm:$0xf] %v1973
  %2486 = vst [vmem:[%s3 + $0x268] sm:$0xf] %v1974
  %2487 = vst [vmem:[%s3 + $0x26c] sm:$0xf] %v1975
  %2488 = vst [vmem:[%s3 + $0x270] sm:$0xf] %v1976
  %2489 = vst [vmem:[%s3 + $0x274] sm:$0xf] %v1977
  %2490 = vst [vmem:[%s3 + $0x278] sm:$0xf] %v1978
  %2491 = vst [vmem:[%s3 + $0x27c] sm:$0xf] %v1979
  %2492 = vst [vmem:[%s3 + $0x280] sm:$0xf] %v1980
  %2493 = vst [vmem:[%s3 + $0x284] sm:$0xf] %v1981
  %2494 = vst [vmem:[%s3 + $0x288] sm:$0xf] %v1982
  %2495 = vst [vmem:[%s3 + $0x28c] sm:$0xf] %v1983
  %2496 = vst [vmem:[%s3 + $0x290] sm:$0xf] %v1984
  %2497 = vst [vmem:[%s3 + $0x294] sm:$0xf] %v1985
  %2498 = vst [vmem:[%s3 + $0x298] sm:$0xf] %v1986
  %2499 = vst [vmem:[%s3 + $0x29c] sm:$0xf] %v1987
  %2500 = vst [vmem:[%s3 + $0x2a0] sm:$0xf] %v1988
  %2501 = vst [vmem:[%s3 + $0x2a4] sm:$0xf] %v1989
  %2502 = vst [vmem:[%s3 + $0x2a8] sm:$0xf] %v1990
  %2503 = vst [vmem:[%s3 + $0x2ac] sm:$0xf] %v1991
  %2504 = vst [vmem:[%s3 + $0x2b0] sm:$0xf] %v1992
  %2505 = vst [vmem:[%s3 + $0x2b4] sm:$0xf] %v1993
  %2506 = vst [vmem:[%s3 + $0x2b8] sm:$0xf] %v1994
  %2507 = vst [vmem:[%s3 + $0x2bc] sm:$0xf] %v1995
  %2508 = vst [vmem:[%s3 + $0x2c0] sm:$0xf] %v1996
  %2509 = vst [vmem:[%s3 + $0x2c4] sm:$0xf] %v1997
  %2510 = vst [vmem:[%s3 + $0x2c8] sm:$0xf] %v1998
  %2511 = vst [vmem:[%s3 + $0x2cc] sm:$0xf] %v1999
  %2512 = vst [vmem:[%s3 + $0x2d0] sm:$0xf] %v2000
  %2513 = vst [vmem:[%s3 + $0x2d4] sm:$0xf] %v2001
  %2514 = vst [vmem:[%s3 + $0x2d8] sm:$0xf] %v2002
  %2515 = vst [vmem:[%s3 + $0x2dc] sm:$0xf] %v2003
  %2516 = vst [vmem:[%s3 + $0x2e0] sm:$0xf] %v2004
  %2517 = vst [vmem:[%s3 + $0x2e4] sm:$0xf] %v2005
  %2518 = vst [vmem:[%s3 + $0x2e8] sm:$0xf] %v2006
  %2519 = vst [vmem:[%s3 + $0x2ec] sm:$0xf] %v2007
  %2520 = vst [vmem:[%s3 + $0x2f0] sm:$0xf] %v2008
  %2521 = vst [vmem:[%s3 + $0x2f4] sm:$0xf] %v2009
  %2522 = vst [vmem:[%s3 + $0x2f8] sm:$0xf] %v2010
  %2523 = vst [vmem:[%s3 + $0x2fc] sm:$0xf] %v2011
  %2524 = vst [vmem:[%s3 + $0x300] sm:$0xf] %v2012
  %2525 = vst [vmem:[%s3 + $0x304] sm:$0xf] %v2013
  %2526 = vst [vmem:[%s3 + $0x308] sm:$0xf] %v2014
  %2527 = vst [vmem:[%s3 + $0x30c] sm:$0xf] %v2015
  %2528 = vst [vmem:[%s3 + $0x310] sm:$0xf] %v2016
  %2529 = vst [vmem:[%s3 + $0x314] sm:$0xf] %v2017
  %2530 = vst [vmem:[%s3 + $0x318] sm:$0xf] %v2018
  %2531 = vst [vmem:[%s3 + $0x31c] sm:$0xf] %v2019
  %2532 = vst [vmem:[%s3 + $0x320] sm:$0xf] %v2020
  %2533 = vst [vmem:[%s3 + $0x324] sm:$0xf] %v2021
  %2534 = vst [vmem:[%s3 + $0x328] sm:$0xf] %v2022
  %2535 = vst [vmem:[%s3 + $0x32c] sm:$0xf] %v2023
  %2536 = vst [vmem:[%s3 + $0x330] sm:$0xf] %v2024
  %2537 = vst [vmem:[%s3 + $0x334] sm:$0xf] %v2025
  %2538 = vst [vmem:[%s3 + $0x338] sm:$0xf] %v2026
  %2539 = vst [vmem:[%s3 + $0x33c] sm:$0xf] %v2027
  %2540 = vst [vmem:[%s3 + $0x340] sm:$0xf] %v2028
  %2541 = vst [vmem:[%s3 + $0x344] sm:$0xf] %v2029
  %2542 = vst [vmem:[%s3 + $0x348] sm:$0xf] %v2030
  %2543 = vst [vmem:[%s3 + $0x34c] sm:$0xf] %v2031
  %2544 = vst [vmem:[%s3 + $0x350] sm:$0xf] %v2032
  %2545 = vst [vmem:[%s3 + $0x354] sm:$0xf] %v2033
  %2546 = vst [vmem:[%s3 + $0x358] sm:$0xf] %v2034
  %2547 = vst [vmem:[%s3 + $0x35c] sm:$0xf] %v2035
  %2548 = vst [vmem:[%s3 + $0x360] sm:$0xf] %v2036
  %2549 = vst [vmem:[%s3 + $0x364] sm:$0xf] %v2037
  %2550 = vst [vmem:[%s3 + $0x368] sm:$0xf] %v2038
  %2551 = vst [vmem:[%s3 + $0x36c] sm:$0xf] %v2039
  %2552 = vst [vmem:[%s3 + $0x370] sm:$0xf] %v2040
  %2553 = vst [vmem:[%s3 + $0x374] sm:$0xf] %v2041
  %2554 = vst [vmem:[%s3 + $0x378] sm:$0xf] %v2042
  %2555 = vst [vmem:[%s3 + $0x37c] sm:$0xf] %v2043
  %2556 = vst [vmem:[%s3 + $0x380] sm:$0xf] %v2044
  %2557 = vst [vmem:[%s3 + $0x384] sm:$0xf] %v2045
  %2558 = vst [vmem:[%s3 + $0x388] sm:$0xf] %v2046
  %2559 = vst [vmem:[%s3 + $0x38c] sm:$0xf] %v2047
  %2560 = vst [vmem:[%s3 + $0x390] sm:$0xf] %v2048
  %2561 = vst [vmem:[%s3 + $0x394] sm:$0xf] %v2049
  %2562 = vst [vmem:[%s3 + $0x398] sm:$0xf] %v2050
  %2563 = vst [vmem:[%s3 + $0x39c] sm:$0xf] %v2051
  %2564 = vst [vmem:[%s3 + $0x3a0] sm:$0xf] %v2052
  %2565 = vst [vmem:[%s3 + $0x3a4] sm:$0xf] %v2053
  %2566 = vst [vmem:[%s3 + $0x3a8] sm:$0xf] %v2054
  %2567 = vst [vmem:[%s3 + $0x3ac] sm:$0xf] %v2055
  %2568 = vst [vmem:[%s3 + $0x3b0] sm:$0xf] %v2056
  %2569 = vst [vmem:[%s3 + $0x3b4] sm:$0xf] %v2057
  %2570 = vst [vmem:[%s3 + $0x3b8] sm:$0xf] %v2058
  %2571 = vst [vmem:[%s3 + $0x3bc] sm:$0xf] %v2059
  %2572 = vst [vmem:[%s3 + $0x3c0] sm:$0xf] %v2060
  %2573 = vst [vmem:[%s3 + $0x3c4] sm:$0xf] %v2061
  %2574 = vst [vmem:[%s3 + $0x3c8] sm:$0xf] %v2062
  %2575 = vst [vmem:[%s3 + $0x3cc] sm:$0xf] %v2063
  %2576 = vst [vmem:[%s3 + $0x3d0] sm:$0xf] %v2064
  %2577 = vst [vmem:[%s3 + $0x3d4] sm:$0xf] %v2065
  %2578 = vst [vmem:[%s3 + $0x3d8] sm:$0xf] %v2066
  %2579 = vst [vmem:[%s3 + $0x3dc] sm:$0xf] %v2067
  %2580 = vst [vmem:[%s3 + $0x3e0] sm:$0xf] %v2068
  %2581 = vst [vmem:[%s3 + $0x3e4] sm:$0xf] %v2069
  %2582 = vst [vmem:[%s3 + $0x3e8] sm:$0xf] %v2070
  %2583 = vst [vmem:[%s3 + $0x3ec] sm:$0xf] %v2071
  %2584 = vst [vmem:[%s3 + $0x3f0] sm:$0xf] %v2072
  %2585 = vst [vmem:[%s3 + $0x3f4] sm:$0xf] %v2073
  %2586 = vst [vmem:[%s3 + $0x3f8] sm:$0xf] %v2074
  %2587 = vst [vmem:[%s3 + $0x3fc] sm:$0xf] %v2075
  // Predicated region
  $region14: #{generator_forward.16} parent=0 // pred_check
    _
  $region15: #{generator_forward.16} parent=0 // pred_check_branch
    %2589 = sbr.rel (0) target = $region17
  $region16: #{generator_forward.16} parent=0 // pred_region
    _
  $region17: #{generator_forward.16} parent=0 // pred_fallthru
    _
  // Predicated region
  $region18: #{generator_forward.16} parent=0 // pred_check
    _
  $region19: #{generator_forward.16} parent=0 // pred_check_branch
    %2591 = sbr.rel (0) target = $region21
  $region20: #{generator_forward.16} parent=0 // pred_region
    _
  $region21: #{generator_forward.16} parent=0 // pred_fallthru
    _

// kernel: generator_forward.17
$region0: #{generator_forward.17}
  #allocation0 [shape = 'u32[]', space=smem, size = 0x4, offset = 0x4, fixed_abs, tag = 'smem constant byte address 0x4 - core index']
  #allocation1 [shape = 'u32[144,128]{1,0:T(1,128)}', space=vmem, size = 0x12000, scoped, tag = 'internal scratch']
  %s0 = inlined_call_operand.vmem [shape: bf16[4,2048,128], index: 0, kind: input, shape index: {}]
  %s1 = inlined_call_operand.vmem [shape: bf16[4,128,128], index: 1, kind: input, shape index: {}]
  %s2 = inlined_call_operand.vmem [shape: bf16[4,2048,128], index: 2, kind: output, shape index: {}]
  %s3 = sld [smem:[#allocation0]]
  $region41: #{generator_forward.17} parent=0
    _
  %s5 = ssub.s32 1, %s3
  %s6 = scalar_select 0, %s5, %s3
  loop: start=0, step=1, limit=10
  $region2: #{generator_forward.17} parent=0 // loop_pre_header
    _
  $region3: #{generator_forward.17} parent=0 // loop_header
    %s8 = sphi 0, %s12
    %p9 = scmp.ge.s32.totalorder %s8, 10
    %s15 = sphi 0, %s34
    %s16 = sphi 0, %s30
    %s17 = sphi 0, %s26
    %s18 = sphi 0, %s15
    %s19 = sphi 0, %s16
    %s20 = sphi 0, %s17
    %s21 = sphi 0, %s18
    %s22 = sphi 0, %s19
    %s23 = sphi 0, %s20
    %s39 = sphi 0, %s41
    %s42 = sphi 0, %s39
    %s43 = sphi 0, %s42
    %s59 = sphi 0, %s43
    %s67 = sphi 0, %s69
    %s70 = sphi 0, %s67
    %s71 = sphi 0, %s70
    %s87 = sphi 0, %s71
    %s97 = sphi 0, %s99
    %s100 = sphi 0, %s97
    %s101 = sphi 0, %s100
    %s117 = sphi 0, %s101
  $region4: #{generator_forward.17} parent=0 // loop_header_branch
    %11 = sbr.rel (%p9) target = $region8
  $region5: #{generator_forward.17} parent=0 // loop_body
    %s13 = ssub.s32 %s8, 1
    %s14 = ssub.s32 %s8, 2
    %s24 = sadd.s32 1, %s17
    %p25 = scmp.ge.s32.totalorder %s24, 2
    %s26 = scalar_select %p25, 0, %s24
    %s27 = sadd.s32 1, %s16
    %s28 = scalar_select %p25, %s27, %s16
    %p29 = scmp.ge.s32.totalorder %s28, 4
    %s30 = scalar_select %p29, 0, %s28
    %s31 = sadd.s32 1, %s15
    %s32 = scalar_select %p29, %s31, %s15
    %p33 = scmp.ge.s32.totalorder %s32, 1
    %s34 = scalar_select %p33, 0, %s32
    %s35 = ssub.s32 %s16, %s30
    %s36 = ssub.s32 %s17, %s26
    %s37 = sor.u32 %s35, %s36
    %p38 = scmp.eq.s32.totalorder %s37, 0
    %s40 = sadd.s32 %s39, 1
    %s41 = scalar_select %p38, %s39, %s40
    %p44 = pneg %p38
    %p45 = scmp.eq.s32.totalorder %s8, 7
    %p46 = por %p44, %p45
    %p47 = scmp.ne.s32.totalorder %s39, %s42
    %p48 = scmp.eq.s32.totalorder %s8, 0
    %p49 = por %p47, %p48
    %p50 = scmp.ne.s32.totalorder %s39, %s42
    %p51 = scmp.eq.s32.totalorder %s13, 7
    %p52 = por %p50, %p51
    %p53 = scmp.ne.s32.totalorder %s42, %s43
    %p54 = scmp.eq.s32.totalorder %s13, 0
    %p55 = por %p53, %p54
    %p56 = scmp.ne.s32.totalorder %s42, %s43
    %p57 = scmp.eq.s32.totalorder %s14, 7
    %p58 = por %p56, %p57
    %p60 = scmp.ne.s32.totalorder %s43, %s59
    %p61 = scmp.eq.s32.totalorder %s14, 0
    %p62 = por %p60, %p61
    %s63 = ssub.s32 %s16, %s30
    %s64 = ssub.s32 %s15, %s34
    %s65 = sor.u32 %s63, %s64
    %p66 = scmp.eq.s32.totalorder %s65, 0
    %s68 = sadd.s32 %s67, 1
    %s69 = scalar_select %p66, %s67, %s68
    %p72 = pneg %p66
    %p73 = scmp.eq.s32.totalorder %s8, 7
    %p74 = por %p72, %p73
    %p75 = scmp.ne.s32.totalorder %s67, %s70
    %p76 = scmp.eq.s32.totalorder %s8, 0
    %p77 = por %p75, %p76
    %p78 = scmp.ne.s32.totalorder %s67, %s70
    %p79 = scmp.eq.s32.totalorder %s13, 7
    %p80 = por %p78, %p79
    %p81 = scmp.ne.s32.totalorder %s70, %s71
    %p82 = scmp.eq.s32.totalorder %s13, 0
    %p83 = por %p81, %p82
    %p84 = scmp.ne.s32.totalorder %s70, %s71
    %p85 = scmp.eq.s32.totalorder %s14, 7
    %p86 = por %p84, %p85
    %p88 = scmp.ne.s32.totalorder %s71, %s87
    %p89 = scmp.eq.s32.totalorder %s14, 0
    %p90 = por %p88, %p89
    %s91 = ssub.s32 %s16, %s30
    %s92 = ssub.s32 %s17, %s26
    %s93 = sor.u32 %s91, %s92
    %s94 = ssub.s32 %s15, %s34
    %s95 = sor.u32 %s93, %s94
    %p96 = scmp.eq.s32.totalorder %s95, 0
    %s98 = sadd.s32 %s97, 1
    %s99 = scalar_select %p96, %s97, %s98
    %p102 = pneg %p96
    %p103 = scmp.eq.s32.totalorder %s8, 7
    %p104 = por %p102, %p103
    %p105 = scmp.ne.s32.totalorder %s97, %s100
    %p106 = scmp.eq.s32.totalorder %s8, 0
    %p107 = por %p105, %p106
    %p108 = scmp.ne.s32.totalorder %s97, %s100
    %p109 = scmp.eq.s32.totalorder %s13, 7
    %p110 = por %p108, %p109
    %p111 = scmp.ne.s32.totalorder %s100, %s101
    %p112 = scmp.eq.s32.totalorder %s13, 0
    %p113 = por %p111, %p112
    %p114 = scmp.ne.s32.totalorder %s100, %s101
    %p115 = scmp.eq.s32.totalorder %s14, 7
    %p116 = por %p114, %p115
    %p118 = scmp.ne.s32.totalorder %s101, %s117
    %p119 = scmp.eq.s32.totalorder %s14, 0
    %p120 = por %p118, %p119
    %p121 = scmp.le.s32.totalorder 1, %s8
    %p122 = scmp.lt.s32.totalorder %s8, 9
    %p123 = pnand %p121, %p122
    %p124 = pneg %p123
    // Predicated region
    $region9: #{generator_forward.17} parent=5 // pred_check
      _
    $region10: #{generator_forward.17} parent=5 // pred_check_branch
      %126 = sbr.rel (%p123) target = $region12
    $region11: #{generator_forward.17} parent=5 // pred_region
      %s127 = ssub.s32 %s8, 1
    $region12: #{generator_forward.17} parent=5 // pred_fallthru
      _
    %p128 = scmp.lt.s32.totalorder %s8, 8
    // Predicated region
    $region13: #{generator_forward.17} parent=5 // pred_check
      %p129 = pneg %p128
    $region14: #{generator_forward.17} parent=5 // pred_check_branch
      %131 = sbr.rel (%p129) target = $region16
    $region15: #{generator_forward.17} parent=5 // pred_region
      // Predicated region
      $region17: #{generator_forward.17} parent=15 // pred_check
        %p132 = pneg %p49
      $region18: #{generator_forward.17} parent=15 // pred_check_branch
        %134 = sbr.rel (%p132) target = $region20
      $region19: #{generator_forward.17} parent=15 // pred_region
        %s135 = smul.u32 128, %s17
        %p136 = scmp.lt.s32.totalorder %s16, 3
        %s137 = scalar_select %p136, %s16, 3
        %p138 = scmp.lt.s32.totalorder %s135, 255
        %s139 = scalar_select %p138, %s135, 255
        %s140 = smul.addr %s137, 256
        %s141 = sadd.s32 %s139, %s140
        %s142 = smul.addr %s141, 4
        %s143 = scalar_lea.vmem %s0, %s142
        %s144 = smul.u32 128, %s17
      $region20: #{generator_forward.17} parent=15 // pred_fallthru
        _
      // Predicated region
      $region21: #{generator_forward.17} parent=15 // pred_check
        %p145 = pneg %p77
      $region22: #{generator_forward.17} parent=15 // pred_check_branch
        %147 = sbr.rel (%p145) target = $region24
      $region23: #{generator_forward.17} parent=15 // pred_region
        %p148 = scmp.lt.s32.totalorder %s16, 3
        %s149 = scalar_select %p148, %s16, 3
        %p150 = scmp.lt.s32.totalorder %s15, 0
        %s151 = scalar_select %p150, %s15, 0
        %s152 = smul.addr %s149, 16
        %s153 = sadd.s32 %s151, %s152
        %s154 = smul.addr %s153, 4
        %s155 = scalar_lea.vmem %s1, %s154
      $region24: #{generator_forward.17} parent=15 // pred_fallthru
        _
    $region16: #{generator_forward.17} parent=5 // pred_fallthru
      _
    %p156 = scmp.le.s32.totalorder 1, %s8
    %p157 = scmp.lt.s32.totalorder %s8, 9
    %p158 = pnand %p156, %p157
    %p159 = pneg %p158
    // Predicated region
    $region25: #{generator_forward.17} parent=5 // pred_check
      _
    $region26: #{generator_forward.17} parent=5 // pred_check_branch
      %161 = sbr.rel (%p158) target = $region28
    $region27: #{generator_forward.17} parent=5 // pred_region
      %s162 = ssub.s32 %s8, 1
      %s163 = smul.u32 128, %s20
      %p164 = scmp.lt.s32.totalorder %s19, 3
      %s165 = scalar_select %p164, %s19, 3
      %p166 = scmp.lt.s32.totalorder %s163, 255
      %s167 = scalar_select %p166, %s163, 255
      %s168 = smul.addr %s165, 256
      %s169 = sadd.s32 %s167, %s168
      %s170 = smul.addr %s169, 4
      %s171 = scalar_lea.vmem %s0, %s170
      %p172 = pneg %p55
      %p173 = pneg %p52
      %p174 = scmp.lt.s32.totalorder %s19, 3
      %s175 = scalar_select %p174, %s19, 3
      %p176 = scmp.lt.s32.totalorder %s18, 0
      %s177 = scalar_select %p176, %s18, 0
      %s178 = smul.addr %s175, 16
      %s179 = sadd.s32 %s177, %s178
      %s180 = smul.addr %s179, 4
      %s181 = scalar_lea.vmem %s1, %s180
      %p182 = pneg %p83
      %p183 = pneg %p80
      %p184 = pneg %p113
      %p185 = pneg %p110
      %s186 = smul.u32 128, %s20
      %p187 = scmp.lt.s32.totalorder %s19, 3
      %s188 = scalar_select %p187, %s19, 3
      %p189 = scmp.lt.s32.totalorder %s186, 255
      %s190 = scalar_select %p189, %s186, 255
      %p191 = scmp.lt.s32.totalorder %s18, 0
      %s192 = scalar_select %p191, %s18, 0
      %s193 = sadd.s32 %s192, %s190
      %s194 = smul.addr %s188, 256
      %s195 = sadd.s32 %s193, %s194
      %s196 = smul.addr %s195, 4
      %s197 = scalar_lea.vmem %s2, %s196
      %s198 = smul.u32 128, %s20
      %p199 = scmp.lt.s32.totalorder %s19, 3
      %s200 = scalar_select %p199, %s19, 3
      %p201 = scmp.lt.s32.totalorder %s198, 255
      %s202 = scalar_select %p201, %s198, 255
      %s203 = smul.addr %s200, 256
      %s204 = sadd.s32 %s202, %s203
      %s205 = smul.addr %s204, 4
      %s206 = scalar_lea.vmem %s0, %s205
      %s207 = smul.u32 128, %s20
      %p208 = scmp.lt.s32.totalorder %s19, 3
      %s209 = scalar_select %p208, %s19, 3
      %p210 = scmp.lt.s32.totalorder %s18, 0
      %s211 = scalar_select %p210, %s18, 0
      %s212 = smul.addr %s209, 16
      %s213 = sadd.s32 %s211, %s212
      %s214 = smul.addr %s213, 4
      %s215 = scalar_lea.vmem %s1, %s214
      %s216 = smul.u32 128, %s20
      %p217 = scmp.lt.s32.totalorder %s19, 3
      %s218 = scalar_select %p217, %s19, 3
      %p219 = scmp.lt.s32.totalorder %s216, 255
      %s220 = scalar_select %p219, %s216, 255
      %p221 = scmp.lt.s32.totalorder %s18, 0
      %s222 = scalar_select %p221, %s18, 0
      %s223 = sadd.s32 %s222, %s220
      %s224 = smul.addr %s218, 256
      %s225 = sadd.s32 %s223, %s224
      %s226 = smul.addr %s225, 4
      %s227 = scalar_lea.vmem %s2, %s226
      %s228 = smul.u32 128, %s20
      %v230 = vld [vmem:[%s206] sm:$0xf]
      %v231 = vld [vmem:[%s206 + $0x4] sm:$0xf]
      %v232 = vld [vmem:[%s206 + $0x8] sm:$0xf]
      %v233 = vld [vmem:[%s206 + $0xc] sm:$0xf]
      %v234 = vld [vmem:[%s206 + $0x10] sm:$0xf]
      %v235 = vld [vmem:[%s206 + $0x14] sm:$0xf]
      %v236 = vld [vmem:[%s206 + $0x18] sm:$0xf]
      %v237 = vld [vmem:[%s206 + $0x1c] sm:$0xf]
      %v238 = vld [vmem:[%s206 + $0x20] sm:$0xf]
      %v239 = vld [vmem:[%s206 + $0x24] sm:$0xf]
      %v240 = vld [vmem:[%s206 + $0x28] sm:$0xf]
      %v241 = vld [vmem:[%s206 + $0x2c] sm:$0xf]
      %v242 = vld [vmem:[%s206 + $0x30] sm:$0xf]
      %v243 = vld [vmem:[%s206 + $0x34] sm:$0xf]
      %v244 = vld [vmem:[%s206 + $0x38] sm:$0xf]
      %v245 = vld [vmem:[%s206 + $0x3c] sm:$0xf]
      %v246 = vld [vmem:[%s206 + $0x40] sm:$0xf]
      %v247 = vld [vmem:[%s206 + $0x44] sm:$0xf]
      %v248 = vld [vmem:[%s206 + $0x48] sm:$0xf]
      %v249 = vld [vmem:[%s206 + $0x4c] sm:$0xf]
      %v250 = vld [vmem:[%s206 + $0x50] sm:$0xf]
      %v251 = vld [vmem:[%s206 + $0x54] sm:$0xf]
      %v252 = vld [vmem:[%s206 + $0x58] sm:$0xf]
      %v253 = vld [vmem:[%s206 + $0x5c] sm:$0xf]
      %v254 = vld [vmem:[%s206 + $0x60] sm:$0xf]
      %v255 = vld [vmem:[%s206 + $0x64] sm:$0xf]
      %v256 = vld [vmem:[%s206 + $0x68] sm:$0xf]
      %v257 = vld [vmem:[%s206 + $0x6c] sm:$0xf]
      %v258 = vld [vmem:[%s206 + $0x70] sm:$0xf]
      %v259 = vld [vmem:[%s206 + $0x74] sm:$0xf]
      %v260 = vld [vmem:[%s206 + $0x78] sm:$0xf]
      %v261 = vld [vmem:[%s206 + $0x7c] sm:$0xf]
      %v262 = vld [vmem:[%s206 + $0x80] sm:$0xf]
      %v263 = vld [vmem:[%s206 + $0x84] sm:$0xf]
      %v264 = vld [vmem:[%s206 + $0x88] sm:$0xf]
      %v265 = vld [vmem:[%s206 + $0x8c] sm:$0xf]
      %v266 = vld [vmem:[%s206 + $0x90] sm:$0xf]
      %v267 = vld [vmem:[%s206 + $0x94] sm:$0xf]
      %v268 = vld [vmem:[%s206 + $0x98] sm:$0xf]
      %v269 = vld [vmem:[%s206 + $0x9c] sm:$0xf]
      %v270 = vld [vmem:[%s206 + $0xa0] sm:$0xf]
      %v271 = vld [vmem:[%s206 + $0xa4] sm:$0xf]
      %v272 = vld [vmem:[%s206 + $0xa8] sm:$0xf]
      %v273 = vld [vmem:[%s206 + $0xac] sm:$0xf]
      %v274 = vld [vmem:[%s206 + $0xb0] sm:$0xf]
      %v275 = vld [vmem:[%s206 + $0xb4] sm:$0xf]
      %v276 = vld [vmem:[%s206 + $0xb8] sm:$0xf]
      %v277 = vld [vmem:[%s206 + $0xbc] sm:$0xf]
      %v278 = vld [vmem:[%s206 + $0xc0] sm:$0xf]
      %v279 = vld [vmem:[%s206 + $0xc4] sm:$0xf]
      %v280 = vld [vmem:[%s206 + $0xc8] sm:$0xf]
      %v281 = vld [vmem:[%s206 + $0xcc] sm:$0xf]
      %v282 = vld [vmem:[%s206 + $0xd0] sm:$0xf]
      %v283 = vld [vmem:[%s206 + $0xd4] sm:$0xf]
      %v284 = vld [vmem:[%s206 + $0xd8] sm:$0xf]
      %v285 = vld [vmem:[%s206 + $0xdc] sm:$0xf]
      %v286 = vld [vmem:[%s206 + $0xe0] sm:$0xf]
      %v287 = vld [vmem:[%s206 + $0xe4] sm:$0xf]
      %v288 = vld [vmem:[%s206 + $0xe8] sm:$0xf]
      %v289 = vld [vmem:[%s206 + $0xec] sm:$0xf]
      %v290 = vld [vmem:[%s206 + $0xf0] sm:$0xf]
      %v291 = vld [vmem:[%s206 + $0xf4] sm:$0xf]
      %v292 = vld [vmem:[%s206 + $0xf8] sm:$0xf]
      %v293 = vld [vmem:[%s206 + $0xfc] sm:$0xf]
      %v294 = vld [vmem:[%s206 + $0x100] sm:$0xf]
      %v295 = vld [vmem:[%s206 + $0x104] sm:$0xf]
      %v296 = vld [vmem:[%s206 + $0x108] sm:$0xf]
      %v297 = vld [vmem:[%s206 + $0x10c] sm:$0xf]
      %v298 = vld [vmem:[%s206 + $0x110] sm:$0xf]
      %v299 = vld [vmem:[%s206 + $0x114] sm:$0xf]
      %v300 = vld [vmem:[%s206 + $0x118] sm:$0xf]
      %v301 = vld [vmem:[%s206 + $0x11c] sm:$0xf]
      %v302 = vld [vmem:[%s206 + $0x120] sm:$0xf]
      %v303 = vld [vmem:[%s206 + $0x124] sm:$0xf]
      %v304 = vld [vmem:[%s206 + $0x128] sm:$0xf]
      %v305 = vld [vmem:[%s206 + $0x12c] sm:$0xf]
      %v306 = vld [vmem:[%s206 + $0x130] sm:$0xf]
      %v307 = vld [vmem:[%s206 + $0x134] sm:$0xf]
      %v308 = vld [vmem:[%s206 + $0x138] sm:$0xf]
      %v309 = vld [vmem:[%s206 + $0x13c] sm:$0xf]
      %v310 = vld [vmem:[%s206 + $0x140] sm:$0xf]
      %v311 = vld [vmem:[%s206 + $0x144] sm:$0xf]
      %v312 = vld [vmem:[%s206 + $0x148] sm:$0xf]
      %v313 = vld [vmem:[%s206 + $0x14c] sm:$0xf]
      %v314 = vld [vmem:[%s206 + $0x150] sm:$0xf]
      %v315 = vld [vmem:[%s206 + $0x154] sm:$0xf]
      %v316 = vld [vmem:[%s206 + $0x158] sm:$0xf]
      %v317 = vld [vmem:[%s206 + $0x15c] sm:$0xf]
      %v318 = vld [vmem:[%s206 + $0x160] sm:$0xf]
      %v319 = vld [vmem:[%s206 + $0x164] sm:$0xf]
      %v320 = vld [vmem:[%s206 + $0x168] sm:$0xf]
      %v321 = vld [vmem:[%s206 + $0x16c] sm:$0xf]
      %v322 = vld [vmem:[%s206 + $0x170] sm:$0xf]
      %v323 = vld [vmem:[%s206 + $0x174] sm:$0xf]
      %v324 = vld [vmem:[%s206 + $0x178] sm:$0xf]
      %v325 = vld [vmem:[%s206 + $0x17c] sm:$0xf]
      %v326 = vld [vmem:[%s206 + $0x180] sm:$0xf]
      %v327 = vld [vmem:[%s206 + $0x184] sm:$0xf]
      %v328 = vld [vmem:[%s206 + $0x188] sm:$0xf]
      %v329 = vld [vmem:[%s206 + $0x18c] sm:$0xf]
      %v330 = vld [vmem:[%s206 + $0x190] sm:$0xf]
      %v331 = vld [vmem:[%s206 + $0x194] sm:$0xf]
      %v332 = vld [vmem:[%s206 + $0x198] sm:$0xf]
      %v333 = vld [vmem:[%s206 + $0x19c] sm:$0xf]
      %v334 = vld [vmem:[%s206 + $0x1a0] sm:$0xf]
      %v335 = vld [vmem:[%s206 + $0x1a4] sm:$0xf]
      %v336 = vld [vmem:[%s206 + $0x1a8] sm:$0xf]
      %v337 = vld [vmem:[%s206 + $0x1ac] sm:$0xf]
      %v338 = vld [vmem:[%s206 + $0x1b0] sm:$0xf]
      %v339 = vld [vmem:[%s206 + $0x1b4] sm:$0xf]
      %v340 = vld [vmem:[%s206 + $0x1b8] sm:$0xf]
      %v341 = vld [vmem:[%s206 + $0x1bc] sm:$0xf]
      %v342 = vld [vmem:[%s206 + $0x1c0] sm:$0xf]
      %v343 = vld [vmem:[%s206 + $0x1c4] sm:$0xf]
      %v344 = vld [vmem:[%s206 + $0x1c8] sm:$0xf]
      %v345 = vld [vmem:[%s206 + $0x1cc] sm:$0xf]
      %v346 = vld [vmem:[%s206 + $0x1d0] sm:$0xf]
      %v347 = vld [vmem:[%s206 + $0x1d4] sm:$0xf]
      %v348 = vld [vmem:[%s206 + $0x1d8] sm:$0xf]
      %v349 = vld [vmem:[%s206 + $0x1dc] sm:$0xf]
      %v350 = vld [vmem:[%s206 + $0x1e0] sm:$0xf]
      %v351 = vld [vmem:[%s206 + $0x1e4] sm:$0xf]
      %v352 = vld [vmem:[%s206 + $0x1e8] sm:$0xf]
      %v353 = vld [vmem:[%s206 + $0x1ec] sm:$0xf]
      %v354 = vld [vmem:[%s206 + $0x1f0] sm:$0xf]
      %v355 = vld [vmem:[%s206 + $0x1f4] sm:$0xf]
      %v356 = vld [vmem:[%s206 + $0x1f8] sm:$0xf]
      %v357 = vld [vmem:[%s206 + $0x1fc] sm:$0xf]
      %v358 = vld [vmem:[%s215] sm:$0xf]
      %v359 = vld [vmem:[%s215 + $0x4] sm:$0xf]
      %v360 = vld [vmem:[%s215 + $0x8] sm:$0xf]
      %v361 = vld [vmem:[%s215 + $0xc] sm:$0xf]
      %v362 = vld [vmem:[%s215 + $0x10] sm:$0xf]
      %v363 = vld [vmem:[%s215 + $0x14] sm:$0xf]
      %v364 = vld [vmem:[%s215 + $0x18] sm:$0xf]
      %v365 = vld [vmem:[%s215 + $0x1c] sm:$0xf]
      %v366 = vld [vmem:[%s215 + $0x20] sm:$0xf]
      %v367 = vld [vmem:[%s215 + $0x24] sm:$0xf]
      %v368 = vld [vmem:[%s215 + $0x28] sm:$0xf]
      %v369 = vld [vmem:[%s215 + $0x2c] sm:$0xf]
      %v370 = vld [vmem:[%s215 + $0x30] sm:$0xf]
      %v371 = vld [vmem:[%s215 + $0x34] sm:$0xf]
      %v372 = vld [vmem:[%s215 + $0x38] sm:$0xf]
      %v373 = vld [vmem:[%s215 + $0x3c] sm:$0xf]
      %v502 = vunpack.c.l.b16 %v230
      %v503 = vunpack.c.l.b16 %v231
      %v504 = vunpack.c.l.b16 %v232
      %v505 = vunpack.c.l.b16 %v233
      %v506 = vunpack.c.l.b16 %v234
      %v507 = vunpack.c.l.b16 %v235
      %v508 = vunpack.c.l.b16 %v236
      %v509 = vunpack.c.l.b16 %v237
      %v510 = vunpack.c.l.b16 %v238
      %v511 = vunpack.c.l.b16 %v239
      %v512 = vunpack.c.l.b16 %v240
      %v513 = vunpack.c.l.b16 %v241
      %v514 = vunpack.c.l.b16 %v242
      %v515 = vunpack.c.l.b16 %v243
      %v516 = vunpack.c.l.b16 %v244
      %v517 = vunpack.c.l.b16 %v245
      %v518 = vunpack.c.l.b16 %v246
      %v519 = vunpack.c.l.b16 %v247
      %v520 = vunpack.c.l.b16 %v248
      %v521 = vunpack.c.l.b16 %v249
      %v522 = vunpack.c.l.b16 %v250
      %v523 = vunpack.c.l.b16 %v251
      %v524 = vunpack.c.l.b16 %v252
      %v525 = vunpack.c.l.b16 %v253
      %v526 = vunpack.c.l.b16 %v254
      %v527 = vunpack.c.l.b16 %v255
      %v528 = vunpack.c.l.b16 %v256
      %v529 = vunpack.c.l.b16 %v257
      %v530 = vunpack.c.l.b16 %v258
      %v531 = vunpack.c.l.b16 %v259
      %v532 = vunpack.c.l.b16 %v260
      %v533 = vunpack.c.l.b16 %v261
      %v534 = vunpack.c.l.b16 %v262
      %v535 = vunpack.c.l.b16 %v263
      %v536 = vunpack.c.l.b16 %v264
      %v537 = vunpack.c.l.b16 %v265
      %v538 = vunpack.c.l.b16 %v266
      %v539 = vunpack.c.l.b16 %v267
      %v540 = vunpack.c.l.b16 %v268
      %v541 = vunpack.c.l.b16 %v269
      %v542 = vunpack.c.l.b16 %v270
      %v543 = vunpack.c.l.b16 %v271
      %v544 = vunpack.c.l.b16 %v272
      %v545 = vunpack.c.l.b16 %v273
      %v546 = vunpack.c.l.b16 %v274
      %v547 = vunpack.c.l.b16 %v275
      %v548 = vunpack.c.l.b16 %v276
      %v549 = vunpack.c.l.b16 %v277
      %v550 = vunpack.c.l.b16 %v278
      %v551 = vunpack.c.l.b16 %v279
      %v552 = vunpack.c.l.b16 %v280
      %v553 = vunpack.c.l.b16 %v281
      %v554 = vunpack.c.l.b16 %v282
      %v555 = vunpack.c.l.b16 %v283
      %v556 = vunpack.c.l.b16 %v284
      %v557 = vunpack.c.l.b16 %v285
      %v558 = vunpack.c.l.b16 %v286
      %v559 = vunpack.c.l.b16 %v287
      %v560 = vunpack.c.l.b16 %v288
      %v561 = vunpack.c.l.b16 %v289
      %v562 = vunpack.c.l.b16 %v290
      %v563 = vunpack.c.l.b16 %v291
      %v564 = vunpack.c.l.b16 %v292
      %v565 = vunpack.c.l.b16 %v293
      %v566 = vunpack.c.l.b16 %v294
      %v567 = vunpack.c.l.b16 %v295
      %v568 = vunpack.c.l.b16 %v296
      %v569 = vunpack.c.l.b16 %v297
      %v570 = vunpack.c.l.b16 %v298
      %v571 = vunpack.c.l.b16 %v299
      %v572 = vunpack.c.l.b16 %v300
      %v573 = vunpack.c.l.b16 %v301
      %v574 = vunpack.c.l.b16 %v302
      %v575 = vunpack.c.l.b16 %v303
      %v576 = vunpack.c.l.b16 %v304
      %v577 = vunpack.c.l.b16 %v305
      %v578 = vunpack.c.l.b16 %v306
      %v579 = vunpack.c.l.b16 %v307
      %v580 = vunpack.c.l.b16 %v308
      %v581 = vunpack.c.l.b16 %v309
      %v582 = vunpack.c.l.b16 %v310
      %v583 = vunpack.c.l.b16 %v311
      %v584 = vunpack.c.l.b16 %v312
      %v585 = vunpack.c.l.b16 %v313
      %v586 = vunpack.c.l.b16 %v314
      %v587 = vunpack.c.l.b16 %v315
      %v588 = vunpack.c.l.b16 %v316
      %v589 = vunpack.c.l.b16 %v317
      %v590 = vunpack.c.l.b16 %v318
      %v591 = vunpack.c.l.b16 %v319
      %v592 = vunpack.c.l.b16 %v320
      %v593 = vunpack.c.l.b16 %v321
      %v594 = vunpack.c.l.b16 %v322
      %v595 = vunpack.c.l.b16 %v323
      %v596 = vunpack.c.l.b16 %v324
      %v597 = vunpack.c.l.b16 %v325
      %v598 = vunpack.c.l.b16 %v326
      %v599 = vunpack.c.l.b16 %v327
      %v600 = vunpack.c.l.b16 %v328
      %v601 = vunpack.c.l.b16 %v329
      %v602 = vunpack.c.l.b16 %v330
      %v603 = vunpack.c.l.b16 %v331
      %v604 = vunpack.c.l.b16 %v332
      %v605 = vunpack.c.l.b16 %v333
      %v606 = vunpack.c.l.b16 %v334
      %v607 = vunpack.c.l.b16 %v335
      %v608 = vunpack.c.l.b16 %v336
      %v609 = vunpack.c.l.b16 %v337
      %v610 = vunpack.c.l.b16 %v338
      %v611 = vunpack.c.l.b16 %v339
      %v612 = vunpack.c.l.b16 %v340
      %v613 = vunpack.c.l.b16 %v341
      %v614 = vunpack.c.l.b16 %v342
      %v615 = vunpack.c.l.b16 %v343
      %v616 = vunpack.c.l.b16 %v344
      %v617 = vunpack.c.l.b16 %v345
      %v618 = vunpack.c.l.b16 %v346
      %v619 = vunpack.c.l.b16 %v347
      %v620 = vunpack.c.l.b16 %v348
      %v621 = vunpack.c.l.b16 %v349
      %v622 = vunpack.c.l.b16 %v350
      %v623 = vunpack.c.l.b16 %v351
      %v624 = vunpack.c.l.b16 %v352
      %v625 = vunpack.c.l.b16 %v353
      %v626 = vunpack.c.l.b16 %v354
      %v627 = vunpack.c.l.b16 %v355
      %v628 = vunpack.c.l.b16 %v356
      %v629 = vunpack.c.l.b16 %v357
      %v630 = vpack.c.b16 %v503, %v502
      %v631 = vpack.c.b16 %v505, %v504
      %v632 = vpack.c.b16 %v507, %v506
      %v633 = vpack.c.b16 %v509, %v508
      %v634 = vpack.c.b16 %v511, %v510
      %v635 = vpack.c.b16 %v513, %v512
      %v636 = vpack.c.b16 %v515, %v514
      %v637 = vpack.c.b16 %v517, %v516
      %v638 = vpack.c.b16 %v519, %v518
      %v639 = vpack.c.b16 %v521, %v520
      %v640 = vpack.c.b16 %v523, %v522
      %v641 = vpack.c.b16 %v525, %v524
      %v642 = vpack.c.b16 %v527, %v526
      %v643 = vpack.c.b16 %v529, %v528
      %v644 = vpack.c.b16 %v531, %v530
      %v645 = vpack.c.b16 %v533, %v532
      %v646 = vpack.c.b16 %v535, %v534
      %v647 = vpack.c.b16 %v537, %v536
      %v648 = vpack.c.b16 %v539, %v538
      %v649 = vpack.c.b16 %v541, %v540
      %v650 = vpack.c.b16 %v543, %v542
      %v651 = vpack.c.b16 %v545, %v544
      %v652 = vpack.c.b16 %v547, %v546
      %v653 = vpack.c.b16 %v549, %v548
      %v654 = vpack.c.b16 %v551, %v550
      %v655 = vpack.c.b16 %v553, %v552
      %v656 = vpack.c.b16 %v555, %v554
      %v657 = vpack.c.b16 %v557, %v556
      %v658 = vpack.c.b16 %v559, %v558
      %v659 = vpack.c.b16 %v561, %v560
      %v660 = vpack.c.b16 %v563, %v562
      %v661 = vpack.c.b16 %v565, %v564
      %v662 = vpack.c.b16 %v567, %v566
      %v663 = vpack.c.b16 %v569, %v568
      %v664 = vpack.c.b16 %v571, %v570
      %v665 = vpack.c.b16 %v573, %v572
      %v666 = vpack.c.b16 %v575, %v574
      %v667 = vpack.c.b16 %v577, %v576
      %v668 = vpack.c.b16 %v579, %v578
      %v669 = vpack.c.b16 %v581, %v580
      %v670 = vpack.c.b16 %v583, %v582
      %v671 = vpack.c.b16 %v585, %v584
      %v672 = vpack.c.b16 %v587, %v586
      %v673 = vpack.c.b16 %v589, %v588
      %v674 = vpack.c.b16 %v591, %v590
      %v675 = vpack.c.b16 %v593, %v592
      %v676 = vpack.c.b16 %v595, %v594
      %v677 = vpack.c.b16 %v597, %v596
      %v678 = vpack.c.b16 %v599, %v598
      %v679 = vpack.c.b16 %v601, %v600
      %v680 = vpack.c.b16 %v603, %v602
      %v681 = vpack.c.b16 %v605, %v604
      %v682 = vpack.c.b16 %v607, %v606
      %v683 = vpack.c.b16 %v609, %v608
      %v684 = vpack.c.b16 %v611, %v610
      %v685 = vpack.c.b16 %v613, %v612
      %v686 = vpack.c.b16 %v615, %v614
      %v687 = vpack.c.b16 %v617, %v616
      %v688 = vpack.c.b16 %v619, %v618
      %v689 = vpack.c.b16 %v621, %v620
      %v690 = vpack.c.b16 %v623, %v622
      %v691 = vpack.c.b16 %v625, %v624
      %v692 = vpack.c.b16 %v627, %v626
      %v693 = vpack.c.b16 %v629, %v628
      %v774 = vunpack.c.l.b16 %v358
      %v775 = vunpack.c.l.b16 %v359
      %v776 = vunpack.c.l.b16 %v360
      %v777 = vunpack.c.l.b16 %v361
      %v778 = vunpack.c.l.b16 %v362
      %v779 = vunpack.c.l.b16 %v363
      %v780 = vunpack.c.l.b16 %v364
      %v781 = vunpack.c.l.b16 %v365
      %v782 = vunpack.c.l.b16 %v366
      %v783 = vunpack.c.l.b16 %v367
      %v784 = vunpack.c.l.b16 %v368
      %v785 = vunpack.c.l.b16 %v369
      %v786 = vunpack.c.l.b16 %v370
      %v787 = vunpack.c.l.b16 %v371
      %v788 = vunpack.c.l.b16 %v372
      %v789 = vunpack.c.l.b16 %v373
      %v790 = vpack.c.b16 %v775, %v774
      %v791 = vpack.c.b16 %v777, %v776
      %v792 = vpack.c.b16 %v779, %v778
      %v793 = vpack.c.b16 %v781, %v780
      %v794 = vpack.c.b16 %v783, %v782
      %v795 = vpack.c.b16 %v785, %v784
      %v796 = vpack.c.b16 %v787, %v786
      %v797 = vpack.c.b16 %v789, %v788
      %806 = vmatprep.subr.bf16.mxu0 0
      %807 = vmatpush1.bf16.msra.mxu0 %v797
      %808 = vmatprep.subr.bf16.mxu0 0
      %809 = vmatpush1.bf16.msra.mxu0 %v796
      %810 = vmatprep.subr.bf16.mxu0 0
      %811 = vmatpush1.bf16.msra.mxu0 %v795
      %812 = vmatprep.subr.bf16.mxu0 0
      %813 = vmatpush1.bf16.msra.mxu0 %v794
      %814 = vmatprep.subr.bf16.mxu0 0
      %815 = vmatpush1.bf16.msra.mxu0 %v793
      %816 = vmatprep.subr.bf16.mxu0 0
      %817 = vmatpush1.bf16.msra.mxu0 %v792
      %818 = vmatprep.subr.bf16.mxu0 0
      %819 = vmatpush1.bf16.msra.mxu0 %v791
      %820 = vmatprep.subr.bf16.mxu0 0
      %821 = vmatpush1.bf16.msra.mxu0 %v790
      %822 = vmatprep.subr.bf16.mxu0 0
      %823 = vmatpush2.bf16.msra.mxu0 0
      %824 = vmatprep.subr.bf16.mxu0 0
      %825 = vmatpush2.bf16.msra.mxu0 0
      %826 = vmatprep.subr.bf16.mxu0 0
      %827 = vmatpush2.bf16.msra.mxu0 0
      %828 = vmatprep.subr.bf16.mxu0 0
      %829 = vmatpush2.bf16.msra.mxu0 0
      %830 = vmatprep.subr.bf16.mxu0 0
      %831 = vmatpush2.bf16.msra.mxu0 0
      %832 = vmatprep.subr.bf16.mxu0 0
      %833 = vmatpush2.bf16.msra.mxu0 0
      %834 = vmatprep.subr.bf16.mxu0 0
      %835 = vmatpush2.bf16.msra.mxu0 0
      %836 = vmatprep.subr.bf16.mxu0 0
      %837 = vmatpush2.bf16.msra.mxu0 0
      %838 = vmatprep.mubr.bf16.mxu0 0
      %839 = vmatmul.mubr.bf16.gmra.mxu0 %v630
      %v840 = vpop.f32.mrf.mxu0
      %v841 = vadd.f32 0.0, %v840
      %v842 = vpop.f32.mrf.mxu0
      %v843 = vpop.f32.mrf.mxu0
      %v844 = vadd.f32 0.0, %v843
      %v845 = vpop.f32.mrf.mxu0
      %846 = vmatprep.mubr.bf16.mxu0 0
      %847 = vmatmul.mubr.bf16.gmra.mxu0 %v631
      %v848 = vpop.f32.mrf.mxu0
      %v849 = vadd.f32 0.0, %v848
      %v850 = vpop.f32.mrf.mxu0
      %v851 = vpop.f32.mrf.mxu0
      %v852 = vadd.f32 0.0, %v851
      %v853 = vpop.f32.mrf.mxu0
      %854 = vmatprep.mubr.bf16.mxu0 0
      %855 = vmatmul.mubr.bf16.gmra.mxu0 %v632
      %v856 = vpop.f32.mrf.mxu0
      %v857 = vadd.f32 0.0, %v856
      %v858 = vpop.f32.mrf.mxu0
      %v859 = vpop.f32.mrf.mxu0
      %v860 = vadd.f32 0.0, %v859
      %v861 = vpop.f32.mrf.mxu0
      %862 = vmatprep.mubr.bf16.mxu0 0
      %863 = vmatmul.mubr.bf16.gmra.mxu0 %v633
      %v864 = vpop.f32.mrf.mxu0
      %v865 = vadd.f32 0.0, %v864
      %v866 = vpop.f32.mrf.mxu0
      %v867 = vpop.f32.mrf.mxu0
      %v868 = vadd.f32 0.0, %v867
      %v869 = vpop.f32.mrf.mxu0
      %870 = vmatprep.mubr.bf16.mxu0 0
      %871 = vmatmul.mubr.bf16.gmra.mxu0 %v634
      %v872 = vpop.f32.mrf.mxu0
      %v873 = vadd.f32 0.0, %v872
      %v874 = vpop.f32.mrf.mxu0
      %v875 = vpop.f32.mrf.mxu0
      %v876 = vadd.f32 0.0, %v875
      %v877 = vpop.f32.mrf.mxu0
      %878 = vmatprep.mubr.bf16.mxu0 0
      %879 = vmatmul.mubr.bf16.gmra.mxu0 %v635
      %v880 = vpop.f32.mrf.mxu0
      %v881 = vadd.f32 0.0, %v880
      %v882 = vpop.f32.mrf.mxu0
      %v883 = vpop.f32.mrf.mxu0
      %v884 = vadd.f32 0.0, %v883
      %v885 = vpop.f32.mrf.mxu0
      %886 = vmatprep.mubr.bf16.mxu0 0
      %887 = vmatmul.mubr.bf16.gmra.mxu0 %v636
      %v888 = vpop.f32.mrf.mxu0
      %v889 = vadd.f32 0.0, %v888
      %v890 = vpop.f32.mrf.mxu0
      %v891 = vpop.f32.mrf.mxu0
      %v892 = vadd.f32 0.0, %v891
      %v893 = vpop.f32.mrf.mxu0
      %894 = vmatprep.mubr.bf16.mxu0 0
      %895 = vmatmul.mubr.bf16.gmra.mxu0 %v637
      %v896 = vpop.f32.mrf.mxu0
      %v897 = vadd.f32 0.0, %v896
      %v898 = vpop.f32.mrf.mxu0
      %v899 = vpop.f32.mrf.mxu0
      %v900 = vadd.f32 0.0, %v899
      %v901 = vpop.f32.mrf.mxu0
      %902 = vmatprep.mubr.bf16.mxu0 0
      %903 = vmatmul.mubr.bf16.gmra.mxu0 %v638
      %v904 = vpop.f32.mrf.mxu0
      %v905 = vadd.f32 0.0, %v904
      %v906 = vpop.f32.mrf.mxu0
      %v907 = vpop.f32.mrf.mxu0
      %v908 = vadd.f32 0.0, %v907
      %v909 = vpop.f32.mrf.mxu0
      %910 = vmatprep.mubr.bf16.mxu0 0
      %911 = vmatmul.mubr.bf16.gmra.mxu0 %v639
      %v912 = vpop.f32.mrf.mxu0
      %v913 = vadd.f32 0.0, %v912
      %v914 = vpop.f32.mrf.mxu0
      %v915 = vpop.f32.mrf.mxu0
      %v916 = vadd.f32 0.0, %v915
      %v917 = vpop.f32.mrf.mxu0
      %918 = vmatprep.mubr.bf16.mxu0 0
      %919 = vmatmul.mubr.bf16.gmra.mxu0 %v640
      %v920 = vpop.f32.mrf.mxu0
      %v921 = vadd.f32 0.0, %v920
      %v922 = vpop.f32.mrf.mxu0
      %v923 = vpop.f32.mrf.mxu0
      %v924 = vadd.f32 0.0, %v923
      %v925 = vpop.f32.mrf.mxu0
      %926 = vmatprep.mubr.bf16.mxu0 0
      %927 = vmatmul.mubr.bf16.gmra.mxu0 %v641
      %v928 = vpop.f32.mrf.mxu0
      %v929 = vadd.f32 0.0, %v928
      %v930 = vpop.f32.mrf.mxu0
      %v931 = vpop.f32.mrf.mxu0
      %v932 = vadd.f32 0.0, %v931
      %v933 = vpop.f32.mrf.mxu0
      %934 = vmatprep.mubr.bf16.mxu0 0
      %935 = vmatmul.mubr.bf16.gmra.mxu0 %v642
      %v936 = vpop.f32.mrf.mxu0
      %v937 = vadd.f32 0.0, %v936
      %v938 = vpop.f32.mrf.mxu0
      %v939 = vpop.f32.mrf.mxu0
      %v940 = vadd.f32 0.0, %v939
      %v941 = vpop.f32.mrf.mxu0
      %942 = vmatprep.mubr.bf16.mxu0 0
      %943 = vmatmul.mubr.bf16.gmra.mxu0 %v643
      %v944 = vpop.f32.mrf.mxu0
      %v945 = vadd.f32 0.0, %v944
      %v946 = vpop.f32.mrf.mxu0
      %v947 = vpop.f32.mrf.mxu0
      %v948 = vadd.f32 0.0, %v947
      %v949 = vpop.f32.mrf.mxu0
      %950 = vmatprep.mubr.bf16.mxu0 0
      %951 = vmatmul.mubr.bf16.gmra.mxu0 %v644
      %v952 = vpop.f32.mrf.mxu0
      %v953 = vadd.f32 0.0, %v952
      %v954 = vpop.f32.mrf.mxu0
      %v955 = vpop.f32.mrf.mxu0
      %v956 = vadd.f32 0.0, %v955
      %v957 = vpop.f32.mrf.mxu0
      %958 = vmatprep.mubr.bf16.mxu0 0
      %959 = vmatmul.mubr.bf16.gmra.mxu0 %v645
      %v960 = vpop.f32.mrf.mxu0
      %v961 = vadd.f32 0.0, %v960
      %v962 = vpop.f32.mrf.mxu0
      %v963 = vpop.f32.mrf.mxu0
      %v964 = vadd.f32 0.0, %v963
      %v965 = vpop.f32.mrf.mxu0
      %966 = vmatprep.mubr.bf16.mxu0 0
      %967 = vmatmul.mubr.bf16.gmra.mxu0 %v646
      %v968 = vpop.f32.mrf.mxu0
      %v969 = vadd.f32 0.0, %v968
      %v970 = vpop.f32.mrf.mxu0
      %v971 = vpop.f32.mrf.mxu0
      %v972 = vadd.f32 0.0, %v971
      %v973 = vpop.f32.mrf.mxu0
      %974 = vmatprep.mubr.bf16.mxu0 0
      %975 = vmatmul.mubr.bf16.gmra.mxu0 %v647
      %v976 = vpop.f32.mrf.mxu0
      %v977 = vadd.f32 0.0, %v976
      %v978 = vpop.f32.mrf.mxu0
      %v979 = vpop.f32.mrf.mxu0
      %v980 = vadd.f32 0.0, %v979
      %v981 = vpop.f32.mrf.mxu0
      %982 = vmatprep.mubr.bf16.mxu0 0
      %983 = vmatmul.mubr.bf16.gmra.mxu0 %v648
      %v984 = vpop.f32.mrf.mxu0
      %v985 = vadd.f32 0.0, %v984
      %v986 = vpop.f32.mrf.mxu0
      %v987 = vpop.f32.mrf.mxu0
      %v988 = vadd.f32 0.0, %v987
      %v989 = vpop.f32.mrf.mxu0
      %990 = vmatprep.mubr.bf16.mxu0 0
      %991 = vmatmul.mubr.bf16.gmra.mxu0 %v649
      %v992 = vpop.f32.mrf.mxu0
      %v993 = vadd.f32 0.0, %v992
      %v994 = vpop.f32.mrf.mxu0
      %v995 = vpop.f32.mrf.mxu0
      %v996 = vadd.f32 0.0, %v995
      %v997 = vpop.f32.mrf.mxu0
      %998 = vmatprep.mubr.bf16.mxu0 0
      %999 = vmatmul.mubr.bf16.gmra.mxu0 %v650
      %v1000 = vpop.f32.mrf.mxu0
      %v1001 = vadd.f32 0.0, %v1000
      %v1002 = vpop.f32.mrf.mxu0
      %v1003 = vpop.f32.mrf.mxu0
      %v1004 = vadd.f32 0.0, %v1003
      %v1005 = vpop.f32.mrf.mxu0
      %1006 = vmatprep.mubr.bf16.mxu0 0
      %1007 = vmatmul.mubr.bf16.gmra.mxu0 %v651
      %v1008 = vpop.f32.mrf.mxu0
      %v1009 = vadd.f32 0.0, %v1008
      %v1010 = vpop.f32.mrf.mxu0
      %v1011 = vpop.f32.mrf.mxu0
      %v1012 = vadd.f32 0.0, %v1011
      %v1013 = vpop.f32.mrf.mxu0
      %1014 = vmatprep.mubr.bf16.mxu0 0
      %1015 = vmatmul.mubr.bf16.gmra.mxu0 %v652
      %v1016 = vpop.f32.mrf.mxu0
      %v1017 = vadd.f32 0.0, %v1016
      %v1018 = vpop.f32.mrf.mxu0
      %v1019 = vpop.f32.mrf.mxu0
      %v1020 = vadd.f32 0.0, %v1019
      %v1021 = vpop.f32.mrf.mxu0
      %1022 = vmatprep.mubr.bf16.mxu0 0
      %1023 = vmatmul.mubr.bf16.gmra.mxu0 %v653
      %v1024 = vpop.f32.mrf.mxu0
      %v1025 = vadd.f32 0.0, %v1024
      %v1026 = vpop.f32.mrf.mxu0
      %v1027 = vpop.f32.mrf.mxu0
      %v1028 = vadd.f32 0.0, %v1027
      %v1029 = vpop.f32.mrf.mxu0
      %1030 = vmatprep.mubr.bf16.mxu0 0
      %1031 = vmatmul.mubr.bf16.gmra.mxu0 %v654
      %v1032 = vpop.f32.mrf.mxu0
      %v1033 = vadd.f32 0.0, %v1032
      %v1034 = vpop.f32.mrf.mxu0
      %v1035 = vpop.f32.mrf.mxu0
      %v1036 = vadd.f32 0.0, %v1035
      %v1037 = vpop.f32.mrf.mxu0
      %1038 = vmatprep.mubr.bf16.mxu0 0
      %1039 = vmatmul.mubr.bf16.gmra.mxu0 %v655
      %v1040 = vpop.f32.mrf.mxu0
      %v1041 = vadd.f32 0.0, %v1040
      %v1042 = vpop.f32.mrf.mxu0
      %v1043 = vpop.f32.mrf.mxu0
      %v1044 = vadd.f32 0.0, %v1043
      %v1045 = vpop.f32.mrf.mxu0
      %1046 = vmatprep.mubr.bf16.mxu0 0
      %1047 = vmatmul.mubr.bf16.gmra.mxu0 %v656
      %v1048 = vpop.f32.mrf.mxu0
      %v1049 = vadd.f32 0.0, %v1048
      %v1050 = vpop.f32.mrf.mxu0
      %v1051 = vpop.f32.mrf.mxu0
      %v1052 = vadd.f32 0.0, %v1051
      %v1053 = vpop.f32.mrf.mxu0
      %1054 = vmatprep.mubr.bf16.mxu0 0
      %1055 = vmatmul.mubr.bf16.gmra.mxu0 %v657
      %v1056 = vpop.f32.mrf.mxu0
      %v1057 = vadd.f32 0.0, %v1056
      %v1058 = vpop.f32.mrf.mxu0
      %v1059 = vpop.f32.mrf.mxu0
      %v1060 = vadd.f32 0.0, %v1059
      %v1061 = vpop.f32.mrf.mxu0
      %1062 = vmatprep.mubr.bf16.mxu0 0
      %1063 = vmatmul.mubr.bf16.gmra.mxu0 %v658
      %v1064 = vpop.f32.mrf.mxu0
      %v1065 = vadd.f32 0.0, %v1064
      %v1066 = vpop.f32.mrf.mxu0
      %v1067 = vpop.f32.mrf.mxu0
      %v1068 = vadd.f32 0.0, %v1067
      %v1069 = vpop.f32.mrf.mxu0
      %1070 = vmatprep.mubr.bf16.mxu0 0
      %1071 = vmatmul.mubr.bf16.gmra.mxu0 %v659
      %v1072 = vpop.f32.mrf.mxu0
      %v1073 = vadd.f32 0.0, %v1072
      %v1074 = vpop.f32.mrf.mxu0
      %v1075 = vpop.f32.mrf.mxu0
      %v1076 = vadd.f32 0.0, %v1075
      %v1077 = vpop.f32.mrf.mxu0
      %1078 = vmatprep.mubr.bf16.mxu0 0
      %1079 = vmatmul.mubr.bf16.gmra.mxu0 %v660
      %v1080 = vpop.f32.mrf.mxu0
      %v1081 = vadd.f32 0.0, %v1080
      %v1082 = vpop.f32.mrf.mxu0
      %v1083 = vpop.f32.mrf.mxu0
      %v1084 = vadd.f32 0.0, %v1083
      %v1085 = vpop.f32.mrf.mxu0
      %1086 = vmatprep.mubr.bf16.mxu0 0
      %1087 = vmatmul.mubr.bf16.gmra.mxu0 %v661
      %v1088 = vpop.f32.mrf.mxu0
      %v1089 = vadd.f32 0.0, %v1088
      %v1090 = vpop.f32.mrf.mxu0
      %v1091 = vpop.f32.mrf.mxu0
      %v1092 = vadd.f32 0.0, %v1091
      %v1093 = vpop.f32.mrf.mxu0
      %1094 = vmatprep.mubr.bf16.mxu0 0
      %1095 = vmatmul.mubr.bf16.gmra.mxu0 %v662
      %v1096 = vpop.f32.mrf.mxu0
      %v1097 = vadd.f32 0.0, %v1096
      %v1098 = vpop.f32.mrf.mxu0
      %v1099 = vpop.f32.mrf.mxu0
      %v1100 = vadd.f32 0.0, %v1099
      %v1101 = vpop.f32.mrf.mxu0
      %1102 = vmatprep.mubr.bf16.mxu0 0
      %1103 = vmatmul.mubr.bf16.gmra.mxu0 %v663
      %v1104 = vpop.f32.mrf.mxu0
      %v1105 = vadd.f32 0.0, %v1104
      %v1106 = vpop.f32.mrf.mxu0
      %v1107 = vpop.f32.mrf.mxu0
      %v1108 = vadd.f32 0.0, %v1107
      %v1109 = vpop.f32.mrf.mxu0
      %1110 = vmatprep.mubr.bf16.mxu0 0
      %1111 = vmatmul.mubr.bf16.gmra.mxu0 %v664
      %v1112 = vpop.f32.mrf.mxu0
      %v1113 = vadd.f32 0.0, %v1112
      %v1114 = vpop.f32.mrf.mxu0
      %v1115 = vpop.f32.mrf.mxu0
      %v1116 = vadd.f32 0.0, %v1115
      %v1117 = vpop.f32.mrf.mxu0
      %1118 = vmatprep.mubr.bf16.mxu0 0
      %1119 = vmatmul.mubr.bf16.gmra.mxu0 %v665
      %v1120 = vpop.f32.mrf.mxu0
      %v1121 = vadd.f32 0.0, %v1120
      %v1122 = vpop.f32.mrf.mxu0
      %v1123 = vpop.f32.mrf.mxu0
      %v1124 = vadd.f32 0.0, %v1123
      %v1125 = vpop.f32.mrf.mxu0
      %1126 = vmatprep.mubr.bf16.mxu0 0
      %1127 = vmatmul.mubr.bf16.gmra.mxu0 %v666
      %v1128 = vpop.f32.mrf.mxu0
      %v1129 = vadd.f32 0.0, %v1128
      %v1130 = vpop.f32.mrf.mxu0
      %v1131 = vpop.f32.mrf.mxu0
      %v1132 = vadd.f32 0.0, %v1131
      %v1133 = vpop.f32.mrf.mxu0
      %1134 = vmatprep.mubr.bf16.mxu0 0
      %1135 = vmatmul.mubr.bf16.gmra.mxu0 %v667
      %v1136 = vpop.f32.mrf.mxu0
      %v1137 = vadd.f32 0.0, %v1136
      %v1138 = vpop.f32.mrf.mxu0
      %v1139 = vpop.f32.mrf.mxu0
      %v1140 = vadd.f32 0.0, %v1139
      %v1141 = vpop.f32.mrf.mxu0
      %1142 = vmatprep.mubr.bf16.mxu0 0
      %1143 = vmatmul.mubr.bf16.gmra.mxu0 %v668
      %v1144 = vpop.f32.mrf.mxu0
      %v1145 = vadd.f32 0.0, %v1144
      %v1146 = vpop.f32.mrf.mxu0
      %v1147 = vpop.f32.mrf.mxu0
      %v1148 = vadd.f32 0.0, %v1147
      %v1149 = vpop.f32.mrf.mxu0
      %1150 = vmatprep.mubr.bf16.mxu0 0
      %1151 = vmatmul.mubr.bf16.gmra.mxu0 %v669
      %v1152 = vpop.f32.mrf.mxu0
      %v1153 = vadd.f32 0.0, %v1152
      %v1154 = vpop.f32.mrf.mxu0
      %v1155 = vpop.f32.mrf.mxu0
      %v1156 = vadd.f32 0.0, %v1155
      %v1157 = vpop.f32.mrf.mxu0
      %1158 = vmatprep.mubr.bf16.mxu0 0
      %1159 = vmatmul.mubr.bf16.gmra.mxu0 %v670
      %v1160 = vpop.f32.mrf.mxu0
      %v1161 = vadd.f32 0.0, %v1160
      %v1162 = vpop.f32.mrf.mxu0
      %v1163 = vpop.f32.mrf.mxu0
      %v1164 = vadd.f32 0.0, %v1163
      %v1165 = vpop.f32.mrf.mxu0
      %1166 = vmatprep.mubr.bf16.mxu0 0
      %1167 = vmatmul.mubr.bf16.gmra.mxu0 %v671
      %v1168 = vpop.f32.mrf.mxu0
      %v1169 = vadd.f32 0.0, %v1168
      %v1170 = vpop.f32.mrf.mxu0
      %v1171 = vpop.f32.mrf.mxu0
      %v1172 = vadd.f32 0.0, %v1171
      %v1173 = vpop.f32.mrf.mxu0
      %1174 = vmatprep.mubr.bf16.mxu0 0
      %1175 = vmatmul.mubr.bf16.gmra.mxu0 %v672
      %v1176 = vpop.f32.mrf.mxu0
      %v1177 = vadd.f32 0.0, %v1176
      %v1178 = vpop.f32.mrf.mxu0
      %v1179 = vpop.f32.mrf.mxu0
      %v1180 = vadd.f32 0.0, %v1179
      %v1181 = vpop.f32.mrf.mxu0
      %1182 = vmatprep.mubr.bf16.mxu0 0
      %1183 = vmatmul.mubr.bf16.gmra.mxu0 %v673
      %v1184 = vpop.f32.mrf.mxu0
      %v1185 = vadd.f32 0.0, %v1184
      %v1186 = vpop.f32.mrf.mxu0
      %v1187 = vpop.f32.mrf.mxu0
      %v1188 = vadd.f32 0.0, %v1187
      %v1189 = vpop.f32.mrf.mxu0
      %1190 = vmatprep.mubr.bf16.mxu0 0
      %1191 = vmatmul.mubr.bf16.gmra.mxu0 %v674
      %v1192 = vpop.f32.mrf.mxu0
      %v1193 = vadd.f32 0.0, %v1192
      %v1194 = vpop.f32.mrf.mxu0
      %v1195 = vpop.f32.mrf.mxu0
      %v1196 = vadd.f32 0.0, %v1195
      %v1197 = vpop.f32.mrf.mxu0
      %1198 = vmatprep.mubr.bf16.mxu0 0
      %1199 = vmatmul.mubr.bf16.gmra.mxu0 %v675
      %v1200 = vpop.f32.mrf.mxu0
      %v1201 = vadd.f32 0.0, %v1200
      %v1202 = vpop.f32.mrf.mxu0
      %v1203 = vpop.f32.mrf.mxu0
      %v1204 = vadd.f32 0.0, %v1203
      %v1205 = vpop.f32.mrf.mxu0
      %1206 = vmatprep.mubr.bf16.mxu0 0
      %1207 = vmatmul.mubr.bf16.gmra.mxu0 %v676
      %v1208 = vpop.f32.mrf.mxu0
      %v1209 = vadd.f32 0.0, %v1208
      %v1210 = vpop.f32.mrf.mxu0
      %v1211 = vpop.f32.mrf.mxu0
      %v1212 = vadd.f32 0.0, %v1211
      %v1213 = vpop.f32.mrf.mxu0
      %1214 = vmatprep.mubr.bf16.mxu0 0
      %1215 = vmatmul.mubr.bf16.gmra.mxu0 %v677
      %v1216 = vpop.f32.mrf.mxu0
      %v1217 = vadd.f32 0.0, %v1216
      %v1218 = vpop.f32.mrf.mxu0
      %v1219 = vpop.f32.mrf.mxu0
      %v1220 = vadd.f32 0.0, %v1219
      %v1221 = vpop.f32.mrf.mxu0
      %1222 = vmatprep.mubr.bf16.mxu0 0
      %1223 = vmatmul.mubr.bf16.gmra.mxu0 %v678
      %v1224 = vpop.f32.mrf.mxu0
      %v1225 = vadd.f32 0.0, %v1224
      %v1226 = vpop.f32.mrf.mxu0
      %v1227 = vpop.f32.mrf.mxu0
      %v1228 = vadd.f32 0.0, %v1227
      %v1229 = vpop.f32.mrf.mxu0
      %1230 = vmatprep.mubr.bf16.mxu0 0
      %1231 = vmatmul.mubr.bf16.gmra.mxu0 %v679
      %v1232 = vpop.f32.mrf.mxu0
      %v1233 = vadd.f32 0.0, %v1232
      %v1234 = vpop.f32.mrf.mxu0
      %v1235 = vpop.f32.mrf.mxu0
      %v1236 = vadd.f32 0.0, %v1235
      %v1237 = vpop.f32.mrf.mxu0
      %1238 = vmatprep.mubr.bf16.mxu0 0
      %1239 = vmatmul.mubr.bf16.gmra.mxu0 %v680
      %v1240 = vpop.f32.mrf.mxu0
      %v1241 = vadd.f32 0.0, %v1240
      %v1242 = vpop.f32.mrf.mxu0
      %v1243 = vpop.f32.mrf.mxu0
      %v1244 = vadd.f32 0.0, %v1243
      %v1245 = vpop.f32.mrf.mxu0
      %1246 = vmatprep.mubr.bf16.mxu0 0
      %1247 = vmatmul.mubr.bf16.gmra.mxu0 %v681
      %v1248 = vpop.f32.mrf.mxu0
      %v1249 = vadd.f32 0.0, %v1248
      %v1250 = vpop.f32.mrf.mxu0
      %v1251 = vpop.f32.mrf.mxu0
      %v1252 = vadd.f32 0.0, %v1251
      %v1253 = vpop.f32.mrf.mxu0
      %1254 = vmatprep.mubr.bf16.mxu0 0
      %1255 = vmatmul.mubr.bf16.gmra.mxu0 %v682
      %v1256 = vpop.f32.mrf.mxu0
      %v1257 = vadd.f32 0.0, %v1256
      %v1258 = vpop.f32.mrf.mxu0
      %v1259 = vpop.f32.mrf.mxu0
      %v1260 = vadd.f32 0.0, %v1259
      %v1261 = vpop.f32.mrf.mxu0
      %1262 = vmatprep.mubr.bf16.mxu0 0
      %1263 = vmatmul.mubr.bf16.gmra.mxu0 %v683
      %v1264 = vpop.f32.mrf.mxu0
      %v1265 = vadd.f32 0.0, %v1264
      %v1266 = vpop.f32.mrf.mxu0
      %v1267 = vpop.f32.mrf.mxu0
      %v1268 = vadd.f32 0.0, %v1267
      %v1269 = vpop.f32.mrf.mxu0
      %1270 = vmatprep.mubr.bf16.mxu0 0
      %1271 = vmatmul.mubr.bf16.gmra.mxu0 %v684
      %v1272 = vpop.f32.mrf.mxu0
      %v1273 = vadd.f32 0.0, %v1272
      %v1274 = vpop.f32.mrf.mxu0
      %v1275 = vpop.f32.mrf.mxu0
      %v1276 = vadd.f32 0.0, %v1275
      %v1277 = vpop.f32.mrf.mxu0
      %1278 = vmatprep.mubr.bf16.mxu0 0
      %1279 = vmatmul.mubr.bf16.gmra.mxu0 %v685
      %v1280 = vpop.f32.mrf.mxu0
      %v1281 = vadd.f32 0.0, %v1280
      %v1282 = vpop.f32.mrf.mxu0
      %v1283 = vpop.f32.mrf.mxu0
      %v1284 = vadd.f32 0.0, %v1283
      %v1285 = vpop.f32.mrf.mxu0
      %1286 = vmatprep.mubr.bf16.mxu0 0
      %1287 = vmatmul.mubr.bf16.gmra.mxu0 %v686
      %v1288 = vpop.f32.mrf.mxu0
      %v1289 = vadd.f32 0.0, %v1288
      %v1290 = vpop.f32.mrf.mxu0
      %v1291 = vpop.f32.mrf.mxu0
      %v1292 = vadd.f32 0.0, %v1291
      %v1293 = vpop.f32.mrf.mxu0
      %1294 = vmatprep.mubr.bf16.mxu0 0
      %1295 = vmatmul.mubr.bf16.gmra.mxu0 %v687
      %v1296 = vpop.f32.mrf.mxu0
      %v1297 = vadd.f32 0.0, %v1296
      %v1298 = vpop.f32.mrf.mxu0
      %v1299 = vpop.f32.mrf.mxu0
      %v1300 = vadd.f32 0.0, %v1299
      %v1301 = vpop.f32.mrf.mxu0
      %1302 = vmatprep.mubr.bf16.mxu0 0
      %1303 = vmatmul.mubr.bf16.gmra.mxu0 %v688
      %v1304 = vpop.f32.mrf.mxu0
      %v1305 = vadd.f32 0.0, %v1304
      %v1306 = vpop.f32.mrf.mxu0
      %v1307 = vpop.f32.mrf.mxu0
      %v1308 = vadd.f32 0.0, %v1307
      %v1309 = vpop.f32.mrf.mxu0
      %1310 = vmatprep.mubr.bf16.mxu0 0
      %1311 = vmatmul.mubr.bf16.gmra.mxu0 %v689
      %v1312 = vpop.f32.mrf.mxu0
      %v1313 = vadd.f32 0.0, %v1312
      %v1314 = vpop.f32.mrf.mxu0
      %v1315 = vpop.f32.mrf.mxu0
      %v1316 = vadd.f32 0.0, %v1315
      %v1317 = vpop.f32.mrf.mxu0
      %1318 = vmatprep.mubr.bf16.mxu0 0
      %1319 = vmatmul.mubr.bf16.gmra.mxu0 %v690
      %v1320 = vpop.f32.mrf.mxu0
      %v1321 = vadd.f32 0.0, %v1320
      %v1322 = vpop.f32.mrf.mxu0
      %v1323 = vpop.f32.mrf.mxu0
      %v1324 = vadd.f32 0.0, %v1323
      %v1325 = vpop.f32.mrf.mxu0
      %1326 = vmatprep.mubr.bf16.mxu0 0
      %1327 = vmatmul.mubr.bf16.gmra.mxu0 %v691
      %v1328 = vpop.f32.mrf.mxu0
      %v1329 = vadd.f32 0.0, %v1328
      %v1330 = vpop.f32.mrf.mxu0
      %v1331 = vpop.f32.mrf.mxu0
      %v1332 = vadd.f32 0.0, %v1331
      %v1333 = vpop.f32.mrf.mxu0
      %1334 = vmatprep.mubr.bf16.mxu0 0
      %1335 = vmatmul.mubr.bf16.gmra.mxu0 %v692
      %v1336 = vpop.f32.mrf.mxu0
      %v1337 = vadd.f32 0.0, %v1336
      %v1338 = vpop.f32.mrf.mxu0
      %v1339 = vpop.f32.mrf.mxu0
      %v1340 = vadd.f32 0.0, %v1339
      %v1341 = vpop.f32.mrf.mxu0
      %1342 = vmatprep.mubr.bf16.mxu0 0
      %1343 = vmatmul.mubr.bf16.gmra.mxu0 %v693
      %v1344 = vpop.f32.mrf.mxu0
      %v1345 = vadd.f32 0.0, %v1344
      %v1346 = vpop.f32.mrf.mxu0
      %v1347 = vpop.f32.mrf.mxu0
      %v1348 = vadd.f32 0.0, %v1347
      %v1349 = vpop.f32.mrf.mxu0
      %1350 = vdwg.mxu0
      %v1351 = vtanh.pop %v841
      %v1352 = vtanh.pop %v844
      %v1353 = vtanh.pop %v849
      %v1354 = vtanh.pop %v852
      %v1355 = vtanh.pop %v857
      %v1356 = vtanh.pop %v860
      %v1357 = vtanh.pop %v865
      %v1358 = vtanh.pop %v868
      %v1359 = vtanh.pop %v873
      %v1360 = vtanh.pop %v876
      %v1361 = vtanh.pop %v881
      %v1362 = vtanh.pop %v884
      %v1363 = vtanh.pop %v889
      %v1364 = vtanh.pop %v892
      %v1365 = vtanh.pop %v897
      %v1366 = vtanh.pop %v900
      %v1367 = vtanh.pop %v905
      %v1368 = vtanh.pop %v908
      %v1369 = vtanh.pop %v913
      %v1370 = vtanh.pop %v916
      %v1371 = vtanh.pop %v921
      %v1372 = vtanh.pop %v924
      %v1373 = vtanh.pop %v929
      %v1374 = vtanh.pop %v932
      %v1375 = vtanh.pop %v937
      %v1376 = vtanh.pop %v940
      %v1377 = vtanh.pop %v945
      %v1378 = vtanh.pop %v948
      %v1379 = vtanh.pop %v953
      %v1380 = vtanh.pop %v956
      %v1381 = vtanh.pop %v961
      %v1382 = vtanh.pop %v964
      %v1383 = vtanh.pop %v969
      %v1384 = vtanh.pop %v972
      %v1385 = vtanh.pop %v977
      %v1386 = vtanh.pop %v980
      %v1387 = vtanh.pop %v985
      %v1388 = vtanh.pop %v988
      %v1389 = vtanh.pop %v993
      %v1390 = vtanh.pop %v996
      %v1391 = vtanh.pop %v1001
      %v1392 = vtanh.pop %v1004
      %v1393 = vtanh.pop %v1009
      %v1394 = vtanh.pop %v1012
      %v1395 = vtanh.pop %v1017
      %v1396 = vtanh.pop %v1020
      %v1397 = vtanh.pop %v1025
      %v1398 = vtanh.pop %v1028
      %v1399 = vtanh.pop %v1033
      %v1400 = vtanh.pop %v1036
      %v1401 = vtanh.pop %v1041
      %v1402 = vtanh.pop %v1044
      %v1403 = vtanh.pop %v1049
      %v1404 = vtanh.pop %v1052
      %v1405 = vtanh.pop %v1057
      %v1406 = vtanh.pop %v1060
      %v1407 = vtanh.pop %v1065
      %v1408 = vtanh.pop %v1068
      %v1409 = vtanh.pop %v1073
      %v1410 = vtanh.pop %v1076
      %v1411 = vtanh.pop %v1081
      %v1412 = vtanh.pop %v1084
      %v1413 = vtanh.pop %v1089
      %v1414 = vtanh.pop %v1092
      %v1415 = vtanh.pop %v1097
      %v1416 = vtanh.pop %v1100
      %v1417 = vtanh.pop %v1105
      %v1418 = vtanh.pop %v1108
      %v1419 = vtanh.pop %v1113
      %v1420 = vtanh.pop %v1116
      %v1421 = vtanh.pop %v1121
      %v1422 = vtanh.pop %v1124
      %v1423 = vtanh.pop %v1129
      %v1424 = vtanh.pop %v1132
      %v1425 = vtanh.pop %v1137
      %v1426 = vtanh.pop %v1140
      %v1427 = vtanh.pop %v1145
      %v1428 = vtanh.pop %v1148
      %v1429 = vtanh.pop %v1153
      %v1430 = vtanh.pop %v1156
      %v1431 = vtanh.pop %v1161
      %v1432 = vtanh.pop %v1164
      %v1433 = vtanh.pop %v1169
      %v1434 = vtanh.pop %v1172
      %v1435 = vtanh.pop %v1177
      %v1436 = vtanh.pop %v1180
      %v1437 = vtanh.pop %v1185
      %v1438 = vtanh.pop %v1188
      %v1439 = vtanh.pop %v1193
      %v1440 = vtanh.pop %v1196
      %v1441 = vtanh.pop %v1201
      %v1442 = vtanh.pop %v1204
      %v1443 = vtanh.pop %v1209
      %v1444 = vtanh.pop %v1212
      %v1445 = vtanh.pop %v1217
      %v1446 = vtanh.pop %v1220
      %v1447 = vtanh.pop %v1225
      %v1448 = vtanh.pop %v1228
      %v1449 = vtanh.pop %v1233
      %v1450 = vtanh.pop %v1236
      %v1451 = vtanh.pop %v1241
      %v1452 = vtanh.pop %v1244
      %v1453 = vtanh.pop %v1249
      %v1454 = vtanh.pop %v1252
      %v1455 = vtanh.pop %v1257
      %v1456 = vtanh.pop %v1260
      %v1457 = vtanh.pop %v1265
      %v1458 = vtanh.pop %v1268
      %v1459 = vtanh.pop %v1273
      %v1460 = vtanh.pop %v1276
      %v1461 = vtanh.pop %v1281
      %v1462 = vtanh.pop %v1284
      %v1463 = vtanh.pop %v1289
      %v1464 = vtanh.pop %v1292
      %v1465 = vtanh.pop %v1297
      %v1466 = vtanh.pop %v1300
      %v1467 = vtanh.pop %v1305
      %v1468 = vtanh.pop %v1308
      %v1469 = vtanh.pop %v1313
      %v1470 = vtanh.pop %v1316
      %v1471 = vtanh.pop %v1321
      %v1472 = vtanh.pop %v1324
      %v1473 = vtanh.pop %v1329
      %v1474 = vtanh.pop %v1332
      %v1475 = vtanh.pop %v1337
      %v1476 = vtanh.pop %v1340
      %v1477 = vtanh.pop %v1345
      %v1478 = vtanh.pop %v1348
      %v1479 = vpack.c.bf16 %v1352, %v1351
      %v1480 = vpack.c.bf16 %v1354, %v1353
      %v1481 = vpack.c.bf16 %v1356, %v1355
      %v1482 = vpack.c.bf16 %v1358, %v1357
      %v1483 = vpack.c.bf16 %v1360, %v1359
      %v1484 = vpack.c.bf16 %v1362, %v1361
      %v1485 = vpack.c.bf16 %v1364, %v1363
      %v1486 = vpack.c.bf16 %v1366, %v1365
      %v1487 = vpack.c.bf16 %v1368, %v1367
      %v1488 = vpack.c.bf16 %v1370, %v1369
      %v1489 = vpack.c.bf16 %v1372, %v1371
      %v1490 = vpack.c.bf16 %v1374, %v1373
      %v1491 = vpack.c.bf16 %v1376, %v1375
      %v1492 = vpack.c.bf16 %v1378, %v1377
      %v1493 = vpack.c.bf16 %v1380, %v1379
      %v1494 = vpack.c.bf16 %v1382, %v1381
      %v1495 = vpack.c.bf16 %v1384, %v1383
      %v1496 = vpack.c.bf16 %v1386, %v1385
      %v1497 = vpack.c.bf16 %v1388, %v1387
      %v1498 = vpack.c.bf16 %v1390, %v1389
      %v1499 = vpack.c.bf16 %v1392, %v1391
      %v1500 = vpack.c.bf16 %v1394, %v1393
      %v1501 = vpack.c.bf16 %v1396, %v1395
      %v1502 = vpack.c.bf16 %v1398, %v1397
      %v1503 = vpack.c.bf16 %v1400, %v1399
      %v1504 = vpack.c.bf16 %v1402, %v1401
      %v1505 = vpack.c.bf16 %v1404, %v1403
      %v1506 = vpack.c.bf16 %v1406, %v1405
      %v1507 = vpack.c.bf16 %v1408, %v1407
      %v1508 = vpack.c.bf16 %v1410, %v1409
      %v1509 = vpack.c.bf16 %v1412, %v1411
      %v1510 = vpack.c.bf16 %v1414, %v1413
      %v1511 = vpack.c.bf16 %v1416, %v1415
      %v1512 = vpack.c.bf16 %v1418, %v1417
      %v1513 = vpack.c.bf16 %v1420, %v1419
      %v1514 = vpack.c.bf16 %v1422, %v1421
      %v1515 = vpack.c.bf16 %v1424, %v1423
      %v1516 = vpack.c.bf16 %v1426, %v1425
      %v1517 = vpack.c.bf16 %v1428, %v1427
      %v1518 = vpack.c.bf16 %v1430, %v1429
      %v1519 = vpack.c.bf16 %v1432, %v1431
      %v1520 = vpack.c.bf16 %v1434, %v1433
      %v1521 = vpack.c.bf16 %v1436, %v1435
      %v1522 = vpack.c.bf16 %v1438, %v1437
      %v1523 = vpack.c.bf16 %v1440, %v1439
      %v1524 = vpack.c.bf16 %v1442, %v1441
      %v1525 = vpack.c.bf16 %v1444, %v1443
      %v1526 = vpack.c.bf16 %v1446, %v1445
      %v1527 = vpack.c.bf16 %v1448, %v1447
      %v1528 = vpack.c.bf16 %v1450, %v1449
      %v1529 = vpack.c.bf16 %v1452, %v1451
      %v1530 = vpack.c.bf16 %v1454, %v1453
      %v1531 = vpack.c.bf16 %v1456, %v1455
      %v1532 = vpack.c.bf16 %v1458, %v1457
      %v1533 = vpack.c.bf16 %v1460, %v1459
      %v1534 = vpack.c.bf16 %v1462, %v1461
      %v1535 = vpack.c.bf16 %v1464, %v1463
      %v1536 = vpack.c.bf16 %v1466, %v1465
      %v1537 = vpack.c.bf16 %v1468, %v1467
      %v1538 = vpack.c.bf16 %v1470, %v1469
      %v1539 = vpack.c.bf16 %v1472, %v1471
      %v1540 = vpack.c.bf16 %v1474, %v1473
      %v1541 = vpack.c.bf16 %v1476, %v1475
      %v1542 = vpack.c.bf16 %v1478, %v1477
      %v1607 = vunpack.c.l.b16 %v1479
      %v1608 = vunpack.c.h.b16 %v1479
      %v1609 = vunpack.c.l.b16 %v1480
      %v1610 = vunpack.c.h.b16 %v1480
      %v1611 = vunpack.c.l.b16 %v1481
      %v1612 = vunpack.c.h.b16 %v1481
      %v1613 = vunpack.c.l.b16 %v1482
      %v1614 = vunpack.c.h.b16 %v1482
      %v1615 = vunpack.c.l.b16 %v1483
      %v1616 = vunpack.c.h.b16 %v1483
      %v1617 = vunpack.c.l.b16 %v1484
      %v1618 = vunpack.c.h.b16 %v1484
      %v1619 = vunpack.c.l.b16 %v1485
      %v1620 = vunpack.c.h.b16 %v1485
      %v1621 = vunpack.c.l.b16 %v1486
      %v1622 = vunpack.c.h.b16 %v1486
      %v1623 = vunpack.c.l.b16 %v1487
      %v1624 = vunpack.c.h.b16 %v1487
      %v1625 = vunpack.c.l.b16 %v1488
      %v1626 = vunpack.c.h.b16 %v1488
      %v1627 = vunpack.c.l.b16 %v1489
      %v1628 = vunpack.c.h.b16 %v1489
      %v1629 = vunpack.c.l.b16 %v1490
      %v1630 = vunpack.c.h.b16 %v1490
      %v1631 = vunpack.c.l.b16 %v1491
      %v1632 = vunpack.c.h.b16 %v1491
      %v1633 = vunpack.c.l.b16 %v1492
      %v1634 = vunpack.c.h.b16 %v1492
      %v1635 = vunpack.c.l.b16 %v1493
      %v1636 = vunpack.c.h.b16 %v1493
      %v1637 = vunpack.c.l.b16 %v1494
      %v1638 = vunpack.c.h.b16 %v1494
      %v1639 = vunpack.c.l.b16 %v1495
      %v1640 = vunpack.c.h.b16 %v1495
      %v1641 = vunpack.c.l.b16 %v1496
      %v1642 = vunpack.c.h.b16 %v1496
      %v1643 = vunpack.c.l.b16 %v1497
      %v1644 = vunpack.c.h.b16 %v1497
      %v1645 = vunpack.c.l.b16 %v1498
      %v1646 = vunpack.c.h.b16 %v1498
      %v1647 = vunpack.c.l.b16 %v1499
      %v1648 = vunpack.c.h.b16 %v1499
      %v1649 = vunpack.c.l.b16 %v1500
      %v1650 = vunpack.c.h.b16 %v1500
      %v1651 = vunpack.c.l.b16 %v1501
      %v1652 = vunpack.c.h.b16 %v1501
      %v1653 = vunpack.c.l.b16 %v1502
      %v1654 = vunpack.c.h.b16 %v1502
      %v1655 = vunpack.c.l.b16 %v1503
      %v1656 = vunpack.c.h.b16 %v1503
      %v1657 = vunpack.c.l.b16 %v1504
      %v1658 = vunpack.c.h.b16 %v1504
      %v1659 = vunpack.c.l.b16 %v1505
      %v1660 = vunpack.c.h.b16 %v1505
      %v1661 = vunpack.c.l.b16 %v1506
      %v1662 = vunpack.c.h.b16 %v1506
      %v1663 = vunpack.c.l.b16 %v1507
      %v1664 = vunpack.c.h.b16 %v1507
      %v1665 = vunpack.c.l.b16 %v1508
      %v1666 = vunpack.c.h.b16 %v1508
      %v1667 = vunpack.c.l.b16 %v1509
      %v1668 = vunpack.c.h.b16 %v1509
      %v1669 = vunpack.c.l.b16 %v1510
      %v1670 = vunpack.c.h.b16 %v1510
      %v1671 = vunpack.c.l.b16 %v1511
      %v1672 = vunpack.c.h.b16 %v1511
      %v1673 = vunpack.c.l.b16 %v1512
      %v1674 = vunpack.c.h.b16 %v1512
      %v1675 = vunpack.c.l.b16 %v1513
      %v1676 = vunpack.c.h.b16 %v1513
      %v1677 = vunpack.c.l.b16 %v1514
      %v1678 = vunpack.c.h.b16 %v1514
      %v1679 = vunpack.c.l.b16 %v1515
      %v1680 = vunpack.c.h.b16 %v1515
      %v1681 = vunpack.c.l.b16 %v1516
      %v1682 = vunpack.c.h.b16 %v1516
      %v1683 = vunpack.c.l.b16 %v1517
      %v1684 = vunpack.c.h.b16 %v1517
      %v1685 = vunpack.c.l.b16 %v1518
      %v1686 = vunpack.c.h.b16 %v1518
      %v1687 = vunpack.c.l.b16 %v1519
      %v1688 = vunpack.c.h.b16 %v1519
      %v1689 = vunpack.c.l.b16 %v1520
      %v1690 = vunpack.c.h.b16 %v1520
      %v1691 = vunpack.c.l.b16 %v1521
      %v1692 = vunpack.c.h.b16 %v1521
      %v1693 = vunpack.c.l.b16 %v1522
      %v1694 = vunpack.c.h.b16 %v1522
      %v1695 = vunpack.c.l.b16 %v1523
      %v1696 = vunpack.c.h.b16 %v1523
      %v1697 = vunpack.c.l.b16 %v1524
      %v1698 = vunpack.c.h.b16 %v1524
      %v1699 = vunpack.c.l.b16 %v1525
      %v1700 = vunpack.c.h.b16 %v1525
      %v1701 = vunpack.c.l.b16 %v1526
      %v1702 = vunpack.c.h.b16 %v1526
      %v1703 = vunpack.c.l.b16 %v1527
      %v1704 = vunpack.c.h.b16 %v1527
      %v1705 = vunpack.c.l.b16 %v1528
      %v1706 = vunpack.c.h.b16 %v1528
      %v1707 = vunpack.c.l.b16 %v1529
      %v1708 = vunpack.c.h.b16 %v1529
      %v1709 = vunpack.c.l.b16 %v1530
      %v1710 = vunpack.c.h.b16 %v1530
      %v1711 = vunpack.c.l.b16 %v1531
      %v1712 = vunpack.c.h.b16 %v1531
      %v1713 = vunpack.c.l.b16 %v1532
      %v1714 = vunpack.c.h.b16 %v1532
      %v1715 = vunpack.c.l.b16 %v1533
      %v1716 = vunpack.c.h.b16 %v1533
      %v1717 = vunpack.c.l.b16 %v1534
      %v1718 = vunpack.c.h.b16 %v1534
      %v1719 = vunpack.c.l.b16 %v1535
      %v1720 = vunpack.c.h.b16 %v1535
      %v1721 = vunpack.c.l.b16 %v1536
      %v1722 = vunpack.c.h.b16 %v1536
      %v1723 = vunpack.c.l.b16 %v1537
      %v1724 = vunpack.c.h.b16 %v1537
      %v1725 = vunpack.c.l.b16 %v1538
      %v1726 = vunpack.c.h.b16 %v1538
      %v1727 = vunpack.c.l.b16 %v1539
      %v1728 = vunpack.c.h.b16 %v1539
      %v1729 = vunpack.c.l.b16 %v1540
      %v1730 = vunpack.c.h.b16 %v1540
      %v1731 = vunpack.c.l.b16 %v1541
      %v1732 = vunpack.c.h.b16 %v1541
      %v1733 = vunpack.c.l.b16 %v1542
      %v1734 = vunpack.c.h.b16 %v1542
      %v1735 = vpack.c.b16 %v1607, %v1607
      %v1736 = vpack.c.b16 %v1608, %v1608
      %v1737 = vpack.c.b16 %v1609, %v1609
      %v1738 = vpack.c.b16 %v1610, %v1610
      %v1739 = vpack.c.b16 %v1611, %v1611
      %v1740 = vpack.c.b16 %v1612, %v1612
      %v1741 = vpack.c.b16 %v1613, %v1613
      %v1742 = vpack.c.b16 %v1614, %v1614
      %v1743 = vpack.c.b16 %v1615, %v1615
      %v1744 = vpack.c.b16 %v1616, %v1616
      %v1745 = vpack.c.b16 %v1617, %v1617
      %v1746 = vpack.c.b16 %v1618, %v1618
      %v1747 = vpack.c.b16 %v1619, %v1619
      %v1748 = vpack.c.b16 %v1620, %v1620
      %v1749 = vpack.c.b16 %v1621, %v1621
      %v1750 = vpack.c.b16 %v1622, %v1622
      %v1751 = vpack.c.b16 %v1623, %v1623
      %v1752 = vpack.c.b16 %v1624, %v1624
      %v1753 = vpack.c.b16 %v1625, %v1625
      %v1754 = vpack.c.b16 %v1626, %v1626
      %v1755 = vpack.c.b16 %v1627, %v1627
      %v1756 = vpack.c.b16 %v1628, %v1628
      %v1757 = vpack.c.b16 %v1629, %v1629
      %v1758 = vpack.c.b16 %v1630, %v1630
      %v1759 = vpack.c.b16 %v1631, %v1631
      %v1760 = vpack.c.b16 %v1632, %v1632
      %v1761 = vpack.c.b16 %v1633, %v1633
      %v1762 = vpack.c.b16 %v1634, %v1634
      %v1763 = vpack.c.b16 %v1635, %v1635
      %v1764 = vpack.c.b16 %v1636, %v1636
      %v1765 = vpack.c.b16 %v1637, %v1637
      %v1766 = vpack.c.b16 %v1638, %v1638
      %v1767 = vpack.c.b16 %v1639, %v1639
      %v1768 = vpack.c.b16 %v1640, %v1640
      %v1769 = vpack.c.b16 %v1641, %v1641
      %v1770 = vpack.c.b16 %v1642, %v1642
      %v1771 = vpack.c.b16 %v1643, %v1643
      %v1772 = vpack.c.b16 %v1644, %v1644
      %v1773 = vpack.c.b16 %v1645, %v1645
      %v1774 = vpack.c.b16 %v1646, %v1646
      %v1775 = vpack.c.b16 %v1647, %v1647
      %v1776 = vpack.c.b16 %v1648, %v1648
      %v1777 = vpack.c.b16 %v1649, %v1649
      %v1778 = vpack.c.b16 %v1650, %v1650
      %v1779 = vpack.c.b16 %v1651, %v1651
      %v1780 = vpack.c.b16 %v1652, %v1652
      %v1781 = vpack.c.b16 %v1653, %v1653
      %v1782 = vpack.c.b16 %v1654, %v1654
      %v1783 = vpack.c.b16 %v1655, %v1655
      %v1784 = vpack.c.b16 %v1656, %v1656
      %v1785 = vpack.c.b16 %v1657, %v1657
      %v1786 = vpack.c.b16 %v1658, %v1658
      %v1787 = vpack.c.b16 %v1659, %v1659
      %v1788 = vpack.c.b16 %v1660, %v1660
      %v1789 = vpack.c.b16 %v1661, %v1661
      %v1790 = vpack.c.b16 %v1662, %v1662
      %v1791 = vpack.c.b16 %v1663, %v1663
      %v1792 = vpack.c.b16 %v1664, %v1664
      %v1793 = vpack.c.b16 %v1665, %v1665
      %v1794 = vpack.c.b16 %v1666, %v1666
      %v1795 = vpack.c.b16 %v1667, %v1667
      %v1796 = vpack.c.b16 %v1668, %v1668
      %v1797 = vpack.c.b16 %v1669, %v1669
      %v1798 = vpack.c.b16 %v1670, %v1670
      %v1799 = vpack.c.b16 %v1671, %v1671
      %v1800 = vpack.c.b16 %v1672, %v1672
      %v1801 = vpack.c.b16 %v1673, %v1673
      %v1802 = vpack.c.b16 %v1674, %v1674
      %v1803 = vpack.c.b16 %v1675, %v1675
      %v1804 = vpack.c.b16 %v1676, %v1676
      %v1805 = vpack.c.b16 %v1677, %v1677
      %v1806 = vpack.c.b16 %v1678, %v1678
      %v1807 = vpack.c.b16 %v1679, %v1679
      %v1808 = vpack.c.b16 %v1680, %v1680
      %v1809 = vpack.c.b16 %v1681, %v1681
      %v1810 = vpack.c.b16 %v1682, %v1682
      %v1811 = vpack.c.b16 %v1683, %v1683
      %v1812 = vpack.c.b16 %v1684, %v1684
      %v1813 = vpack.c.b16 %v1685, %v1685
      %v1814 = vpack.c.b16 %v1686, %v1686
      %v1815 = vpack.c.b16 %v1687, %v1687
      %v1816 = vpack.c.b16 %v1688, %v1688
      %v1817 = vpack.c.b16 %v1689, %v1689
      %v1818 = vpack.c.b16 %v1690, %v1690
      %v1819 = vpack.c.b16 %v1691, %v1691
      %v1820 = vpack.c.b16 %v1692, %v1692
      %v1821 = vpack.c.b16 %v1693, %v1693
      %v1822 = vpack.c.b16 %v1694, %v1694
      %v1823 = vpack.c.b16 %v1695, %v1695
      %v1824 = vpack.c.b16 %v1696, %v1696
      %v1825 = vpack.c.b16 %v1697, %v1697
      %v1826 = vpack.c.b16 %v1698, %v1698
      %v1827 = vpack.c.b16 %v1699, %v1699
      %v1828 = vpack.c.b16 %v1700, %v1700
      %v1829 = vpack.c.b16 %v1701, %v1701
      %v1830 = vpack.c.b16 %v1702, %v1702
      %v1831 = vpack.c.b16 %v1703, %v1703
      %v1832 = vpack.c.b16 %v1704, %v1704
      %v1833 = vpack.c.b16 %v1705, %v1705
      %v1834 = vpack.c.b16 %v1706, %v1706
      %v1835 = vpack.c.b16 %v1707, %v1707
      %v1836 = vpack.c.b16 %v1708, %v1708
      %v1837 = vpack.c.b16 %v1709, %v1709
      %v1838 = vpack.c.b16 %v1710, %v1710
      %v1839 = vpack.c.b16 %v1711, %v1711
      %v1840 = vpack.c.b16 %v1712, %v1712
      %v1841 = vpack.c.b16 %v1713, %v1713
      %v1842 = vpack.c.b16 %v1714, %v1714
      %v1843 = vpack.c.b16 %v1715, %v1715
      %v1844 = vpack.c.b16 %v1716, %v1716
      %v1845 = vpack.c.b16 %v1717, %v1717
      %v1846 = vpack.c.b16 %v1718, %v1718
      %v1847 = vpack.c.b16 %v1719, %v1719
      %v1848 = vpack.c.b16 %v1720, %v1720
      %v1849 = vpack.c.b16 %v1721, %v1721
      %v1850 = vpack.c.b16 %v1722, %v1722
      %v1851 = vpack.c.b16 %v1723, %v1723
      %v1852 = vpack.c.b16 %v1724, %v1724
      %v1853 = vpack.c.b16 %v1725, %v1725
      %v1854 = vpack.c.b16 %v1726, %v1726
      %v1855 = vpack.c.b16 %v1727, %v1727
      %v1856 = vpack.c.b16 %v1728, %v1728
      %v1857 = vpack.c.b16 %v1729, %v1729
      %v1858 = vpack.c.b16 %v1730, %v1730
      %v1859 = vpack.c.b16 %v1731, %v1731
      %v1860 = vpack.c.b16 %v1732, %v1732
      %v1861 = vpack.c.b16 %v1733, %v1733
      %v1862 = vpack.c.b16 %v1734, %v1734
      %1991 = vst [vmem:[%s227] sm:$0xf] %v1735
      %1992 = vst [vmem:[%s227 + $0x4] sm:$0xf] %v1736
      %1993 = vst [vmem:[%s227 + $0x8] sm:$0xf] %v1737
      %1994 = vst [vmem:[%s227 + $0xc] sm:$0xf] %v1738
      %1995 = vst [vmem:[%s227 + $0x10] sm:$0xf] %v1739
      %1996 = vst [vmem:[%s227 + $0x14] sm:$0xf] %v1740
      %1997 = vst [vmem:[%s227 + $0x18] sm:$0xf] %v1741
      %1998 = vst [vmem:[%s227 + $0x1c] sm:$0xf] %v1742
      %1999 = vst [vmem:[%s227 + $0x20] sm:$0xf] %v1743
      %2000 = vst [vmem:[%s227 + $0x24] sm:$0xf] %v1744
      %2001 = vst [vmem:[%s227 + $0x28] sm:$0xf] %v1745
      %2002 = vst [vmem:[%s227 + $0x2c] sm:$0xf] %v1746
      %2003 = vst [vmem:[%s227 + $0x30] sm:$0xf] %v1747
      %2004 = vst [vmem:[%s227 + $0x34] sm:$0xf] %v1748
      %2005 = vst [vmem:[%s227 + $0x38] sm:$0xf] %v1749
      %2006 = vst [vmem:[%s227 + $0x3c] sm:$0xf] %v1750
      %2007 = vst [vmem:[%s227 + $0x40] sm:$0xf] %v1751
      %2008 = vst [vmem:[%s227 + $0x44] sm:$0xf] %v1752
      %2009 = vst [vmem:[%s227 + $0x48] sm:$0xf] %v1753
      %2010 = vst [vmem:[%s227 + $0x4c] sm:$0xf] %v1754
      %2011 = vst [vmem:[%s227 + $0x50] sm:$0xf] %v1755
      %2012 = vst [vmem:[%s227 + $0x54] sm:$0xf] %v1756
      %2013 = vst [vmem:[%s227 + $0x58] sm:$0xf] %v1757
      %2014 = vst [vmem:[%s227 + $0x5c] sm:$0xf] %v1758
      %2015 = vst [vmem:[%s227 + $0x60] sm:$0xf] %v1759
      %2016 = vst [vmem:[%s227 + $0x64] sm:$0xf] %v1760
      %2017 = vst [vmem:[%s227 + $0x68] sm:$0xf] %v1761
      %2018 = vst [vmem:[%s227 + $0x6c] sm:$0xf] %v1762
      %2019 = vst [vmem:[%s227 + $0x70] sm:$0xf] %v1763
      %2020 = vst [vmem:[%s227 + $0x74] sm:$0xf] %v1764
      %2021 = vst [vmem:[%s227 + $0x78] sm:$0xf] %v1765
      %2022 = vst [vmem:[%s227 + $0x7c] sm:$0xf] %v1766
      %2023 = vst [vmem:[%s227 + $0x80] sm:$0xf] %v1767
      %2024 = vst [vmem:[%s227 + $0x84] sm:$0xf] %v1768
      %2025 = vst [vmem:[%s227 + $0x88] sm:$0xf] %v1769
      %2026 = vst [vmem:[%s227 + $0x8c] sm:$0xf] %v1770
      %2027 = vst [vmem:[%s227 + $0x90] sm:$0xf] %v1771
      %2028 = vst [vmem:[%s227 + $0x94] sm:$0xf] %v1772
      %2029 = vst [vmem:[%s227 + $0x98] sm:$0xf] %v1773
      %2030 = vst [vmem:[%s227 + $0x9c] sm:$0xf] %v1774
      %2031 = vst [vmem:[%s227 + $0xa0] sm:$0xf] %v1775
      %2032 = vst [vmem:[%s227 + $0xa4] sm:$0xf] %v1776
      %2033 = vst [vmem:[%s227 + $0xa8] sm:$0xf] %v1777
      %2034 = vst [vmem:[%s227 + $0xac] sm:$0xf] %v1778
      %2035 = vst [vmem:[%s227 + $0xb0] sm:$0xf] %v1779
      %2036 = vst [vmem:[%s227 + $0xb4] sm:$0xf] %v1780
      %2037 = vst [vmem:[%s227 + $0xb8] sm:$0xf] %v1781
      %2038 = vst [vmem:[%s227 + $0xbc] sm:$0xf] %v1782
      %2039 = vst [vmem:[%s227 + $0xc0] sm:$0xf] %v1783
      %2040 = vst [vmem:[%s227 + $0xc4] sm:$0xf] %v1784
      %2041 = vst [vmem:[%s227 + $0xc8] sm:$0xf] %v1785
      %2042 = vst [vmem:[%s227 + $0xcc] sm:$0xf] %v1786
      %2043 = vst [vmem:[%s227 + $0xd0] sm:$0xf] %v1787
      %2044 = vst [vmem:[%s227 + $0xd4] sm:$0xf] %v1788
      %2045 = vst [vmem:[%s227 + $0xd8] sm:$0xf] %v1789
      %2046 = vst [vmem:[%s227 + $0xdc] sm:$0xf] %v1790
      %2047 = vst [vmem:[%s227 + $0xe0] sm:$0xf] %v1791
      %2048 = vst [vmem:[%s227 + $0xe4] sm:$0xf] %v1792
      %2049 = vst [vmem:[%s227 + $0xe8] sm:$0xf] %v1793
      %2050 = vst [vmem:[%s227 + $0xec] sm:$0xf] %v1794
      %2051 = vst [vmem:[%s227 + $0xf0] sm:$0xf] %v1795
      %2052 = vst [vmem:[%s227 + $0xf4] sm:$0xf] %v1796
      %2053 = vst [vmem:[%s227 + $0xf8] sm:$0xf] %v1797
      %2054 = vst [vmem:[%s227 + $0xfc] sm:$0xf] %v1798
      %2055 = vst [vmem:[%s227 + $0x100] sm:$0xf] %v1799
      %2056 = vst [vmem:[%s227 + $0x104] sm:$0xf] %v1800
      %2057 = vst [vmem:[%s227 + $0x108] sm:$0xf] %v1801
      %2058 = vst [vmem:[%s227 + $0x10c] sm:$0xf] %v1802
      %2059 = vst [vmem:[%s227 + $0x110] sm:$0xf] %v1803
      %2060 = vst [vmem:[%s227 + $0x114] sm:$0xf] %v1804
      %2061 = vst [vmem:[%s227 + $0x118] sm:$0xf] %v1805
      %2062 = vst [vmem:[%s227 + $0x11c] sm:$0xf] %v1806
      %2063 = vst [vmem:[%s227 + $0x120] sm:$0xf] %v1807
      %2064 = vst [vmem:[%s227 + $0x124] sm:$0xf] %v1808
      %2065 = vst [vmem:[%s227 + $0x128] sm:$0xf] %v1809
      %2066 = vst [vmem:[%s227 + $0x12c] sm:$0xf] %v1810
      %2067 = vst [vmem:[%s227 + $0x130] sm:$0xf] %v1811
      %2068 = vst [vmem:[%s227 + $0x134] sm:$0xf] %v1812
      %2069 = vst [vmem:[%s227 + $0x138] sm:$0xf] %v1813
      %2070 = vst [vmem:[%s227 + $0x13c] sm:$0xf] %v1814
      %2071 = vst [vmem:[%s227 + $0x140] sm:$0xf] %v1815
      %2072 = vst [vmem:[%s227 + $0x144] sm:$0xf] %v1816
      %2073 = vst [vmem:[%s227 + $0x148] sm:$0xf] %v1817
      %2074 = vst [vmem:[%s227 + $0x14c] sm:$0xf] %v1818
      %2075 = vst [vmem:[%s227 + $0x150] sm:$0xf] %v1819
      %2076 = vst [vmem:[%s227 + $0x154] sm:$0xf] %v1820
      %2077 = vst [vmem:[%s227 + $0x158] sm:$0xf] %v1821
      %2078 = vst [vmem:[%s227 + $0x15c] sm:$0xf] %v1822
      %2079 = vst [vmem:[%s227 + $0x160] sm:$0xf] %v1823
      %2080 = vst [vmem:[%s227 + $0x164] sm:$0xf] %v1824
      %2081 = vst [vmem:[%s227 + $0x168] sm:$0xf] %v1825
      %2082 = vst [vmem:[%s227 + $0x16c] sm:$0xf] %v1826
      %2083 = vst [vmem:[%s227 + $0x170] sm:$0xf] %v1827
      %2084 = vst [vmem:[%s227 + $0x174] sm:$0xf] %v1828
      %2085 = vst [vmem:[%s227 + $0x178] sm:$0xf] %v1829
      %2086 = vst [vmem:[%s227 + $0x17c] sm:$0xf] %v1830
      %2087 = vst [vmem:[%s227 + $0x180] sm:$0xf] %v1831
      %2088 = vst [vmem:[%s227 + $0x184] sm:$0xf] %v1832
      %2089 = vst [vmem:[%s227 + $0x188] sm:$0xf] %v1833
      %2090 = vst [vmem:[%s227 + $0x18c] sm:$0xf] %v1834
      %2091 = vst [vmem:[%s227 + $0x190] sm:$0xf] %v1835
      %2092 = vst [vmem:[%s227 + $0x194] sm:$0xf] %v1836
      %2093 = vst [vmem:[%s227 + $0x198] sm:$0xf] %v1837
      %2094 = vst [vmem:[%s227 + $0x19c] sm:$0xf] %v1838
      %2095 = vst [vmem:[%s227 + $0x1a0] sm:$0xf] %v1839
      %2096 = vst [vmem:[%s227 + $0x1a4] sm:$0xf] %v1840
      %2097 = vst [vmem:[%s227 + $0x1a8] sm:$0xf] %v1841
      %2098 = vst [vmem:[%s227 + $0x1ac] sm:$0xf] %v1842
      %2099 = vst [vmem:[%s227 + $0x1b0] sm:$0xf] %v1843
      %2100 = vst [vmem:[%s227 + $0x1b4] sm:$0xf] %v1844
      %2101 = vst [vmem:[%s227 + $0x1b8] sm:$0xf] %v1845
      %2102 = vst [vmem:[%s227 + $0x1bc] sm:$0xf] %v1846
      %2103 = vst [vmem:[%s227 + $0x1c0] sm:$0xf] %v1847
      %2104 = vst [vmem:[%s227 + $0x1c4] sm:$0xf] %v1848
      %2105 = vst [vmem:[%s227 + $0x1c8] sm:$0xf] %v1849
      %2106 = vst [vmem:[%s227 + $0x1cc] sm:$0xf] %v1850
      %2107 = vst [vmem:[%s227 + $0x1d0] sm:$0xf] %v1851
      %2108 = vst [vmem:[%s227 + $0x1d4] sm:$0xf] %v1852
      %2109 = vst [vmem:[%s227 + $0x1d8] sm:$0xf] %v1853
      %2110 = vst [vmem:[%s227 + $0x1dc] sm:$0xf] %v1854
      %2111 = vst [vmem:[%s227 + $0x1e0] sm:$0xf] %v1855
      %2112 = vst [vmem:[%s227 + $0x1e4] sm:$0xf] %v1856
      %2113 = vst [vmem:[%s227 + $0x1e8] sm:$0xf] %v1857
      %2114 = vst [vmem:[%s227 + $0x1ec] sm:$0xf] %v1858
      %2115 = vst [vmem:[%s227 + $0x1f0] sm:$0xf] %v1859
      %2116 = vst [vmem:[%s227 + $0x1f4] sm:$0xf] %v1860
      %2117 = vst [vmem:[%s227 + $0x1f8] sm:$0xf] %v1861
      %2118 = vst [vmem:[%s227 + $0x1fc] sm:$0xf] %v1862
      %s2119 = smul.u32 128, %s20
      %p2120 = scmp.lt.s32.totalorder %s19, 3
      %s2121 = scalar_select %p2120, %s19, 3
      %p2122 = scmp.lt.s32.totalorder %s2119, 255
      %s2123 = scalar_select %p2122, %s2119, 255
      %p2124 = scmp.lt.s32.totalorder %s18, 0
      %s2125 = scalar_select %p2124, %s18, 0
      %s2126 = sadd.s32 %s2125, %s2123
      %s2127 = smul.addr %s2121, 256
      %s2128 = sadd.s32 %s2126, %s2127
      %s2129 = smul.addr %s2128, 4
      %s2130 = scalar_lea.vmem %s2, %s2129
      // Predicated region
      $region29: #{generator_forward.17} parent=27 // pred_check
        %p2131 = pneg %p110
      $region30: #{generator_forward.17} parent=27 // pred_check_branch
        %2133 = sbr.rel (%p2131) target = $region32
      $region31: #{generator_forward.17} parent=27 // pred_region
        %s2134 = smul.u32 128, %s20
      $region32: #{generator_forward.17} parent=27 // pred_fallthru
        _
    $region28: #{generator_forward.17} parent=5 // pred_fallthru
      _
    %p2135 = scmp.le.s32.totalorder 2, %s8
    // Predicated region
    $region33: #{generator_forward.17} parent=5 // pred_check
      %p2136 = pneg %p2135
    $region34: #{generator_forward.17} parent=5 // pred_check_branch
      %2138 = sbr.rel (%p2136) target = $region36
    $region35: #{generator_forward.17} parent=5 // pred_region
      %s2139 = ssub.s32 %s8, 2
      // Predicated region
      $region37: #{generator_forward.17} parent=35 // pred_check
        %p2140 = pneg %p116
      $region38: #{generator_forward.17} parent=35 // pred_check_branch
        %2142 = sbr.rel (%p2140) target = $region40
      $region39: #{generator_forward.17} parent=35 // pred_region
        %s2143 = smul.u32 128, %s23
        %p2144 = scmp.lt.s32.totalorder %s22, 3
        %s2145 = scalar_select %p2144, %s22, 3
        %p2146 = scmp.lt.s32.totalorder %s2143, 255
        %s2147 = scalar_select %p2146, %s2143, 255
        %p2148 = scmp.lt.s32.totalorder %s21, 0
        %s2149 = scalar_select %p2148, %s21, 0
        %s2150 = sadd.s32 %s2149, %s2147
        %s2151 = smul.addr %s2145, 256
        %s2152 = sadd.s32 %s2150, %s2151
        %s2153 = smul.addr %s2152, 4
        %s2154 = scalar_lea.vmem %s2, %s2153
      $region40: #{generator_forward.17} parent=35 // pred_fallthru
        _
    $region36: #{generator_forward.17} parent=5 // pred_fallthru
      _
  $region6: #{generator_forward.17} parent=0 // loop_footer
    %s12 = sadd.s32 1, %s8
  $region7: #{generator_forward.17} parent=0 // loop_footer_branch
    %7 = sbr.rel target = $region3
  $region8: #{generator_forward.17} parent=0 // loop_exit
    _

</llo_original>
